<compile_context>
chip_gen: v7x
topology: tpu7x:2x2x1
jax: 0.10.0
libtpu: 0.0.40
codegen_flags: <defaults>
</compile_context>

<pallas_src>
import math
from functools import partial
from itertools import combinations

import numpy as np
import jax
import jax.numpy as jnp
from jax.experimental import pallas as pl
from jax.experimental.pallas import tpu as pltpu

LANE = 128
NEG_INF = -1e30


def _pad_to(n, m):
    return ((n + m - 1) // m) * m


# -----------------------------------------------------------------------------
# Pallas kernel: one block of `bblk` graphs per grid step.
# -----------------------------------------------------------------------------
def gran_kernel(x_ref, tmat_ref, wall_ref, ball_ref, eproj_ref,
                lng_ref, lnb_ref, w12_ref, b12_ref, out_ref,
                *, mm_dtype=jnp.float32):
    P, D = x_ref.shape                        # P = bblk * Npad flattened node rows
    Bblk, Npad, _ = tmat_ref.shape
    NT, HD = eproj_ref.shape
    H = HD // D
    L = w12_ref.shape[0]
    seg = _pad_to(HD, LANE)                   # lane-padded Q|K|V slab width in wall/ball
    scale = 1.0 / math.sqrt(D)
    inv_h = 1.0 / H

    x = x_ref[...]                            # (P, D) f32 node features of this block

    # ---- hoisted, layer- and head-invariant ----------------------------------
    # int32 edge-type matrix -> additive score bias, validity, and per-(dst,src)
    # edge-type embeddings via NT compare-select MACs (no one-hot DMA, no K=NT
    # matmul).  All kept in the P-flattened (leading-dim-merge only) layout.
    tmat = tmat_ref[...].reshape(P, Npad)                         # -1 = no edge
    valid = tmat >= 0
    bias = jnp.where(valid, 0.0, NEG_INF).astype(jnp.float32)     # (P, Npad)
    validf = valid.astype(jnp.float32)                            # zeroes padded query rows

    eproj = eproj_ref[...]                                        # (NT, HD)
    epair = jnp.zeros((P, Npad, HD), jnp.float32)                 # E[type(dst, src)]
    for t in range(NT):
        sel = (tmat == t).astype(jnp.float32)[:, :, None]         # (P, Npad, 1)
        epair = epair + sel * eproj[t]                            # lane-broadcast MAC

    wall = wall_ref[...]; ball = ball_ref[...]                    # fused, lane-padded Q|K|V|skip
    lng = lng_ref[...];  lnb = lnb_ref[...]
    w12 = w12_ref[...];  b12 = b12_ref[...]                       # folded activation-free FFN

    for l in range(L):                        # conv weights shared across layers (as in the module)
        # fused Q|K|V|skip projection: one (P, D) x (D, 3*seg + pad(D)) MXU matmul;
        # every output segment starts on a 128-lane boundary.
        qkvs = jnp.dot(x.astype(mm_dtype), wall.astype(mm_dtype),
                       preferred_element_type=jnp.float32) + ball
        q = qkvs[:, 0:HD]                                         # (P, HD)
        k = qkvs[:, seg:seg + HD]
        v = qkvs[:, 2 * seg:2 * seg + HD]
        skip = qkvs[:, 3 * seg:3 * seg + D]                       # (P, D)

        outacc = jnp.zeros((P, D), jnp.float32)
        for h in range(H):
            sl = slice(h * D, (h + 1) * D)
            qhp = q[:, sl]                                        # (P, D)
            qh = qhp.reshape(Bblk, Npad, D)
            kh = k[:, sl].reshape(Bblk, Npad, D)
            vh = v[:, sl].reshape(Bblk, Npad, D)
            eph = epair[..., sl]                                  # (P, Npad, D)

            # scores: q_i . k_j (per-graph batched MXU) + q_i . E[type(i,j)] (VPU)
            s_main = jnp.einsum('bid,bjd->bij',
                                qh.astype(mm_dtype), kh.astype(mm_dtype),
                                preferred_element_type=jnp.float32)
            es = jnp.sum(qhp[:, None, :] * eph, axis=-1)          # (P, Npad)
            s = (s_main.reshape(P, Npad) + es) * scale + bias     # hoisted additive mask

            m = jnp.max(s, axis=-1, keepdims=True)
            e = jnp.exp(s - m)
            denom = jnp.sum(e, axis=-1, keepdims=True)
            alpha = e * pl.reciprocal(denom, approx=True)         # EUP divide
            alpha = alpha * validf                                # zero all-padded query rows
            alpha3 = alpha.reshape(Bblk, Npad, Npad)

            # aggregation: alpha @ v (MXU) + sum_j alpha * E[type(i,j)] (VPU)
            out_main = jnp.einsum('bij,bjd->bid',
                                  alpha3.astype(mm_dtype), vh.astype(mm_dtype),
                                  preferred_element_type=jnp.float32)
            out_edge = jnp.sum(alpha[:, :, None] * eph, axis=1)   # (P, D)
            outacc = outacc + out_main.reshape(P, D) + out_edge

        y = outacc * inv_h + skip + x         # head mean + root skip + residual (pre_out)

        # LayerNorm over last dim, eps = 1e-6
        mu = jnp.mean(y, axis=-1, keepdims=True)
        yc = y - mu
        var = jnp.mean(yc * yc, axis=-1, keepdims=True)
        yn = yc * jax.lax.rsqrt(var + 1e-6)
        yn = yn * lng[l] + lnb[l]

        # FFN (Linear->Linear, no nonlinearity) folded host-side into one (D, D) matmul
        x = jnp.dot(yn.astype(mm_dtype), w12[l].astype(mm_dtype),
                    preferred_element_type=jnp.float32) + b12[l]

    out_ref[...] = x


# -----------------------------------------------------------------------------
# Wrapper: block sizing, VMEM budgeting, cost estimate, pallas_call.
# -----------------------------------------------------------------------------
def choose_bblk(B, n_pad, target_rows=1024, min_grid=2):
    """Largest graphs-per-step block: fills the MXU M dim and amortizes the
    ~0.35us per-step overhead, while keeping grid >= min_grid so both v7x
    TensorCores get work (neutral on v5e/v6e)."""
    divisors = [d for d in range(1, B + 1) if B % d == 0]
    ok = [d for d in divisors if B // d >= min_grid] or [1]
    fit = [d for d in ok if d * n_pad <= target_rows]
    return max(fit) if fit else min(ok)


def _vmem_estimate_bytes(bblk, n_pad, D, HD, NT, L, wt):
    P = bblk * n_pad
    f32 = 4
    io = 2 * 2 * (P * D * f32) + 2 * (bblk * n_pad * n_pad * 4)   # double-buffered x/out + tmat
    weights = (D * wt + wt + NT * HD + L * (D * D + 3 * D)) * f32
    temps = (P * n_pad * HD + P * wt + 3 * P * HD
             + 6 * P * n_pad + 4 * P * D) * f32                    # epair, qkvs, scores, ...
    return io + weights + temps


def run_gran_pallas(x_flat, tmat, packed, *, bblk=None, matmul_dtype=jnp.float32,
                    vmem_cap_bytes=100 * 2**20):
    # NOTE: on v7x set vmem_cap_bytes ~= 48 MiB (64 MiB physical VMEM) and keep
    # grid >= 2; on v5e the default scoped VMEM is only 16 MiB.
    BN, D = x_flat.shape
    B, n_pad, _ = tmat.shape
    assert BN == B * n_pad
    NT, HD = packed['eproj'].shape
    L = packed['w12'].shape[0]
    wt = packed['wall'].shape[1]
    H = HD // D
    if bblk is None:
        bblk = choose_bblk(B, n_pad)
    assert B % bblk == 0
    grid = B // bblk
    P = bblk * n_pad

    weights = [packed[key] for key in ('wall', 'ball', 'eproj', 'ln_g', 'ln_b', 'w12', 'b12')]

    def rep(a):  # whole-array block, same block at every grid step
        nd = a.ndim
        return pl.BlockSpec(a.shape, lambda g, _n=nd: (0,) * _n)

    in_specs = ([pl.BlockSpec((P, D), lambda g: (g, 0)),
                 pl.BlockSpec((bblk, n_pad, n_pad), lambda g: (g, 0, 0))]
                + [rep(w) for w in weights])
    # TODO(synk): add pipeline_mode=pl.Buffered(3) on the edge-type BlockSpec only
    # if profiling shows exposed DMA at production Npad.

    # rough FLOP / byte counts so XLA schedules around the custom call sensibly
    flops_layer = (2 * P * D * wt                              # fused projection
                   + H * 2 * (2 * bblk * n_pad * n_pad * D)    # qk^T + alpha@v (MXU)
                   + H * 2 * (2 * P * n_pad * D)               # edge key/value terms (VPU)
                   + 2 * P * D * D)                            # folded FFN
    flops = grid * (L * flops_layer + 2 * NT * P * n_pad * HD)
    transcendentals = grid * L * (H * P * n_pad + P * (H + 1))
    bytes_accessed = (x_flat.size * 4 * 2 + tmat.size * 4
                      + grid * sum(int(np.prod(w.shape)) * 4 for w in weights))

    est = _vmem_estimate_bytes(bblk, n_pad, D, HD, NT, L, wt)
    vmem_limit = int(min(est * 2, vmem_cap_bytes)) if est > 14 * 2**20 else None

    kernel = partial(gran_kernel, mm_dtype=matmul_dtype)
    return pl.pallas_call(
        kernel,
        out_shape=jax.ShapeDtypeStruct((BN, D), jnp.float32),
        grid=(grid,),
        in_specs=in_specs,
        out_specs=pl.BlockSpec((P, D), lambda g: (g, 0)),
        compiler_params=pltpu.CompilerParams(
            dimension_semantics=("parallel",),     # independent graph blocks (2 TCs on v7x)
            vmem_limit_bytes=vmem_limit),
        cost_estimate=pl.CostEstimate(flops=int(flops),
                                      transcendentals=int(transcendentals),
                                      bytes_accessed=int(bytes_accessed)),
    )(x_flat, tmat, *weights)


# -----------------------------------------------------------------------------
# Host-side glue: graph construction (mirrors the PyTorch index logic exactly).
# -----------------------------------------------------------------------------
def build_edge_type_matrix(length):
    """Returns (length, length) int32 matrix with [dst, src] = edge type, -1 if none."""
    qual_num = (length - 3) // 2
    r_begin = qual_num + 2
    edge_index = [[0, r_begin], [1, r_begin]]
    edge_type = [1, 2]
    for i in range(1, qual_num + 1):
        edge_index.append([r_begin + i, r_begin]); edge_type.append(3)
        edge_index.append([2 + i, r_begin + i]);   edge_type.append(4)
    for i, j in combinations(range(length), 2):
        if [i, j] not in edge_index and [j, i] not in edge_index:
            edge_index.append([i, j]); edge_type.append(0)
    inv_index = [[d, s] for s, d in edge_index]
    inv_type = [t + 5 for t in edge_type]
    edge_index = edge_index + inv_index
    edge_type = edge_type + inv_type
    mat = -np.ones((length, length), dtype=np.int32)
    for (src, dst), t in zip(edge_index, edge_type):
        mat[dst, src] = t          # attention row = target/query node, col = source
    return mat


def prepare_inputs(batch_input_ids, unity_embeddings, n_pad):
    """Pack node features (B*n_pad, D) and the int32 edge-type matrix (B, n_pad, n_pad)."""
    B = batch_input_ids.shape[0]
    D = unity_embeddings.shape[1]
    ue = np.asarray(unity_embeddings)
    x_flat = np.zeros((B * n_pad, D), np.float32)
    tmat_all = -np.ones((B, n_pad, n_pad), np.int32)
    for b in range(B):
        ids = np.asarray(batch_input_ids[b])
        node_index = ids[ids != 0]
        length = node_index.shape[0]
        ent = node_index[0::2]
        rel = node_index[1::2]
        x_nodes = np.concatenate([ue[ent], ue[rel]], axis=0)      # (length, D)
        x_flat[b * n_pad:b * n_pad + length] = x_nodes
        tmat_all[b, :length, :length] = build_edge_type_matrix(length)
    return jnp.asarray(x_flat), jnp.asarray(tmat_all)


def init_params(key, D, H, inter, n_layers, n_types):
    HD = H * D
    ks = jax.random.split(key, 16)

    def w(k, shape, s=0.1):
        return jax.random.normal(k, shape, dtype=jnp.float32) * s

    emb_hetro = w(ks[0], (n_types, D))      # embedding_hetro_layer.weight (10, D)
    w_edge = w(ks[1], (D, HD))              # lin_edge (no bias)
    return dict(
        wq=w(ks[2], (D, HD)), bq=w(ks[3], (1, HD)),
        wk=w(ks[4], (D, HD)), bk=w(ks[5], (1, HD)),
        wv=w(ks[6], (D, HD)), bv=w(ks[7], (1, HD)),
        eproj=jnp.dot(emb_hetro, w_edge),   # lin_edge(embedding_hetro(types)) precomputed
        wskip=w(ks[8], (D, D)), bskip=w(ks[9], (1, D)),
        ln_g=1.0 + w(ks[14], (n_layers, 1, D)),
        ln_b=w(ks[15], (n_layers, 1, D)),
        w1=w(ks[10], (n_layers, D, inter)), b1=w(ks[11], (n_layers, 1, inter)),
        w2=w(ks[12], (n_layers, inter, D)), b2=w(ks[13], (n_layers, 1, D)),
    )


def pack_params(raw, lane=LANE):
    """Fuse Q|K|V|skip (each segment zero-padded to a 128-lane slab) and fold the
    activation-free FFN into one (D, D) matmul per layer."""
    D, HD = raw['wq'].shape
    seg = _pad_to(HD, lane)
    seg_s = _pad_to(D, lane)

    def padc(a, width):
        return jnp.pad(a, ((0, 0), (0, width - a.shape[-1])))

    wall = jnp.concatenate([padc(raw['wq'], seg), padc(raw['wk'], seg),
                            padc(raw['wv'], seg), padc(raw['wskip'], seg_s)], axis=1)
    ball = jnp.concatenate([padc(raw['bq'], seg), padc(raw['bk'], seg),
                            padc(raw['bv'], seg), padc(raw['bskip'], seg_s)], axis=1)
    w12 = jnp.einsum('lij,ljk->lik', raw['w1'], raw['w2'])              # (L, D, D)
    b12 = jnp.einsum('lij,ljk->lik', raw['b1'], raw['w2']) + raw['b2']  # (L, 1, D)
    return dict(wall=wall, ball=ball, eproj=raw['eproj'],
                ln_g=raw['ln_g'], ln_b=raw['ln_b'], w12=w12, b12=b12)


# Pure-JAX reference (same math as the module, unfused weights, per graph).
def reference_graph(x_nodes, tmat, params, n_layers, H):
    N, D = x_nodes.shape
    scale = 1.0 / math.sqrt(D)
    NT = params['eproj'].shape[0]
    eproj = params['eproj'].reshape(NT, H, D)
    ep = eproj[np.maximum(np.asarray(tmat), 0)]        # (N, N, H, D)
    valid = jnp.asarray(tmat >= 0)
    x = x_nodes
    for l in range(n_layers):
        q = (x @ params['wq'] + params['bq'][0]).reshape(N, H, D)
        k = (x @ params['wk'] + params['bk'][0]).reshape(N, H, D)
        v = (x @ params['wv'] + params['bv'][0]).reshape(N, H, D)
        kk = k[None, :, :, :] + ep
        vv = v[None, :, :, :] + ep
        s = jnp.einsum('ihd,ijhd->ihj', q, kk) * scale
        s = jnp.where(valid[:, None, :], s, -1e30)
        s = s - s.max(axis=-1, keepdims=True)
        p = jnp.exp(s)
        alpha = p / p.sum(axis=-1, keepdims=True)
        alpha = jnp.where(valid[:, None, :], alpha, 0.0)
        out = jnp.einsum('ihj,ijhd->ihd', alpha, vv).mean(axis=1)
        skip = x @ params['wskip'] + params['bskip'][0]
        y = out + skip + x
        mu = y.mean(-1, keepdims=True)
        var = ((y - mu) ** 2).mean(-1, keepdims=True)
        y = (y - mu) / jnp.sqrt(var + 1e-6)
        y = y * params['ln_g'][l, 0] + params['ln_b'][l, 0]
        y = (y @ params['w1'][l] + params['b1'][l, 0]) @ params['w2'][l] + params['b2'][l, 0]
        x = y
    return x


if __name__ == "__main__":
    # small config: embed_dim=32, num_heads=2, intermediate_size=64, n_gcn_layer=2
    B, SEQ, D, H, INTER, NLAYERS, VOCAB, NTYPES = 8, 7, 32, 2, 64, 2, 20, 10
    # TODO(synk): f_out_rel / f_out_ent heads are not used in GRAN.forward, so not built.

    key = jax.random.PRNGKey(0)
    k_emb, k_par, k_ids, k_pos = jax.random.split(key, 4)
    unity_embeddings = jax.random.normal(k_emb, (VOCAB, D), dtype=jnp.float32) * 0.1
    raw = init_params(k_par, D, H, INTER, NLAYERS, NTYPES)
    packed = pack_params(raw)

    batch_input_ids = np.asarray(jax.random.randint(k_ids, (B, SEQ), 1, VOCAB), dtype=np.int32)
    batch_mask_position = np.asarray(jax.random.randint(k_pos, (B,), 0, SEQ), dtype=np.int32)

    n_pad = _pad_to(SEQ, 8)
    x_flat, tmat = prepare_inputs(batch_input_ids, unity_embeddings, n_pad)

    # auto bblk: largest block with grid >= 2 (both v7x cores), rows/step <= target
    out_nodes = run_gran_pallas(x_flat, tmat, packed)
    out_nodes = jax.block_until_ready(out_nodes)

    mask_node = batch_mask_position // 2
    idx = jnp.asarray(np.arange(B) * n_pad + mask_node)
    batch_mask_emb = out_nodes[idx]                       # (B, D) module output

    # correctness check vs the pure-JAX per-graph reference (unfused weights);
    # tolerance covers the approx-reciprocal softmax and fused-weight rounding.
    ue = np.asarray(unity_embeddings)
    refs = []
    for b in range(B):
        ids = batch_input_ids[b]
        node_index = ids[ids != 0]
        x_nodes = jnp.asarray(np.concatenate(
            [ue[node_index[0::2]], ue[node_index[1::2]]], axis=0))
        tm = build_edge_type_matrix(node_index.shape[0])
        xr = reference_graph(x_nodes, tm, raw, NLAYERS, H)
        refs.append(xr[int(mask_node[b])])
    ref = jnp.stack(refs, axis=0)
    np.testing.assert_allclose(np.asarray(batch_mask_emb), np.asarray(ref),
                               rtol=5e-3, atol=5e-3)

    # bf16 MXU-operand variant (production path on v6e/v7x; softmax/LN stay f32).
    out_bf16 = jax.block_until_ready(
        run_gran_pallas(x_flat, tmat, packed, matmul_dtype=jnp.bfloat16))
    np.testing.assert_allclose(np.asarray(out_bf16[idx]), np.asarray(ref),
                               rtol=1e-1, atol=1e-1)

    print("KERNEL_OK")
</pallas_src>

<mosaic_0001>
module attributes {stable_mosaic.version = 11 : i64} {
  func.func @gran_kernel(%arg0: i32, %arg1: memref<32x32xf32, #tpu.memory_space<vmem>>, %arg2: memref<4x8x8xi32, #tpu.memory_space<vmem>>, %arg3: memref<32x512xf32, #tpu.memory_space<vmem>>, %arg4: memref<1x512xf32, #tpu.memory_space<vmem>>, %arg5: memref<10x64xf32, #tpu.memory_space<vmem>>, %arg6: memref<2x1x32xf32, #tpu.memory_space<vmem>>, %arg7: memref<2x1x32xf32, #tpu.memory_space<vmem>>, %arg8: memref<2x32x32xf32, #tpu.memory_space<vmem>>, %arg9: memref<2x1x32xf32, #tpu.memory_space<vmem>>, %arg10: memref<32x32xf32, #tpu.memory_space<vmem>>) attributes {dimension_semantics = [#tpu.dimension_semantics<parallel>], iteration_bounds = array<i64: 2>, scalar_prefetch = 0 : i64, scratch_operands = 0 : i64, tpu.core_type = #tpu.core_type<tc>, window_params = [{transform_indices = @transform_0, window_bounds = array<i64: 32, 32>}, {transform_indices = @transform_1, window_bounds = array<i64: 4, 8, 8>}, {pipeline_mode = #tpu.pipeline_mode<synchronous>, transform_indices = @transform_2, window_bounds = array<i64: 32, 512>}, {pipeline_mode = #tpu.pipeline_mode<synchronous>, transform_indices = @transform_3, window_bounds = array<i64: 1, 512>}, {pipeline_mode = #tpu.pipeline_mode<synchronous>, transform_indices = @transform_4, window_bounds = array<i64: 10, 64>}, {pipeline_mode = #tpu.pipeline_mode<synchronous>, transform_indices = @transform_5, window_bounds = array<i64: 2, 1, 32>}, {pipeline_mode = #tpu.pipeline_mode<synchronous>, transform_indices = @transform_6, window_bounds = array<i64: 2, 1, 32>}, {pipeline_mode = #tpu.pipeline_mode<synchronous>, transform_indices = @transform_7, window_bounds = array<i64: 2, 32, 32>}, {pipeline_mode = #tpu.pipeline_mode<synchronous>, transform_indices = @transform_8, window_bounds = array<i64: 2, 1, 32>}, {transform_indices = @transform_9, window_bounds = array<i64: 32, 32>}]} {
    %c0 = arith.constant 0 : index
    %c0_0 = arith.constant 0 : index
    %0 = vector.load %arg1[%c0, %c0_0] : memref<32x32xf32, #tpu.memory_space<vmem>>, vector<32x32xf32>
    %c0_1 = arith.constant 0 : index
    %c0_2 = arith.constant 0 : index
    %c0_3 = arith.constant 0 : index
    %1 = vector.load %arg2[%c0_1, %c0_2, %c0_3] : memref<4x8x8xi32, #tpu.memory_space<vmem>>, vector<4x8x8xi32>
    %2 = vector.shape_cast %1 : vector<4x8x8xi32> to vector<32x8xi32>
    %c0_i32 = arith.constant 0 : i32
    %3 = vector.broadcast %c0_i32 : i32 to vector<32x8xi32>
    %4 = arith.cmpi sge, %2, %3 : vector<32x8xi32>
    %cst = arith.constant 0.000000e+00 : f32
    %cst_4 = arith.constant -1.000000e+30 : f32
    %5 = vector.broadcast %cst : f32 to vector<32x8xf32>
    %6 = vector.broadcast %cst_4 : f32 to vector<32x8xf32>
    %7 = arith.select %4, %5, %6 : vector<32x8xi1>, vector<32x8xf32>
    %8 = arith.extui %4 : vector<32x8xi1> to vector<32x8xi32>
    %9 = arith.sitofp %8 : vector<32x8xi32> to vector<32x8xf32>
    %c0_5 = arith.constant 0 : index
    %c0_6 = arith.constant 0 : index
    %10 = vector.load %arg5[%c0_5, %c0_6] : memref<10x64xf32, #tpu.memory_space<vmem>>, vector<10x64xf32>
    %cst_7 = arith.constant 0.000000e+00 : f32
    %11 = vector.broadcast %cst_7 : f32 to vector<32x8x64xf32>
    %c0_i32_8 = arith.constant 0 : i32
    %12 = vector.broadcast %c0_i32_8 : i32 to vector<32x8xi32>
    %13 = arith.cmpi eq, %2, %12 : vector<32x8xi32>
    %14 = arith.extui %13 : vector<32x8xi1> to vector<32x8xi32>
    %15 = arith.sitofp %14 : vector<32x8xi32> to vector<32x8xf32>
    %16 = vector.shape_cast %15 : vector<32x8xf32> to vector<32x8x1xf32>
    %17 = vector.extract_strided_slice %10 {offsets = [0, 0], sizes = [1, 64], strides = [1, 1]} : vector<10x64xf32> to vector<1x64xf32>
    %18 = vector.shape_cast %17 : vector<1x64xf32> to vector<64xf32>
    %19 = vector.shape_cast %18 : vector<64xf32> to vector<1x1x64xf32>
    %20 = vector.broadcast %16 : vector<32x8x1xf32> to vector<32x8x64xf32>
    %21 = vector.broadcast %19 : vector<1x1x64xf32> to vector<32x8x64xf32>
    %22 = arith.mulf %20, %21 : vector<32x8x64xf32>
    %23 = arith.addf %11, %22 : vector<32x8x64xf32>
    %c1_i32 = arith.constant 1 : i32
    %24 = vector.broadcast %c1_i32 : i32 to vector<32x8xi32>
    %25 = arith.cmpi eq, %2, %24 : vector<32x8xi32>
    %26 = arith.extui %25 : vector<32x8xi1> to vector<32x8xi32>
    %27 = arith.sitofp %26 : vector<32x8xi32> to vector<32x8xf32>
    %28 = vector.shape_cast %27 : vector<32x8xf32> to vector<32x8x1xf32>
    %29 = vector.extract_strided_slice %10 {offsets = [1, 0], sizes = [1, 64], strides = [1, 1]} : vector<10x64xf32> to vector<1x64xf32>
    %30 = vector.shape_cast %29 : vector<1x64xf32> to vector<64xf32>
    %31 = vector.shape_cast %30 : vector<64xf32> to vector<1x1x64xf32>
    %32 = vector.broadcast %28 : vector<32x8x1xf32> to vector<32x8x64xf32>
    %33 = vector.broadcast %31 : vector<1x1x64xf32> to vector<32x8x64xf32>
    %34 = arith.mulf %32, %33 : vector<32x8x64xf32>
    %35 = arith.addf %23, %34 : vector<32x8x64xf32>
    %c2_i32 = arith.constant 2 : i32
    %36 = vector.broadcast %c2_i32 : i32 to vector<32x8xi32>
    %37 = arith.cmpi eq, %2, %36 : vector<32x8xi32>
    %38 = arith.extui %37 : vector<32x8xi1> to vector<32x8xi32>
    %39 = arith.sitofp %38 : vector<32x8xi32> to vector<32x8xf32>
    %40 = vector.shape_cast %39 : vector<32x8xf32> to vector<32x8x1xf32>
    %41 = vector.extract_strided_slice %10 {offsets = [2, 0], sizes = [1, 64], strides = [1, 1]} : vector<10x64xf32> to vector<1x64xf32>
    %42 = vector.shape_cast %41 : vector<1x64xf32> to vector<64xf32>
    %43 = vector.shape_cast %42 : vector<64xf32> to vector<1x1x64xf32>
    %44 = vector.broadcast %40 : vector<32x8x1xf32> to vector<32x8x64xf32>
    %45 = vector.broadcast %43 : vector<1x1x64xf32> to vector<32x8x64xf32>
    %46 = arith.mulf %44, %45 : vector<32x8x64xf32>
    %47 = arith.addf %35, %46 : vector<32x8x64xf32>
    %c3_i32 = arith.constant 3 : i32
    %48 = vector.broadcast %c3_i32 : i32 to vector<32x8xi32>
    %49 = arith.cmpi eq, %2, %48 : vector<32x8xi32>
    %50 = arith.extui %49 : vector<32x8xi1> to vector<32x8xi32>
    %51 = arith.sitofp %50 : vector<32x8xi32> to vector<32x8xf32>
    %52 = vector.shape_cast %51 : vector<32x8xf32> to vector<32x8x1xf32>
    %53 = vector.extract_strided_slice %10 {offsets = [3, 0], sizes = [1, 64], strides = [1, 1]} : vector<10x64xf32> to vector<1x64xf32>
    %54 = vector.shape_cast %53 : vector<1x64xf32> to vector<64xf32>
    %55 = vector.shape_cast %54 : vector<64xf32> to vector<1x1x64xf32>
    %56 = vector.broadcast %52 : vector<32x8x1xf32> to vector<32x8x64xf32>
    %57 = vector.broadcast %55 : vector<1x1x64xf32> to vector<32x8x64xf32>
    %58 = arith.mulf %56, %57 : vector<32x8x64xf32>
    %59 = arith.addf %47, %58 : vector<32x8x64xf32>
    %c4_i32 = arith.constant 4 : i32
    %60 = vector.broadcast %c4_i32 : i32 to vector<32x8xi32>
    %61 = arith.cmpi eq, %2, %60 : vector<32x8xi32>
    %62 = arith.extui %61 : vector<32x8xi1> to vector<32x8xi32>
    %63 = arith.sitofp %62 : vector<32x8xi32> to vector<32x8xf32>
    %64 = vector.shape_cast %63 : vector<32x8xf32> to vector<32x8x1xf32>
    %65 = vector.extract_strided_slice %10 {offsets = [4, 0], sizes = [1, 64], strides = [1, 1]} : vector<10x64xf32> to vector<1x64xf32>
    %66 = vector.shape_cast %65 : vector<1x64xf32> to vector<64xf32>
    %67 = vector.shape_cast %66 : vector<64xf32> to vector<1x1x64xf32>
    %68 = vector.broadcast %64 : vector<32x8x1xf32> to vector<32x8x64xf32>
    %69 = vector.broadcast %67 : vector<1x1x64xf32> to vector<32x8x64xf32>
    %70 = arith.mulf %68, %69 : vector<32x8x64xf32>
    %71 = arith.addf %59, %70 : vector<32x8x64xf32>
    %c5_i32 = arith.constant 5 : i32
    %72 = vector.broadcast %c5_i32 : i32 to vector<32x8xi32>
    %73 = arith.cmpi eq, %2, %72 : vector<32x8xi32>
    %74 = arith.extui %73 : vector<32x8xi1> to vector<32x8xi32>
    %75 = arith.sitofp %74 : vector<32x8xi32> to vector<32x8xf32>
    %76 = vector.shape_cast %75 : vector<32x8xf32> to vector<32x8x1xf32>
    %77 = vector.extract_strided_slice %10 {offsets = [5, 0], sizes = [1, 64], strides = [1, 1]} : vector<10x64xf32> to vector<1x64xf32>
    %78 = vector.shape_cast %77 : vector<1x64xf32> to vector<64xf32>
    %79 = vector.shape_cast %78 : vector<64xf32> to vector<1x1x64xf32>
    %80 = vector.broadcast %76 : vector<32x8x1xf32> to vector<32x8x64xf32>
    %81 = vector.broadcast %79 : vector<1x1x64xf32> to vector<32x8x64xf32>
    %82 = arith.mulf %80, %81 : vector<32x8x64xf32>
    %83 = arith.addf %71, %82 : vector<32x8x64xf32>
    %c6_i32 = arith.constant 6 : i32
    %84 = vector.broadcast %c6_i32 : i32 to vector<32x8xi32>
    %85 = arith.cmpi eq, %2, %84 : vector<32x8xi32>
    %86 = arith.extui %85 : vector<32x8xi1> to vector<32x8xi32>
    %87 = arith.sitofp %86 : vector<32x8xi32> to vector<32x8xf32>
    %88 = vector.shape_cast %87 : vector<32x8xf32> to vector<32x8x1xf32>
    %89 = vector.extract_strided_slice %10 {offsets = [6, 0], sizes = [1, 64], strides = [1, 1]} : vector<10x64xf32> to vector<1x64xf32>
    %90 = vector.shape_cast %89 : vector<1x64xf32> to vector<64xf32>
    %91 = vector.shape_cast %90 : vector<64xf32> to vector<1x1x64xf32>
    %92 = vector.broadcast %88 : vector<32x8x1xf32> to vector<32x8x64xf32>
    %93 = vector.broadcast %91 : vector<1x1x64xf32> to vector<32x8x64xf32>
    %94 = arith.mulf %92, %93 : vector<32x8x64xf32>
    %95 = arith.addf %83, %94 : vector<32x8x64xf32>
    %c7_i32 = arith.constant 7 : i32
    %96 = vector.broadcast %c7_i32 : i32 to vector<32x8xi32>
    %97 = arith.cmpi eq, %2, %96 : vector<32x8xi32>
    %98 = arith.extui %97 : vector<32x8xi1> to vector<32x8xi32>
    %99 = arith.sitofp %98 : vector<32x8xi32> to vector<32x8xf32>
    %100 = vector.shape_cast %99 : vector<32x8xf32> to vector<32x8x1xf32>
    %101 = vector.extract_strided_slice %10 {offsets = [7, 0], sizes = [1, 64], strides = [1, 1]} : vector<10x64xf32> to vector<1x64xf32>
    %102 = vector.shape_cast %101 : vector<1x64xf32> to vector<64xf32>
    %103 = vector.shape_cast %102 : vector<64xf32> to vector<1x1x64xf32>
    %104 = vector.broadcast %100 : vector<32x8x1xf32> to vector<32x8x64xf32>
    %105 = vector.broadcast %103 : vector<1x1x64xf32> to vector<32x8x64xf32>
    %106 = arith.mulf %104, %105 : vector<32x8x64xf32>
    %107 = arith.addf %95, %106 : vector<32x8x64xf32>
    %c8_i32 = arith.constant 8 : i32
    %108 = vector.broadcast %c8_i32 : i32 to vector<32x8xi32>
    %109 = arith.cmpi eq, %2, %108 : vector<32x8xi32>
    %110 = arith.extui %109 : vector<32x8xi1> to vector<32x8xi32>
    %111 = arith.sitofp %110 : vector<32x8xi32> to vector<32x8xf32>
    %112 = vector.shape_cast %111 : vector<32x8xf32> to vector<32x8x1xf32>
    %113 = vector.extract_strided_slice %10 {offsets = [8, 0], sizes = [1, 64], strides = [1, 1]} : vector<10x64xf32> to vector<1x64xf32>
    %114 = vector.shape_cast %113 : vector<1x64xf32> to vector<64xf32>
    %115 = vector.shape_cast %114 : vector<64xf32> to vector<1x1x64xf32>
    %116 = vector.broadcast %112 : vector<32x8x1xf32> to vector<32x8x64xf32>
    %117 = vector.broadcast %115 : vector<1x1x64xf32> to vector<32x8x64xf32>
    %118 = arith.mulf %116, %117 : vector<32x8x64xf32>
    %119 = arith.addf %107, %118 : vector<32x8x64xf32>
    %c9_i32 = arith.constant 9 : i32
    %120 = vector.broadcast %c9_i32 : i32 to vector<32x8xi32>
    %121 = arith.cmpi eq, %2, %120 : vector<32x8xi32>
    %122 = arith.extui %121 : vector<32x8xi1> to vector<32x8xi32>
    %123 = arith.sitofp %122 : vector<32x8xi32> to vector<32x8xf32>
    %124 = vector.shape_cast %123 : vector<32x8xf32> to vector<32x8x1xf32>
    %125 = vector.extract_strided_slice %10 {offsets = [9, 0], sizes = [1, 64], strides = [1, 1]} : vector<10x64xf32> to vector<1x64xf32>
    %126 = vector.shape_cast %125 : vector<1x64xf32> to vector<64xf32>
    %127 = vector.shape_cast %126 : vector<64xf32> to vector<1x1x64xf32>
    %128 = vector.broadcast %124 : vector<32x8x1xf32> to vector<32x8x64xf32>
    %129 = vector.broadcast %127 : vector<1x1x64xf32> to vector<32x8x64xf32>
    %130 = arith.mulf %128, %129 : vector<32x8x64xf32>
    %131 = arith.addf %119, %130 : vector<32x8x64xf32>
    %c0_9 = arith.constant 0 : index
    %c0_10 = arith.constant 0 : index
    %132 = vector.load %arg3[%c0_9, %c0_10] : memref<32x512xf32, #tpu.memory_space<vmem>>, vector<32x512xf32>
    %c0_11 = arith.constant 0 : index
    %c0_12 = arith.constant 0 : index
    %133 = vector.load %arg4[%c0_11, %c0_12] : memref<1x512xf32, #tpu.memory_space<vmem>>, vector<1x512xf32>
    %c0_13 = arith.constant 0 : index
    %c0_14 = arith.constant 0 : index
    %c0_15 = arith.constant 0 : index
    %134 = vector.load %arg6[%c0_13, %c0_14, %c0_15] : memref<2x1x32xf32, #tpu.memory_space<vmem>>, vector<2x1x32xf32>
    %c0_16 = arith.constant 0 : index
    %c0_17 = arith.constant 0 : index
    %c0_18 = arith.constant 0 : index
    %135 = vector.load %arg7[%c0_16, %c0_17, %c0_18] : memref<2x1x32xf32, #tpu.memory_space<vmem>>, vector<2x1x32xf32>
    %c0_19 = arith.constant 0 : index
    %c0_20 = arith.constant 0 : index
    %c0_21 = arith.constant 0 : index
    %136 = vector.load %arg8[%c0_19, %c0_20, %c0_21] : memref<2x32x32xf32, #tpu.memory_space<vmem>>, vector<2x32x32xf32>
    %c0_22 = arith.constant 0 : index
    %c0_23 = arith.constant 0 : index
    %c0_24 = arith.constant 0 : index
    %137 = vector.load %arg9[%c0_22, %c0_23, %c0_24] : memref<2x1x32xf32, #tpu.memory_space<vmem>>, vector<2x1x32xf32>
    %cst_25 = arith.constant dense<0.000000e+00> : vector<32x512xf32>
    %138 = tpu.matmul %0, %132, %cst_25 {dimension_numbers = #tpu.dot_dimension_numbers<[1], [0], [0], [1], [0, 0, 1, 1], [], []>} : vector<32x32xf32>, vector<32x512xf32>, vector<32x512xf32> -> vector<32x512xf32>
    %139 = vector.broadcast %133 : vector<1x512xf32> to vector<32x512xf32>
    %140 = arith.addf %138, %139 : vector<32x512xf32>
    %141 = vector.extract_strided_slice %140 {offsets = [0, 0], sizes = [32, 64], strides = [1, 1]} : vector<32x512xf32> to vector<32x64xf32>
    %142 = vector.extract_strided_slice %140 {offsets = [0, 128], sizes = [32, 64], strides = [1, 1]} : vector<32x512xf32> to vector<32x64xf32>
    %143 = vector.extract_strided_slice %140 {offsets = [0, 256], sizes = [32, 64], strides = [1, 1]} : vector<32x512xf32> to vector<32x64xf32>
    %144 = vector.extract_strided_slice %140 {offsets = [0, 384], sizes = [32, 32], strides = [1, 1]} : vector<32x512xf32> to vector<32x32xf32>
    %cst_26 = arith.constant 0.000000e+00 : f32
    %145 = vector.broadcast %cst_26 : f32 to vector<32x32xf32>
    %146 = vector.extract_strided_slice %141 {offsets = [0, 0], sizes = [32, 32], strides = [1, 1]} : vector<32x64xf32> to vector<32x32xf32>
    %147 = vector.shape_cast %146 : vector<32x32xf32> to vector<4x8x32xf32>
    %148 = vector.extract_strided_slice %142 {offsets = [0, 0], sizes = [32, 32], strides = [1, 1]} : vector<32x64xf32> to vector<32x32xf32>
    %149 = vector.shape_cast %148 : vector<32x32xf32> to vector<4x8x32xf32>
    %150 = vector.extract_strided_slice %143 {offsets = [0, 0], sizes = [32, 32], strides = [1, 1]} : vector<32x64xf32> to vector<32x32xf32>
    %151 = vector.shape_cast %150 : vector<32x32xf32> to vector<4x8x32xf32>
    %152 = vector.extract_strided_slice %131 {offsets = [0, 0, 0], sizes = [32, 8, 32], strides = [1, 1, 1]} : vector<32x8x64xf32> to vector<32x8x32xf32>
    "tpu.trace_start"() <{level = 10 : i32, message = "bid,bjd->bij"}> : () -> ()
    %cst_27 = arith.constant dense<0.000000e+00> : vector<4x8x8xf32>
    %153 = tpu.matmul %147, %149, %cst_27 {dimension_numbers = #tpu.dot_dimension_numbers<[2], [2], [1], [1], [0, 0, 0, 1, 1, 1], [0], [0]>} : vector<4x8x32xf32>, vector<4x8x32xf32>, vector<4x8x8xf32> -> vector<4x8x8xf32>
    "tpu.trace_stop"() : () -> ()
    %154 = vector.shape_cast %146 : vector<32x32xf32> to vector<32x1x32xf32>
    %155 = vector.broadcast %154 : vector<32x1x32xf32> to vector<32x8x32xf32>
    %156 = arith.mulf %155, %152 : vector<32x8x32xf32>
    %cst_28 = arith.constant dense<0.000000e+00> : vector<32x8xf32>
    %157 = vector.multi_reduction <add>, %156, %cst_28 [2] : vector<32x8x32xf32> to vector<32x8xf32>
    %158 = vector.shape_cast %153 : vector<4x8x8xf32> to vector<32x8xf32>
    %159 = arith.addf %158, %157 : vector<32x8xf32>
    %cst_29 = arith.constant 0.176776692 : f32
    %160 = vector.broadcast %cst_29 : f32 to vector<32x8xf32>
    %161 = arith.mulf %159, %160 : vector<32x8xf32>
    %162 = arith.addf %161, %7 : vector<32x8xf32>
    %cst_30 = arith.constant dense<0xFF800000> : vector<32xf32>
    %163 = vector.multi_reduction <maximumf>, %162, %cst_30 [1] : vector<32x8xf32> to vector<32xf32>
    %164 = vector.shape_cast %163 : vector<32xf32> to vector<32x1xf32>
    %165 = vector.broadcast %164 : vector<32x1xf32> to vector<32x8xf32>
    %166 = arith.subf %162, %165 : vector<32x8xf32>
    %167 = math.exp %166 : vector<32x8xf32>
    %cst_31 = arith.constant dense<0.000000e+00> : vector<32xf32>
    %168 = vector.multi_reduction <add>, %167, %cst_31 [1] : vector<32x8xf32> to vector<32xf32>
    %169 = vector.shape_cast %168 : vector<32xf32> to vector<32x1xf32>
    %170 = tpu.reciprocal %169 {approx = true} : vector<32x1xf32> -> vector<32x1xf32>
    %171 = vector.broadcast %170 : vector<32x1xf32> to vector<32x8xf32>
    %172 = arith.mulf %167, %171 : vector<32x8xf32>
    %173 = arith.mulf %172, %9 : vector<32x8xf32>
    %174 = vector.shape_cast %173 : vector<32x8xf32> to vector<4x8x8xf32>
    "tpu.trace_start"() <{level = 10 : i32, message = "bij,bjd->bid"}> : () -> ()
    %cst_32 = arith.constant dense<0.000000e+00> : vector<4x8x32xf32>
    %175 = tpu.matmul %174, %151, %cst_32 {dimension_numbers = #tpu.dot_dimension_numbers<[2], [1], [1], [2], [0, 0, 0, 1, 1, 2], [0], [0]>} : vector<4x8x8xf32>, vector<4x8x32xf32>, vector<4x8x32xf32> -> vector<4x8x32xf32>
    "tpu.trace_stop"() : () -> ()
    %176 = vector.shape_cast %173 : vector<32x8xf32> to vector<32x8x1xf32>
    %177 = vector.broadcast %176 : vector<32x8x1xf32> to vector<32x8x32xf32>
    %178 = arith.mulf %177, %152 : vector<32x8x32xf32>
    %cst_33 = arith.constant dense<0.000000e+00> : vector<32x32xf32>
    %179 = vector.multi_reduction <add>, %178, %cst_33 [1] : vector<32x8x32xf32> to vector<32x32xf32>
    %180 = vector.shape_cast %175 : vector<4x8x32xf32> to vector<32x32xf32>
    %181 = arith.addf %145, %180 : vector<32x32xf32>
    %182 = arith.addf %181, %179 : vector<32x32xf32>
    %183 = vector.extract_strided_slice %141 {offsets = [0, 32], sizes = [32, 32], strides = [1, 1]} : vector<32x64xf32> to vector<32x32xf32>
    %184 = vector.shape_cast %183 : vector<32x32xf32> to vector<4x8x32xf32>
    %185 = vector.extract_strided_slice %142 {offsets = [0, 32], sizes = [32, 32], strides = [1, 1]} : vector<32x64xf32> to vector<32x32xf32>
    %186 = vector.shape_cast %185 : vector<32x32xf32> to vector<4x8x32xf32>
    %187 = vector.extract_strided_slice %143 {offsets = [0, 32], sizes = [32, 32], strides = [1, 1]} : vector<32x64xf32> to vector<32x32xf32>
    %188 = vector.shape_cast %187 : vector<32x32xf32> to vector<4x8x32xf32>
    %189 = vector.extract_strided_slice %131 {offsets = [0, 0, 32], sizes = [32, 8, 32], strides = [1, 1, 1]} : vector<32x8x64xf32> to vector<32x8x32xf32>
    "tpu.trace_start"() <{level = 10 : i32, message = "bid,bjd->bij"}> : () -> ()
    %cst_34 = arith.constant dense<0.000000e+00> : vector<4x8x8xf32>
    %190 = tpu.matmul %184, %186, %cst_34 {dimension_numbers = #tpu.dot_dimension_numbers<[2], [2], [1], [1], [0, 0, 0, 1, 1, 1], [0], [0]>} : vector<4x8x32xf32>, vector<4x8x32xf32>, vector<4x8x8xf32> -> vector<4x8x8xf32>
    "tpu.trace_stop"() : () -> ()
    %191 = vector.shape_cast %183 : vector<32x32xf32> to vector<32x1x32xf32>
    %192 = vector.broadcast %191 : vector<32x1x32xf32> to vector<32x8x32xf32>
    %193 = arith.mulf %192, %189 : vector<32x8x32xf32>
    %cst_35 = arith.constant dense<0.000000e+00> : vector<32x8xf32>
    %194 = vector.multi_reduction <add>, %193, %cst_35 [2] : vector<32x8x32xf32> to vector<32x8xf32>
    %195 = vector.shape_cast %190 : vector<4x8x8xf32> to vector<32x8xf32>
    %196 = arith.addf %195, %194 : vector<32x8xf32>
    %cst_36 = arith.constant 0.176776692 : f32
    %197 = vector.broadcast %cst_36 : f32 to vector<32x8xf32>
    %198 = arith.mulf %196, %197 : vector<32x8xf32>
    %199 = arith.addf %198, %7 : vector<32x8xf32>
    %cst_37 = arith.constant dense<0xFF800000> : vector<32xf32>
    %200 = vector.multi_reduction <maximumf>, %199, %cst_37 [1] : vector<32x8xf32> to vector<32xf32>
    %201 = vector.shape_cast %200 : vector<32xf32> to vector<32x1xf32>
    %202 = vector.broadcast %201 : vector<32x1xf32> to vector<32x8xf32>
    %203 = arith.subf %199, %202 : vector<32x8xf32>
    %204 = math.exp %203 : vector<32x8xf32>
    %cst_38 = arith.constant dense<0.000000e+00> : vector<32xf32>
    %205 = vector.multi_reduction <add>, %204, %cst_38 [1] : vector<32x8xf32> to vector<32xf32>
    %206 = vector.shape_cast %205 : vector<32xf32> to vector<32x1xf32>
    %207 = tpu.reciprocal %206 {approx = true} : vector<32x1xf32> -> vector<32x1xf32>
    %208 = vector.broadcast %207 : vector<32x1xf32> to vector<32x8xf32>
    %209 = arith.mulf %204, %208 : vector<32x8xf32>
    %210 = arith.mulf %209, %9 : vector<32x8xf32>
    %211 = vector.shape_cast %210 : vector<32x8xf32> to vector<4x8x8xf32>
    "tpu.trace_start"() <{level = 10 : i32, message = "bij,bjd->bid"}> : () -> ()
    %cst_39 = arith.constant dense<0.000000e+00> : vector<4x8x32xf32>
    %212 = tpu.matmul %211, %188, %cst_39 {dimension_numbers = #tpu.dot_dimension_numbers<[2], [1], [1], [2], [0, 0, 0, 1, 1, 2], [0], [0]>} : vector<4x8x8xf32>, vector<4x8x32xf32>, vector<4x8x32xf32> -> vector<4x8x32xf32>
    "tpu.trace_stop"() : () -> ()
    %213 = vector.shape_cast %210 : vector<32x8xf32> to vector<32x8x1xf32>
    %214 = vector.broadcast %213 : vector<32x8x1xf32> to vector<32x8x32xf32>
    %215 = arith.mulf %214, %189 : vector<32x8x32xf32>
    %cst_40 = arith.constant dense<0.000000e+00> : vector<32x32xf32>
    %216 = vector.multi_reduction <add>, %215, %cst_40 [1] : vector<32x8x32xf32> to vector<32x32xf32>
    %217 = vector.shape_cast %212 : vector<4x8x32xf32> to vector<32x32xf32>
    %218 = arith.addf %182, %217 : vector<32x32xf32>
    %219 = arith.addf %218, %216 : vector<32x32xf32>
    %cst_41 = arith.constant 5.000000e-01 : f32
    %220 = vector.broadcast %cst_41 : f32 to vector<32x32xf32>
    %221 = arith.mulf %219, %220 : vector<32x32xf32>
    %222 = arith.addf %221, %144 : vector<32x32xf32>
    %223 = arith.addf %222, %0 : vector<32x32xf32>
    %cst_42 = arith.constant dense<0.000000e+00> : vector<32xf32>
    %224 = vector.multi_reduction <add>, %223, %cst_42 [1] : vector<32x32xf32> to vector<32xf32>
    %225 = vector.shape_cast %224 : vector<32xf32> to vector<32x1xf32>
    %cst_43 = arith.constant 3.200000e+01 : f32
    %226 = vector.broadcast %cst_43 : f32 to vector<32x1xf32>
    %227 = arith.divf %225, %226 : vector<32x1xf32>
    %228 = vector.broadcast %227 : vector<32x1xf32> to vector<32x32xf32>
    %229 = arith.subf %223, %228 : vector<32x32xf32>
    %230 = arith.mulf %229, %229 : vector<32x32xf32>
    %cst_44 = arith.constant dense<0.000000e+00> : vector<32xf32>
    %231 = vector.multi_reduction <add>, %230, %cst_44 [1] : vector<32x32xf32> to vector<32xf32>
    %232 = vector.shape_cast %231 : vector<32xf32> to vector<32x1xf32>
    %cst_45 = arith.constant 3.200000e+01 : f32
    %233 = vector.broadcast %cst_45 : f32 to vector<32x1xf32>
    %234 = arith.divf %232, %233 : vector<32x1xf32>
    %cst_46 = arith.constant 9.99999997E-7 : f32
    %235 = vector.broadcast %cst_46 : f32 to vector<32x1xf32>
    %236 = arith.addf %234, %235 : vector<32x1xf32>
    %237 = math.rsqrt %236 : vector<32x1xf32>
    %238 = vector.broadcast %237 : vector<32x1xf32> to vector<32x32xf32>
    %239 = arith.mulf %229, %238 : vector<32x32xf32>
    %240 = vector.extract_strided_slice %134 {offsets = [0, 0, 0], sizes = [1, 1, 32], strides = [1, 1, 1]} : vector<2x1x32xf32> to vector<1x1x32xf32>
    %241 = vector.shape_cast %240 : vector<1x1x32xf32> to vector<1x32xf32>
    %242 = vector.broadcast %241 : vector<1x32xf32> to vector<32x32xf32>
    %243 = arith.mulf %239, %242 : vector<32x32xf32>
    %244 = vector.extract_strided_slice %135 {offsets = [0, 0, 0], sizes = [1, 1, 32], strides = [1, 1, 1]} : vector<2x1x32xf32> to vector<1x1x32xf32>
    %245 = vector.shape_cast %244 : vector<1x1x32xf32> to vector<1x32xf32>
    %246 = vector.broadcast %245 : vector<1x32xf32> to vector<32x32xf32>
    %247 = arith.addf %243, %246 : vector<32x32xf32>
    %248 = vector.extract_strided_slice %136 {offsets = [0, 0, 0], sizes = [1, 32, 32], strides = [1, 1, 1]} : vector<2x32x32xf32> to vector<1x32x32xf32>
    %249 = vector.shape_cast %248 : vector<1x32x32xf32> to vector<32x32xf32>
    %cst_47 = arith.constant dense<0.000000e+00> : vector<32x32xf32>
    %250 = tpu.matmul %247, %249, %cst_47 {dimension_numbers = #tpu.dot_dimension_numbers<[1], [0], [0], [1], [0, 0, 1, 1], [], []>} : vector<32x32xf32>, vector<32x32xf32>, vector<32x32xf32> -> vector<32x32xf32>
    %251 = vector.extract_strided_slice %137 {offsets = [0, 0, 0], sizes = [1, 1, 32], strides = [1, 1, 1]} : vector<2x1x32xf32> to vector<1x1x32xf32>
    %252 = vector.shape_cast %251 : vector<1x1x32xf32> to vector<1x32xf32>
    %253 = vector.broadcast %252 : vector<1x32xf32> to vector<32x32xf32>
    %254 = arith.addf %250, %253 : vector<32x32xf32>
    %cst_48 = arith.constant dense<0.000000e+00> : vector<32x512xf32>
    %255 = tpu.matmul %254, %132, %cst_48 {dimension_numbers = #tpu.dot_dimension_numbers<[1], [0], [0], [1], [0, 0, 1, 1], [], []>} : vector<32x32xf32>, vector<32x512xf32>, vector<32x512xf32> -> vector<32x512xf32>
    %256 = vector.broadcast %133 : vector<1x512xf32> to vector<32x512xf32>
    %257 = arith.addf %255, %256 : vector<32x512xf32>
    %258 = vector.extract_strided_slice %257 {offsets = [0, 0], sizes = [32, 64], strides = [1, 1]} : vector<32x512xf32> to vector<32x64xf32>
    %259 = vector.extract_strided_slice %257 {offsets = [0, 128], sizes = [32, 64], strides = [1, 1]} : vector<32x512xf32> to vector<32x64xf32>
    %260 = vector.extract_strided_slice %257 {offsets = [0, 256], sizes = [32, 64], strides = [1, 1]} : vector<32x512xf32> to vector<32x64xf32>
    %261 = vector.extract_strided_slice %257 {offsets = [0, 384], sizes = [32, 32], strides = [1, 1]} : vector<32x512xf32> to vector<32x32xf32>
    %cst_49 = arith.constant 0.000000e+00 : f32
    %262 = vector.broadcast %cst_49 : f32 to vector<32x32xf32>
    %263 = vector.extract_strided_slice %258 {offsets = [0, 0], sizes = [32, 32], strides = [1, 1]} : vector<32x64xf32> to vector<32x32xf32>
    %264 = vector.shape_cast %263 : vector<32x32xf32> to vector<4x8x32xf32>
    %265 = vector.extract_strided_slice %259 {offsets = [0, 0], sizes = [32, 32], strides = [1, 1]} : vector<32x64xf32> to vector<32x32xf32>
    %266 = vector.shape_cast %265 : vector<32x32xf32> to vector<4x8x32xf32>
    %267 = vector.extract_strided_slice %260 {offsets = [0, 0], sizes = [32, 32], strides = [1, 1]} : vector<32x64xf32> to vector<32x32xf32>
    %268 = vector.shape_cast %267 : vector<32x32xf32> to vector<4x8x32xf32>
    %269 = vector.extract_strided_slice %131 {offsets = [0, 0, 0], sizes = [32, 8, 32], strides = [1, 1, 1]} : vector<32x8x64xf32> to vector<32x8x32xf32>
    "tpu.trace_start"() <{level = 10 : i32, message = "bid,bjd->bij"}> : () -> ()
    %cst_50 = arith.constant dense<0.000000e+00> : vector<4x8x8xf32>
    %270 = tpu.matmul %264, %266, %cst_50 {dimension_numbers = #tpu.dot_dimension_numbers<[2], [2], [1], [1], [0, 0, 0, 1, 1, 1], [0], [0]>} : vector<4x8x32xf32>, vector<4x8x32xf32>, vector<4x8x8xf32> -> vector<4x8x8xf32>
    "tpu.trace_stop"() : () -> ()
    %271 = vector.shape_cast %263 : vector<32x32xf32> to vector<32x1x32xf32>
    %272 = vector.broadcast %271 : vector<32x1x32xf32> to vector<32x8x32xf32>
    %273 = arith.mulf %272, %269 : vector<32x8x32xf32>
    %cst_51 = arith.constant dense<0.000000e+00> : vector<32x8xf32>
    %274 = vector.multi_reduction <add>, %273, %cst_51 [2] : vector<32x8x32xf32> to vector<32x8xf32>
    %275 = vector.shape_cast %270 : vector<4x8x8xf32> to vector<32x8xf32>
    %276 = arith.addf %275, %274 : vector<32x8xf32>
    %cst_52 = arith.constant 0.176776692 : f32
    %277 = vector.broadcast %cst_52 : f32 to vector<32x8xf32>
    %278 = arith.mulf %276, %277 : vector<32x8xf32>
    %279 = arith.addf %278, %7 : vector<32x8xf32>
    %cst_53 = arith.constant dense<0xFF800000> : vector<32xf32>
    %280 = vector.multi_reduction <maximumf>, %279, %cst_53 [1] : vector<32x8xf32> to vector<32xf32>
    %281 = vector.shape_cast %280 : vector<32xf32> to vector<32x1xf32>
    %282 = vector.broadcast %281 : vector<32x1xf32> to vector<32x8xf32>
    %283 = arith.subf %279, %282 : vector<32x8xf32>
    %284 = math.exp %283 : vector<32x8xf32>
    %cst_54 = arith.constant dense<0.000000e+00> : vector<32xf32>
    %285 = vector.multi_reduction <add>, %284, %cst_54 [1] : vector<32x8xf32> to vector<32xf32>
    %286 = vector.shape_cast %285 : vector<32xf32> to vector<32x1xf32>
    %287 = tpu.reciprocal %286 {approx = true} : vector<32x1xf32> -> vector<32x1xf32>
    %288 = vector.broadcast %287 : vector<32x1xf32> to vector<32x8xf32>
    %289 = arith.mulf %284, %288 : vector<32x8xf32>
    %290 = arith.mulf %289, %9 : vector<32x8xf32>
    %291 = vector.shape_cast %290 : vector<32x8xf32> to vector<4x8x8xf32>
    "tpu.trace_start"() <{level = 10 : i32, message = "bij,bjd->bid"}> : () -> ()
    %cst_55 = arith.constant dense<0.000000e+00> : vector<4x8x32xf32>
    %292 = tpu.matmul %291, %268, %cst_55 {dimension_numbers = #tpu.dot_dimension_numbers<[2], [1], [1], [2], [0, 0, 0, 1, 1, 2], [0], [0]>} : vector<4x8x8xf32>, vector<4x8x32xf32>, vector<4x8x32xf32> -> vector<4x8x32xf32>
    "tpu.trace_stop"() : () -> ()
    %293 = vector.shape_cast %290 : vector<32x8xf32> to vector<32x8x1xf32>
    %294 = vector.broadcast %293 : vector<32x8x1xf32> to vector<32x8x32xf32>
    %295 = arith.mulf %294, %269 : vector<32x8x32xf32>
    %cst_56 = arith.constant dense<0.000000e+00> : vector<32x32xf32>
    %296 = vector.multi_reduction <add>, %295, %cst_56 [1] : vector<32x8x32xf32> to vector<32x32xf32>
    %297 = vector.shape_cast %292 : vector<4x8x32xf32> to vector<32x32xf32>
    %298 = arith.addf %262, %297 : vector<32x32xf32>
    %299 = arith.addf %298, %296 : vector<32x32xf32>
    %300 = vector.extract_strided_slice %258 {offsets = [0, 32], sizes = [32, 32], strides = [1, 1]} : vector<32x64xf32> to vector<32x32xf32>
    %301 = vector.shape_cast %300 : vector<32x32xf32> to vector<4x8x32xf32>
    %302 = vector.extract_strided_slice %259 {offsets = [0, 32], sizes = [32, 32], strides = [1, 1]} : vector<32x64xf32> to vector<32x32xf32>
    %303 = vector.shape_cast %302 : vector<32x32xf32> to vector<4x8x32xf32>
    %304 = vector.extract_strided_slice %260 {offsets = [0, 32], sizes = [32, 32], strides = [1, 1]} : vector<32x64xf32> to vector<32x32xf32>
    %305 = vector.shape_cast %304 : vector<32x32xf32> to vector<4x8x32xf32>
    %306 = vector.extract_strided_slice %131 {offsets = [0, 0, 32], sizes = [32, 8, 32], strides = [1, 1, 1]} : vector<32x8x64xf32> to vector<32x8x32xf32>
    "tpu.trace_start"() <{level = 10 : i32, message = "bid,bjd->bij"}> : () -> ()
    %cst_57 = arith.constant dense<0.000000e+00> : vector<4x8x8xf32>
    %307 = tpu.matmul %301, %303, %cst_57 {dimension_numbers = #tpu.dot_dimension_numbers<[2], [2], [1], [1], [0, 0, 0, 1, 1, 1], [0], [0]>} : vector<4x8x32xf32>, vector<4x8x32xf32>, vector<4x8x8xf32> -> vector<4x8x8xf32>
    "tpu.trace_stop"() : () -> ()
    %308 = vector.shape_cast %300 : vector<32x32xf32> to vector<32x1x32xf32>
    %309 = vector.broadcast %308 : vector<32x1x32xf32> to vector<32x8x32xf32>
    %310 = arith.mulf %309, %306 : vector<32x8x32xf32>
    %cst_58 = arith.constant dense<0.000000e+00> : vector<32x8xf32>
    %311 = vector.multi_reduction <add>, %310, %cst_58 [2] : vector<32x8x32xf32> to vector<32x8xf32>
    %312 = vector.shape_cast %307 : vector<4x8x8xf32> to vector<32x8xf32>
    %313 = arith.addf %312, %311 : vector<32x8xf32>
    %cst_59 = arith.constant 0.176776692 : f32
    %314 = vector.broadcast %cst_59 : f32 to vector<32x8xf32>
    %315 = arith.mulf %313, %314 : vector<32x8xf32>
    %316 = arith.addf %315, %7 : vector<32x8xf32>
    %cst_60 = arith.constant dense<0xFF800000> : vector<32xf32>
    %317 = vector.multi_reduction <maximumf>, %316, %cst_60 [1] : vector<32x8xf32> to vector<32xf32>
    %318 = vector.shape_cast %317 : vector<32xf32> to vector<32x1xf32>
    %319 = vector.broadcast %318 : vector<32x1xf32> to vector<32x8xf32>
    %320 = arith.subf %316, %319 : vector<32x8xf32>
    %321 = math.exp %320 : vector<32x8xf32>
    %cst_61 = arith.constant dense<0.000000e+00> : vector<32xf32>
    %322 = vector.multi_reduction <add>, %321, %cst_61 [1] : vector<32x8xf32> to vector<32xf32>
    %323 = vector.shape_cast %322 : vector<32xf32> to vector<32x1xf32>
    %324 = tpu.reciprocal %323 {approx = true} : vector<32x1xf32> -> vector<32x1xf32>
    %325 = vector.broadcast %324 : vector<32x1xf32> to vector<32x8xf32>
    %326 = arith.mulf %321, %325 : vector<32x8xf32>
    %327 = arith.mulf %326, %9 : vector<32x8xf32>
    %328 = vector.shape_cast %327 : vector<32x8xf32> to vector<4x8x8xf32>
    "tpu.trace_start"() <{level = 10 : i32, message = "bij,bjd->bid"}> : () -> ()
    %cst_62 = arith.constant dense<0.000000e+00> : vector<4x8x32xf32>
    %329 = tpu.matmul %328, %305, %cst_62 {dimension_numbers = #tpu.dot_dimension_numbers<[2], [1], [1], [2], [0, 0, 0, 1, 1, 2], [0], [0]>} : vector<4x8x8xf32>, vector<4x8x32xf32>, vector<4x8x32xf32> -> vector<4x8x32xf32>
    "tpu.trace_stop"() : () -> ()
    %330 = vector.shape_cast %327 : vector<32x8xf32> to vector<32x8x1xf32>
    %331 = vector.broadcast %330 : vector<32x8x1xf32> to vector<32x8x32xf32>
    %332 = arith.mulf %331, %306 : vector<32x8x32xf32>
    %cst_63 = arith.constant dense<0.000000e+00> : vector<32x32xf32>
    %333 = vector.multi_reduction <add>, %332, %cst_63 [1] : vector<32x8x32xf32> to vector<32x32xf32>
    %334 = vector.shape_cast %329 : vector<4x8x32xf32> to vector<32x32xf32>
    %335 = arith.addf %299, %334 : vector<32x32xf32>
    %336 = arith.addf %335, %333 : vector<32x32xf32>
    %cst_64 = arith.constant 5.000000e-01 : f32
    %337 = vector.broadcast %cst_64 : f32 to vector<32x32xf32>
    %338 = arith.mulf %336, %337 : vector<32x32xf32>
    %339 = arith.addf %338, %261 : vector<32x32xf32>
    %340 = arith.addf %339, %254 : vector<32x32xf32>
    %cst_65 = arith.constant dense<0.000000e+00> : vector<32xf32>
    %341 = vector.multi_reduction <add>, %340, %cst_65 [1] : vector<32x32xf32> to vector<32xf32>
    %342 = vector.shape_cast %341 : vector<32xf32> to vector<32x1xf32>
    %cst_66 = arith.constant 3.200000e+01 : f32
    %343 = vector.broadcast %cst_66 : f32 to vector<32x1xf32>
    %344 = arith.divf %342, %343 : vector<32x1xf32>
    %345 = vector.broadcast %344 : vector<32x1xf32> to vector<32x32xf32>
    %346 = arith.subf %340, %345 : vector<32x32xf32>
    %347 = arith.mulf %346, %346 : vector<32x32xf32>
    %cst_67 = arith.constant dense<0.000000e+00> : vector<32xf32>
    %348 = vector.multi_reduction <add>, %347, %cst_67 [1] : vector<32x32xf32> to vector<32xf32>
    %349 = vector.shape_cast %348 : vector<32xf32> to vector<32x1xf32>
    %cst_68 = arith.constant 3.200000e+01 : f32
    %350 = vector.broadcast %cst_68 : f32 to vector<32x1xf32>
    %351 = arith.divf %349, %350 : vector<32x1xf32>
    %cst_69 = arith.constant 9.99999997E-7 : f32
    %352 = vector.broadcast %cst_69 : f32 to vector<32x1xf32>
    %353 = arith.addf %351, %352 : vector<32x1xf32>
    %354 = math.rsqrt %353 : vector<32x1xf32>
    %355 = vector.broadcast %354 : vector<32x1xf32> to vector<32x32xf32>
    %356 = arith.mulf %346, %355 : vector<32x32xf32>
    %357 = vector.extract_strided_slice %134 {offsets = [1, 0, 0], sizes = [1, 1, 32], strides = [1, 1, 1]} : vector<2x1x32xf32> to vector<1x1x32xf32>
    %358 = vector.shape_cast %357 : vector<1x1x32xf32> to vector<1x32xf32>
    %359 = vector.broadcast %358 : vector<1x32xf32> to vector<32x32xf32>
    %360 = arith.mulf %356, %359 : vector<32x32xf32>
    %361 = vector.extract_strided_slice %135 {offsets = [1, 0, 0], sizes = [1, 1, 32], strides = [1, 1, 1]} : vector<2x1x32xf32> to vector<1x1x32xf32>
    %362 = vector.shape_cast %361 : vector<1x1x32xf32> to vector<1x32xf32>
    %363 = vector.broadcast %362 : vector<1x32xf32> to vector<32x32xf32>
    %364 = arith.addf %360, %363 : vector<32x32xf32>
    %365 = vector.extract_strided_slice %136 {offsets = [1, 0, 0], sizes = [1, 32, 32], strides = [1, 1, 1]} : vector<2x32x32xf32> to vector<1x32x32xf32>
    %366 = vector.shape_cast %365 : vector<1x32x32xf32> to vector<32x32xf32>
    %cst_70 = arith.constant dense<0.000000e+00> : vector<32x32xf32>
    %367 = tpu.matmul %364, %366, %cst_70 {dimension_numbers = #tpu.dot_dimension_numbers<[1], [0], [0], [1], [0, 0, 1, 1], [], []>} : vector<32x32xf32>, vector<32x32xf32>, vector<32x32xf32> -> vector<32x32xf32>
    %368 = vector.extract_strided_slice %137 {offsets = [1, 0, 0], sizes = [1, 1, 32], strides = [1, 1, 1]} : vector<2x1x32xf32> to vector<1x1x32xf32>
    %369 = vector.shape_cast %368 : vector<1x1x32xf32> to vector<1x32xf32>
    %370 = vector.broadcast %369 : vector<1x32xf32> to vector<32x32xf32>
    %371 = arith.addf %367, %370 : vector<32x32xf32>
    %c0_71 = arith.constant 0 : index
    %c0_72 = arith.constant 0 : index
    %372 = vector.load %arg10[%c0_71, %c0_72] : memref<32x32xf32, #tpu.memory_space<vmem>>, vector<32x32xf32>
    tpu.vector_store %arg10[%c0_71, %c0_72], %371 {strides = array<i32>} : memref<32x32xf32, #tpu.memory_space<vmem>>, vector<32x32xf32>,
    return
  }
  func.func @transform_0(%arg0: i32) -> (i32, i32) {
    %c0_i32 = arith.constant 0 : i32
    %c0_i32_0 = arith.constant 0 : i32
    return %arg0, %c0_i32 : i32, i32
  }
  func.func @transform_1(%arg0: i32) -> (i32, i32, i32) {
    %c0_i32 = arith.constant 0 : i32
    %c0_i32_0 = arith.constant 0 : i32
    %c0_i32_1 = arith.constant 0 : i32
    return %arg0, %c0_i32, %c0_i32_0 : i32, i32, i32
  }
  func.func @transform_2(%arg0: i32) -> (i32, i32) {
    %c0_i32 = arith.constant 0 : i32
    %c0_i32_0 = arith.constant 0 : i32
    %c0_i32_1 = arith.constant 0 : i32
    return %c0_i32, %c0_i32_0 : i32, i32
  }
  func.func @transform_3(%arg0: i32) -> (i32, i32) {
    %c0_i32 = arith.constant 0 : i32
    %c0_i32_0 = arith.constant 0 : i32
    %c0_i32_1 = arith.constant 0 : i32
    return %c0_i32, %c0_i32_0 : i32, i32
  }
  func.func @transform_4(%arg0: i32) -> (i32, i32) {
    %c0_i32 = arith.constant 0 : i32
    %c0_i32_0 = arith.constant 0 : i32
    %c0_i32_1 = arith.constant 0 : i32
    return %c0_i32, %c0_i32_0 : i32, i32
  }
  func.func @transform_5(%arg0: i32) -> (i32, i32, i32) {
    %c0_i32 = arith.constant 0 : i32
    %c0_i32_0 = arith.constant 0 : i32
    %c0_i32_1 = arith.constant 0 : i32
    %c0_i32_2 = arith.constant 0 : i32
    return %c0_i32, %c0_i32_0, %c0_i32_1 : i32, i32, i32
  }
  func.func @transform_6(%arg0: i32) -> (i32, i32, i32) {
    %c0_i32 = arith.constant 0 : i32
    %c0_i32_0 = arith.constant 0 : i32
    %c0_i32_1 = arith.constant 0 : i32
    %c0_i32_2 = arith.constant 0 : i32
    return %c0_i32, %c0_i32_0, %c0_i32_1 : i32, i32, i32
  }
  func.func @transform_7(%arg0: i32) -> (i32, i32, i32) {
    %c0_i32 = arith.constant 0 : i32
    %c0_i32_0 = arith.constant 0 : i32
    %c0_i32_1 = arith.constant 0 : i32
    %c0_i32_2 = arith.constant 0 : i32
    return %c0_i32, %c0_i32_0, %c0_i32_1 : i32, i32, i32
  }
  func.func @transform_8(%arg0: i32) -> (i32, i32, i32) {
    %c0_i32 = arith.constant 0 : i32
    %c0_i32_0 = arith.constant 0 : i32
    %c0_i32_1 = arith.constant 0 : i32
    %c0_i32_2 = arith.constant 0 : i32
    return %c0_i32, %c0_i32_0, %c0_i32_1 : i32, i32, i32
  }
  func.func @transform_9(%arg0: i32) -> (i32, i32) {
    %c0_i32 = arith.constant 0 : i32
    %c0_i32_0 = arith.constant 0 : i32
    return %arg0, %c0_i32 : i32, i32
  }
}

</mosaic_0001>

<llo_original>
// kernel: tpu_custom_call.1
$region0: #{tpu_custom_call.1}
  #allocation0 [shape = 'u32[]', space=smem, size = 0x4, offset = 0x4, fixed_abs, tag = 'smem constant byte address 0x4 - core index']
  #allocation1 [shape = 'u32[144,128]{1,0:T(1,128)}', space=vmem, size = 0x12000, scoped, tag = 'internal scratch']
  %s0 = inlined_call_operand.vmem [shape: f32[64,32], index: 0, kind: input, shape index: {}]
  %s1 = inlined_call_operand.vmem [shape: s32[8,8,8], index: 1, kind: input, shape index: {}]
  %s2 = inlined_call_operand.hbm [shape: f32[32,512], index: 2, kind: input, shape index: {}]
  %s3 = inlined_call_operand.vmem [shape: f32[1,512], index: 3, kind: input, shape index: {}]
  %s4 = inlined_call_operand.vmem [shape: f32[10,64], index: 4, kind: input, shape index: {}]
  %s5 = inlined_call_operand.vmem [shape: f32[2,1,32], index: 5, kind: input, shape index: {}]
  %s6 = inlined_call_operand.vmem [shape: f32[2,1,32], index: 6, kind: input, shape index: {}]
  %s7 = inlined_call_operand.hbm [shape: f32[2,32,32], index: 7, kind: input, shape index: {}]
  %s8 = inlined_call_operand.vmem [shape: f32[2,1,32], index: 8, kind: input, shape index: {}]
  %s9 = inlined_call_operand.vmem [shape: f32[64,32], index: 9, kind: output, shape index: {}]
  %s10 = sld [smem:[#allocation0]]
  $region77: #{tpu_custom_call.1} parent=0
    _
  %s12 = ssub.s32 1, %s10
  %s13 = scalar_select 0, %s12, %s10
  $region1: #{tpu_custom_call.1} parent=0
    #allocation2 [shape = 'u8[65536]{0}', space=vmem, size = 0x10000, scoped, tag = 'input window, operand 2, single buffered']
    #allocation3 [shape = 's32[2]{0}', space=sflag, size = 0x8, scoped, tag = 'scoped memory for tpu_custom_call.1']
    #allocation4 [shape = 'u8[32768]{0}', space=vmem, size = 0x8000, scoped, tag = 'input window, operand 7, single buffered']
    #allocation5 [shape = 's32[1]{0}', space=sflag, size = 0x4, scoped, tag = 'scoped memory for tpu_custom_call.1']
    %14 = vsyncpa [#allocation3], 0
    %15 = vsyncpa [#allocation5], 0
    loop: start=0, step=1, limit=4
    $region2: #{tpu_custom_call.1} parent=1 // loop_pre_header
      _
    $region3: #{tpu_custom_call.1} parent=1 // loop_header
      %s17 = sphi 0, %s21
      %p18 = scmp.ge.s32.totalorder %s17, 4
      %s27 = sphi 0, %s29
      %s30 = sphi 0, %s27
      %s31 = sphi 0, %s30
      %s47 = sphi 0, %s31
      %s53 = sphi 0, %s55
      %s56 = sphi 0, %s53
      %s57 = sphi 0, %s56
      %s73 = sphi 0, %s57
      %s77 = sphi 0, %s77
      %s79 = sphi 0, %s77
      %s80 = sphi 0, %s79
      %s94 = sphi 0, %s80
      %s98 = sphi 0, %s98
      %s100 = sphi 0, %s98
      %s101 = sphi 0, %s100
      %s115 = sphi 0, %s101
      %s119 = sphi 0, %s119
      %s121 = sphi 0, %s119
      %s122 = sphi 0, %s121
      %s136 = sphi 0, %s122
      %s140 = sphi 0, %s140
      %s142 = sphi 0, %s140
      %s143 = sphi 0, %s142
      %s157 = sphi 0, %s143
      %s161 = sphi 0, %s161
      %s163 = sphi 0, %s161
      %s164 = sphi 0, %s163
      %s178 = sphi 0, %s164
      %s182 = sphi 0, %s182
      %s184 = sphi 0, %s182
      %s185 = sphi 0, %s184
      %s199 = sphi 0, %s185
      %s203 = sphi 0, %s203
      %s205 = sphi 0, %s203
      %s206 = sphi 0, %s205
      %s220 = sphi 0, %s206
      %s226 = sphi 0, %s228
      %s229 = sphi 0, %s226
      %s230 = sphi 0, %s229
      %s246 = sphi 0, %s230
    $region4: #{tpu_custom_call.1} parent=1 // loop_header_branch
      %20 = sbr.rel (%p18) target = $region8
    $region5: #{tpu_custom_call.1} parent=1 // loop_body
      %s22 = ssub.s32 %s17, 1
      %s23 = ssub.s32 %s17, 2
      %s24 = sadd.s32 %s17, 1
      %s25 = ssub.s32 %s17, %s24
      %p26 = scmp.eq.s32.totalorder %s25, 0
      %s28 = sadd.s32 %s27, 1
      %s29 = scalar_select %p26, %s27, %s28
      %p32 = pneg %p26
      %p33 = scmp.eq.s32.totalorder %s17, 1
      %p34 = por %p32, %p33
      %p35 = scmp.ne.s32.totalorder %s27, %s30
      %p36 = scmp.eq.s32.totalorder %s17, 0
      %p37 = por %p35, %p36
      %p38 = scmp.ne.s32.totalorder %s27, %s30
      %p39 = scmp.eq.s32.totalorder %s22, 1
      %p40 = por %p38, %p39
      %p41 = scmp.ne.s32.totalorder %s30, %s31
      %p42 = scmp.eq.s32.totalorder %s22, 0
      %p43 = por %p41, %p42
      %p44 = scmp.ne.s32.totalorder %s30, %s31
      %p45 = scmp.eq.s32.totalorder %s23, 1
      %p46 = por %p44, %p45
      %p48 = scmp.ne.s32.totalorder %s31, %s47
      %p49 = scmp.eq.s32.totalorder %s23, 0
      %p50 = por %p48, %p49
      %s51 = ssub.s32 %s17, %s24
      %p52 = scmp.eq.s32.totalorder %s51, 0
      %s54 = sadd.s32 %s53, 1
      %s55 = scalar_select %p52, %s53, %s54
      %p58 = pneg %p52
      %p59 = scmp.eq.s32.totalorder %s17, 1
      %p60 = por %p58, %p59
      %p61 = scmp.ne.s32.totalorder %s53, %s56
      %p62 = scmp.eq.s32.totalorder %s17, 0
      %p63 = por %p61, %p62
      %p64 = scmp.ne.s32.totalorder %s53, %s56
      %p65 = scmp.eq.s32.totalorder %s22, 1
      %p66 = por %p64, %p65
      %p67 = scmp.ne.s32.totalorder %s56, %s57
      %p68 = scmp.eq.s32.totalorder %s22, 0
      %p69 = por %p67, %p68
      %p70 = scmp.ne.s32.totalorder %s56, %s57
      %p71 = scmp.eq.s32.totalorder %s23, 1
      %p72 = por %p70, %p71
      %p74 = scmp.ne.s32.totalorder %s57, %s73
      %p75 = scmp.eq.s32.totalorder %s23, 0
      %p76 = por %p74, %p75
      %s78 = sadd.s32 %s77, 1
      %p81 = scmp.eq.s32.totalorder %s17, 1
      %p82 = scmp.ne.s32.totalorder %s77, %s79
      %p83 = scmp.eq.s32.totalorder %s17, 0
      %p84 = por %p82, %p83
      %p85 = scmp.ne.s32.totalorder %s77, %s79
      %p86 = scmp.eq.s32.totalorder %s22, 1
      %p87 = por %p85, %p86
      %p88 = scmp.ne.s32.totalorder %s79, %s80
      %p89 = scmp.eq.s32.totalorder %s22, 0
      %p90 = por %p88, %p89
      %p91 = scmp.ne.s32.totalorder %s79, %s80
      %p92 = scmp.eq.s32.totalorder %s23, 1
      %p93 = por %p91, %p92
      %p95 = scmp.ne.s32.totalorder %s80, %s94
      %p96 = scmp.eq.s32.totalorder %s23, 0
      %p97 = por %p95, %p96
      %s99 = sadd.s32 %s98, 1
      %p102 = scmp.eq.s32.totalorder %s17, 1
      %p103 = scmp.ne.s32.totalorder %s98, %s100
      %p104 = scmp.eq.s32.totalorder %s17, 0
      %p105 = por %p103, %p104
      %p106 = scmp.ne.s32.totalorder %s98, %s100
      %p107 = scmp.eq.s32.totalorder %s22, 1
      %p108 = por %p106, %p107
      %p109 = scmp.ne.s32.totalorder %s100, %s101
      %p110 = scmp.eq.s32.totalorder %s22, 0
      %p111 = por %p109, %p110
      %p112 = scmp.ne.s32.totalorder %s100, %s101
      %p113 = scmp.eq.s32.totalorder %s23, 1
      %p114 = por %p112, %p113
      %p116 = scmp.ne.s32.totalorder %s101, %s115
      %p117 = scmp.eq.s32.totalorder %s23, 0
      %p118 = por %p116, %p117
      %s120 = sadd.s32 %s119, 1
      %p123 = scmp.eq.s32.totalorder %s17, 1
      %p124 = scmp.ne.s32.totalorder %s119, %s121
      %p125 = scmp.eq.s32.totalorder %s17, 0
      %p126 = por %p124, %p125
      %p127 = scmp.ne.s32.totalorder %s119, %s121
      %p128 = scmp.eq.s32.totalorder %s22, 1
      %p129 = por %p127, %p128
      %p130 = scmp.ne.s32.totalorder %s121, %s122
      %p131 = scmp.eq.s32.totalorder %s22, 0
      %p132 = por %p130, %p131
      %p133 = scmp.ne.s32.totalorder %s121, %s122
      %p134 = scmp.eq.s32.totalorder %s23, 1
      %p135 = por %p133, %p134
      %p137 = scmp.ne.s32.totalorder %s122, %s136
      %p138 = scmp.eq.s32.totalorder %s23, 0
      %p139 = por %p137, %p138
      %s141 = sadd.s32 %s140, 1
      %p144 = scmp.eq.s32.totalorder %s17, 1
      %p145 = scmp.ne.s32.totalorder %s140, %s142
      %p146 = scmp.eq.s32.totalorder %s17, 0
      %p147 = por %p145, %p146
      %p148 = scmp.ne.s32.totalorder %s140, %s142
      %p149 = scmp.eq.s32.totalorder %s22, 1
      %p150 = por %p148, %p149
      %p151 = scmp.ne.s32.totalorder %s142, %s143
      %p152 = scmp.eq.s32.totalorder %s22, 0
      %p153 = por %p151, %p152
      %p154 = scmp.ne.s32.totalorder %s142, %s143
      %p155 = scmp.eq.s32.totalorder %s23, 1
      %p156 = por %p154, %p155
      %p158 = scmp.ne.s32.totalorder %s143, %s157
      %p159 = scmp.eq.s32.totalorder %s23, 0
      %p160 = por %p158, %p159
      %s162 = sadd.s32 %s161, 1
      %p165 = scmp.eq.s32.totalorder %s17, 1
      %p166 = scmp.ne.s32.totalorder %s161, %s163
      %p167 = scmp.eq.s32.totalorder %s17, 0
      %p168 = por %p166, %p167
      %p169 = scmp.ne.s32.totalorder %s161, %s163
      %p170 = scmp.eq.s32.totalorder %s22, 1
      %p171 = por %p169, %p170
      %p172 = scmp.ne.s32.totalorder %s163, %s164
      %p173 = scmp.eq.s32.totalorder %s22, 0
      %p174 = por %p172, %p173
      %p175 = scmp.ne.s32.totalorder %s163, %s164
      %p176 = scmp.eq.s32.totalorder %s23, 1
      %p177 = por %p175, %p176
      %p179 = scmp.ne.s32.totalorder %s164, %s178
      %p180 = scmp.eq.s32.totalorder %s23, 0
      %p181 = por %p179, %p180
      %s183 = sadd.s32 %s182, 1
      %p186 = scmp.eq.s32.totalorder %s17, 1
      %p187 = scmp.ne.s32.totalorder %s182, %s184
      %p188 = scmp.eq.s32.totalorder %s17, 0
      %p189 = por %p187, %p188
      %p190 = scmp.ne.s32.totalorder %s182, %s184
      %p191 = scmp.eq.s32.totalorder %s22, 1
      %p192 = por %p190, %p191
      %p193 = scmp.ne.s32.totalorder %s184, %s185
      %p194 = scmp.eq.s32.totalorder %s22, 0
      %p195 = por %p193, %p194
      %p196 = scmp.ne.s32.totalorder %s184, %s185
      %p197 = scmp.eq.s32.totalorder %s23, 1
      %p198 = por %p196, %p197
      %p200 = scmp.ne.s32.totalorder %s185, %s199
      %p201 = scmp.eq.s32.totalorder %s23, 0
      %p202 = por %p200, %p201
      %s204 = sadd.s32 %s203, 1
      %p207 = scmp.eq.s32.totalorder %s17, 1
      %p208 = scmp.ne.s32.totalorder %s203, %s205
      %p209 = scmp.eq.s32.totalorder %s17, 0
      %p210 = por %p208, %p209
      %p211 = scmp.ne.s32.totalorder %s203, %s205
      %p212 = scmp.eq.s32.totalorder %s22, 1
      %p213 = por %p211, %p212
      %p214 = scmp.ne.s32.totalorder %s205, %s206
      %p215 = scmp.eq.s32.totalorder %s22, 0
      %p216 = por %p214, %p215
      %p217 = scmp.ne.s32.totalorder %s205, %s206
      %p218 = scmp.eq.s32.totalorder %s23, 1
      %p219 = por %p217, %p218
      %p221 = scmp.ne.s32.totalorder %s206, %s220
      %p222 = scmp.eq.s32.totalorder %s23, 0
      %p223 = por %p221, %p222
      %s224 = ssub.s32 %s17, %s24
      %p225 = scmp.eq.s32.totalorder %s224, 0
      %s227 = sadd.s32 %s226, 1
      %s228 = scalar_select %p225, %s226, %s227
      %p231 = pneg %p225
      %p232 = scmp.eq.s32.totalorder %s17, 1
      %p233 = por %p231, %p232
      %p234 = scmp.ne.s32.totalorder %s226, %s229
      %p235 = scmp.eq.s32.totalorder %s17, 0
      %p236 = por %p234, %p235
      %p237 = scmp.ne.s32.totalorder %s226, %s229
      %p238 = scmp.eq.s32.totalorder %s22, 1
      %p239 = por %p237, %p238
      %p240 = scmp.ne.s32.totalorder %s229, %s230
      %p241 = scmp.eq.s32.totalorder %s22, 0
      %p242 = por %p240, %p241
      %p243 = scmp.ne.s32.totalorder %s229, %s230
      %p244 = scmp.eq.s32.totalorder %s23, 1
      %p245 = por %p243, %p244
      %p247 = scmp.ne.s32.totalorder %s230, %s246
      %p248 = scmp.eq.s32.totalorder %s23, 0
      %p249 = por %p247, %p248
      %p250 = scmp.le.s32.totalorder 1, %s17
      %p251 = scmp.lt.s32.totalorder %s17, 3
      %p252 = pnand %p250, %p251
      %p253 = pneg %p252
      // Predicated region
      $region9: #{tpu_custom_call.1} parent=5 // pred_check
        _
      $region10: #{tpu_custom_call.1} parent=5 // pred_check_branch
        %255 = sbr.rel (%p252) target = $region12
      $region11: #{tpu_custom_call.1} parent=5 // pred_region
        %s256 = ssub.s32 %s17, 1
        // Predicated region
        $region13: #{tpu_custom_call.1} parent=11 // pred_check
          %p257 = pneg %p90
        $region14: #{tpu_custom_call.1} parent=11 // pred_check_branch
          %259 = sbr.rel (%p257) target = $region16
        $region15: #{tpu_custom_call.1} parent=11 // pred_region
          %s261 = ssub.s32 2048, 2048
          %262 = vsyncadd [#allocation3], %s261
          %s263 = sshll.u32 [#allocation2], 4
          %s264 = int_to_ptr.vmem [resolvable:$true] %s263
          %269 = dma.hbm_to_vmem [thread:$0]  %s2, 2048, %s264, [#allocation3], 512, 512, 32
        $region16: #{tpu_custom_call.1} parent=11 // pred_fallthru
          _
        // Predicated region
        $region17: #{tpu_custom_call.1} parent=11 // pred_check
          %p270 = pneg %p111
        $region18: #{tpu_custom_call.1} parent=11 // pred_check_branch
          %272 = sbr.rel (%p270) target = $region20
        $region19: #{tpu_custom_call.1} parent=11 // pred_region
          _
        $region20: #{tpu_custom_call.1} parent=11 // pred_fallthru
          _
        // Predicated region
        $region21: #{tpu_custom_call.1} parent=11 // pred_check
          %p273 = pneg %p132
        $region22: #{tpu_custom_call.1} parent=11 // pred_check_branch
          %275 = sbr.rel (%p273) target = $region24
        $region23: #{tpu_custom_call.1} parent=11 // pred_region
          _
        $region24: #{tpu_custom_call.1} parent=11 // pred_fallthru
          _
        // Predicated region
        $region25: #{tpu_custom_call.1} parent=11 // pred_check
          %p276 = pneg %p153
        $region26: #{tpu_custom_call.1} parent=11 // pred_check_branch
          %278 = sbr.rel (%p276) target = $region28
        $region27: #{tpu_custom_call.1} parent=11 // pred_region
          _
        $region28: #{tpu_custom_call.1} parent=11 // pred_fallthru
          _
        // Predicated region
        $region29: #{tpu_custom_call.1} parent=11 // pred_check
          %p279 = pneg %p174
        $region30: #{tpu_custom_call.1} parent=11 // pred_check_branch
          %281 = sbr.rel (%p279) target = $region32
        $region31: #{tpu_custom_call.1} parent=11 // pred_region
          _
        $region32: #{tpu_custom_call.1} parent=11 // pred_fallthru
          _
        // Predicated region
        $region33: #{tpu_custom_call.1} parent=11 // pred_check
          %p282 = pneg %p195
        $region34: #{tpu_custom_call.1} parent=11 // pred_check_branch
          %284 = sbr.rel (%p282) target = $region36
        $region35: #{tpu_custom_call.1} parent=11 // pred_region
          %s286 = ssub.s32 1024, 1024
          %287 = vsyncadd [#allocation5], %s286
          %s288 = sshll.u32 [#allocation4], 4
          %s289 = int_to_ptr.vmem [resolvable:$true] %s288
          %294 = dma.hbm_to_vmem [thread:$0]  %s7, 1024, %s289, [#allocation5], 128, 128, 8
        $region36: #{tpu_custom_call.1} parent=11 // pred_fallthru
          _
        // Predicated region
        $region37: #{tpu_custom_call.1} parent=11 // pred_check
          %p295 = pneg %p216
        $region38: #{tpu_custom_call.1} parent=11 // pred_check_branch
          %297 = sbr.rel (%p295) target = $region40
        $region39: #{tpu_custom_call.1} parent=11 // pred_region
          _
        $region40: #{tpu_custom_call.1} parent=11 // pred_fallthru
          _
      $region12: #{tpu_custom_call.1} parent=5 // pred_fallthru
        _
      %p298 = scmp.lt.s32.totalorder %s17, 2
      // Predicated region
      $region41: #{tpu_custom_call.1} parent=5 // pred_check
        %p299 = pneg %p298
      $region42: #{tpu_custom_call.1} parent=5 // pred_check_branch
        %301 = sbr.rel (%p299) target = $region44
      $region43: #{tpu_custom_call.1} parent=5 // pred_region
        // Predicated region
        $region45: #{tpu_custom_call.1} parent=43 // pred_check
          %p302 = pneg %p37
        $region46: #{tpu_custom_call.1} parent=43 // pred_check_branch
          %304 = sbr.rel (%p302) target = $region48
        $region47: #{tpu_custom_call.1} parent=43 // pred_region
          %s305 = smul.u32 4, %s17
          %p306 = scmp.lt.s32.totalorder %s305, 7
          %s307 = scalar_select %p306, %s305, 7
          %s308 = smul.addr %s307, 8
          %s309 = scalar_lea.vmem %s0, %s308
          %s310 = smul.u32 4, %s17
        $region48: #{tpu_custom_call.1} parent=43 // pred_fallthru
          _
        // Predicated region
        $region49: #{tpu_custom_call.1} parent=43 // pred_check
          %p311 = pneg %p63
        $region50: #{tpu_custom_call.1} parent=43 // pred_check_branch
          %313 = sbr.rel (%p311) target = $region52
        $region51: #{tpu_custom_call.1} parent=43 // pred_region
          %s314 = smul.u32 4, %s17
          %p315 = scmp.lt.s32.totalorder %s314, 7
          %s316 = scalar_select %p315, %s314, 7
          %s317 = smul.addr %s316, 8
          %s318 = scalar_lea.vmem %s1, %s317
          %s319 = smul.u32 4, %s17
        $region52: #{tpu_custom_call.1} parent=43 // pred_fallthru
          _
      $region44: #{tpu_custom_call.1} parent=5 // pred_fallthru
        _
      %p320 = scmp.le.s32.totalorder 1, %s17
      %p321 = scmp.lt.s32.totalorder %s17, 3
      %p322 = pnand %p320, %p321
      %p323 = pneg %p322
      // Predicated region
      $region53: #{tpu_custom_call.1} parent=5 // pred_check
        _
      $region54: #{tpu_custom_call.1} parent=5 // pred_check_branch
        %325 = sbr.rel (%p322) target = $region56
      $region55: #{tpu_custom_call.1} parent=5 // pred_region
        %s326 = ssub.s32 %s17, 1
        // Predicated region
        $region57: #{tpu_custom_call.1} parent=55 // pred_check
          %p327 = pneg %p90
        $region58: #{tpu_custom_call.1} parent=55 // pred_check_branch
          %329 = sbr.rel (%p327) target = $region60
        $region59: #{tpu_custom_call.1} parent=55 // pred_region
          %330 = dma.done [#allocation3], 2048
        $region60: #{tpu_custom_call.1} parent=55 // pred_fallthru
          _
        // Predicated region
        $region61: #{tpu_custom_call.1} parent=55 // pred_check
          %p331 = pneg %p195
        $region62: #{tpu_custom_call.1} parent=55 // pred_check_branch
          %333 = sbr.rel (%p331) target = $region64
        $region63: #{tpu_custom_call.1} parent=55 // pred_region
          %334 = dma.done [#allocation5], 1024
        $region64: #{tpu_custom_call.1} parent=55 // pred_fallthru
          _
        %s335 = smul.u32 4, %s22
        %p336 = scmp.lt.s32.totalorder %s335, 7
        %s337 = scalar_select %p336, %s335, 7
        %s338 = smul.addr %s337, 8
        %s339 = scalar_lea.vmem %s0, %s338
        %p340 = pneg %p43
        %p341 = pneg %p40
        %s342 = smul.u32 4, %s22
        %p343 = scmp.lt.s32.totalorder %s342, 7
        %s344 = scalar_select %p343, %s342, 7
        %s345 = smul.addr %s344, 8
        %s346 = scalar_lea.vmem %s1, %s345
        %p347 = pneg %p69
        %p348 = pneg %p66
        %p349 = pneg %p90
        %p350 = pneg %p87
        %p351 = pneg %p111
        %p352 = pneg %p108
        %p353 = pneg %p132
        %p354 = pneg %p129
        %p355 = pneg %p153
        %p356 = pneg %p150
        %p357 = pneg %p174
        %p358 = pneg %p171
        %p359 = pneg %p195
        %p360 = pneg %p192
        %p361 = pneg %p216
        %p362 = pneg %p213
        %p363 = pneg %p242
        %p364 = pneg %p239
        %s365 = smul.u32 4, %s22
        %p366 = scmp.lt.s32.totalorder %s365, 7
        %s367 = scalar_select %p366, %s365, 7
        %s368 = smul.addr %s367, 8
        %s369 = scalar_lea.vmem %s9, %s368
        %s370 = smul.u32 4, %s22
        %p371 = scmp.lt.s32.totalorder %s370, 7
        %s372 = scalar_select %p371, %s370, 7
        %s373 = smul.addr %s372, 8
        %s374 = scalar_lea.vmem %s0, %s373
        %s375 = smul.u32 4, %s22
        %s376 = smul.u32 4, %s22
        %p377 = scmp.lt.s32.totalorder %s376, 7
        %s378 = scalar_select %p377, %s376, 7
        %s379 = smul.addr %s378, 8
        %s380 = scalar_lea.vmem %s1, %s379
        %s381 = smul.u32 4, %s22
        %s382 = smul.u32 4, %s22
        %p383 = scmp.lt.s32.totalorder %s382, 7
        %s384 = scalar_select %p383, %s382, 7
        %s385 = smul.addr %s384, 8
        %s386 = scalar_lea.vmem %s9, %s385
        %s387 = smul.u32 4, %s22
        %v388 = vld [vmem:[%s374] sm:$0xff]
        %v389 = vld [vmem:[%s374 + $0x8] sm:$0xff]
        %v390 = vld [vmem:[%s374 + $0x10] sm:$0xff]
        %v391 = vld [vmem:[%s374 + $0x18] sm:$0xff]
        %v392 = vld [vmem:[%s380] sm:$0xff]
        %v393 = vld [vmem:[%s380 + $0x8] sm:$0xff]
        %v394 = vld [vmem:[%s380 + $0x10] sm:$0xff]
        %v395 = vld [vmem:[%s380 + $0x18] sm:$0xff]
        %vm396 = vcmp.ge.s32.totalorder %v392, 0
        %vm397 = vcmp.ge.s32.totalorder %v393, 0
        %vm398 = vcmp.ge.s32.totalorder %v394, 0
        %vm399 = vcmp.ge.s32.totalorder %v395, 0
        %v400 = vsel %vm396, 0.0, -1e+30
        %v401 = vsel %vm397, 0.0, -1e+30
        %v402 = vsel %vm398, 0.0, -1e+30
        %v403 = vsel %vm399, 0.0, -1e+30
        %v404 = vsel %vm396, 1, 0
        %v405 = vsel %vm397, 1, 0
        %v406 = vsel %vm398, 1, 0
        %v407 = vsel %vm399, 1, 0
        %v408 = vcvt.s32.f32 %v404
        %v409 = vcvt.s32.f32 %v405
        %v410 = vcvt.s32.f32 %v406
        %v411 = vcvt.s32.f32 %v407
        %v412 = vld [vmem:[%s4] sm:$0xff]
        %v413 = vld [vmem:[%s4 + $0x8] sm:$0x3]
        %vm414 = vcmp.eq.s32.totalorder %v392, 0
        %vm415 = vcmp.eq.s32.totalorder %v393, 0
        %vm416 = vcmp.eq.s32.totalorder %v394, 0
        %vm417 = vcmp.eq.s32.totalorder %v395, 0
        %v418 = vsel %vm414, 1, 0
        %v419 = vsel %vm415, 1, 0
        %v420 = vsel %vm416, 1, 0
        %v421 = vsel %vm417, 1, 0
        %v422 = vcvt.s32.f32 %v418
        %v423 = vcvt.s32.f32 %v419
        %v424 = vcvt.s32.f32 %v420
        %v425 = vcvt.s32.f32 %v421
        %v426 = vlaneseq
        %v427 = vshrl.u32 %v426, 7
        %v428 = vsub.s32 0, %v427
        %v429 = vrot.slane %v422, %v428
        %431 = vbcast.lane.b32.xlu0 %v429, 256
        %v432 = vpop.permute.xlu0 %431
        %v433 = vlaneseq
        %v434 = vshrl.u32 %v433, 7
        %v435 = vsub.s32 1, %v434
        %v436 = vrot.slane %v422, %v435
        %438 = vbcast.lane.b32.xlu0 %v436, 256
        %v439 = vpop.permute.xlu0 %438
        %v440 = vlaneseq
        %v441 = vshrl.u32 %v440, 7
        %v442 = vsub.s32 2, %v441
        %v443 = vrot.slane %v422, %v442
        %445 = vbcast.lane.b32.xlu0 %v443, 256
        %v446 = vpop.permute.xlu0 %445
        %v447 = vlaneseq
        %v448 = vshrl.u32 %v447, 7
        %v449 = vsub.s32 3, %v448
        %v450 = vrot.slane %v422, %v449
        %452 = vbcast.lane.b32.xlu0 %v450, 256
        %v453 = vpop.permute.xlu0 %452
        %v454 = vlaneseq
        %v455 = vshrl.u32 %v454, 7
        %v456 = vsub.s32 4, %v455
        %v457 = vrot.slane %v422, %v456
        %459 = vbcast.lane.b32.xlu0 %v457, 256
        %v460 = vpop.permute.xlu0 %459
        %v461 = vlaneseq
        %v462 = vshrl.u32 %v461, 7
        %v463 = vsub.s32 5, %v462
        %v464 = vrot.slane %v422, %v463
        %466 = vbcast.lane.b32.xlu0 %v464, 256
        %v467 = vpop.permute.xlu0 %466
        %v468 = vlaneseq
        %v469 = vshrl.u32 %v468, 7
        %v470 = vsub.s32 6, %v469
        %v471 = vrot.slane %v422, %v470
        %473 = vbcast.lane.b32.xlu0 %v471, 256
        %v474 = vpop.permute.xlu0 %473
        %v475 = vlaneseq
        %v476 = vshrl.u32 %v475, 7
        %v477 = vsub.s32 7, %v476
        %v478 = vrot.slane %v422, %v477
        %480 = vbcast.lane.b32.xlu0 %v478, 256
        %v481 = vpop.permute.xlu0 %480
        %v482 = vlaneseq
        %v483 = vshrl.u32 %v482, 7
        %v484 = vsub.s32 0, %v483
        %v485 = vrot.slane %v423, %v484
        %487 = vbcast.lane.b32.xlu0 %v485, 256
        %v488 = vpop.permute.xlu0 %487
        %v489 = vlaneseq
        %v490 = vshrl.u32 %v489, 7
        %v491 = vsub.s32 1, %v490
        %v492 = vrot.slane %v423, %v491
        %494 = vbcast.lane.b32.xlu0 %v492, 256
        %v495 = vpop.permute.xlu0 %494
        %v496 = vlaneseq
        %v497 = vshrl.u32 %v496, 7
        %v498 = vsub.s32 2, %v497
        %v499 = vrot.slane %v423, %v498
        %501 = vbcast.lane.b32.xlu0 %v499, 256
        %v502 = vpop.permute.xlu0 %501
        %v503 = vlaneseq
        %v504 = vshrl.u32 %v503, 7
        %v505 = vsub.s32 3, %v504
        %v506 = vrot.slane %v423, %v505
        %508 = vbcast.lane.b32.xlu0 %v506, 256
        %v509 = vpop.permute.xlu0 %508
        %v510 = vlaneseq
        %v511 = vshrl.u32 %v510, 7
        %v512 = vsub.s32 4, %v511
        %v513 = vrot.slane %v423, %v512
        %515 = vbcast.lane.b32.xlu0 %v513, 256
        %v516 = vpop.permute.xlu0 %515
        %v517 = vlaneseq
        %v518 = vshrl.u32 %v517, 7
        %v519 = vsub.s32 5, %v518
        %v520 = vrot.slane %v423, %v519
        %522 = vbcast.lane.b32.xlu0 %v520, 256
        %v523 = vpop.permute.xlu0 %522
        %v524 = vlaneseq
        %v525 = vshrl.u32 %v524, 7
        %v526 = vsub.s32 6, %v525
        %v527 = vrot.slane %v423, %v526
        %529 = vbcast.lane.b32.xlu0 %v527, 256
        %v530 = vpop.permute.xlu0 %529
        %v531 = vlaneseq
        %v532 = vshrl.u32 %v531, 7
        %v533 = vsub.s32 7, %v532
        %v534 = vrot.slane %v423, %v533
        %536 = vbcast.lane.b32.xlu0 %v534, 256
        %v537 = vpop.permute.xlu0 %536
        %v538 = vlaneseq
        %v539 = vshrl.u32 %v538, 7
        %v540 = vsub.s32 0, %v539
        %v541 = vrot.slane %v424, %v540
        %543 = vbcast.lane.b32.xlu0 %v541, 256
        %v544 = vpop.permute.xlu0 %543
        %v545 = vlaneseq
        %v546 = vshrl.u32 %v545, 7
        %v547 = vsub.s32 1, %v546
        %v548 = vrot.slane %v424, %v547
        %550 = vbcast.lane.b32.xlu0 %v548, 256
        %v551 = vpop.permute.xlu0 %550
        %v552 = vlaneseq
        %v553 = vshrl.u32 %v552, 7
        %v554 = vsub.s32 2, %v553
        %v555 = vrot.slane %v424, %v554
        %557 = vbcast.lane.b32.xlu0 %v555, 256
        %v558 = vpop.permute.xlu0 %557
        %v559 = vlaneseq
        %v560 = vshrl.u32 %v559, 7
        %v561 = vsub.s32 3, %v560
        %v562 = vrot.slane %v424, %v561
        %564 = vbcast.lane.b32.xlu0 %v562, 256
        %v565 = vpop.permute.xlu0 %564
        %v566 = vlaneseq
        %v567 = vshrl.u32 %v566, 7
        %v568 = vsub.s32 4, %v567
        %v569 = vrot.slane %v424, %v568
        %571 = vbcast.lane.b32.xlu0 %v569, 256
        %v572 = vpop.permute.xlu0 %571
        %v573 = vlaneseq
        %v574 = vshrl.u32 %v573, 7
        %v575 = vsub.s32 5, %v574
        %v576 = vrot.slane %v424, %v575
        %578 = vbcast.lane.b32.xlu0 %v576, 256
        %v579 = vpop.permute.xlu0 %578
        %v580 = vlaneseq
        %v581 = vshrl.u32 %v580, 7
        %v582 = vsub.s32 6, %v581
        %v583 = vrot.slane %v424, %v582
        %585 = vbcast.lane.b32.xlu0 %v583, 256
        %v586 = vpop.permute.xlu0 %585
        %v587 = vlaneseq
        %v588 = vshrl.u32 %v587, 7
        %v589 = vsub.s32 7, %v588
        %v590 = vrot.slane %v424, %v589
        %592 = vbcast.lane.b32.xlu0 %v590, 256
        %v593 = vpop.permute.xlu0 %592
        %v594 = vlaneseq
        %v595 = vshrl.u32 %v594, 7
        %v596 = vsub.s32 0, %v595
        %v597 = vrot.slane %v425, %v596
        %599 = vbcast.lane.b32.xlu0 %v597, 256
        %v600 = vpop.permute.xlu0 %599
        %v601 = vlaneseq
        %v602 = vshrl.u32 %v601, 7
        %v603 = vsub.s32 1, %v602
        %v604 = vrot.slane %v425, %v603
        %606 = vbcast.lane.b32.xlu0 %v604, 256
        %v607 = vpop.permute.xlu0 %606
        %v608 = vlaneseq
        %v609 = vshrl.u32 %v608, 7
        %v610 = vsub.s32 2, %v609
        %v611 = vrot.slane %v425, %v610
        %613 = vbcast.lane.b32.xlu0 %v611, 256
        %v614 = vpop.permute.xlu0 %613
        %v615 = vlaneseq
        %v616 = vshrl.u32 %v615, 7
        %v617 = vsub.s32 3, %v616
        %v618 = vrot.slane %v425, %v617
        %620 = vbcast.lane.b32.xlu0 %v618, 256
        %v621 = vpop.permute.xlu0 %620
        %v622 = vlaneseq
        %v623 = vshrl.u32 %v622, 7
        %v624 = vsub.s32 4, %v623
        %v625 = vrot.slane %v425, %v624
        %627 = vbcast.lane.b32.xlu0 %v625, 256
        %v628 = vpop.permute.xlu0 %627
        %v629 = vlaneseq
        %v630 = vshrl.u32 %v629, 7
        %v631 = vsub.s32 5, %v630
        %v632 = vrot.slane %v425, %v631
        %634 = vbcast.lane.b32.xlu0 %v632, 256
        %v635 = vpop.permute.xlu0 %634
        %v636 = vlaneseq
        %v637 = vshrl.u32 %v636, 7
        %v638 = vsub.s32 6, %v637
        %v639 = vrot.slane %v425, %v638
        %641 = vbcast.lane.b32.xlu0 %v639, 256
        %v642 = vpop.permute.xlu0 %641
        %v643 = vlaneseq
        %v644 = vshrl.u32 %v643, 7
        %v645 = vsub.s32 7, %v644
        %v646 = vrot.slane %v425, %v645
        %648 = vbcast.lane.b32.xlu0 %v646, 256
        %v649 = vpop.permute.xlu0 %648
        %v650 = vlaneseq
        %v651 = vshrl.u32 %v650, 7
        %v652 = vsub.s32 0, %v651
        %v653 = vrot.slane %v412, %v652
        %v654 = vmul.f32 %v432, %v653
        %v655 = vmul.f32 %v439, %v653
        %v656 = vmul.f32 %v446, %v653
        %v657 = vmul.f32 %v453, %v653
        %v658 = vmul.f32 %v460, %v653
        %v659 = vmul.f32 %v467, %v653
        %v660 = vmul.f32 %v474, %v653
        %v661 = vmul.f32 %v481, %v653
        %v662 = vmul.f32 %v488, %v653
        %v663 = vmul.f32 %v495, %v653
        %v664 = vmul.f32 %v502, %v653
        %v665 = vmul.f32 %v509, %v653
        %v666 = vmul.f32 %v516, %v653
        %v667 = vmul.f32 %v523, %v653
        %v668 = vmul.f32 %v530, %v653
        %v669 = vmul.f32 %v537, %v653
        %v670 = vmul.f32 %v544, %v653
        %v671 = vmul.f32 %v551, %v653
        %v672 = vmul.f32 %v558, %v653
        %v673 = vmul.f32 %v565, %v653
        %v674 = vmul.f32 %v572, %v653
        %v675 = vmul.f32 %v579, %v653
        %v676 = vmul.f32 %v586, %v653
        %v677 = vmul.f32 %v593, %v653
        %v678 = vmul.f32 %v600, %v653
        %v679 = vmul.f32 %v607, %v653
        %v680 = vmul.f32 %v614, %v653
        %v681 = vmul.f32 %v621, %v653
        %v682 = vmul.f32 %v628, %v653
        %v683 = vmul.f32 %v635, %v653
        %v684 = vmul.f32 %v642, %v653
        %v685 = vmul.f32 %v649, %v653
        %v686 = vadd.f32 %v654, 0.0
        %v687 = vadd.f32 %v655, 0.0
        %v688 = vadd.f32 %v656, 0.0
        %v689 = vadd.f32 %v657, 0.0
        %v690 = vadd.f32 %v658, 0.0
        %v691 = vadd.f32 %v659, 0.0
        %v692 = vadd.f32 %v660, 0.0
        %v693 = vadd.f32 %v661, 0.0
        %v694 = vadd.f32 %v662, 0.0
        %v695 = vadd.f32 %v663, 0.0
        %v696 = vadd.f32 %v664, 0.0
        %v697 = vadd.f32 %v665, 0.0
        %v698 = vadd.f32 %v666, 0.0
        %v699 = vadd.f32 %v667, 0.0
        %v700 = vadd.f32 %v668, 0.0
        %v701 = vadd.f32 %v669, 0.0
        %v702 = vadd.f32 %v670, 0.0
        %v703 = vadd.f32 %v671, 0.0
        %v704 = vadd.f32 %v672, 0.0
        %v705 = vadd.f32 %v673, 0.0
        %v706 = vadd.f32 %v674, 0.0
        %v707 = vadd.f32 %v675, 0.0
        %v708 = vadd.f32 %v676, 0.0
        %v709 = vadd.f32 %v677, 0.0
        %v710 = vadd.f32 %v678, 0.0
        %v711 = vadd.f32 %v679, 0.0
        %v712 = vadd.f32 %v680, 0.0
        %v713 = vadd.f32 %v681, 0.0
        %v714 = vadd.f32 %v682, 0.0
        %v715 = vadd.f32 %v683, 0.0
        %v716 = vadd.f32 %v684, 0.0
        %v717 = vadd.f32 %v685, 0.0
        %vm718 = vcmp.eq.s32.totalorder %v392, 1
        %vm719 = vcmp.eq.s32.totalorder %v393, 1
        %vm720 = vcmp.eq.s32.totalorder %v394, 1
        %vm721 = vcmp.eq.s32.totalorder %v395, 1
        %v722 = vsel %vm718, 1, 0
        %v723 = vsel %vm719, 1, 0
        %v724 = vsel %vm720, 1, 0
        %v725 = vsel %vm721, 1, 0
        %v726 = vcvt.s32.f32 %v722
        %v727 = vcvt.s32.f32 %v723
        %v728 = vcvt.s32.f32 %v724
        %v729 = vcvt.s32.f32 %v725
        %v730 = vlaneseq
        %v731 = vshrl.u32 %v730, 7
        %v732 = vsub.s32 0, %v731
        %v733 = vrot.slane %v726, %v732
        %735 = vbcast.lane.b32.xlu0 %v733, 256
        %v736 = vpop.permute.xlu0 %735
        %v737 = vlaneseq
        %v738 = vshrl.u32 %v737, 7
        %v739 = vsub.s32 1, %v738
        %v740 = vrot.slane %v726, %v739
        %742 = vbcast.lane.b32.xlu0 %v740, 256
        %v743 = vpop.permute.xlu0 %742
        %v744 = vlaneseq
        %v745 = vshrl.u32 %v744, 7
        %v746 = vsub.s32 2, %v745
        %v747 = vrot.slane %v726, %v746
        %749 = vbcast.lane.b32.xlu0 %v747, 256
        %v750 = vpop.permute.xlu0 %749
        %v751 = vlaneseq
        %v752 = vshrl.u32 %v751, 7
        %v753 = vsub.s32 3, %v752
        %v754 = vrot.slane %v726, %v753
        %756 = vbcast.lane.b32.xlu0 %v754, 256
        %v757 = vpop.permute.xlu0 %756
        %v758 = vlaneseq
        %v759 = vshrl.u32 %v758, 7
        %v760 = vsub.s32 4, %v759
        %v761 = vrot.slane %v726, %v760
        %763 = vbcast.lane.b32.xlu0 %v761, 256
        %v764 = vpop.permute.xlu0 %763
        %v765 = vlaneseq
        %v766 = vshrl.u32 %v765, 7
        %v767 = vsub.s32 5, %v766
        %v768 = vrot.slane %v726, %v767
        %770 = vbcast.lane.b32.xlu0 %v768, 256
        %v771 = vpop.permute.xlu0 %770
        %v772 = vlaneseq
        %v773 = vshrl.u32 %v772, 7
        %v774 = vsub.s32 6, %v773
        %v775 = vrot.slane %v726, %v774
        %777 = vbcast.lane.b32.xlu0 %v775, 256
        %v778 = vpop.permute.xlu0 %777
        %v779 = vlaneseq
        %v780 = vshrl.u32 %v779, 7
        %v781 = vsub.s32 7, %v780
        %v782 = vrot.slane %v726, %v781
        %784 = vbcast.lane.b32.xlu0 %v782, 256
        %v785 = vpop.permute.xlu0 %784
        %v786 = vlaneseq
        %v787 = vshrl.u32 %v786, 7
        %v788 = vsub.s32 0, %v787
        %v789 = vrot.slane %v727, %v788
        %791 = vbcast.lane.b32.xlu0 %v789, 256
        %v792 = vpop.permute.xlu0 %791
        %v793 = vlaneseq
        %v794 = vshrl.u32 %v793, 7
        %v795 = vsub.s32 1, %v794
        %v796 = vrot.slane %v727, %v795
        %798 = vbcast.lane.b32.xlu0 %v796, 256
        %v799 = vpop.permute.xlu0 %798
        %v800 = vlaneseq
        %v801 = vshrl.u32 %v800, 7
        %v802 = vsub.s32 2, %v801
        %v803 = vrot.slane %v727, %v802
        %805 = vbcast.lane.b32.xlu0 %v803, 256
        %v806 = vpop.permute.xlu0 %805
        %v807 = vlaneseq
        %v808 = vshrl.u32 %v807, 7
        %v809 = vsub.s32 3, %v808
        %v810 = vrot.slane %v727, %v809
        %812 = vbcast.lane.b32.xlu0 %v810, 256
        %v813 = vpop.permute.xlu0 %812
        %v814 = vlaneseq
        %v815 = vshrl.u32 %v814, 7
        %v816 = vsub.s32 4, %v815
        %v817 = vrot.slane %v727, %v816
        %819 = vbcast.lane.b32.xlu0 %v817, 256
        %v820 = vpop.permute.xlu0 %819
        %v821 = vlaneseq
        %v822 = vshrl.u32 %v821, 7
        %v823 = vsub.s32 5, %v822
        %v824 = vrot.slane %v727, %v823
        %826 = vbcast.lane.b32.xlu0 %v824, 256
        %v827 = vpop.permute.xlu0 %826
        %v828 = vlaneseq
        %v829 = vshrl.u32 %v828, 7
        %v830 = vsub.s32 6, %v829
        %v831 = vrot.slane %v727, %v830
        %833 = vbcast.lane.b32.xlu0 %v831, 256
        %v834 = vpop.permute.xlu0 %833
        %v835 = vlaneseq
        %v836 = vshrl.u32 %v835, 7
        %v837 = vsub.s32 7, %v836
        %v838 = vrot.slane %v727, %v837
        %840 = vbcast.lane.b32.xlu0 %v838, 256
        %v841 = vpop.permute.xlu0 %840
        %v842 = vlaneseq
        %v843 = vshrl.u32 %v842, 7
        %v844 = vsub.s32 0, %v843
        %v845 = vrot.slane %v728, %v844
        %847 = vbcast.lane.b32.xlu0 %v845, 256
        %v848 = vpop.permute.xlu0 %847
        %v849 = vlaneseq
        %v850 = vshrl.u32 %v849, 7
        %v851 = vsub.s32 1, %v850
        %v852 = vrot.slane %v728, %v851
        %854 = vbcast.lane.b32.xlu0 %v852, 256
        %v855 = vpop.permute.xlu0 %854
        %v856 = vlaneseq
        %v857 = vshrl.u32 %v856, 7
        %v858 = vsub.s32 2, %v857
        %v859 = vrot.slane %v728, %v858
        %861 = vbcast.lane.b32.xlu0 %v859, 256
        %v862 = vpop.permute.xlu0 %861
        %v863 = vlaneseq
        %v864 = vshrl.u32 %v863, 7
        %v865 = vsub.s32 3, %v864
        %v866 = vrot.slane %v728, %v865
        %868 = vbcast.lane.b32.xlu0 %v866, 256
        %v869 = vpop.permute.xlu0 %868
        %v870 = vlaneseq
        %v871 = vshrl.u32 %v870, 7
        %v872 = vsub.s32 4, %v871
        %v873 = vrot.slane %v728, %v872
        %875 = vbcast.lane.b32.xlu0 %v873, 256
        %v876 = vpop.permute.xlu0 %875
        %v877 = vlaneseq
        %v878 = vshrl.u32 %v877, 7
        %v879 = vsub.s32 5, %v878
        %v880 = vrot.slane %v728, %v879
        %882 = vbcast.lane.b32.xlu0 %v880, 256
        %v883 = vpop.permute.xlu0 %882
        %v884 = vlaneseq
        %v885 = vshrl.u32 %v884, 7
        %v886 = vsub.s32 6, %v885
        %v887 = vrot.slane %v728, %v886
        %889 = vbcast.lane.b32.xlu0 %v887, 256
        %v890 = vpop.permute.xlu0 %889
        %v891 = vlaneseq
        %v892 = vshrl.u32 %v891, 7
        %v893 = vsub.s32 7, %v892
        %v894 = vrot.slane %v728, %v893
        %896 = vbcast.lane.b32.xlu0 %v894, 256
        %v897 = vpop.permute.xlu0 %896
        %v898 = vlaneseq
        %v899 = vshrl.u32 %v898, 7
        %v900 = vsub.s32 0, %v899
        %v901 = vrot.slane %v729, %v900
        %903 = vbcast.lane.b32.xlu0 %v901, 256
        %v904 = vpop.permute.xlu0 %903
        %v905 = vlaneseq
        %v906 = vshrl.u32 %v905, 7
        %v907 = vsub.s32 1, %v906
        %v908 = vrot.slane %v729, %v907
        %910 = vbcast.lane.b32.xlu0 %v908, 256
        %v911 = vpop.permute.xlu0 %910
        %v912 = vlaneseq
        %v913 = vshrl.u32 %v912, 7
        %v914 = vsub.s32 2, %v913
        %v915 = vrot.slane %v729, %v914
        %917 = vbcast.lane.b32.xlu0 %v915, 256
        %v918 = vpop.permute.xlu0 %917
        %v919 = vlaneseq
        %v920 = vshrl.u32 %v919, 7
        %v921 = vsub.s32 3, %v920
        %v922 = vrot.slane %v729, %v921
        %924 = vbcast.lane.b32.xlu0 %v922, 256
        %v925 = vpop.permute.xlu0 %924
        %v926 = vlaneseq
        %v927 = vshrl.u32 %v926, 7
        %v928 = vsub.s32 4, %v927
        %v929 = vrot.slane %v729, %v928
        %931 = vbcast.lane.b32.xlu0 %v929, 256
        %v932 = vpop.permute.xlu0 %931
        %v933 = vlaneseq
        %v934 = vshrl.u32 %v933, 7
        %v935 = vsub.s32 5, %v934
        %v936 = vrot.slane %v729, %v935
        %938 = vbcast.lane.b32.xlu0 %v936, 256
        %v939 = vpop.permute.xlu0 %938
        %v940 = vlaneseq
        %v941 = vshrl.u32 %v940, 7
        %v942 = vsub.s32 6, %v941
        %v943 = vrot.slane %v729, %v942
        %945 = vbcast.lane.b32.xlu0 %v943, 256
        %v946 = vpop.permute.xlu0 %945
        %v947 = vlaneseq
        %v948 = vshrl.u32 %v947, 7
        %v949 = vsub.s32 7, %v948
        %v950 = vrot.slane %v729, %v949
        %952 = vbcast.lane.b32.xlu0 %v950, 256
        %v953 = vpop.permute.xlu0 %952
        %v954 = vlaneseq
        %v955 = vshrl.u32 %v954, 7
        %v956 = vsub.s32 1, %v955
        %v957 = vrot.slane %v412, %v956
        %v958 = vmul.f32 %v736, %v957
        %v959 = vmul.f32 %v743, %v957
        %v960 = vmul.f32 %v750, %v957
        %v961 = vmul.f32 %v757, %v957
        %v962 = vmul.f32 %v764, %v957
        %v963 = vmul.f32 %v771, %v957
        %v964 = vmul.f32 %v778, %v957
        %v965 = vmul.f32 %v785, %v957
        %v966 = vmul.f32 %v792, %v957
        %v967 = vmul.f32 %v799, %v957
        %v968 = vmul.f32 %v806, %v957
        %v969 = vmul.f32 %v813, %v957
        %v970 = vmul.f32 %v820, %v957
        %v971 = vmul.f32 %v827, %v957
        %v972 = vmul.f32 %v834, %v957
        %v973 = vmul.f32 %v841, %v957
        %v974 = vmul.f32 %v848, %v957
        %v975 = vmul.f32 %v855, %v957
        %v976 = vmul.f32 %v862, %v957
        %v977 = vmul.f32 %v869, %v957
        %v978 = vmul.f32 %v876, %v957
        %v979 = vmul.f32 %v883, %v957
        %v980 = vmul.f32 %v890, %v957
        %v981 = vmul.f32 %v897, %v957
        %v982 = vmul.f32 %v904, %v957
        %v983 = vmul.f32 %v911, %v957
        %v984 = vmul.f32 %v918, %v957
        %v985 = vmul.f32 %v925, %v957
        %v986 = vmul.f32 %v932, %v957
        %v987 = vmul.f32 %v939, %v957
        %v988 = vmul.f32 %v946, %v957
        %v989 = vmul.f32 %v953, %v957
        %v990 = vadd.f32 %v686, %v958
        %v991 = vadd.f32 %v687, %v959
        %v992 = vadd.f32 %v688, %v960
        %v993 = vadd.f32 %v689, %v961
        %v994 = vadd.f32 %v690, %v962
        %v995 = vadd.f32 %v691, %v963
        %v996 = vadd.f32 %v692, %v964
        %v997 = vadd.f32 %v693, %v965
        %v998 = vadd.f32 %v694, %v966
        %v999 = vadd.f32 %v695, %v967
        %v1000 = vadd.f32 %v696, %v968
        %v1001 = vadd.f32 %v697, %v969
        %v1002 = vadd.f32 %v698, %v970
        %v1003 = vadd.f32 %v699, %v971
        %v1004 = vadd.f32 %v700, %v972
        %v1005 = vadd.f32 %v701, %v973
        %v1006 = vadd.f32 %v702, %v974
        %v1007 = vadd.f32 %v703, %v975
        %v1008 = vadd.f32 %v704, %v976
        %v1009 = vadd.f32 %v705, %v977
        %v1010 = vadd.f32 %v706, %v978
        %v1011 = vadd.f32 %v707, %v979
        %v1012 = vadd.f32 %v708, %v980
        %v1013 = vadd.f32 %v709, %v981
        %v1014 = vadd.f32 %v710, %v982
        %v1015 = vadd.f32 %v711, %v983
        %v1016 = vadd.f32 %v712, %v984
        %v1017 = vadd.f32 %v713, %v985
        %v1018 = vadd.f32 %v714, %v986
        %v1019 = vadd.f32 %v715, %v987
        %v1020 = vadd.f32 %v716, %v988
        %v1021 = vadd.f32 %v717, %v989
        %vm1022 = vcmp.eq.s32.totalorder %v392, 2
        %vm1023 = vcmp.eq.s32.totalorder %v393, 2
        %vm1024 = vcmp.eq.s32.totalorder %v394, 2
        %vm1025 = vcmp.eq.s32.totalorder %v395, 2
        %v1026 = vsel %vm1022, 1, 0
        %v1027 = vsel %vm1023, 1, 0
        %v1028 = vsel %vm1024, 1, 0
        %v1029 = vsel %vm1025, 1, 0
        %v1030 = vcvt.s32.f32 %v1026
        %v1031 = vcvt.s32.f32 %v1027
        %v1032 = vcvt.s32.f32 %v1028
        %v1033 = vcvt.s32.f32 %v1029
        %v1034 = vlaneseq
        %v1035 = vshrl.u32 %v1034, 7
        %v1036 = vsub.s32 0, %v1035
        %v1037 = vrot.slane %v1030, %v1036
        %1039 = vbcast.lane.b32.xlu0 %v1037, 256
        %v1040 = vpop.permute.xlu0 %1039
        %v1041 = vlaneseq
        %v1042 = vshrl.u32 %v1041, 7
        %v1043 = vsub.s32 1, %v1042
        %v1044 = vrot.slane %v1030, %v1043
        %1046 = vbcast.lane.b32.xlu0 %v1044, 256
        %v1047 = vpop.permute.xlu0 %1046
        %v1048 = vlaneseq
        %v1049 = vshrl.u32 %v1048, 7
        %v1050 = vsub.s32 2, %v1049
        %v1051 = vrot.slane %v1030, %v1050
        %1053 = vbcast.lane.b32.xlu0 %v1051, 256
        %v1054 = vpop.permute.xlu0 %1053
        %v1055 = vlaneseq
        %v1056 = vshrl.u32 %v1055, 7
        %v1057 = vsub.s32 3, %v1056
        %v1058 = vrot.slane %v1030, %v1057
        %1060 = vbcast.lane.b32.xlu0 %v1058, 256
        %v1061 = vpop.permute.xlu0 %1060
        %v1062 = vlaneseq
        %v1063 = vshrl.u32 %v1062, 7
        %v1064 = vsub.s32 4, %v1063
        %v1065 = vrot.slane %v1030, %v1064
        %1067 = vbcast.lane.b32.xlu0 %v1065, 256
        %v1068 = vpop.permute.xlu0 %1067
        %v1069 = vlaneseq
        %v1070 = vshrl.u32 %v1069, 7
        %v1071 = vsub.s32 5, %v1070
        %v1072 = vrot.slane %v1030, %v1071
        %1074 = vbcast.lane.b32.xlu0 %v1072, 256
        %v1075 = vpop.permute.xlu0 %1074
        %v1076 = vlaneseq
        %v1077 = vshrl.u32 %v1076, 7
        %v1078 = vsub.s32 6, %v1077
        %v1079 = vrot.slane %v1030, %v1078
        %1081 = vbcast.lane.b32.xlu0 %v1079, 256
        %v1082 = vpop.permute.xlu0 %1081
        %v1083 = vlaneseq
        %v1084 = vshrl.u32 %v1083, 7
        %v1085 = vsub.s32 7, %v1084
        %v1086 = vrot.slane %v1030, %v1085
        %1088 = vbcast.lane.b32.xlu0 %v1086, 256
        %v1089 = vpop.permute.xlu0 %1088
        %v1090 = vlaneseq
        %v1091 = vshrl.u32 %v1090, 7
        %v1092 = vsub.s32 0, %v1091
        %v1093 = vrot.slane %v1031, %v1092
        %1095 = vbcast.lane.b32.xlu0 %v1093, 256
        %v1096 = vpop.permute.xlu0 %1095
        %v1097 = vlaneseq
        %v1098 = vshrl.u32 %v1097, 7
        %v1099 = vsub.s32 1, %v1098
        %v1100 = vrot.slane %v1031, %v1099
        %1102 = vbcast.lane.b32.xlu0 %v1100, 256
        %v1103 = vpop.permute.xlu0 %1102
        %v1104 = vlaneseq
        %v1105 = vshrl.u32 %v1104, 7
        %v1106 = vsub.s32 2, %v1105
        %v1107 = vrot.slane %v1031, %v1106
        %1109 = vbcast.lane.b32.xlu0 %v1107, 256
        %v1110 = vpop.permute.xlu0 %1109
        %v1111 = vlaneseq
        %v1112 = vshrl.u32 %v1111, 7
        %v1113 = vsub.s32 3, %v1112
        %v1114 = vrot.slane %v1031, %v1113
        %1116 = vbcast.lane.b32.xlu0 %v1114, 256
        %v1117 = vpop.permute.xlu0 %1116
        %v1118 = vlaneseq
        %v1119 = vshrl.u32 %v1118, 7
        %v1120 = vsub.s32 4, %v1119
        %v1121 = vrot.slane %v1031, %v1120
        %1123 = vbcast.lane.b32.xlu0 %v1121, 256
        %v1124 = vpop.permute.xlu0 %1123
        %v1125 = vlaneseq
        %v1126 = vshrl.u32 %v1125, 7
        %v1127 = vsub.s32 5, %v1126
        %v1128 = vrot.slane %v1031, %v1127
        %1130 = vbcast.lane.b32.xlu0 %v1128, 256
        %v1131 = vpop.permute.xlu0 %1130
        %v1132 = vlaneseq
        %v1133 = vshrl.u32 %v1132, 7
        %v1134 = vsub.s32 6, %v1133
        %v1135 = vrot.slane %v1031, %v1134
        %1137 = vbcast.lane.b32.xlu0 %v1135, 256
        %v1138 = vpop.permute.xlu0 %1137
        %v1139 = vlaneseq
        %v1140 = vshrl.u32 %v1139, 7
        %v1141 = vsub.s32 7, %v1140
        %v1142 = vrot.slane %v1031, %v1141
        %1144 = vbcast.lane.b32.xlu0 %v1142, 256
        %v1145 = vpop.permute.xlu0 %1144
        %v1146 = vlaneseq
        %v1147 = vshrl.u32 %v1146, 7
        %v1148 = vsub.s32 0, %v1147
        %v1149 = vrot.slane %v1032, %v1148
        %1151 = vbcast.lane.b32.xlu0 %v1149, 256
        %v1152 = vpop.permute.xlu0 %1151
        %v1153 = vlaneseq
        %v1154 = vshrl.u32 %v1153, 7
        %v1155 = vsub.s32 1, %v1154
        %v1156 = vrot.slane %v1032, %v1155
        %1158 = vbcast.lane.b32.xlu0 %v1156, 256
        %v1159 = vpop.permute.xlu0 %1158
        %v1160 = vlaneseq
        %v1161 = vshrl.u32 %v1160, 7
        %v1162 = vsub.s32 2, %v1161
        %v1163 = vrot.slane %v1032, %v1162
        %1165 = vbcast.lane.b32.xlu0 %v1163, 256
        %v1166 = vpop.permute.xlu0 %1165
        %v1167 = vlaneseq
        %v1168 = vshrl.u32 %v1167, 7
        %v1169 = vsub.s32 3, %v1168
        %v1170 = vrot.slane %v1032, %v1169
        %1172 = vbcast.lane.b32.xlu0 %v1170, 256
        %v1173 = vpop.permute.xlu0 %1172
        %v1174 = vlaneseq
        %v1175 = vshrl.u32 %v1174, 7
        %v1176 = vsub.s32 4, %v1175
        %v1177 = vrot.slane %v1032, %v1176
        %1179 = vbcast.lane.b32.xlu0 %v1177, 256
        %v1180 = vpop.permute.xlu0 %1179
        %v1181 = vlaneseq
        %v1182 = vshrl.u32 %v1181, 7
        %v1183 = vsub.s32 5, %v1182
        %v1184 = vrot.slane %v1032, %v1183
        %1186 = vbcast.lane.b32.xlu0 %v1184, 256
        %v1187 = vpop.permute.xlu0 %1186
        %v1188 = vlaneseq
        %v1189 = vshrl.u32 %v1188, 7
        %v1190 = vsub.s32 6, %v1189
        %v1191 = vrot.slane %v1032, %v1190
        %1193 = vbcast.lane.b32.xlu0 %v1191, 256
        %v1194 = vpop.permute.xlu0 %1193
        %v1195 = vlaneseq
        %v1196 = vshrl.u32 %v1195, 7
        %v1197 = vsub.s32 7, %v1196
        %v1198 = vrot.slane %v1032, %v1197
        %1200 = vbcast.lane.b32.xlu0 %v1198, 256
        %v1201 = vpop.permute.xlu0 %1200
        %v1202 = vlaneseq
        %v1203 = vshrl.u32 %v1202, 7
        %v1204 = vsub.s32 0, %v1203
        %v1205 = vrot.slane %v1033, %v1204
        %1207 = vbcast.lane.b32.xlu0 %v1205, 256
        %v1208 = vpop.permute.xlu0 %1207
        %v1209 = vlaneseq
        %v1210 = vshrl.u32 %v1209, 7
        %v1211 = vsub.s32 1, %v1210
        %v1212 = vrot.slane %v1033, %v1211
        %1214 = vbcast.lane.b32.xlu0 %v1212, 256
        %v1215 = vpop.permute.xlu0 %1214
        %v1216 = vlaneseq
        %v1217 = vshrl.u32 %v1216, 7
        %v1218 = vsub.s32 2, %v1217
        %v1219 = vrot.slane %v1033, %v1218
        %1221 = vbcast.lane.b32.xlu0 %v1219, 256
        %v1222 = vpop.permute.xlu0 %1221
        %v1223 = vlaneseq
        %v1224 = vshrl.u32 %v1223, 7
        %v1225 = vsub.s32 3, %v1224
        %v1226 = vrot.slane %v1033, %v1225
        %1228 = vbcast.lane.b32.xlu0 %v1226, 256
        %v1229 = vpop.permute.xlu0 %1228
        %v1230 = vlaneseq
        %v1231 = vshrl.u32 %v1230, 7
        %v1232 = vsub.s32 4, %v1231
        %v1233 = vrot.slane %v1033, %v1232
        %1235 = vbcast.lane.b32.xlu0 %v1233, 256
        %v1236 = vpop.permute.xlu0 %1235
        %v1237 = vlaneseq
        %v1238 = vshrl.u32 %v1237, 7
        %v1239 = vsub.s32 5, %v1238
        %v1240 = vrot.slane %v1033, %v1239
        %1242 = vbcast.lane.b32.xlu0 %v1240, 256
        %v1243 = vpop.permute.xlu0 %1242
        %v1244 = vlaneseq
        %v1245 = vshrl.u32 %v1244, 7
        %v1246 = vsub.s32 6, %v1245
        %v1247 = vrot.slane %v1033, %v1246
        %1249 = vbcast.lane.b32.xlu0 %v1247, 256
        %v1250 = vpop.permute.xlu0 %1249
        %v1251 = vlaneseq
        %v1252 = vshrl.u32 %v1251, 7
        %v1253 = vsub.s32 7, %v1252
        %v1254 = vrot.slane %v1033, %v1253
        %1256 = vbcast.lane.b32.xlu0 %v1254, 256
        %v1257 = vpop.permute.xlu0 %1256
        %v1258 = vlaneseq
        %v1259 = vshrl.u32 %v1258, 7
        %v1260 = vsub.s32 2, %v1259
        %v1261 = vrot.slane %v412, %v1260
        %v1262 = vmul.f32 %v1040, %v1261
        %v1263 = vmul.f32 %v1047, %v1261
        %v1264 = vmul.f32 %v1054, %v1261
        %v1265 = vmul.f32 %v1061, %v1261
        %v1266 = vmul.f32 %v1068, %v1261
        %v1267 = vmul.f32 %v1075, %v1261
        %v1268 = vmul.f32 %v1082, %v1261
        %v1269 = vmul.f32 %v1089, %v1261
        %v1270 = vmul.f32 %v1096, %v1261
        %v1271 = vmul.f32 %v1103, %v1261
        %v1272 = vmul.f32 %v1110, %v1261
        %v1273 = vmul.f32 %v1117, %v1261
        %v1274 = vmul.f32 %v1124, %v1261
        %v1275 = vmul.f32 %v1131, %v1261
        %v1276 = vmul.f32 %v1138, %v1261
        %v1277 = vmul.f32 %v1145, %v1261
        %v1278 = vmul.f32 %v1152, %v1261
        %v1279 = vmul.f32 %v1159, %v1261
        %v1280 = vmul.f32 %v1166, %v1261
        %v1281 = vmul.f32 %v1173, %v1261
        %v1282 = vmul.f32 %v1180, %v1261
        %v1283 = vmul.f32 %v1187, %v1261
        %v1284 = vmul.f32 %v1194, %v1261
        %v1285 = vmul.f32 %v1201, %v1261
        %v1286 = vmul.f32 %v1208, %v1261
        %v1287 = vmul.f32 %v1215, %v1261
        %v1288 = vmul.f32 %v1222, %v1261
        %v1289 = vmul.f32 %v1229, %v1261
        %v1290 = vmul.f32 %v1236, %v1261
        %v1291 = vmul.f32 %v1243, %v1261
        %v1292 = vmul.f32 %v1250, %v1261
        %v1293 = vmul.f32 %v1257, %v1261
        %v1294 = vadd.f32 %v990, %v1262
        %v1295 = vadd.f32 %v991, %v1263
        %v1296 = vadd.f32 %v992, %v1264
        %v1297 = vadd.f32 %v993, %v1265
        %v1298 = vadd.f32 %v994, %v1266
        %v1299 = vadd.f32 %v995, %v1267
        %v1300 = vadd.f32 %v996, %v1268
        %v1301 = vadd.f32 %v997, %v1269
        %v1302 = vadd.f32 %v998, %v1270
        %v1303 = vadd.f32 %v999, %v1271
        %v1304 = vadd.f32 %v1000, %v1272
        %v1305 = vadd.f32 %v1001, %v1273
        %v1306 = vadd.f32 %v1002, %v1274
        %v1307 = vadd.f32 %v1003, %v1275
        %v1308 = vadd.f32 %v1004, %v1276
        %v1309 = vadd.f32 %v1005, %v1277
        %v1310 = vadd.f32 %v1006, %v1278
        %v1311 = vadd.f32 %v1007, %v1279
        %v1312 = vadd.f32 %v1008, %v1280
        %v1313 = vadd.f32 %v1009, %v1281
        %v1314 = vadd.f32 %v1010, %v1282
        %v1315 = vadd.f32 %v1011, %v1283
        %v1316 = vadd.f32 %v1012, %v1284
        %v1317 = vadd.f32 %v1013, %v1285
        %v1318 = vadd.f32 %v1014, %v1286
        %v1319 = vadd.f32 %v1015, %v1287
        %v1320 = vadd.f32 %v1016, %v1288
        %v1321 = vadd.f32 %v1017, %v1289
        %v1322 = vadd.f32 %v1018, %v1290
        %v1323 = vadd.f32 %v1019, %v1291
        %v1324 = vadd.f32 %v1020, %v1292
        %v1325 = vadd.f32 %v1021, %v1293
        %vm1326 = vcmp.eq.s32.totalorder %v392, 3
        %vm1327 = vcmp.eq.s32.totalorder %v393, 3
        %vm1328 = vcmp.eq.s32.totalorder %v394, 3
        %vm1329 = vcmp.eq.s32.totalorder %v395, 3
        %v1330 = vsel %vm1326, 1, 0
        %v1331 = vsel %vm1327, 1, 0
        %v1332 = vsel %vm1328, 1, 0
        %v1333 = vsel %vm1329, 1, 0
        %v1334 = vcvt.s32.f32 %v1330
        %v1335 = vcvt.s32.f32 %v1331
        %v1336 = vcvt.s32.f32 %v1332
        %v1337 = vcvt.s32.f32 %v1333
        %v1338 = vlaneseq
        %v1339 = vshrl.u32 %v1338, 7
        %v1340 = vsub.s32 0, %v1339
        %v1341 = vrot.slane %v1334, %v1340
        %1343 = vbcast.lane.b32.xlu0 %v1341, 256
        %v1344 = vpop.permute.xlu0 %1343
        %v1345 = vlaneseq
        %v1346 = vshrl.u32 %v1345, 7
        %v1347 = vsub.s32 1, %v1346
        %v1348 = vrot.slane %v1334, %v1347
        %1350 = vbcast.lane.b32.xlu0 %v1348, 256
        %v1351 = vpop.permute.xlu0 %1350
        %v1352 = vlaneseq
        %v1353 = vshrl.u32 %v1352, 7
        %v1354 = vsub.s32 2, %v1353
        %v1355 = vrot.slane %v1334, %v1354
        %1357 = vbcast.lane.b32.xlu0 %v1355, 256
        %v1358 = vpop.permute.xlu0 %1357
        %v1359 = vlaneseq
        %v1360 = vshrl.u32 %v1359, 7
        %v1361 = vsub.s32 3, %v1360
        %v1362 = vrot.slane %v1334, %v1361
        %1364 = vbcast.lane.b32.xlu0 %v1362, 256
        %v1365 = vpop.permute.xlu0 %1364
        %v1366 = vlaneseq
        %v1367 = vshrl.u32 %v1366, 7
        %v1368 = vsub.s32 4, %v1367
        %v1369 = vrot.slane %v1334, %v1368
        %1371 = vbcast.lane.b32.xlu0 %v1369, 256
        %v1372 = vpop.permute.xlu0 %1371
        %v1373 = vlaneseq
        %v1374 = vshrl.u32 %v1373, 7
        %v1375 = vsub.s32 5, %v1374
        %v1376 = vrot.slane %v1334, %v1375
        %1378 = vbcast.lane.b32.xlu0 %v1376, 256
        %v1379 = vpop.permute.xlu0 %1378
        %v1380 = vlaneseq
        %v1381 = vshrl.u32 %v1380, 7
        %v1382 = vsub.s32 6, %v1381
        %v1383 = vrot.slane %v1334, %v1382
        %1385 = vbcast.lane.b32.xlu0 %v1383, 256
        %v1386 = vpop.permute.xlu0 %1385
        %v1387 = vlaneseq
        %v1388 = vshrl.u32 %v1387, 7
        %v1389 = vsub.s32 7, %v1388
        %v1390 = vrot.slane %v1334, %v1389
        %1392 = vbcast.lane.b32.xlu0 %v1390, 256
        %v1393 = vpop.permute.xlu0 %1392
        %v1394 = vlaneseq
        %v1395 = vshrl.u32 %v1394, 7
        %v1396 = vsub.s32 0, %v1395
        %v1397 = vrot.slane %v1335, %v1396
        %1399 = vbcast.lane.b32.xlu0 %v1397, 256
        %v1400 = vpop.permute.xlu0 %1399
        %v1401 = vlaneseq
        %v1402 = vshrl.u32 %v1401, 7
        %v1403 = vsub.s32 1, %v1402
        %v1404 = vrot.slane %v1335, %v1403
        %1406 = vbcast.lane.b32.xlu0 %v1404, 256
        %v1407 = vpop.permute.xlu0 %1406
        %v1408 = vlaneseq
        %v1409 = vshrl.u32 %v1408, 7
        %v1410 = vsub.s32 2, %v1409
        %v1411 = vrot.slane %v1335, %v1410
        %1413 = vbcast.lane.b32.xlu0 %v1411, 256
        %v1414 = vpop.permute.xlu0 %1413
        %v1415 = vlaneseq
        %v1416 = vshrl.u32 %v1415, 7
        %v1417 = vsub.s32 3, %v1416
        %v1418 = vrot.slane %v1335, %v1417
        %1420 = vbcast.lane.b32.xlu0 %v1418, 256
        %v1421 = vpop.permute.xlu0 %1420
        %v1422 = vlaneseq
        %v1423 = vshrl.u32 %v1422, 7
        %v1424 = vsub.s32 4, %v1423
        %v1425 = vrot.slane %v1335, %v1424
        %1427 = vbcast.lane.b32.xlu0 %v1425, 256
        %v1428 = vpop.permute.xlu0 %1427
        %v1429 = vlaneseq
        %v1430 = vshrl.u32 %v1429, 7
        %v1431 = vsub.s32 5, %v1430
        %v1432 = vrot.slane %v1335, %v1431
        %1434 = vbcast.lane.b32.xlu0 %v1432, 256
        %v1435 = vpop.permute.xlu0 %1434
        %v1436 = vlaneseq
        %v1437 = vshrl.u32 %v1436, 7
        %v1438 = vsub.s32 6, %v1437
        %v1439 = vrot.slane %v1335, %v1438
        %1441 = vbcast.lane.b32.xlu0 %v1439, 256
        %v1442 = vpop.permute.xlu0 %1441
        %v1443 = vlaneseq
        %v1444 = vshrl.u32 %v1443, 7
        %v1445 = vsub.s32 7, %v1444
        %v1446 = vrot.slane %v1335, %v1445
        %1448 = vbcast.lane.b32.xlu0 %v1446, 256
        %v1449 = vpop.permute.xlu0 %1448
        %v1450 = vlaneseq
        %v1451 = vshrl.u32 %v1450, 7
        %v1452 = vsub.s32 0, %v1451
        %v1453 = vrot.slane %v1336, %v1452
        %1455 = vbcast.lane.b32.xlu0 %v1453, 256
        %v1456 = vpop.permute.xlu0 %1455
        %v1457 = vlaneseq
        %v1458 = vshrl.u32 %v1457, 7
        %v1459 = vsub.s32 1, %v1458
        %v1460 = vrot.slane %v1336, %v1459
        %1462 = vbcast.lane.b32.xlu0 %v1460, 256
        %v1463 = vpop.permute.xlu0 %1462
        %v1464 = vlaneseq
        %v1465 = vshrl.u32 %v1464, 7
        %v1466 = vsub.s32 2, %v1465
        %v1467 = vrot.slane %v1336, %v1466
        %1469 = vbcast.lane.b32.xlu0 %v1467, 256
        %v1470 = vpop.permute.xlu0 %1469
        %v1471 = vlaneseq
        %v1472 = vshrl.u32 %v1471, 7
        %v1473 = vsub.s32 3, %v1472
        %v1474 = vrot.slane %v1336, %v1473
        %1476 = vbcast.lane.b32.xlu0 %v1474, 256
        %v1477 = vpop.permute.xlu0 %1476
        %v1478 = vlaneseq
        %v1479 = vshrl.u32 %v1478, 7
        %v1480 = vsub.s32 4, %v1479
        %v1481 = vrot.slane %v1336, %v1480
        %1483 = vbcast.lane.b32.xlu0 %v1481, 256
        %v1484 = vpop.permute.xlu0 %1483
        %v1485 = vlaneseq
        %v1486 = vshrl.u32 %v1485, 7
        %v1487 = vsub.s32 5, %v1486
        %v1488 = vrot.slane %v1336, %v1487
        %1490 = vbcast.lane.b32.xlu0 %v1488, 256
        %v1491 = vpop.permute.xlu0 %1490
        %v1492 = vlaneseq
        %v1493 = vshrl.u32 %v1492, 7
        %v1494 = vsub.s32 6, %v1493
        %v1495 = vrot.slane %v1336, %v1494
        %1497 = vbcast.lane.b32.xlu0 %v1495, 256
        %v1498 = vpop.permute.xlu0 %1497
        %v1499 = vlaneseq
        %v1500 = vshrl.u32 %v1499, 7
        %v1501 = vsub.s32 7, %v1500
        %v1502 = vrot.slane %v1336, %v1501
        %1504 = vbcast.lane.b32.xlu0 %v1502, 256
        %v1505 = vpop.permute.xlu0 %1504
        %v1506 = vlaneseq
        %v1507 = vshrl.u32 %v1506, 7
        %v1508 = vsub.s32 0, %v1507
        %v1509 = vrot.slane %v1337, %v1508
        %1511 = vbcast.lane.b32.xlu0 %v1509, 256
        %v1512 = vpop.permute.xlu0 %1511
        %v1513 = vlaneseq
        %v1514 = vshrl.u32 %v1513, 7
        %v1515 = vsub.s32 1, %v1514
        %v1516 = vrot.slane %v1337, %v1515
        %1518 = vbcast.lane.b32.xlu0 %v1516, 256
        %v1519 = vpop.permute.xlu0 %1518
        %v1520 = vlaneseq
        %v1521 = vshrl.u32 %v1520, 7
        %v1522 = vsub.s32 2, %v1521
        %v1523 = vrot.slane %v1337, %v1522
        %1525 = vbcast.lane.b32.xlu0 %v1523, 256
        %v1526 = vpop.permute.xlu0 %1525
        %v1527 = vlaneseq
        %v1528 = vshrl.u32 %v1527, 7
        %v1529 = vsub.s32 3, %v1528
        %v1530 = vrot.slane %v1337, %v1529
        %1532 = vbcast.lane.b32.xlu0 %v1530, 256
        %v1533 = vpop.permute.xlu0 %1532
        %v1534 = vlaneseq
        %v1535 = vshrl.u32 %v1534, 7
        %v1536 = vsub.s32 4, %v1535
        %v1537 = vrot.slane %v1337, %v1536
        %1539 = vbcast.lane.b32.xlu0 %v1537, 256
        %v1540 = vpop.permute.xlu0 %1539
        %v1541 = vlaneseq
        %v1542 = vshrl.u32 %v1541, 7
        %v1543 = vsub.s32 5, %v1542
        %v1544 = vrot.slane %v1337, %v1543
        %1546 = vbcast.lane.b32.xlu0 %v1544, 256
        %v1547 = vpop.permute.xlu0 %1546
        %v1548 = vlaneseq
        %v1549 = vshrl.u32 %v1548, 7
        %v1550 = vsub.s32 6, %v1549
        %v1551 = vrot.slane %v1337, %v1550
        %1553 = vbcast.lane.b32.xlu0 %v1551, 256
        %v1554 = vpop.permute.xlu0 %1553
        %v1555 = vlaneseq
        %v1556 = vshrl.u32 %v1555, 7
        %v1557 = vsub.s32 7, %v1556
        %v1558 = vrot.slane %v1337, %v1557
        %1560 = vbcast.lane.b32.xlu0 %v1558, 256
        %v1561 = vpop.permute.xlu0 %1560
        %v1562 = vlaneseq
        %v1563 = vshrl.u32 %v1562, 7
        %v1564 = vsub.s32 3, %v1563
        %v1565 = vrot.slane %v412, %v1564
        %v1566 = vmul.f32 %v1344, %v1565
        %v1567 = vmul.f32 %v1351, %v1565
        %v1568 = vmul.f32 %v1358, %v1565
        %v1569 = vmul.f32 %v1365, %v1565
        %v1570 = vmul.f32 %v1372, %v1565
        %v1571 = vmul.f32 %v1379, %v1565
        %v1572 = vmul.f32 %v1386, %v1565
        %v1573 = vmul.f32 %v1393, %v1565
        %v1574 = vmul.f32 %v1400, %v1565
        %v1575 = vmul.f32 %v1407, %v1565
        %v1576 = vmul.f32 %v1414, %v1565
        %v1577 = vmul.f32 %v1421, %v1565
        %v1578 = vmul.f32 %v1428, %v1565
        %v1579 = vmul.f32 %v1435, %v1565
        %v1580 = vmul.f32 %v1442, %v1565
        %v1581 = vmul.f32 %v1449, %v1565
        %v1582 = vmul.f32 %v1456, %v1565
        %v1583 = vmul.f32 %v1463, %v1565
        %v1584 = vmul.f32 %v1470, %v1565
        %v1585 = vmul.f32 %v1477, %v1565
        %v1586 = vmul.f32 %v1484, %v1565
        %v1587 = vmul.f32 %v1491, %v1565
        %v1588 = vmul.f32 %v1498, %v1565
        %v1589 = vmul.f32 %v1505, %v1565
        %v1590 = vmul.f32 %v1512, %v1565
        %v1591 = vmul.f32 %v1519, %v1565
        %v1592 = vmul.f32 %v1526, %v1565
        %v1593 = vmul.f32 %v1533, %v1565
        %v1594 = vmul.f32 %v1540, %v1565
        %v1595 = vmul.f32 %v1547, %v1565
        %v1596 = vmul.f32 %v1554, %v1565
        %v1597 = vmul.f32 %v1561, %v1565
        %v1598 = vadd.f32 %v1294, %v1566
        %v1599 = vadd.f32 %v1295, %v1567
        %v1600 = vadd.f32 %v1296, %v1568
        %v1601 = vadd.f32 %v1297, %v1569
        %v1602 = vadd.f32 %v1298, %v1570
        %v1603 = vadd.f32 %v1299, %v1571
        %v1604 = vadd.f32 %v1300, %v1572
        %v1605 = vadd.f32 %v1301, %v1573
        %v1606 = vadd.f32 %v1302, %v1574
        %v1607 = vadd.f32 %v1303, %v1575
        %v1608 = vadd.f32 %v1304, %v1576
        %v1609 = vadd.f32 %v1305, %v1577
        %v1610 = vadd.f32 %v1306, %v1578
        %v1611 = vadd.f32 %v1307, %v1579
        %v1612 = vadd.f32 %v1308, %v1580
        %v1613 = vadd.f32 %v1309, %v1581
        %v1614 = vadd.f32 %v1310, %v1582
        %v1615 = vadd.f32 %v1311, %v1583
        %v1616 = vadd.f32 %v1312, %v1584
        %v1617 = vadd.f32 %v1313, %v1585
        %v1618 = vadd.f32 %v1314, %v1586
        %v1619 = vadd.f32 %v1315, %v1587
        %v1620 = vadd.f32 %v1316, %v1588
        %v1621 = vadd.f32 %v1317, %v1589
        %v1622 = vadd.f32 %v1318, %v1590
        %v1623 = vadd.f32 %v1319, %v1591
        %v1624 = vadd.f32 %v1320, %v1592
        %v1625 = vadd.f32 %v1321, %v1593
        %v1626 = vadd.f32 %v1322, %v1594
        %v1627 = vadd.f32 %v1323, %v1595
        %v1628 = vadd.f32 %v1324, %v1596
        %v1629 = vadd.f32 %v1325, %v1597
        %vm1630 = vcmp.eq.s32.totalorder %v392, 4
        %vm1631 = vcmp.eq.s32.totalorder %v393, 4
        %vm1632 = vcmp.eq.s32.totalorder %v394, 4
        %vm1633 = vcmp.eq.s32.totalorder %v395, 4
        %v1634 = vsel %vm1630, 1, 0
        %v1635 = vsel %vm1631, 1, 0
        %v1636 = vsel %vm1632, 1, 0
        %v1637 = vsel %vm1633, 1, 0
        %v1638 = vcvt.s32.f32 %v1634
        %v1639 = vcvt.s32.f32 %v1635
        %v1640 = vcvt.s32.f32 %v1636
        %v1641 = vcvt.s32.f32 %v1637
        %v1642 = vlaneseq
        %v1643 = vshrl.u32 %v1642, 7
        %v1644 = vsub.s32 0, %v1643
        %v1645 = vrot.slane %v1638, %v1644
        %1647 = vbcast.lane.b32.xlu0 %v1645, 256
        %v1648 = vpop.permute.xlu0 %1647
        %v1649 = vlaneseq
        %v1650 = vshrl.u32 %v1649, 7
        %v1651 = vsub.s32 1, %v1650
        %v1652 = vrot.slane %v1638, %v1651
        %1654 = vbcast.lane.b32.xlu0 %v1652, 256
        %v1655 = vpop.permute.xlu0 %1654
        %v1656 = vlaneseq
        %v1657 = vshrl.u32 %v1656, 7
        %v1658 = vsub.s32 2, %v1657
        %v1659 = vrot.slane %v1638, %v1658
        %1661 = vbcast.lane.b32.xlu0 %v1659, 256
        %v1662 = vpop.permute.xlu0 %1661
        %v1663 = vlaneseq
        %v1664 = vshrl.u32 %v1663, 7
        %v1665 = vsub.s32 3, %v1664
        %v1666 = vrot.slane %v1638, %v1665
        %1668 = vbcast.lane.b32.xlu0 %v1666, 256
        %v1669 = vpop.permute.xlu0 %1668
        %v1670 = vlaneseq
        %v1671 = vshrl.u32 %v1670, 7
        %v1672 = vsub.s32 4, %v1671
        %v1673 = vrot.slane %v1638, %v1672
        %1675 = vbcast.lane.b32.xlu0 %v1673, 256
        %v1676 = vpop.permute.xlu0 %1675
        %v1677 = vlaneseq
        %v1678 = vshrl.u32 %v1677, 7
        %v1679 = vsub.s32 5, %v1678
        %v1680 = vrot.slane %v1638, %v1679
        %1682 = vbcast.lane.b32.xlu0 %v1680, 256
        %v1683 = vpop.permute.xlu0 %1682
        %v1684 = vlaneseq
        %v1685 = vshrl.u32 %v1684, 7
        %v1686 = vsub.s32 6, %v1685
        %v1687 = vrot.slane %v1638, %v1686
        %1689 = vbcast.lane.b32.xlu0 %v1687, 256
        %v1690 = vpop.permute.xlu0 %1689
        %v1691 = vlaneseq
        %v1692 = vshrl.u32 %v1691, 7
        %v1693 = vsub.s32 7, %v1692
        %v1694 = vrot.slane %v1638, %v1693
        %1696 = vbcast.lane.b32.xlu0 %v1694, 256
        %v1697 = vpop.permute.xlu0 %1696
        %v1698 = vlaneseq
        %v1699 = vshrl.u32 %v1698, 7
        %v1700 = vsub.s32 0, %v1699
        %v1701 = vrot.slane %v1639, %v1700
        %1703 = vbcast.lane.b32.xlu0 %v1701, 256
        %v1704 = vpop.permute.xlu0 %1703
        %v1705 = vlaneseq
        %v1706 = vshrl.u32 %v1705, 7
        %v1707 = vsub.s32 1, %v1706
        %v1708 = vrot.slane %v1639, %v1707
        %1710 = vbcast.lane.b32.xlu0 %v1708, 256
        %v1711 = vpop.permute.xlu0 %1710
        %v1712 = vlaneseq
        %v1713 = vshrl.u32 %v1712, 7
        %v1714 = vsub.s32 2, %v1713
        %v1715 = vrot.slane %v1639, %v1714
        %1717 = vbcast.lane.b32.xlu0 %v1715, 256
        %v1718 = vpop.permute.xlu0 %1717
        %v1719 = vlaneseq
        %v1720 = vshrl.u32 %v1719, 7
        %v1721 = vsub.s32 3, %v1720
        %v1722 = vrot.slane %v1639, %v1721
        %1724 = vbcast.lane.b32.xlu0 %v1722, 256
        %v1725 = vpop.permute.xlu0 %1724
        %v1726 = vlaneseq
        %v1727 = vshrl.u32 %v1726, 7
        %v1728 = vsub.s32 4, %v1727
        %v1729 = vrot.slane %v1639, %v1728
        %1731 = vbcast.lane.b32.xlu0 %v1729, 256
        %v1732 = vpop.permute.xlu0 %1731
        %v1733 = vlaneseq
        %v1734 = vshrl.u32 %v1733, 7
        %v1735 = vsub.s32 5, %v1734
        %v1736 = vrot.slane %v1639, %v1735
        %1738 = vbcast.lane.b32.xlu0 %v1736, 256
        %v1739 = vpop.permute.xlu0 %1738
        %v1740 = vlaneseq
        %v1741 = vshrl.u32 %v1740, 7
        %v1742 = vsub.s32 6, %v1741
        %v1743 = vrot.slane %v1639, %v1742
        %1745 = vbcast.lane.b32.xlu0 %v1743, 256
        %v1746 = vpop.permute.xlu0 %1745
        %v1747 = vlaneseq
        %v1748 = vshrl.u32 %v1747, 7
        %v1749 = vsub.s32 7, %v1748
        %v1750 = vrot.slane %v1639, %v1749
        %1752 = vbcast.lane.b32.xlu0 %v1750, 256
        %v1753 = vpop.permute.xlu0 %1752
        %v1754 = vlaneseq
        %v1755 = vshrl.u32 %v1754, 7
        %v1756 = vsub.s32 0, %v1755
        %v1757 = vrot.slane %v1640, %v1756
        %1759 = vbcast.lane.b32.xlu0 %v1757, 256
        %v1760 = vpop.permute.xlu0 %1759
        %v1761 = vlaneseq
        %v1762 = vshrl.u32 %v1761, 7
        %v1763 = vsub.s32 1, %v1762
        %v1764 = vrot.slane %v1640, %v1763
        %1766 = vbcast.lane.b32.xlu0 %v1764, 256
        %v1767 = vpop.permute.xlu0 %1766
        %v1768 = vlaneseq
        %v1769 = vshrl.u32 %v1768, 7
        %v1770 = vsub.s32 2, %v1769
        %v1771 = vrot.slane %v1640, %v1770
        %1773 = vbcast.lane.b32.xlu0 %v1771, 256
        %v1774 = vpop.permute.xlu0 %1773
        %v1775 = vlaneseq
        %v1776 = vshrl.u32 %v1775, 7
        %v1777 = vsub.s32 3, %v1776
        %v1778 = vrot.slane %v1640, %v1777
        %1780 = vbcast.lane.b32.xlu0 %v1778, 256
        %v1781 = vpop.permute.xlu0 %1780
        %v1782 = vlaneseq
        %v1783 = vshrl.u32 %v1782, 7
        %v1784 = vsub.s32 4, %v1783
        %v1785 = vrot.slane %v1640, %v1784
        %1787 = vbcast.lane.b32.xlu0 %v1785, 256
        %v1788 = vpop.permute.xlu0 %1787
        %v1789 = vlaneseq
        %v1790 = vshrl.u32 %v1789, 7
        %v1791 = vsub.s32 5, %v1790
        %v1792 = vrot.slane %v1640, %v1791
        %1794 = vbcast.lane.b32.xlu0 %v1792, 256
        %v1795 = vpop.permute.xlu0 %1794
        %v1796 = vlaneseq
        %v1797 = vshrl.u32 %v1796, 7
        %v1798 = vsub.s32 6, %v1797
        %v1799 = vrot.slane %v1640, %v1798
        %1801 = vbcast.lane.b32.xlu0 %v1799, 256
        %v1802 = vpop.permute.xlu0 %1801
        %v1803 = vlaneseq
        %v1804 = vshrl.u32 %v1803, 7
        %v1805 = vsub.s32 7, %v1804
        %v1806 = vrot.slane %v1640, %v1805
        %1808 = vbcast.lane.b32.xlu0 %v1806, 256
        %v1809 = vpop.permute.xlu0 %1808
        %v1810 = vlaneseq
        %v1811 = vshrl.u32 %v1810, 7
        %v1812 = vsub.s32 0, %v1811
        %v1813 = vrot.slane %v1641, %v1812
        %1815 = vbcast.lane.b32.xlu0 %v1813, 256
        %v1816 = vpop.permute.xlu0 %1815
        %v1817 = vlaneseq
        %v1818 = vshrl.u32 %v1817, 7
        %v1819 = vsub.s32 1, %v1818
        %v1820 = vrot.slane %v1641, %v1819
        %1822 = vbcast.lane.b32.xlu0 %v1820, 256
        %v1823 = vpop.permute.xlu0 %1822
        %v1824 = vlaneseq
        %v1825 = vshrl.u32 %v1824, 7
        %v1826 = vsub.s32 2, %v1825
        %v1827 = vrot.slane %v1641, %v1826
        %1829 = vbcast.lane.b32.xlu0 %v1827, 256
        %v1830 = vpop.permute.xlu0 %1829
        %v1831 = vlaneseq
        %v1832 = vshrl.u32 %v1831, 7
        %v1833 = vsub.s32 3, %v1832
        %v1834 = vrot.slane %v1641, %v1833
        %1836 = vbcast.lane.b32.xlu0 %v1834, 256
        %v1837 = vpop.permute.xlu0 %1836
        %v1838 = vlaneseq
        %v1839 = vshrl.u32 %v1838, 7
        %v1840 = vsub.s32 4, %v1839
        %v1841 = vrot.slane %v1641, %v1840
        %1843 = vbcast.lane.b32.xlu0 %v1841, 256
        %v1844 = vpop.permute.xlu0 %1843
        %v1845 = vlaneseq
        %v1846 = vshrl.u32 %v1845, 7
        %v1847 = vsub.s32 5, %v1846
        %v1848 = vrot.slane %v1641, %v1847
        %1850 = vbcast.lane.b32.xlu0 %v1848, 256
        %v1851 = vpop.permute.xlu0 %1850
        %v1852 = vlaneseq
        %v1853 = vshrl.u32 %v1852, 7
        %v1854 = vsub.s32 6, %v1853
        %v1855 = vrot.slane %v1641, %v1854
        %1857 = vbcast.lane.b32.xlu0 %v1855, 256
        %v1858 = vpop.permute.xlu0 %1857
        %v1859 = vlaneseq
        %v1860 = vshrl.u32 %v1859, 7
        %v1861 = vsub.s32 7, %v1860
        %v1862 = vrot.slane %v1641, %v1861
        %1864 = vbcast.lane.b32.xlu0 %v1862, 256
        %v1865 = vpop.permute.xlu0 %1864
        %v1866 = vlaneseq
        %v1867 = vshrl.u32 %v1866, 7
        %v1868 = vsub.s32 4, %v1867
        %v1869 = vrot.slane %v412, %v1868
        %v1870 = vmul.f32 %v1648, %v1869
        %v1871 = vmul.f32 %v1655, %v1869
        %v1872 = vmul.f32 %v1662, %v1869
        %v1873 = vmul.f32 %v1669, %v1869
        %v1874 = vmul.f32 %v1676, %v1869
        %v1875 = vmul.f32 %v1683, %v1869
        %v1876 = vmul.f32 %v1690, %v1869
        %v1877 = vmul.f32 %v1697, %v1869
        %v1878 = vmul.f32 %v1704, %v1869
        %v1879 = vmul.f32 %v1711, %v1869
        %v1880 = vmul.f32 %v1718, %v1869
        %v1881 = vmul.f32 %v1725, %v1869
        %v1882 = vmul.f32 %v1732, %v1869
        %v1883 = vmul.f32 %v1739, %v1869
        %v1884 = vmul.f32 %v1746, %v1869
        %v1885 = vmul.f32 %v1753, %v1869
        %v1886 = vmul.f32 %v1760, %v1869
        %v1887 = vmul.f32 %v1767, %v1869
        %v1888 = vmul.f32 %v1774, %v1869
        %v1889 = vmul.f32 %v1781, %v1869
        %v1890 = vmul.f32 %v1788, %v1869
        %v1891 = vmul.f32 %v1795, %v1869
        %v1892 = vmul.f32 %v1802, %v1869
        %v1893 = vmul.f32 %v1809, %v1869
        %v1894 = vmul.f32 %v1816, %v1869
        %v1895 = vmul.f32 %v1823, %v1869
        %v1896 = vmul.f32 %v1830, %v1869
        %v1897 = vmul.f32 %v1837, %v1869
        %v1898 = vmul.f32 %v1844, %v1869
        %v1899 = vmul.f32 %v1851, %v1869
        %v1900 = vmul.f32 %v1858, %v1869
        %v1901 = vmul.f32 %v1865, %v1869
        %v1902 = vadd.f32 %v1598, %v1870
        %v1903 = vadd.f32 %v1599, %v1871
        %v1904 = vadd.f32 %v1600, %v1872
        %v1905 = vadd.f32 %v1601, %v1873
        %v1906 = vadd.f32 %v1602, %v1874
        %v1907 = vadd.f32 %v1603, %v1875
        %v1908 = vadd.f32 %v1604, %v1876
        %v1909 = vadd.f32 %v1605, %v1877
        %v1910 = vadd.f32 %v1606, %v1878
        %v1911 = vadd.f32 %v1607, %v1879
        %v1912 = vadd.f32 %v1608, %v1880
        %v1913 = vadd.f32 %v1609, %v1881
        %v1914 = vadd.f32 %v1610, %v1882
        %v1915 = vadd.f32 %v1611, %v1883
        %v1916 = vadd.f32 %v1612, %v1884
        %v1917 = vadd.f32 %v1613, %v1885
        %v1918 = vadd.f32 %v1614, %v1886
        %v1919 = vadd.f32 %v1615, %v1887
        %v1920 = vadd.f32 %v1616, %v1888
        %v1921 = vadd.f32 %v1617, %v1889
        %v1922 = vadd.f32 %v1618, %v1890
        %v1923 = vadd.f32 %v1619, %v1891
        %v1924 = vadd.f32 %v1620, %v1892
        %v1925 = vadd.f32 %v1621, %v1893
        %v1926 = vadd.f32 %v1622, %v1894
        %v1927 = vadd.f32 %v1623, %v1895
        %v1928 = vadd.f32 %v1624, %v1896
        %v1929 = vadd.f32 %v1625, %v1897
        %v1930 = vadd.f32 %v1626, %v1898
        %v1931 = vadd.f32 %v1627, %v1899
        %v1932 = vadd.f32 %v1628, %v1900
        %v1933 = vadd.f32 %v1629, %v1901
        %vm1934 = vcmp.eq.s32.totalorder %v392, 5
        %vm1935 = vcmp.eq.s32.totalorder %v393, 5
        %vm1936 = vcmp.eq.s32.totalorder %v394, 5
        %vm1937 = vcmp.eq.s32.totalorder %v395, 5
        %v1938 = vsel %vm1934, 1, 0
        %v1939 = vsel %vm1935, 1, 0
        %v1940 = vsel %vm1936, 1, 0
        %v1941 = vsel %vm1937, 1, 0
        %v1942 = vcvt.s32.f32 %v1938
        %v1943 = vcvt.s32.f32 %v1939
        %v1944 = vcvt.s32.f32 %v1940
        %v1945 = vcvt.s32.f32 %v1941
        %v1946 = vlaneseq
        %v1947 = vshrl.u32 %v1946, 7
        %v1948 = vsub.s32 0, %v1947
        %v1949 = vrot.slane %v1942, %v1948
        %1951 = vbcast.lane.b32.xlu0 %v1949, 256
        %v1952 = vpop.permute.xlu0 %1951
        %v1953 = vlaneseq
        %v1954 = vshrl.u32 %v1953, 7
        %v1955 = vsub.s32 1, %v1954
        %v1956 = vrot.slane %v1942, %v1955
        %1958 = vbcast.lane.b32.xlu0 %v1956, 256
        %v1959 = vpop.permute.xlu0 %1958
        %v1960 = vlaneseq
        %v1961 = vshrl.u32 %v1960, 7
        %v1962 = vsub.s32 2, %v1961
        %v1963 = vrot.slane %v1942, %v1962
        %1965 = vbcast.lane.b32.xlu0 %v1963, 256
        %v1966 = vpop.permute.xlu0 %1965
        %v1967 = vlaneseq
        %v1968 = vshrl.u32 %v1967, 7
        %v1969 = vsub.s32 3, %v1968
        %v1970 = vrot.slane %v1942, %v1969
        %1972 = vbcast.lane.b32.xlu0 %v1970, 256
        %v1973 = vpop.permute.xlu0 %1972
        %v1974 = vlaneseq
        %v1975 = vshrl.u32 %v1974, 7
        %v1976 = vsub.s32 4, %v1975
        %v1977 = vrot.slane %v1942, %v1976
        %1979 = vbcast.lane.b32.xlu0 %v1977, 256
        %v1980 = vpop.permute.xlu0 %1979
        %v1981 = vlaneseq
        %v1982 = vshrl.u32 %v1981, 7
        %v1983 = vsub.s32 5, %v1982
        %v1984 = vrot.slane %v1942, %v1983
        %1986 = vbcast.lane.b32.xlu0 %v1984, 256
        %v1987 = vpop.permute.xlu0 %1986
        %v1988 = vlaneseq
        %v1989 = vshrl.u32 %v1988, 7
        %v1990 = vsub.s32 6, %v1989
        %v1991 = vrot.slane %v1942, %v1990
        %1993 = vbcast.lane.b32.xlu0 %v1991, 256
        %v1994 = vpop.permute.xlu0 %1993
        %v1995 = vlaneseq
        %v1996 = vshrl.u32 %v1995, 7
        %v1997 = vsub.s32 7, %v1996
        %v1998 = vrot.slane %v1942, %v1997
        %2000 = vbcast.lane.b32.xlu0 %v1998, 256
        %v2001 = vpop.permute.xlu0 %2000
        %v2002 = vlaneseq
        %v2003 = vshrl.u32 %v2002, 7
        %v2004 = vsub.s32 0, %v2003
        %v2005 = vrot.slane %v1943, %v2004
        %2007 = vbcast.lane.b32.xlu0 %v2005, 256
        %v2008 = vpop.permute.xlu0 %2007
        %v2009 = vlaneseq
        %v2010 = vshrl.u32 %v2009, 7
        %v2011 = vsub.s32 1, %v2010
        %v2012 = vrot.slane %v1943, %v2011
        %2014 = vbcast.lane.b32.xlu0 %v2012, 256
        %v2015 = vpop.permute.xlu0 %2014
        %v2016 = vlaneseq
        %v2017 = vshrl.u32 %v2016, 7
        %v2018 = vsub.s32 2, %v2017
        %v2019 = vrot.slane %v1943, %v2018
        %2021 = vbcast.lane.b32.xlu0 %v2019, 256
        %v2022 = vpop.permute.xlu0 %2021
        %v2023 = vlaneseq
        %v2024 = vshrl.u32 %v2023, 7
        %v2025 = vsub.s32 3, %v2024
        %v2026 = vrot.slane %v1943, %v2025
        %2028 = vbcast.lane.b32.xlu0 %v2026, 256
        %v2029 = vpop.permute.xlu0 %2028
        %v2030 = vlaneseq
        %v2031 = vshrl.u32 %v2030, 7
        %v2032 = vsub.s32 4, %v2031
        %v2033 = vrot.slane %v1943, %v2032
        %2035 = vbcast.lane.b32.xlu0 %v2033, 256
        %v2036 = vpop.permute.xlu0 %2035
        %v2037 = vlaneseq
        %v2038 = vshrl.u32 %v2037, 7
        %v2039 = vsub.s32 5, %v2038
        %v2040 = vrot.slane %v1943, %v2039
        %2042 = vbcast.lane.b32.xlu0 %v2040, 256
        %v2043 = vpop.permute.xlu0 %2042
        %v2044 = vlaneseq
        %v2045 = vshrl.u32 %v2044, 7
        %v2046 = vsub.s32 6, %v2045
        %v2047 = vrot.slane %v1943, %v2046
        %2049 = vbcast.lane.b32.xlu0 %v2047, 256
        %v2050 = vpop.permute.xlu0 %2049
        %v2051 = vlaneseq
        %v2052 = vshrl.u32 %v2051, 7
        %v2053 = vsub.s32 7, %v2052
        %v2054 = vrot.slane %v1943, %v2053
        %2056 = vbcast.lane.b32.xlu0 %v2054, 256
        %v2057 = vpop.permute.xlu0 %2056
        %v2058 = vlaneseq
        %v2059 = vshrl.u32 %v2058, 7
        %v2060 = vsub.s32 0, %v2059
        %v2061 = vrot.slane %v1944, %v2060
        %2063 = vbcast.lane.b32.xlu0 %v2061, 256
        %v2064 = vpop.permute.xlu0 %2063
        %v2065 = vlaneseq
        %v2066 = vshrl.u32 %v2065, 7
        %v2067 = vsub.s32 1, %v2066
        %v2068 = vrot.slane %v1944, %v2067
        %2070 = vbcast.lane.b32.xlu0 %v2068, 256
        %v2071 = vpop.permute.xlu0 %2070
        %v2072 = vlaneseq
        %v2073 = vshrl.u32 %v2072, 7
        %v2074 = vsub.s32 2, %v2073
        %v2075 = vrot.slane %v1944, %v2074
        %2077 = vbcast.lane.b32.xlu0 %v2075, 256
        %v2078 = vpop.permute.xlu0 %2077
        %v2079 = vlaneseq
        %v2080 = vshrl.u32 %v2079, 7
        %v2081 = vsub.s32 3, %v2080
        %v2082 = vrot.slane %v1944, %v2081
        %2084 = vbcast.lane.b32.xlu0 %v2082, 256
        %v2085 = vpop.permute.xlu0 %2084
        %v2086 = vlaneseq
        %v2087 = vshrl.u32 %v2086, 7
        %v2088 = vsub.s32 4, %v2087
        %v2089 = vrot.slane %v1944, %v2088
        %2091 = vbcast.lane.b32.xlu0 %v2089, 256
        %v2092 = vpop.permute.xlu0 %2091
        %v2093 = vlaneseq
        %v2094 = vshrl.u32 %v2093, 7
        %v2095 = vsub.s32 5, %v2094
        %v2096 = vrot.slane %v1944, %v2095
        %2098 = vbcast.lane.b32.xlu0 %v2096, 256
        %v2099 = vpop.permute.xlu0 %2098
        %v2100 = vlaneseq
        %v2101 = vshrl.u32 %v2100, 7
        %v2102 = vsub.s32 6, %v2101
        %v2103 = vrot.slane %v1944, %v2102
        %2105 = vbcast.lane.b32.xlu0 %v2103, 256
        %v2106 = vpop.permute.xlu0 %2105
        %v2107 = vlaneseq
        %v2108 = vshrl.u32 %v2107, 7
        %v2109 = vsub.s32 7, %v2108
        %v2110 = vrot.slane %v1944, %v2109
        %2112 = vbcast.lane.b32.xlu0 %v2110, 256
        %v2113 = vpop.permute.xlu0 %2112
        %v2114 = vlaneseq
        %v2115 = vshrl.u32 %v2114, 7
        %v2116 = vsub.s32 0, %v2115
        %v2117 = vrot.slane %v1945, %v2116
        %2119 = vbcast.lane.b32.xlu0 %v2117, 256
        %v2120 = vpop.permute.xlu0 %2119
        %v2121 = vlaneseq
        %v2122 = vshrl.u32 %v2121, 7
        %v2123 = vsub.s32 1, %v2122
        %v2124 = vrot.slane %v1945, %v2123
        %2126 = vbcast.lane.b32.xlu0 %v2124, 256
        %v2127 = vpop.permute.xlu0 %2126
        %v2128 = vlaneseq
        %v2129 = vshrl.u32 %v2128, 7
        %v2130 = vsub.s32 2, %v2129
        %v2131 = vrot.slane %v1945, %v2130
        %2133 = vbcast.lane.b32.xlu0 %v2131, 256
        %v2134 = vpop.permute.xlu0 %2133
        %v2135 = vlaneseq
        %v2136 = vshrl.u32 %v2135, 7
        %v2137 = vsub.s32 3, %v2136
        %v2138 = vrot.slane %v1945, %v2137
        %2140 = vbcast.lane.b32.xlu0 %v2138, 256
        %v2141 = vpop.permute.xlu0 %2140
        %v2142 = vlaneseq
        %v2143 = vshrl.u32 %v2142, 7
        %v2144 = vsub.s32 4, %v2143
        %v2145 = vrot.slane %v1945, %v2144
        %2147 = vbcast.lane.b32.xlu0 %v2145, 256
        %v2148 = vpop.permute.xlu0 %2147
        %v2149 = vlaneseq
        %v2150 = vshrl.u32 %v2149, 7
        %v2151 = vsub.s32 5, %v2150
        %v2152 = vrot.slane %v1945, %v2151
        %2154 = vbcast.lane.b32.xlu0 %v2152, 256
        %v2155 = vpop.permute.xlu0 %2154
        %v2156 = vlaneseq
        %v2157 = vshrl.u32 %v2156, 7
        %v2158 = vsub.s32 6, %v2157
        %v2159 = vrot.slane %v1945, %v2158
        %2161 = vbcast.lane.b32.xlu0 %v2159, 256
        %v2162 = vpop.permute.xlu0 %2161
        %v2163 = vlaneseq
        %v2164 = vshrl.u32 %v2163, 7
        %v2165 = vsub.s32 7, %v2164
        %v2166 = vrot.slane %v1945, %v2165
        %2168 = vbcast.lane.b32.xlu0 %v2166, 256
        %v2169 = vpop.permute.xlu0 %2168
        %v2170 = vlaneseq
        %v2171 = vshrl.u32 %v2170, 7
        %v2172 = vsub.s32 5, %v2171
        %v2173 = vrot.slane %v412, %v2172
        %v2174 = vmul.f32 %v1952, %v2173
        %v2175 = vmul.f32 %v1959, %v2173
        %v2176 = vmul.f32 %v1966, %v2173
        %v2177 = vmul.f32 %v1973, %v2173
        %v2178 = vmul.f32 %v1980, %v2173
        %v2179 = vmul.f32 %v1987, %v2173
        %v2180 = vmul.f32 %v1994, %v2173
        %v2181 = vmul.f32 %v2001, %v2173
        %v2182 = vmul.f32 %v2008, %v2173
        %v2183 = vmul.f32 %v2015, %v2173
        %v2184 = vmul.f32 %v2022, %v2173
        %v2185 = vmul.f32 %v2029, %v2173
        %v2186 = vmul.f32 %v2036, %v2173
        %v2187 = vmul.f32 %v2043, %v2173
        %v2188 = vmul.f32 %v2050, %v2173
        %v2189 = vmul.f32 %v2057, %v2173
        %v2190 = vmul.f32 %v2064, %v2173
        %v2191 = vmul.f32 %v2071, %v2173
        %v2192 = vmul.f32 %v2078, %v2173
        %v2193 = vmul.f32 %v2085, %v2173
        %v2194 = vmul.f32 %v2092, %v2173
        %v2195 = vmul.f32 %v2099, %v2173
        %v2196 = vmul.f32 %v2106, %v2173
        %v2197 = vmul.f32 %v2113, %v2173
        %v2198 = vmul.f32 %v2120, %v2173
        %v2199 = vmul.f32 %v2127, %v2173
        %v2200 = vmul.f32 %v2134, %v2173
        %v2201 = vmul.f32 %v2141, %v2173
        %v2202 = vmul.f32 %v2148, %v2173
        %v2203 = vmul.f32 %v2155, %v2173
        %v2204 = vmul.f32 %v2162, %v2173
        %v2205 = vmul.f32 %v2169, %v2173
        %v2206 = vadd.f32 %v1902, %v2174
        %v2207 = vadd.f32 %v1903, %v2175
        %v2208 = vadd.f32 %v1904, %v2176
        %v2209 = vadd.f32 %v1905, %v2177
        %v2210 = vadd.f32 %v1906, %v2178
        %v2211 = vadd.f32 %v1907, %v2179
        %v2212 = vadd.f32 %v1908, %v2180
        %v2213 = vadd.f32 %v1909, %v2181
        %v2214 = vadd.f32 %v1910, %v2182
        %v2215 = vadd.f32 %v1911, %v2183
        %v2216 = vadd.f32 %v1912, %v2184
        %v2217 = vadd.f32 %v1913, %v2185
        %v2218 = vadd.f32 %v1914, %v2186
        %v2219 = vadd.f32 %v1915, %v2187
        %v2220 = vadd.f32 %v1916, %v2188
        %v2221 = vadd.f32 %v1917, %v2189
        %v2222 = vadd.f32 %v1918, %v2190
        %v2223 = vadd.f32 %v1919, %v2191
        %v2224 = vadd.f32 %v1920, %v2192
        %v2225 = vadd.f32 %v1921, %v2193
        %v2226 = vadd.f32 %v1922, %v2194
        %v2227 = vadd.f32 %v1923, %v2195
        %v2228 = vadd.f32 %v1924, %v2196
        %v2229 = vadd.f32 %v1925, %v2197
        %v2230 = vadd.f32 %v1926, %v2198
        %v2231 = vadd.f32 %v1927, %v2199
        %v2232 = vadd.f32 %v1928, %v2200
        %v2233 = vadd.f32 %v1929, %v2201
        %v2234 = vadd.f32 %v1930, %v2202
        %v2235 = vadd.f32 %v1931, %v2203
        %v2236 = vadd.f32 %v1932, %v2204
        %v2237 = vadd.f32 %v1933, %v2205
        %vm2238 = vcmp.eq.s32.totalorder %v392, 6
        %vm2239 = vcmp.eq.s32.totalorder %v393, 6
        %vm2240 = vcmp.eq.s32.totalorder %v394, 6
        %vm2241 = vcmp.eq.s32.totalorder %v395, 6
        %v2242 = vsel %vm2238, 1, 0
        %v2243 = vsel %vm2239, 1, 0
        %v2244 = vsel %vm2240, 1, 0
        %v2245 = vsel %vm2241, 1, 0
        %v2246 = vcvt.s32.f32 %v2242
        %v2247 = vcvt.s32.f32 %v2243
        %v2248 = vcvt.s32.f32 %v2244
        %v2249 = vcvt.s32.f32 %v2245
        %v2250 = vlaneseq
        %v2251 = vshrl.u32 %v2250, 7
        %v2252 = vsub.s32 0, %v2251
        %v2253 = vrot.slane %v2246, %v2252
        %2255 = vbcast.lane.b32.xlu0 %v2253, 256
        %v2256 = vpop.permute.xlu0 %2255
        %v2257 = vlaneseq
        %v2258 = vshrl.u32 %v2257, 7
        %v2259 = vsub.s32 1, %v2258
        %v2260 = vrot.slane %v2246, %v2259
        %2262 = vbcast.lane.b32.xlu0 %v2260, 256
        %v2263 = vpop.permute.xlu0 %2262
        %v2264 = vlaneseq
        %v2265 = vshrl.u32 %v2264, 7
        %v2266 = vsub.s32 2, %v2265
        %v2267 = vrot.slane %v2246, %v2266
        %2269 = vbcast.lane.b32.xlu0 %v2267, 256
        %v2270 = vpop.permute.xlu0 %2269
        %v2271 = vlaneseq
        %v2272 = vshrl.u32 %v2271, 7
        %v2273 = vsub.s32 3, %v2272
        %v2274 = vrot.slane %v2246, %v2273
        %2276 = vbcast.lane.b32.xlu0 %v2274, 256
        %v2277 = vpop.permute.xlu0 %2276
        %v2278 = vlaneseq
        %v2279 = vshrl.u32 %v2278, 7
        %v2280 = vsub.s32 4, %v2279
        %v2281 = vrot.slane %v2246, %v2280
        %2283 = vbcast.lane.b32.xlu0 %v2281, 256
        %v2284 = vpop.permute.xlu0 %2283
        %v2285 = vlaneseq
        %v2286 = vshrl.u32 %v2285, 7
        %v2287 = vsub.s32 5, %v2286
        %v2288 = vrot.slane %v2246, %v2287
        %2290 = vbcast.lane.b32.xlu0 %v2288, 256
        %v2291 = vpop.permute.xlu0 %2290
        %v2292 = vlaneseq
        %v2293 = vshrl.u32 %v2292, 7
        %v2294 = vsub.s32 6, %v2293
        %v2295 = vrot.slane %v2246, %v2294
        %2297 = vbcast.lane.b32.xlu0 %v2295, 256
        %v2298 = vpop.permute.xlu0 %2297
        %v2299 = vlaneseq
        %v2300 = vshrl.u32 %v2299, 7
        %v2301 = vsub.s32 7, %v2300
        %v2302 = vrot.slane %v2246, %v2301
        %2304 = vbcast.lane.b32.xlu0 %v2302, 256
        %v2305 = vpop.permute.xlu0 %2304
        %v2306 = vlaneseq
        %v2307 = vshrl.u32 %v2306, 7
        %v2308 = vsub.s32 0, %v2307
        %v2309 = vrot.slane %v2247, %v2308
        %2311 = vbcast.lane.b32.xlu0 %v2309, 256
        %v2312 = vpop.permute.xlu0 %2311
        %v2313 = vlaneseq
        %v2314 = vshrl.u32 %v2313, 7
        %v2315 = vsub.s32 1, %v2314
        %v2316 = vrot.slane %v2247, %v2315
        %2318 = vbcast.lane.b32.xlu0 %v2316, 256
        %v2319 = vpop.permute.xlu0 %2318
        %v2320 = vlaneseq
        %v2321 = vshrl.u32 %v2320, 7
        %v2322 = vsub.s32 2, %v2321
        %v2323 = vrot.slane %v2247, %v2322
        %2325 = vbcast.lane.b32.xlu0 %v2323, 256
        %v2326 = vpop.permute.xlu0 %2325
        %v2327 = vlaneseq
        %v2328 = vshrl.u32 %v2327, 7
        %v2329 = vsub.s32 3, %v2328
        %v2330 = vrot.slane %v2247, %v2329
        %2332 = vbcast.lane.b32.xlu0 %v2330, 256
        %v2333 = vpop.permute.xlu0 %2332
        %v2334 = vlaneseq
        %v2335 = vshrl.u32 %v2334, 7
        %v2336 = vsub.s32 4, %v2335
        %v2337 = vrot.slane %v2247, %v2336
        %2339 = vbcast.lane.b32.xlu0 %v2337, 256
        %v2340 = vpop.permute.xlu0 %2339
        %v2341 = vlaneseq
        %v2342 = vshrl.u32 %v2341, 7
        %v2343 = vsub.s32 5, %v2342
        %v2344 = vrot.slane %v2247, %v2343
        %2346 = vbcast.lane.b32.xlu0 %v2344, 256
        %v2347 = vpop.permute.xlu0 %2346
        %v2348 = vlaneseq
        %v2349 = vshrl.u32 %v2348, 7
        %v2350 = vsub.s32 6, %v2349
        %v2351 = vrot.slane %v2247, %v2350
        %2353 = vbcast.lane.b32.xlu0 %v2351, 256
        %v2354 = vpop.permute.xlu0 %2353
        %v2355 = vlaneseq
        %v2356 = vshrl.u32 %v2355, 7
        %v2357 = vsub.s32 7, %v2356
        %v2358 = vrot.slane %v2247, %v2357
        %2360 = vbcast.lane.b32.xlu0 %v2358, 256
        %v2361 = vpop.permute.xlu0 %2360
        %v2362 = vlaneseq
        %v2363 = vshrl.u32 %v2362, 7
        %v2364 = vsub.s32 0, %v2363
        %v2365 = vrot.slane %v2248, %v2364
        %2367 = vbcast.lane.b32.xlu0 %v2365, 256
        %v2368 = vpop.permute.xlu0 %2367
        %v2369 = vlaneseq
        %v2370 = vshrl.u32 %v2369, 7
        %v2371 = vsub.s32 1, %v2370
        %v2372 = vrot.slane %v2248, %v2371
        %2374 = vbcast.lane.b32.xlu0 %v2372, 256
        %v2375 = vpop.permute.xlu0 %2374
        %v2376 = vlaneseq
        %v2377 = vshrl.u32 %v2376, 7
        %v2378 = vsub.s32 2, %v2377
        %v2379 = vrot.slane %v2248, %v2378
        %2381 = vbcast.lane.b32.xlu0 %v2379, 256
        %v2382 = vpop.permute.xlu0 %2381
        %v2383 = vlaneseq
        %v2384 = vshrl.u32 %v2383, 7
        %v2385 = vsub.s32 3, %v2384
        %v2386 = vrot.slane %v2248, %v2385
        %2388 = vbcast.lane.b32.xlu0 %v2386, 256
        %v2389 = vpop.permute.xlu0 %2388
        %v2390 = vlaneseq
        %v2391 = vshrl.u32 %v2390, 7
        %v2392 = vsub.s32 4, %v2391
        %v2393 = vrot.slane %v2248, %v2392
        %2395 = vbcast.lane.b32.xlu0 %v2393, 256
        %v2396 = vpop.permute.xlu0 %2395
        %v2397 = vlaneseq
        %v2398 = vshrl.u32 %v2397, 7
        %v2399 = vsub.s32 5, %v2398
        %v2400 = vrot.slane %v2248, %v2399
        %2402 = vbcast.lane.b32.xlu0 %v2400, 256
        %v2403 = vpop.permute.xlu0 %2402
        %v2404 = vlaneseq
        %v2405 = vshrl.u32 %v2404, 7
        %v2406 = vsub.s32 6, %v2405
        %v2407 = vrot.slane %v2248, %v2406
        %2409 = vbcast.lane.b32.xlu0 %v2407, 256
        %v2410 = vpop.permute.xlu0 %2409
        %v2411 = vlaneseq
        %v2412 = vshrl.u32 %v2411, 7
        %v2413 = vsub.s32 7, %v2412
        %v2414 = vrot.slane %v2248, %v2413
        %2416 = vbcast.lane.b32.xlu0 %v2414, 256
        %v2417 = vpop.permute.xlu0 %2416
        %v2418 = vlaneseq
        %v2419 = vshrl.u32 %v2418, 7
        %v2420 = vsub.s32 0, %v2419
        %v2421 = vrot.slane %v2249, %v2420
        %2423 = vbcast.lane.b32.xlu0 %v2421, 256
        %v2424 = vpop.permute.xlu0 %2423
        %v2425 = vlaneseq
        %v2426 = vshrl.u32 %v2425, 7
        %v2427 = vsub.s32 1, %v2426
        %v2428 = vrot.slane %v2249, %v2427
        %2430 = vbcast.lane.b32.xlu0 %v2428, 256
        %v2431 = vpop.permute.xlu0 %2430
        %v2432 = vlaneseq
        %v2433 = vshrl.u32 %v2432, 7
        %v2434 = vsub.s32 2, %v2433
        %v2435 = vrot.slane %v2249, %v2434
        %2437 = vbcast.lane.b32.xlu0 %v2435, 256
        %v2438 = vpop.permute.xlu0 %2437
        %v2439 = vlaneseq
        %v2440 = vshrl.u32 %v2439, 7
        %v2441 = vsub.s32 3, %v2440
        %v2442 = vrot.slane %v2249, %v2441
        %2444 = vbcast.lane.b32.xlu0 %v2442, 256
        %v2445 = vpop.permute.xlu0 %2444
        %v2446 = vlaneseq
        %v2447 = vshrl.u32 %v2446, 7
        %v2448 = vsub.s32 4, %v2447
        %v2449 = vrot.slane %v2249, %v2448
        %2451 = vbcast.lane.b32.xlu0 %v2449, 256
        %v2452 = vpop.permute.xlu0 %2451
        %v2453 = vlaneseq
        %v2454 = vshrl.u32 %v2453, 7
        %v2455 = vsub.s32 5, %v2454
        %v2456 = vrot.slane %v2249, %v2455
        %2458 = vbcast.lane.b32.xlu0 %v2456, 256
        %v2459 = vpop.permute.xlu0 %2458
        %v2460 = vlaneseq
        %v2461 = vshrl.u32 %v2460, 7
        %v2462 = vsub.s32 6, %v2461
        %v2463 = vrot.slane %v2249, %v2462
        %2465 = vbcast.lane.b32.xlu0 %v2463, 256
        %v2466 = vpop.permute.xlu0 %2465
        %v2467 = vlaneseq
        %v2468 = vshrl.u32 %v2467, 7
        %v2469 = vsub.s32 7, %v2468
        %v2470 = vrot.slane %v2249, %v2469
        %2472 = vbcast.lane.b32.xlu0 %v2470, 256
        %v2473 = vpop.permute.xlu0 %2472
        %v2474 = vlaneseq
        %v2475 = vshrl.u32 %v2474, 7
        %v2476 = vsub.s32 6, %v2475
        %v2477 = vrot.slane %v412, %v2476
        %v2478 = vmul.f32 %v2256, %v2477
        %v2479 = vmul.f32 %v2263, %v2477
        %v2480 = vmul.f32 %v2270, %v2477
        %v2481 = vmul.f32 %v2277, %v2477
        %v2482 = vmul.f32 %v2284, %v2477
        %v2483 = vmul.f32 %v2291, %v2477
        %v2484 = vmul.f32 %v2298, %v2477
        %v2485 = vmul.f32 %v2305, %v2477
        %v2486 = vmul.f32 %v2312, %v2477
        %v2487 = vmul.f32 %v2319, %v2477
        %v2488 = vmul.f32 %v2326, %v2477
        %v2489 = vmul.f32 %v2333, %v2477
        %v2490 = vmul.f32 %v2340, %v2477
        %v2491 = vmul.f32 %v2347, %v2477
        %v2492 = vmul.f32 %v2354, %v2477
        %v2493 = vmul.f32 %v2361, %v2477
        %v2494 = vmul.f32 %v2368, %v2477
        %v2495 = vmul.f32 %v2375, %v2477
        %v2496 = vmul.f32 %v2382, %v2477
        %v2497 = vmul.f32 %v2389, %v2477
        %v2498 = vmul.f32 %v2396, %v2477
        %v2499 = vmul.f32 %v2403, %v2477
        %v2500 = vmul.f32 %v2410, %v2477
        %v2501 = vmul.f32 %v2417, %v2477
        %v2502 = vmul.f32 %v2424, %v2477
        %v2503 = vmul.f32 %v2431, %v2477
        %v2504 = vmul.f32 %v2438, %v2477
        %v2505 = vmul.f32 %v2445, %v2477
        %v2506 = vmul.f32 %v2452, %v2477
        %v2507 = vmul.f32 %v2459, %v2477
        %v2508 = vmul.f32 %v2466, %v2477
        %v2509 = vmul.f32 %v2473, %v2477
        %v2510 = vadd.f32 %v2206, %v2478
        %v2511 = vadd.f32 %v2207, %v2479
        %v2512 = vadd.f32 %v2208, %v2480
        %v2513 = vadd.f32 %v2209, %v2481
        %v2514 = vadd.f32 %v2210, %v2482
        %v2515 = vadd.f32 %v2211, %v2483
        %v2516 = vadd.f32 %v2212, %v2484
        %v2517 = vadd.f32 %v2213, %v2485
        %v2518 = vadd.f32 %v2214, %v2486
        %v2519 = vadd.f32 %v2215, %v2487
        %v2520 = vadd.f32 %v2216, %v2488
        %v2521 = vadd.f32 %v2217, %v2489
        %v2522 = vadd.f32 %v2218, %v2490
        %v2523 = vadd.f32 %v2219, %v2491
        %v2524 = vadd.f32 %v2220, %v2492
        %v2525 = vadd.f32 %v2221, %v2493
        %v2526 = vadd.f32 %v2222, %v2494
        %v2527 = vadd.f32 %v2223, %v2495
        %v2528 = vadd.f32 %v2224, %v2496
        %v2529 = vadd.f32 %v2225, %v2497
        %v2530 = vadd.f32 %v2226, %v2498
        %v2531 = vadd.f32 %v2227, %v2499
        %v2532 = vadd.f32 %v2228, %v2500
        %v2533 = vadd.f32 %v2229, %v2501
        %v2534 = vadd.f32 %v2230, %v2502
        %v2535 = vadd.f32 %v2231, %v2503
        %v2536 = vadd.f32 %v2232, %v2504
        %v2537 = vadd.f32 %v2233, %v2505
        %v2538 = vadd.f32 %v2234, %v2506
        %v2539 = vadd.f32 %v2235, %v2507
        %v2540 = vadd.f32 %v2236, %v2508
        %v2541 = vadd.f32 %v2237, %v2509
        %vm2542 = vcmp.eq.s32.totalorder %v392, 7
        %vm2543 = vcmp.eq.s32.totalorder %v393, 7
        %vm2544 = vcmp.eq.s32.totalorder %v394, 7
        %vm2545 = vcmp.eq.s32.totalorder %v395, 7
        %v2546 = vsel %vm2542, 1, 0
        %v2547 = vsel %vm2543, 1, 0
        %v2548 = vsel %vm2544, 1, 0
        %v2549 = vsel %vm2545, 1, 0
        %v2550 = vcvt.s32.f32 %v2546
        %v2551 = vcvt.s32.f32 %v2547
        %v2552 = vcvt.s32.f32 %v2548
        %v2553 = vcvt.s32.f32 %v2549
        %v2554 = vlaneseq
        %v2555 = vshrl.u32 %v2554, 7
        %v2556 = vsub.s32 0, %v2555
        %v2557 = vrot.slane %v2550, %v2556
        %2559 = vbcast.lane.b32.xlu0 %v2557, 256
        %v2560 = vpop.permute.xlu0 %2559
        %v2561 = vlaneseq
        %v2562 = vshrl.u32 %v2561, 7
        %v2563 = vsub.s32 1, %v2562
        %v2564 = vrot.slane %v2550, %v2563
        %2566 = vbcast.lane.b32.xlu0 %v2564, 256
        %v2567 = vpop.permute.xlu0 %2566
        %v2568 = vlaneseq
        %v2569 = vshrl.u32 %v2568, 7
        %v2570 = vsub.s32 2, %v2569
        %v2571 = vrot.slane %v2550, %v2570
        %2573 = vbcast.lane.b32.xlu0 %v2571, 256
        %v2574 = vpop.permute.xlu0 %2573
        %v2575 = vlaneseq
        %v2576 = vshrl.u32 %v2575, 7
        %v2577 = vsub.s32 3, %v2576
        %v2578 = vrot.slane %v2550, %v2577
        %2580 = vbcast.lane.b32.xlu0 %v2578, 256
        %v2581 = vpop.permute.xlu0 %2580
        %v2582 = vlaneseq
        %v2583 = vshrl.u32 %v2582, 7
        %v2584 = vsub.s32 4, %v2583
        %v2585 = vrot.slane %v2550, %v2584
        %2587 = vbcast.lane.b32.xlu0 %v2585, 256
        %v2588 = vpop.permute.xlu0 %2587
        %v2589 = vlaneseq
        %v2590 = vshrl.u32 %v2589, 7
        %v2591 = vsub.s32 5, %v2590
        %v2592 = vrot.slane %v2550, %v2591
        %2594 = vbcast.lane.b32.xlu0 %v2592, 256
        %v2595 = vpop.permute.xlu0 %2594
        %v2596 = vlaneseq
        %v2597 = vshrl.u32 %v2596, 7
        %v2598 = vsub.s32 6, %v2597
        %v2599 = vrot.slane %v2550, %v2598
        %2601 = vbcast.lane.b32.xlu0 %v2599, 256
        %v2602 = vpop.permute.xlu0 %2601
        %v2603 = vlaneseq
        %v2604 = vshrl.u32 %v2603, 7
        %v2605 = vsub.s32 7, %v2604
        %v2606 = vrot.slane %v2550, %v2605
        %2608 = vbcast.lane.b32.xlu0 %v2606, 256
        %v2609 = vpop.permute.xlu0 %2608
        %v2610 = vlaneseq
        %v2611 = vshrl.u32 %v2610, 7
        %v2612 = vsub.s32 0, %v2611
        %v2613 = vrot.slane %v2551, %v2612
        %2615 = vbcast.lane.b32.xlu0 %v2613, 256
        %v2616 = vpop.permute.xlu0 %2615
        %v2617 = vlaneseq
        %v2618 = vshrl.u32 %v2617, 7
        %v2619 = vsub.s32 1, %v2618
        %v2620 = vrot.slane %v2551, %v2619
        %2622 = vbcast.lane.b32.xlu0 %v2620, 256
        %v2623 = vpop.permute.xlu0 %2622
        %v2624 = vlaneseq
        %v2625 = vshrl.u32 %v2624, 7
        %v2626 = vsub.s32 2, %v2625
        %v2627 = vrot.slane %v2551, %v2626
        %2629 = vbcast.lane.b32.xlu0 %v2627, 256
        %v2630 = vpop.permute.xlu0 %2629
        %v2631 = vlaneseq
        %v2632 = vshrl.u32 %v2631, 7
        %v2633 = vsub.s32 3, %v2632
        %v2634 = vrot.slane %v2551, %v2633
        %2636 = vbcast.lane.b32.xlu0 %v2634, 256
        %v2637 = vpop.permute.xlu0 %2636
        %v2638 = vlaneseq
        %v2639 = vshrl.u32 %v2638, 7
        %v2640 = vsub.s32 4, %v2639
        %v2641 = vrot.slane %v2551, %v2640
        %2643 = vbcast.lane.b32.xlu0 %v2641, 256
        %v2644 = vpop.permute.xlu0 %2643
        %v2645 = vlaneseq
        %v2646 = vshrl.u32 %v2645, 7
        %v2647 = vsub.s32 5, %v2646
        %v2648 = vrot.slane %v2551, %v2647
        %2650 = vbcast.lane.b32.xlu0 %v2648, 256
        %v2651 = vpop.permute.xlu0 %2650
        %v2652 = vlaneseq
        %v2653 = vshrl.u32 %v2652, 7
        %v2654 = vsub.s32 6, %v2653
        %v2655 = vrot.slane %v2551, %v2654
        %2657 = vbcast.lane.b32.xlu0 %v2655, 256
        %v2658 = vpop.permute.xlu0 %2657
        %v2659 = vlaneseq
        %v2660 = vshrl.u32 %v2659, 7
        %v2661 = vsub.s32 7, %v2660
        %v2662 = vrot.slane %v2551, %v2661
        %2664 = vbcast.lane.b32.xlu0 %v2662, 256
        %v2665 = vpop.permute.xlu0 %2664
        %v2666 = vlaneseq
        %v2667 = vshrl.u32 %v2666, 7
        %v2668 = vsub.s32 0, %v2667
        %v2669 = vrot.slane %v2552, %v2668
        %2671 = vbcast.lane.b32.xlu0 %v2669, 256
        %v2672 = vpop.permute.xlu0 %2671
        %v2673 = vlaneseq
        %v2674 = vshrl.u32 %v2673, 7
        %v2675 = vsub.s32 1, %v2674
        %v2676 = vrot.slane %v2552, %v2675
        %2678 = vbcast.lane.b32.xlu0 %v2676, 256
        %v2679 = vpop.permute.xlu0 %2678
        %v2680 = vlaneseq
        %v2681 = vshrl.u32 %v2680, 7
        %v2682 = vsub.s32 2, %v2681
        %v2683 = vrot.slane %v2552, %v2682
        %2685 = vbcast.lane.b32.xlu0 %v2683, 256
        %v2686 = vpop.permute.xlu0 %2685
        %v2687 = vlaneseq
        %v2688 = vshrl.u32 %v2687, 7
        %v2689 = vsub.s32 3, %v2688
        %v2690 = vrot.slane %v2552, %v2689
        %2692 = vbcast.lane.b32.xlu0 %v2690, 256
        %v2693 = vpop.permute.xlu0 %2692
        %v2694 = vlaneseq
        %v2695 = vshrl.u32 %v2694, 7
        %v2696 = vsub.s32 4, %v2695
        %v2697 = vrot.slane %v2552, %v2696
        %2699 = vbcast.lane.b32.xlu0 %v2697, 256
        %v2700 = vpop.permute.xlu0 %2699
        %v2701 = vlaneseq
        %v2702 = vshrl.u32 %v2701, 7
        %v2703 = vsub.s32 5, %v2702
        %v2704 = vrot.slane %v2552, %v2703
        %2706 = vbcast.lane.b32.xlu0 %v2704, 256
        %v2707 = vpop.permute.xlu0 %2706
        %v2708 = vlaneseq
        %v2709 = vshrl.u32 %v2708, 7
        %v2710 = vsub.s32 6, %v2709
        %v2711 = vrot.slane %v2552, %v2710
        %2713 = vbcast.lane.b32.xlu0 %v2711, 256
        %v2714 = vpop.permute.xlu0 %2713
        %v2715 = vlaneseq
        %v2716 = vshrl.u32 %v2715, 7
        %v2717 = vsub.s32 7, %v2716
        %v2718 = vrot.slane %v2552, %v2717
        %2720 = vbcast.lane.b32.xlu0 %v2718, 256
        %v2721 = vpop.permute.xlu0 %2720
        %v2722 = vlaneseq
        %v2723 = vshrl.u32 %v2722, 7
        %v2724 = vsub.s32 0, %v2723
        %v2725 = vrot.slane %v2553, %v2724
        %2727 = vbcast.lane.b32.xlu0 %v2725, 256
        %v2728 = vpop.permute.xlu0 %2727
        %v2729 = vlaneseq
        %v2730 = vshrl.u32 %v2729, 7
        %v2731 = vsub.s32 1, %v2730
        %v2732 = vrot.slane %v2553, %v2731
        %2734 = vbcast.lane.b32.xlu0 %v2732, 256
        %v2735 = vpop.permute.xlu0 %2734
        %v2736 = vlaneseq
        %v2737 = vshrl.u32 %v2736, 7
        %v2738 = vsub.s32 2, %v2737
        %v2739 = vrot.slane %v2553, %v2738
        %2741 = vbcast.lane.b32.xlu0 %v2739, 256
        %v2742 = vpop.permute.xlu0 %2741
        %v2743 = vlaneseq
        %v2744 = vshrl.u32 %v2743, 7
        %v2745 = vsub.s32 3, %v2744
        %v2746 = vrot.slane %v2553, %v2745
        %2748 = vbcast.lane.b32.xlu0 %v2746, 256
        %v2749 = vpop.permute.xlu0 %2748
        %v2750 = vlaneseq
        %v2751 = vshrl.u32 %v2750, 7
        %v2752 = vsub.s32 4, %v2751
        %v2753 = vrot.slane %v2553, %v2752
        %2755 = vbcast.lane.b32.xlu0 %v2753, 256
        %v2756 = vpop.permute.xlu0 %2755
        %v2757 = vlaneseq
        %v2758 = vshrl.u32 %v2757, 7
        %v2759 = vsub.s32 5, %v2758
        %v2760 = vrot.slane %v2553, %v2759
        %2762 = vbcast.lane.b32.xlu0 %v2760, 256
        %v2763 = vpop.permute.xlu0 %2762
        %v2764 = vlaneseq
        %v2765 = vshrl.u32 %v2764, 7
        %v2766 = vsub.s32 6, %v2765
        %v2767 = vrot.slane %v2553, %v2766
        %2769 = vbcast.lane.b32.xlu0 %v2767, 256
        %v2770 = vpop.permute.xlu0 %2769
        %v2771 = vlaneseq
        %v2772 = vshrl.u32 %v2771, 7
        %v2773 = vsub.s32 7, %v2772
        %v2774 = vrot.slane %v2553, %v2773
        %2776 = vbcast.lane.b32.xlu0 %v2774, 256
        %v2777 = vpop.permute.xlu0 %2776
        %v2778 = vlaneseq
        %v2779 = vshrl.u32 %v2778, 7
        %v2780 = vsub.s32 7, %v2779
        %v2781 = vrot.slane %v412, %v2780
        %v2782 = vmul.f32 %v2560, %v2781
        %v2783 = vmul.f32 %v2567, %v2781
        %v2784 = vmul.f32 %v2574, %v2781
        %v2785 = vmul.f32 %v2581, %v2781
        %v2786 = vmul.f32 %v2588, %v2781
        %v2787 = vmul.f32 %v2595, %v2781
        %v2788 = vmul.f32 %v2602, %v2781
        %v2789 = vmul.f32 %v2609, %v2781
        %v2790 = vmul.f32 %v2616, %v2781
        %v2791 = vmul.f32 %v2623, %v2781
        %v2792 = vmul.f32 %v2630, %v2781
        %v2793 = vmul.f32 %v2637, %v2781
        %v2794 = vmul.f32 %v2644, %v2781
        %v2795 = vmul.f32 %v2651, %v2781
        %v2796 = vmul.f32 %v2658, %v2781
        %v2797 = vmul.f32 %v2665, %v2781
        %v2798 = vmul.f32 %v2672, %v2781
        %v2799 = vmul.f32 %v2679, %v2781
        %v2800 = vmul.f32 %v2686, %v2781
        %v2801 = vmul.f32 %v2693, %v2781
        %v2802 = vmul.f32 %v2700, %v2781
        %v2803 = vmul.f32 %v2707, %v2781
        %v2804 = vmul.f32 %v2714, %v2781
        %v2805 = vmul.f32 %v2721, %v2781
        %v2806 = vmul.f32 %v2728, %v2781
        %v2807 = vmul.f32 %v2735, %v2781
        %v2808 = vmul.f32 %v2742, %v2781
        %v2809 = vmul.f32 %v2749, %v2781
        %v2810 = vmul.f32 %v2756, %v2781
        %v2811 = vmul.f32 %v2763, %v2781
        %v2812 = vmul.f32 %v2770, %v2781
        %v2813 = vmul.f32 %v2777, %v2781
        %v2814 = vadd.f32 %v2510, %v2782
        %v2815 = vadd.f32 %v2511, %v2783
        %v2816 = vadd.f32 %v2512, %v2784
        %v2817 = vadd.f32 %v2513, %v2785
        %v2818 = vadd.f32 %v2514, %v2786
        %v2819 = vadd.f32 %v2515, %v2787
        %v2820 = vadd.f32 %v2516, %v2788
        %v2821 = vadd.f32 %v2517, %v2789
        %v2822 = vadd.f32 %v2518, %v2790
        %v2823 = vadd.f32 %v2519, %v2791
        %v2824 = vadd.f32 %v2520, %v2792
        %v2825 = vadd.f32 %v2521, %v2793
        %v2826 = vadd.f32 %v2522, %v2794
        %v2827 = vadd.f32 %v2523, %v2795
        %v2828 = vadd.f32 %v2524, %v2796
        %v2829 = vadd.f32 %v2525, %v2797
        %v2830 = vadd.f32 %v2526, %v2798
        %v2831 = vadd.f32 %v2527, %v2799
        %v2832 = vadd.f32 %v2528, %v2800
        %v2833 = vadd.f32 %v2529, %v2801
        %v2834 = vadd.f32 %v2530, %v2802
        %v2835 = vadd.f32 %v2531, %v2803
        %v2836 = vadd.f32 %v2532, %v2804
        %v2837 = vadd.f32 %v2533, %v2805
        %v2838 = vadd.f32 %v2534, %v2806
        %v2839 = vadd.f32 %v2535, %v2807
        %v2840 = vadd.f32 %v2536, %v2808
        %v2841 = vadd.f32 %v2537, %v2809
        %v2842 = vadd.f32 %v2538, %v2810
        %v2843 = vadd.f32 %v2539, %v2811
        %v2844 = vadd.f32 %v2540, %v2812
        %v2845 = vadd.f32 %v2541, %v2813
        %vm2846 = vcmp.eq.s32.totalorder %v392, 8
        %vm2847 = vcmp.eq.s32.totalorder %v393, 8
        %vm2848 = vcmp.eq.s32.totalorder %v394, 8
        %vm2849 = vcmp.eq.s32.totalorder %v395, 8
        %v2850 = vsel %vm2846, 1, 0
        %v2851 = vsel %vm2847, 1, 0
        %v2852 = vsel %vm2848, 1, 0
        %v2853 = vsel %vm2849, 1, 0
        %v2854 = vcvt.s32.f32 %v2850
        %v2855 = vcvt.s32.f32 %v2851
        %v2856 = vcvt.s32.f32 %v2852
        %v2857 = vcvt.s32.f32 %v2853
        %v2858 = vlaneseq
        %v2859 = vshrl.u32 %v2858, 7
        %v2860 = vsub.s32 0, %v2859
        %v2861 = vrot.slane %v2854, %v2860
        %2863 = vbcast.lane.b32.xlu0 %v2861, 256
        %v2864 = vpop.permute.xlu0 %2863
        %v2865 = vlaneseq
        %v2866 = vshrl.u32 %v2865, 7
        %v2867 = vsub.s32 1, %v2866
        %v2868 = vrot.slane %v2854, %v2867
        %2870 = vbcast.lane.b32.xlu0 %v2868, 256
        %v2871 = vpop.permute.xlu0 %2870
        %v2872 = vlaneseq
        %v2873 = vshrl.u32 %v2872, 7
        %v2874 = vsub.s32 2, %v2873
        %v2875 = vrot.slane %v2854, %v2874
        %2877 = vbcast.lane.b32.xlu0 %v2875, 256
        %v2878 = vpop.permute.xlu0 %2877
        %v2879 = vlaneseq
        %v2880 = vshrl.u32 %v2879, 7
        %v2881 = vsub.s32 3, %v2880
        %v2882 = vrot.slane %v2854, %v2881
        %2884 = vbcast.lane.b32.xlu0 %v2882, 256
        %v2885 = vpop.permute.xlu0 %2884
        %v2886 = vlaneseq
        %v2887 = vshrl.u32 %v2886, 7
        %v2888 = vsub.s32 4, %v2887
        %v2889 = vrot.slane %v2854, %v2888
        %2891 = vbcast.lane.b32.xlu0 %v2889, 256
        %v2892 = vpop.permute.xlu0 %2891
        %v2893 = vlaneseq
        %v2894 = vshrl.u32 %v2893, 7
        %v2895 = vsub.s32 5, %v2894
        %v2896 = vrot.slane %v2854, %v2895
        %2898 = vbcast.lane.b32.xlu0 %v2896, 256
        %v2899 = vpop.permute.xlu0 %2898
        %v2900 = vlaneseq
        %v2901 = vshrl.u32 %v2900, 7
        %v2902 = vsub.s32 6, %v2901
        %v2903 = vrot.slane %v2854, %v2902
        %2905 = vbcast.lane.b32.xlu0 %v2903, 256
        %v2906 = vpop.permute.xlu0 %2905
        %v2907 = vlaneseq
        %v2908 = vshrl.u32 %v2907, 7
        %v2909 = vsub.s32 7, %v2908
        %v2910 = vrot.slane %v2854, %v2909
        %2912 = vbcast.lane.b32.xlu0 %v2910, 256
        %v2913 = vpop.permute.xlu0 %2912
        %v2914 = vlaneseq
        %v2915 = vshrl.u32 %v2914, 7
        %v2916 = vsub.s32 0, %v2915
        %v2917 = vrot.slane %v2855, %v2916
        %2919 = vbcast.lane.b32.xlu0 %v2917, 256
        %v2920 = vpop.permute.xlu0 %2919
        %v2921 = vlaneseq
        %v2922 = vshrl.u32 %v2921, 7
        %v2923 = vsub.s32 1, %v2922
        %v2924 = vrot.slane %v2855, %v2923
        %2926 = vbcast.lane.b32.xlu0 %v2924, 256
        %v2927 = vpop.permute.xlu0 %2926
        %v2928 = vlaneseq
        %v2929 = vshrl.u32 %v2928, 7
        %v2930 = vsub.s32 2, %v2929
        %v2931 = vrot.slane %v2855, %v2930
        %2933 = vbcast.lane.b32.xlu0 %v2931, 256
        %v2934 = vpop.permute.xlu0 %2933
        %v2935 = vlaneseq
        %v2936 = vshrl.u32 %v2935, 7
        %v2937 = vsub.s32 3, %v2936
        %v2938 = vrot.slane %v2855, %v2937
        %2940 = vbcast.lane.b32.xlu0 %v2938, 256
        %v2941 = vpop.permute.xlu0 %2940
        %v2942 = vlaneseq
        %v2943 = vshrl.u32 %v2942, 7
        %v2944 = vsub.s32 4, %v2943
        %v2945 = vrot.slane %v2855, %v2944
        %2947 = vbcast.lane.b32.xlu0 %v2945, 256
        %v2948 = vpop.permute.xlu0 %2947
        %v2949 = vlaneseq
        %v2950 = vshrl.u32 %v2949, 7
        %v2951 = vsub.s32 5, %v2950
        %v2952 = vrot.slane %v2855, %v2951
        %2954 = vbcast.lane.b32.xlu0 %v2952, 256
        %v2955 = vpop.permute.xlu0 %2954
        %v2956 = vlaneseq
        %v2957 = vshrl.u32 %v2956, 7
        %v2958 = vsub.s32 6, %v2957
        %v2959 = vrot.slane %v2855, %v2958
        %2961 = vbcast.lane.b32.xlu0 %v2959, 256
        %v2962 = vpop.permute.xlu0 %2961
        %v2963 = vlaneseq
        %v2964 = vshrl.u32 %v2963, 7
        %v2965 = vsub.s32 7, %v2964
        %v2966 = vrot.slane %v2855, %v2965
        %2968 = vbcast.lane.b32.xlu0 %v2966, 256
        %v2969 = vpop.permute.xlu0 %2968
        %v2970 = vlaneseq
        %v2971 = vshrl.u32 %v2970, 7
        %v2972 = vsub.s32 0, %v2971
        %v2973 = vrot.slane %v2856, %v2972
        %2975 = vbcast.lane.b32.xlu0 %v2973, 256
        %v2976 = vpop.permute.xlu0 %2975
        %v2977 = vlaneseq
        %v2978 = vshrl.u32 %v2977, 7
        %v2979 = vsub.s32 1, %v2978
        %v2980 = vrot.slane %v2856, %v2979
        %2982 = vbcast.lane.b32.xlu0 %v2980, 256
        %v2983 = vpop.permute.xlu0 %2982
        %v2984 = vlaneseq
        %v2985 = vshrl.u32 %v2984, 7
        %v2986 = vsub.s32 2, %v2985
        %v2987 = vrot.slane %v2856, %v2986
        %2989 = vbcast.lane.b32.xlu0 %v2987, 256
        %v2990 = vpop.permute.xlu0 %2989
        %v2991 = vlaneseq
        %v2992 = vshrl.u32 %v2991, 7
        %v2993 = vsub.s32 3, %v2992
        %v2994 = vrot.slane %v2856, %v2993
        %2996 = vbcast.lane.b32.xlu0 %v2994, 256
        %v2997 = vpop.permute.xlu0 %2996
        %v2998 = vlaneseq
        %v2999 = vshrl.u32 %v2998, 7
        %v3000 = vsub.s32 4, %v2999
        %v3001 = vrot.slane %v2856, %v3000
        %3003 = vbcast.lane.b32.xlu0 %v3001, 256
        %v3004 = vpop.permute.xlu0 %3003
        %v3005 = vlaneseq
        %v3006 = vshrl.u32 %v3005, 7
        %v3007 = vsub.s32 5, %v3006
        %v3008 = vrot.slane %v2856, %v3007
        %3010 = vbcast.lane.b32.xlu0 %v3008, 256
        %v3011 = vpop.permute.xlu0 %3010
        %v3012 = vlaneseq
        %v3013 = vshrl.u32 %v3012, 7
        %v3014 = vsub.s32 6, %v3013
        %v3015 = vrot.slane %v2856, %v3014
        %3017 = vbcast.lane.b32.xlu0 %v3015, 256
        %v3018 = vpop.permute.xlu0 %3017
        %v3019 = vlaneseq
        %v3020 = vshrl.u32 %v3019, 7
        %v3021 = vsub.s32 7, %v3020
        %v3022 = vrot.slane %v2856, %v3021
        %3024 = vbcast.lane.b32.xlu0 %v3022, 256
        %v3025 = vpop.permute.xlu0 %3024
        %v3026 = vlaneseq
        %v3027 = vshrl.u32 %v3026, 7
        %v3028 = vsub.s32 0, %v3027
        %v3029 = vrot.slane %v2857, %v3028
        %3031 = vbcast.lane.b32.xlu0 %v3029, 256
        %v3032 = vpop.permute.xlu0 %3031
        %v3033 = vlaneseq
        %v3034 = vshrl.u32 %v3033, 7
        %v3035 = vsub.s32 1, %v3034
        %v3036 = vrot.slane %v2857, %v3035
        %3038 = vbcast.lane.b32.xlu0 %v3036, 256
        %v3039 = vpop.permute.xlu0 %3038
        %v3040 = vlaneseq
        %v3041 = vshrl.u32 %v3040, 7
        %v3042 = vsub.s32 2, %v3041
        %v3043 = vrot.slane %v2857, %v3042
        %3045 = vbcast.lane.b32.xlu0 %v3043, 256
        %v3046 = vpop.permute.xlu0 %3045
        %v3047 = vlaneseq
        %v3048 = vshrl.u32 %v3047, 7
        %v3049 = vsub.s32 3, %v3048
        %v3050 = vrot.slane %v2857, %v3049
        %3052 = vbcast.lane.b32.xlu0 %v3050, 256
        %v3053 = vpop.permute.xlu0 %3052
        %v3054 = vlaneseq
        %v3055 = vshrl.u32 %v3054, 7
        %v3056 = vsub.s32 4, %v3055
        %v3057 = vrot.slane %v2857, %v3056
        %3059 = vbcast.lane.b32.xlu0 %v3057, 256
        %v3060 = vpop.permute.xlu0 %3059
        %v3061 = vlaneseq
        %v3062 = vshrl.u32 %v3061, 7
        %v3063 = vsub.s32 5, %v3062
        %v3064 = vrot.slane %v2857, %v3063
        %3066 = vbcast.lane.b32.xlu0 %v3064, 256
        %v3067 = vpop.permute.xlu0 %3066
        %v3068 = vlaneseq
        %v3069 = vshrl.u32 %v3068, 7
        %v3070 = vsub.s32 6, %v3069
        %v3071 = vrot.slane %v2857, %v3070
        %3073 = vbcast.lane.b32.xlu0 %v3071, 256
        %v3074 = vpop.permute.xlu0 %3073
        %v3075 = vlaneseq
        %v3076 = vshrl.u32 %v3075, 7
        %v3077 = vsub.s32 7, %v3076
        %v3078 = vrot.slane %v2857, %v3077
        %3080 = vbcast.lane.b32.xlu0 %v3078, 256
        %v3081 = vpop.permute.xlu0 %3080
        %v3082 = vlaneseq
        %v3083 = vshrl.u32 %v3082, 7
        %v3084 = vsub.s32 0, %v3083
        %v3085 = vrot.slane %v413, %v3084
        %v3086 = vmul.f32 %v2864, %v3085
        %v3087 = vmul.f32 %v2871, %v3085
        %v3088 = vmul.f32 %v2878, %v3085
        %v3089 = vmul.f32 %v2885, %v3085
        %v3090 = vmul.f32 %v2892, %v3085
        %v3091 = vmul.f32 %v2899, %v3085
        %v3092 = vmul.f32 %v2906, %v3085
        %v3093 = vmul.f32 %v2913, %v3085
        %v3094 = vmul.f32 %v2920, %v3085
        %v3095 = vmul.f32 %v2927, %v3085
        %v3096 = vmul.f32 %v2934, %v3085
        %v3097 = vmul.f32 %v2941, %v3085
        %v3098 = vmul.f32 %v2948, %v3085
        %v3099 = vmul.f32 %v2955, %v3085
        %v3100 = vmul.f32 %v2962, %v3085
        %v3101 = vmul.f32 %v2969, %v3085
        %v3102 = vmul.f32 %v2976, %v3085
        %v3103 = vmul.f32 %v2983, %v3085
        %v3104 = vmul.f32 %v2990, %v3085
        %v3105 = vmul.f32 %v2997, %v3085
        %v3106 = vmul.f32 %v3004, %v3085
        %v3107 = vmul.f32 %v3011, %v3085
        %v3108 = vmul.f32 %v3018, %v3085
        %v3109 = vmul.f32 %v3025, %v3085
        %v3110 = vmul.f32 %v3032, %v3085
        %v3111 = vmul.f32 %v3039, %v3085
        %v3112 = vmul.f32 %v3046, %v3085
        %v3113 = vmul.f32 %v3053, %v3085
        %v3114 = vmul.f32 %v3060, %v3085
        %v3115 = vmul.f32 %v3067, %v3085
        %v3116 = vmul.f32 %v3074, %v3085
        %v3117 = vmul.f32 %v3081, %v3085
        %v3118 = vadd.f32 %v2814, %v3086
        %v3119 = vadd.f32 %v2815, %v3087
        %v3120 = vadd.f32 %v2816, %v3088
        %v3121 = vadd.f32 %v2817, %v3089
        %v3122 = vadd.f32 %v2818, %v3090
        %v3123 = vadd.f32 %v2819, %v3091
        %v3124 = vadd.f32 %v2820, %v3092
        %v3125 = vadd.f32 %v2821, %v3093
        %v3126 = vadd.f32 %v2822, %v3094
        %v3127 = vadd.f32 %v2823, %v3095
        %v3128 = vadd.f32 %v2824, %v3096
        %v3129 = vadd.f32 %v2825, %v3097
        %v3130 = vadd.f32 %v2826, %v3098
        %v3131 = vadd.f32 %v2827, %v3099
        %v3132 = vadd.f32 %v2828, %v3100
        %v3133 = vadd.f32 %v2829, %v3101
        %v3134 = vadd.f32 %v2830, %v3102
        %v3135 = vadd.f32 %v2831, %v3103
        %v3136 = vadd.f32 %v2832, %v3104
        %v3137 = vadd.f32 %v2833, %v3105
        %v3138 = vadd.f32 %v2834, %v3106
        %v3139 = vadd.f32 %v2835, %v3107
        %v3140 = vadd.f32 %v2836, %v3108
        %v3141 = vadd.f32 %v2837, %v3109
        %v3142 = vadd.f32 %v2838, %v3110
        %v3143 = vadd.f32 %v2839, %v3111
        %v3144 = vadd.f32 %v2840, %v3112
        %v3145 = vadd.f32 %v2841, %v3113
        %v3146 = vadd.f32 %v2842, %v3114
        %v3147 = vadd.f32 %v2843, %v3115
        %v3148 = vadd.f32 %v2844, %v3116
        %v3149 = vadd.f32 %v2845, %v3117
        %vm3150 = vcmp.eq.s32.totalorder %v392, 9
        %vm3151 = vcmp.eq.s32.totalorder %v393, 9
        %vm3152 = vcmp.eq.s32.totalorder %v394, 9
        %vm3153 = vcmp.eq.s32.totalorder %v395, 9
        %v3154 = vsel %vm3150, 1, 0
        %v3155 = vsel %vm3151, 1, 0
        %v3156 = vsel %vm3152, 1, 0
        %v3157 = vsel %vm3153, 1, 0
        %v3158 = vcvt.s32.f32 %v3154
        %v3159 = vcvt.s32.f32 %v3155
        %v3160 = vcvt.s32.f32 %v3156
        %v3161 = vcvt.s32.f32 %v3157
        %v3162 = vlaneseq
        %v3163 = vshrl.u32 %v3162, 7
        %v3164 = vsub.s32 0, %v3163
        %v3165 = vrot.slane %v3158, %v3164
        %3167 = vbcast.lane.b32.xlu0 %v3165, 256
        %v3168 = vpop.permute.xlu0 %3167
        %v3169 = vlaneseq
        %v3170 = vshrl.u32 %v3169, 7
        %v3171 = vsub.s32 1, %v3170
        %v3172 = vrot.slane %v3158, %v3171
        %3174 = vbcast.lane.b32.xlu0 %v3172, 256
        %v3175 = vpop.permute.xlu0 %3174
        %v3176 = vlaneseq
        %v3177 = vshrl.u32 %v3176, 7
        %v3178 = vsub.s32 2, %v3177
        %v3179 = vrot.slane %v3158, %v3178
        %3181 = vbcast.lane.b32.xlu0 %v3179, 256
        %v3182 = vpop.permute.xlu0 %3181
        %v3183 = vlaneseq
        %v3184 = vshrl.u32 %v3183, 7
        %v3185 = vsub.s32 3, %v3184
        %v3186 = vrot.slane %v3158, %v3185
        %3188 = vbcast.lane.b32.xlu0 %v3186, 256
        %v3189 = vpop.permute.xlu0 %3188
        %v3190 = vlaneseq
        %v3191 = vshrl.u32 %v3190, 7
        %v3192 = vsub.s32 4, %v3191
        %v3193 = vrot.slane %v3158, %v3192
        %3195 = vbcast.lane.b32.xlu0 %v3193, 256
        %v3196 = vpop.permute.xlu0 %3195
        %v3197 = vlaneseq
        %v3198 = vshrl.u32 %v3197, 7
        %v3199 = vsub.s32 5, %v3198
        %v3200 = vrot.slane %v3158, %v3199
        %3202 = vbcast.lane.b32.xlu0 %v3200, 256
        %v3203 = vpop.permute.xlu0 %3202
        %v3204 = vlaneseq
        %v3205 = vshrl.u32 %v3204, 7
        %v3206 = vsub.s32 6, %v3205
        %v3207 = vrot.slane %v3158, %v3206
        %3209 = vbcast.lane.b32.xlu0 %v3207, 256
        %v3210 = vpop.permute.xlu0 %3209
        %v3211 = vlaneseq
        %v3212 = vshrl.u32 %v3211, 7
        %v3213 = vsub.s32 7, %v3212
        %v3214 = vrot.slane %v3158, %v3213
        %3216 = vbcast.lane.b32.xlu0 %v3214, 256
        %v3217 = vpop.permute.xlu0 %3216
        %v3218 = vlaneseq
        %v3219 = vshrl.u32 %v3218, 7
        %v3220 = vsub.s32 0, %v3219
        %v3221 = vrot.slane %v3159, %v3220
        %3223 = vbcast.lane.b32.xlu0 %v3221, 256
        %v3224 = vpop.permute.xlu0 %3223
        %v3225 = vlaneseq
        %v3226 = vshrl.u32 %v3225, 7
        %v3227 = vsub.s32 1, %v3226
        %v3228 = vrot.slane %v3159, %v3227
        %3230 = vbcast.lane.b32.xlu0 %v3228, 256
        %v3231 = vpop.permute.xlu0 %3230
        %v3232 = vlaneseq
        %v3233 = vshrl.u32 %v3232, 7
        %v3234 = vsub.s32 2, %v3233
        %v3235 = vrot.slane %v3159, %v3234
        %3237 = vbcast.lane.b32.xlu0 %v3235, 256
        %v3238 = vpop.permute.xlu0 %3237
        %v3239 = vlaneseq
        %v3240 = vshrl.u32 %v3239, 7
        %v3241 = vsub.s32 3, %v3240
        %v3242 = vrot.slane %v3159, %v3241
        %3244 = vbcast.lane.b32.xlu0 %v3242, 256
        %v3245 = vpop.permute.xlu0 %3244
        %v3246 = vlaneseq
        %v3247 = vshrl.u32 %v3246, 7
        %v3248 = vsub.s32 4, %v3247
        %v3249 = vrot.slane %v3159, %v3248
        %3251 = vbcast.lane.b32.xlu0 %v3249, 256
        %v3252 = vpop.permute.xlu0 %3251
        %v3253 = vlaneseq
        %v3254 = vshrl.u32 %v3253, 7
        %v3255 = vsub.s32 5, %v3254
        %v3256 = vrot.slane %v3159, %v3255
        %3258 = vbcast.lane.b32.xlu0 %v3256, 256
        %v3259 = vpop.permute.xlu0 %3258
        %v3260 = vlaneseq
        %v3261 = vshrl.u32 %v3260, 7
        %v3262 = vsub.s32 6, %v3261
        %v3263 = vrot.slane %v3159, %v3262
        %3265 = vbcast.lane.b32.xlu0 %v3263, 256
        %v3266 = vpop.permute.xlu0 %3265
        %v3267 = vlaneseq
        %v3268 = vshrl.u32 %v3267, 7
        %v3269 = vsub.s32 7, %v3268
        %v3270 = vrot.slane %v3159, %v3269
        %3272 = vbcast.lane.b32.xlu0 %v3270, 256
        %v3273 = vpop.permute.xlu0 %3272
        %v3274 = vlaneseq
        %v3275 = vshrl.u32 %v3274, 7
        %v3276 = vsub.s32 0, %v3275
        %v3277 = vrot.slane %v3160, %v3276
        %3279 = vbcast.lane.b32.xlu0 %v3277, 256
        %v3280 = vpop.permute.xlu0 %3279
        %v3281 = vlaneseq
        %v3282 = vshrl.u32 %v3281, 7
        %v3283 = vsub.s32 1, %v3282
        %v3284 = vrot.slane %v3160, %v3283
        %3286 = vbcast.lane.b32.xlu0 %v3284, 256
        %v3287 = vpop.permute.xlu0 %3286
        %v3288 = vlaneseq
        %v3289 = vshrl.u32 %v3288, 7
        %v3290 = vsub.s32 2, %v3289
        %v3291 = vrot.slane %v3160, %v3290
        %3293 = vbcast.lane.b32.xlu0 %v3291, 256
        %v3294 = vpop.permute.xlu0 %3293
        %v3295 = vlaneseq
        %v3296 = vshrl.u32 %v3295, 7
        %v3297 = vsub.s32 3, %v3296
        %v3298 = vrot.slane %v3160, %v3297
        %3300 = vbcast.lane.b32.xlu0 %v3298, 256
        %v3301 = vpop.permute.xlu0 %3300
        %v3302 = vlaneseq
        %v3303 = vshrl.u32 %v3302, 7
        %v3304 = vsub.s32 4, %v3303
        %v3305 = vrot.slane %v3160, %v3304
        %3307 = vbcast.lane.b32.xlu0 %v3305, 256
        %v3308 = vpop.permute.xlu0 %3307
        %v3309 = vlaneseq
        %v3310 = vshrl.u32 %v3309, 7
        %v3311 = vsub.s32 5, %v3310
        %v3312 = vrot.slane %v3160, %v3311
        %3314 = vbcast.lane.b32.xlu0 %v3312, 256
        %v3315 = vpop.permute.xlu0 %3314
        %v3316 = vlaneseq
        %v3317 = vshrl.u32 %v3316, 7
        %v3318 = vsub.s32 6, %v3317
        %v3319 = vrot.slane %v3160, %v3318
        %3321 = vbcast.lane.b32.xlu0 %v3319, 256
        %v3322 = vpop.permute.xlu0 %3321
        %v3323 = vlaneseq
        %v3324 = vshrl.u32 %v3323, 7
        %v3325 = vsub.s32 7, %v3324
        %v3326 = vrot.slane %v3160, %v3325
        %3328 = vbcast.lane.b32.xlu0 %v3326, 256
        %v3329 = vpop.permute.xlu0 %3328
        %v3330 = vlaneseq
        %v3331 = vshrl.u32 %v3330, 7
        %v3332 = vsub.s32 0, %v3331
        %v3333 = vrot.slane %v3161, %v3332
        %3335 = vbcast.lane.b32.xlu0 %v3333, 256
        %v3336 = vpop.permute.xlu0 %3335
        %v3337 = vlaneseq
        %v3338 = vshrl.u32 %v3337, 7
        %v3339 = vsub.s32 1, %v3338
        %v3340 = vrot.slane %v3161, %v3339
        %3342 = vbcast.lane.b32.xlu0 %v3340, 256
        %v3343 = vpop.permute.xlu0 %3342
        %v3344 = vlaneseq
        %v3345 = vshrl.u32 %v3344, 7
        %v3346 = vsub.s32 2, %v3345
        %v3347 = vrot.slane %v3161, %v3346
        %3349 = vbcast.lane.b32.xlu0 %v3347, 256
        %v3350 = vpop.permute.xlu0 %3349
        %v3351 = vlaneseq
        %v3352 = vshrl.u32 %v3351, 7
        %v3353 = vsub.s32 3, %v3352
        %v3354 = vrot.slane %v3161, %v3353
        %3356 = vbcast.lane.b32.xlu0 %v3354, 256
        %v3357 = vpop.permute.xlu0 %3356
        %v3358 = vlaneseq
        %v3359 = vshrl.u32 %v3358, 7
        %v3360 = vsub.s32 4, %v3359
        %v3361 = vrot.slane %v3161, %v3360
        %3363 = vbcast.lane.b32.xlu0 %v3361, 256
        %v3364 = vpop.permute.xlu0 %3363
        %v3365 = vlaneseq
        %v3366 = vshrl.u32 %v3365, 7
        %v3367 = vsub.s32 5, %v3366
        %v3368 = vrot.slane %v3161, %v3367
        %3370 = vbcast.lane.b32.xlu0 %v3368, 256
        %v3371 = vpop.permute.xlu0 %3370
        %v3372 = vlaneseq
        %v3373 = vshrl.u32 %v3372, 7
        %v3374 = vsub.s32 6, %v3373
        %v3375 = vrot.slane %v3161, %v3374
        %3377 = vbcast.lane.b32.xlu0 %v3375, 256
        %v3378 = vpop.permute.xlu0 %3377
        %v3379 = vlaneseq
        %v3380 = vshrl.u32 %v3379, 7
        %v3381 = vsub.s32 7, %v3380
        %v3382 = vrot.slane %v3161, %v3381
        %3384 = vbcast.lane.b32.xlu0 %v3382, 256
        %v3385 = vpop.permute.xlu0 %3384
        %v3386 = vlaneseq
        %v3387 = vshrl.u32 %v3386, 7
        %v3388 = vsub.s32 1, %v3387
        %v3389 = vrot.slane %v413, %v3388
        %v3390 = vmul.f32 %v3168, %v3389
        %v3391 = vmul.f32 %v3175, %v3389
        %v3392 = vmul.f32 %v3182, %v3389
        %v3393 = vmul.f32 %v3189, %v3389
        %v3394 = vmul.f32 %v3196, %v3389
        %v3395 = vmul.f32 %v3203, %v3389
        %v3396 = vmul.f32 %v3210, %v3389
        %v3397 = vmul.f32 %v3217, %v3389
        %v3398 = vmul.f32 %v3224, %v3389
        %v3399 = vmul.f32 %v3231, %v3389
        %v3400 = vmul.f32 %v3238, %v3389
        %v3401 = vmul.f32 %v3245, %v3389
        %v3402 = vmul.f32 %v3252, %v3389
        %v3403 = vmul.f32 %v3259, %v3389
        %v3404 = vmul.f32 %v3266, %v3389
        %v3405 = vmul.f32 %v3273, %v3389
        %v3406 = vmul.f32 %v3280, %v3389
        %v3407 = vmul.f32 %v3287, %v3389
        %v3408 = vmul.f32 %v3294, %v3389
        %v3409 = vmul.f32 %v3301, %v3389
        %v3410 = vmul.f32 %v3308, %v3389
        %v3411 = vmul.f32 %v3315, %v3389
        %v3412 = vmul.f32 %v3322, %v3389
        %v3413 = vmul.f32 %v3329, %v3389
        %v3414 = vmul.f32 %v3336, %v3389
        %v3415 = vmul.f32 %v3343, %v3389
        %v3416 = vmul.f32 %v3350, %v3389
        %v3417 = vmul.f32 %v3357, %v3389
        %v3418 = vmul.f32 %v3364, %v3389
        %v3419 = vmul.f32 %v3371, %v3389
        %v3420 = vmul.f32 %v3378, %v3389
        %v3421 = vmul.f32 %v3385, %v3389
        %v3422 = vadd.f32 %v3118, %v3390
        %v3423 = vadd.f32 %v3119, %v3391
        %v3424 = vadd.f32 %v3120, %v3392
        %v3425 = vadd.f32 %v3121, %v3393
        %v3426 = vadd.f32 %v3122, %v3394
        %v3427 = vadd.f32 %v3123, %v3395
        %v3428 = vadd.f32 %v3124, %v3396
        %v3429 = vadd.f32 %v3125, %v3397
        %v3430 = vadd.f32 %v3126, %v3398
        %v3431 = vadd.f32 %v3127, %v3399
        %v3432 = vadd.f32 %v3128, %v3400
        %v3433 = vadd.f32 %v3129, %v3401
        %v3434 = vadd.f32 %v3130, %v3402
        %v3435 = vadd.f32 %v3131, %v3403
        %v3436 = vadd.f32 %v3132, %v3404
        %v3437 = vadd.f32 %v3133, %v3405
        %v3438 = vadd.f32 %v3134, %v3406
        %v3439 = vadd.f32 %v3135, %v3407
        %v3440 = vadd.f32 %v3136, %v3408
        %v3441 = vadd.f32 %v3137, %v3409
        %v3442 = vadd.f32 %v3138, %v3410
        %v3443 = vadd.f32 %v3139, %v3411
        %v3444 = vadd.f32 %v3140, %v3412
        %v3445 = vadd.f32 %v3141, %v3413
        %v3446 = vadd.f32 %v3142, %v3414
        %v3447 = vadd.f32 %v3143, %v3415
        %v3448 = vadd.f32 %v3144, %v3416
        %v3449 = vadd.f32 %v3145, %v3417
        %v3450 = vadd.f32 %v3146, %v3418
        %v3451 = vadd.f32 %v3147, %v3419
        %v3452 = vadd.f32 %v3148, %v3420
        %v3453 = vadd.f32 %v3149, %v3421
        %v3454 = vld [vmem:[#allocation2] sm:$0xff]
        %v3455 = vld [vmem:[#allocation2 + $0x8] sm:$0xff]
        %v3456 = vld [vmem:[#allocation2 + $0x10] sm:$0xff]
        %v3457 = vld [vmem:[#allocation2 + $0x18] sm:$0xff]
        %v3458 = vld [vmem:[#allocation2 + $0x20] sm:$0xff]
        %v3459 = vld [vmem:[#allocation2 + $0x28] sm:$0xff]
        %v3460 = vld [vmem:[#allocation2 + $0x30] sm:$0xff]
        %v3461 = vld [vmem:[#allocation2 + $0x38] sm:$0xff]
        %v3462 = vld [vmem:[#allocation2 + $0x40] sm:$0xff]
        %v3463 = vld [vmem:[#allocation2 + $0x48] sm:$0xff]
        %v3464 = vld [vmem:[#allocation2 + $0x50] sm:$0xff]
        %v3465 = vld [vmem:[#allocation2 + $0x58] sm:$0xff]
        %v3466 = vld [vmem:[#allocation2 + $0x60] sm:$0xff]
        %v3467 = vld [vmem:[#allocation2 + $0x68] sm:$0xff]
        %v3468 = vld [vmem:[#allocation2 + $0x70] sm:$0xff]
        %v3469 = vld [vmem:[#allocation2 + $0x78] sm:$0xff]
        %v3470 = vld [vmem:[%s3] sm:$0xf]
        %v3471 = vld [vmem:[%s5] sm:$0x1]
        %v3472 = vld [vmem:[%s5 + $0x1] sm:$0x1]
        %v3473 = vld [vmem:[%s6] sm:$0x1]
        %v3474 = vld [vmem:[%s6 + $0x1] sm:$0x1]
        %v3475 = vld [vmem:[#allocation4] sm:$0xff]
        %v3476 = vld [vmem:[#allocation4 + $0x8] sm:$0xff]
        %v3477 = vld [vmem:[#allocation4 + $0x10] sm:$0xff]
        %v3478 = vld [vmem:[#allocation4 + $0x18] sm:$0xff]
        %v3479 = vld [vmem:[#allocation4 + $0x20] sm:$0xff]
        %v3480 = vld [vmem:[#allocation4 + $0x28] sm:$0xff]
        %v3481 = vld [vmem:[#allocation4 + $0x30] sm:$0xff]
        %v3482 = vld [vmem:[#allocation4 + $0x38] sm:$0xff]
        %v3483 = vld [vmem:[%s8] sm:$0x1]
        %v3484 = vld [vmem:[%s8 + $0x1] sm:$0x1]
        %v3486 = vlaneseq
        %v3487 = vshrl.u32 %v3486, 7
        %v3488 = vsub.s32 0, %v3487
        %v3489 = vrot.slane %v3470, %v3488
        %v3490 = vlaneseq
        %v3491 = vshrl.u32 %v3490, 7
        %v3492 = vsub.s32 1, %v3491
        %v3493 = vrot.slane %v3470, %v3492
        %v3494 = vlaneseq
        %v3495 = vshrl.u32 %v3494, 7
        %v3496 = vsub.s32 2, %v3495
        %v3497 = vrot.slane %v3470, %v3496
        %v3498 = vlaneseq
        %v3499 = vshrl.u32 %v3498, 7
        %v3500 = vsub.s32 3, %v3499
        %v3501 = vrot.slane %v3470, %v3500
        %vm3506 = vcmask 261120
        %v3508 = vsel %vm3506, %v388, 0
        %v3511 = vsel %vm3506, %v389, 0
        %v3514 = vsel %vm3506, %v390, 0
        %v3517 = vsel %vm3506, %v391, 0
        %3519 = vmatprep.subr.mxu0 %v3455
        %3520 = vmatpush1.msra.mxu0 %v3454
        %3521 = vmatprep.subr.mxu0 %v3459
        %3522 = vmatpush1.msra.mxu0 %v3458
        %3523 = vmatprep.subr.mxu0 %v3463
        %3524 = vmatpush1.msra.mxu0 %v3462
        %3525 = vmatprep.subr.mxu0 %v3467
        %3526 = vmatpush1.msra.mxu0 %v3466
        %3527 = vmatprep.subr.mxu0 0.0
        %3528 = vmatpush1.msra.mxu0 0.0
        %3529 = vmatprep.subr.mxu0 0.0
        %3530 = vmatpush1.msra.mxu0 0.0
        %3531 = vmatprep.subr.mxu0 0.0
        %3532 = vmatpush1.msra.mxu0 0.0
        %3533 = vmatprep.subr.mxu0 0.0
        %3534 = vmatpush1.msra.mxu0 0.0
        %3535 = vmatprep.subr.mxu0 0.0
        %3536 = vmatpush1.msra.mxu0 0.0
        %3537 = vmatprep.subr.mxu0 0.0
        %3538 = vmatpush1.msra.mxu0 0.0
        %3539 = vmatprep.subr.mxu0 0.0
        %3540 = vmatpush1.msra.mxu0 0.0
        %3541 = vmatprep.subr.mxu0 0.0
        %3542 = vmatpush1.msra.mxu0 0.0
        %3543 = vmatprep.subr.mxu0 0.0
        %3544 = vmatpush1.msra.mxu0 0.0
        %3545 = vmatprep.subr.mxu0 0.0
        %3546 = vmatpush1.msra.mxu0 0.0
        %3547 = vmatprep.subr.mxu0 0.0
        %3548 = vmatpush1.msra.mxu0 0.0
        %3549 = vmatprep.subr.mxu0 0.0
        %3550 = vmatpush1.msra.mxu0 0.0
        %3551 = vmatprep.subr.mxu0 0.0
        %3552 = vmatpush1.msra.mxu0 0.0
        %3553 = vmatprep.subr.mxu0 0.0
        %3554 = vmatpush1.msra.mxu0 0.0
        %3555 = vmatprep.subr.mxu0 0.0
        %3556 = vmatpush1.msra.mxu0 0.0
        %3557 = vmatprep.subr.mxu0 0.0
        %3558 = vmatpush1.msra.mxu0 0.0
        %3559 = vmatprep.subr.mxu0 0.0
        %3560 = vmatpush1.msra.mxu0 0.0
        %3561 = vmatprep.subr.mxu0 0.0
        %3562 = vmatpush1.msra.mxu0 0.0
        %3563 = vmatprep.subr.mxu0 0.0
        %3564 = vmatpush1.msra.mxu0 0.0
        %3565 = vmatprep.subr.mxu0 0.0
        %3566 = vmatpush1.msra.mxu0 0.0
        %3567 = vmatprep.subr.mxu0 0.0
        %3568 = vmatpush1.msra.mxu0 0.0
        %3569 = vmatprep.subr.mxu0 0.0
        %3570 = vmatpush1.msra.mxu0 0.0
        %3571 = vmatprep.subr.mxu0 0.0
        %3572 = vmatpush1.msra.mxu0 0.0
        %3573 = vmatprep.subr.mxu0 0.0
        %3574 = vmatpush1.msra.mxu0 0.0
        %3575 = vmatprep.subr.mxu0 0.0
        %3576 = vmatpush1.msra.mxu0 0.0
        %3577 = vmatprep.subr.mxu0 0.0
        %3578 = vmatpush1.msra.mxu0 0.0
        %3579 = vmatprep.subr.mxu0 0.0
        %3580 = vmatpush1.msra.mxu0 0.0
        %3581 = vmatprep.subr.mxu0 0.0
        %3582 = vmatpush1.msra.mxu0 0.0
        %3583 = vmatprep.mubr.f32.mxu0 0.0
        %3584 = vmatmul.mubr.f32.gmra.mrb[0].mxu0 %v3508
        %v3585 = vpop.f32.mrb[0].mxu0
        %v3586 = vadd.f32 %v3489, %v3585
        %v3587 = vpop.f32.mrb[0].mxu0
        %v3588 = vadd.f32 %v3493, %v3587
        %3589 = vmatprep.mubr.f32.mxu0 0.0
        %3590 = vmatmul.mubr.f32.gmra.mrb[0].mxu0 %v3511
        %v3591 = vpop.f32.mrb[0].mxu0
        %v3592 = vadd.f32 %v3489, %v3591
        %v3593 = vpop.f32.mrb[0].mxu0
        %v3594 = vadd.f32 %v3493, %v3593
        %3595 = vmatprep.mubr.f32.mxu0 0.0
        %3596 = vmatmul.mubr.f32.gmra.mrb[0].mxu0 %v3514
        %v3597 = vpop.f32.mrb[0].mxu0
        %v3598 = vadd.f32 %v3489, %v3597
        %v3599 = vpop.f32.mrb[0].mxu0
        %v3600 = vadd.f32 %v3493, %v3599
        %3601 = vmatprep.mubr.f32.mxu0 0.0
        %3602 = vmatmul.mubr.f32.gmra.mrb[0].mxu0 %v3517
        %v3603 = vpop.f32.mrb[0].mxu0
        %v3604 = vadd.f32 %v3489, %v3603
        %v3605 = vpop.f32.mrb[0].mxu0
        %v3606 = vadd.f32 %v3493, %v3605
        %3607 = vdwg.mxu0
        %3608 = vmatprep.subr.mxu0 %v3457
        %3609 = vmatpush1.msra.mxu0 %v3456
        %3610 = vmatprep.subr.mxu0 %v3461
        %3611 = vmatpush1.msra.mxu0 %v3460
        %3612 = vmatprep.subr.mxu0 %v3465
        %3613 = vmatpush1.msra.mxu0 %v3464
        %3614 = vmatprep.subr.mxu0 %v3469
        %3615 = vmatpush1.msra.mxu0 %v3468
        %3616 = vmatprep.subr.mxu0 0.0
        %3617 = vmatpush1.msra.mxu0 0.0
        %3618 = vmatprep.subr.mxu0 0.0
        %3619 = vmatpush1.msra.mxu0 0.0
        %3620 = vmatprep.subr.mxu0 0.0
        %3621 = vmatpush1.msra.mxu0 0.0
        %3622 = vmatprep.subr.mxu0 0.0
        %3623 = vmatpush1.msra.mxu0 0.0
        %3624 = vmatprep.subr.mxu0 0.0
        %3625 = vmatpush1.msra.mxu0 0.0
        %3626 = vmatprep.subr.mxu0 0.0
        %3627 = vmatpush1.msra.mxu0 0.0
        %3628 = vmatprep.subr.mxu0 0.0
        %3629 = vmatpush1.msra.mxu0 0.0
        %3630 = vmatprep.subr.mxu0 0.0
        %3631 = vmatpush1.msra.mxu0 0.0
        %3632 = vmatprep.subr.mxu0 0.0
        %3633 = vmatpush1.msra.mxu0 0.0
        %3634 = vmatprep.subr.mxu0 0.0
        %3635 = vmatpush1.msra.mxu0 0.0
        %3636 = vmatprep.subr.mxu0 0.0
        %3637 = vmatpush1.msra.mxu0 0.0
        %3638 = vmatprep.subr.mxu0 0.0
        %3639 = vmatpush1.msra.mxu0 0.0
        %3640 = vmatprep.subr.mxu0 0.0
        %3641 = vmatpush1.msra.mxu0 0.0
        %3642 = vmatprep.subr.mxu0 0.0
        %3643 = vmatpush1.msra.mxu0 0.0
        %3644 = vmatprep.subr.mxu0 0.0
        %3645 = vmatpush1.msra.mxu0 0.0
        %3646 = vmatprep.subr.mxu0 0.0
        %3647 = vmatpush1.msra.mxu0 0.0
        %3648 = vmatprep.subr.mxu0 0.0
        %3649 = vmatpush1.msra.mxu0 0.0
        %3650 = vmatprep.subr.mxu0 0.0
        %3651 = vmatpush1.msra.mxu0 0.0
        %3652 = vmatprep.subr.mxu0 0.0
        %3653 = vmatpush1.msra.mxu0 0.0
        %3654 = vmatprep.subr.mxu0 0.0
        %3655 = vmatpush1.msra.mxu0 0.0
        %3656 = vmatprep.subr.mxu0 0.0
        %3657 = vmatpush1.msra.mxu0 0.0
        %3658 = vmatprep.subr.mxu0 0.0
        %3659 = vmatpush1.msra.mxu0 0.0
        %3660 = vmatprep.subr.mxu0 0.0
        %3661 = vmatpush1.msra.mxu0 0.0
        %3662 = vmatprep.subr.mxu0 0.0
        %3663 = vmatpush1.msra.mxu0 0.0
        %3664 = vmatprep.subr.mxu0 0.0
        %3665 = vmatpush1.msra.mxu0 0.0
        %3666 = vmatprep.subr.mxu0 0.0
        %3667 = vmatpush1.msra.mxu0 0.0
        %3668 = vmatprep.subr.mxu0 0.0
        %3669 = vmatpush1.msra.mxu0 0.0
        %3670 = vmatprep.subr.mxu0 0.0
        %3671 = vmatpush1.msra.mxu0 0.0
        %3672 = vmatprep.mubr.f32.mxu0 0.0
        %3673 = vmatmul.mubr.f32.gmra.mrb[0].mxu0 %v3508
        %v3674 = vpop.f32.mrb[0].mxu0
        %v3675 = vadd.f32 %v3497, %v3674
        %v3676 = vpop.f32.mrb[0].mxu0
        %v3677 = vadd.f32 %v3501, %v3676
        %3678 = vmatprep.mubr.f32.mxu0 0.0
        %3679 = vmatmul.mubr.f32.gmra.mrb[0].mxu0 %v3511
        %v3680 = vpop.f32.mrb[0].mxu0
        %v3681 = vadd.f32 %v3497, %v3680
        %v3682 = vpop.f32.mrb[0].mxu0
        %v3683 = vadd.f32 %v3501, %v3682
        %3684 = vmatprep.mubr.f32.mxu0 0.0
        %3685 = vmatmul.mubr.f32.gmra.mrb[0].mxu0 %v3514
        %v3686 = vpop.f32.mrb[0].mxu0
        %v3687 = vadd.f32 %v3497, %v3686
        %v3688 = vpop.f32.mrb[0].mxu0
        %v3689 = vadd.f32 %v3501, %v3688
        %3690 = vmatprep.mubr.f32.mxu0 0.0
        %3691 = vmatmul.mubr.f32.gmra.mrb[0].mxu0 %v3517
        %v3692 = vpop.f32.mrb[0].mxu0
        %v3693 = vadd.f32 %v3497, %v3692
        %v3694 = vpop.f32.mrb[0].mxu0
        %v3695 = vadd.f32 %v3501, %v3694
        %3696 = vdwg.mxu0
        %v3698 = vsel %vm3506, %v3586, 0
        %v3701 = vsel %vm3506, %v3588, 0
        %3703 = vmatprep.subr.mxu0 0.0
        %3704 = vmatpush1.xpose.msra.mxu0 %v3701
        %3705 = vmatprep.subr.mxu0 0.0
        %3706 = vmatpush1.xpose.msra.mxu0 0.0
        %3707 = vmatprep.subr.mxu0 0.0
        %3708 = vmatpush1.xpose.msra.mxu0 0.0
        %3709 = vmatprep.subr.mxu0 0.0
        %3710 = vmatpush1.xpose.msra.mxu0 0.0
        %3711 = vmatprep.subr.mxu0 0.0
        %3712 = vmatpush1.xpose.msra.mxu0 0.0
        %3713 = vmatprep.subr.mxu0 0.0
        %3714 = vmatpush1.xpose.msra.mxu0 0.0
        %3715 = vmatprep.subr.mxu0 0.0
        %3716 = vmatpush1.xpose.msra.mxu0 0.0
        %3717 = vmatprep.subr.mxu0 0.0
        %3718 = vmatpush1.xpose.msra.mxu0 0.0
        %3719 = vmatprep.subr.mxu0 0.0
        %3720 = vmatpush1.xpose.msra.mxu0 0.0
        %3721 = vmatprep.subr.mxu0 0.0
        %3722 = vmatpush1.xpose.msra.mxu0 0.0
        %3723 = vmatprep.subr.mxu0 0.0
        %3724 = vmatpush1.xpose.msra.mxu0 0.0
        %3725 = vmatprep.subr.mxu0 0.0
        %3726 = vmatpush1.xpose.msra.mxu0 0.0
        %3727 = vmatprep.subr.mxu0 0.0
        %3728 = vmatpush1.xpose.msra.mxu0 0.0
        %3729 = vmatprep.subr.mxu0 0.0
        %3730 = vmatpush1.xpose.msra.mxu0 0.0
        %3731 = vmatprep.subr.mxu0 0.0
        %3732 = vmatpush1.xpose.msra.mxu0 0.0
        %3733 = vmatprep.subr.mxu0 0.0
        %3734 = vmatpush1.xpose.msra.mxu0 0.0
        %3735 = vmatprep.subr.mxu0 0.0
        %3736 = vmatpush1.xpose.msra.mxu0 0.0
        %3737 = vmatprep.subr.mxu0 0.0
        %3738 = vmatpush1.xpose.msra.mxu0 0.0
        %3739 = vmatprep.subr.mxu0 0.0
        %3740 = vmatpush1.xpose.msra.mxu0 0.0
        %3741 = vmatprep.subr.mxu0 0.0
        %3742 = vmatpush1.xpose.msra.mxu0 0.0
        %3743 = vmatprep.subr.mxu0 0.0
        %3744 = vmatpush1.xpose.msra.mxu0 0.0
        %3745 = vmatprep.subr.mxu0 0.0
        %3746 = vmatpush1.xpose.msra.mxu0 0.0
        %3747 = vmatprep.subr.mxu0 0.0
        %3748 = vmatpush1.xpose.msra.mxu0 0.0
        %3749 = vmatprep.subr.mxu0 0.0
        %3750 = vmatpush1.xpose.msra.mxu0 0.0
        %3751 = vmatprep.subr.mxu0 0.0
        %3752 = vmatpush1.xpose.msra.mxu0 0.0
        %3753 = vmatprep.subr.mxu0 0.0
        %3754 = vmatpush1.xpose.msra.mxu0 0.0
        %3755 = vmatprep.subr.mxu0 0.0
        %3756 = vmatpush1.xpose.msra.mxu0 0.0
        %3757 = vmatprep.subr.mxu0 0.0
        %3758 = vmatpush1.xpose.msra.mxu0 0.0
        %3759 = vmatprep.subr.mxu0 0.0
        %3760 = vmatpush1.xpose.msra.mxu0 0.0
        %3761 = vmatprep.subr.mxu0 0.0
        %3762 = vmatpush1.xpose.msra.mxu0 0.0
        %3763 = vmatprep.subr.mxu0 0.0
        %3764 = vmatpush1.xpose.msra.mxu0 0.0
        %3765 = vmatprep.subr.mxu0 0.0
        %3766 = vmatpush1.xpose.msra.mxu0 0.0
        %3767 = vmatprep.mubr.f32.mxu0 0.0
        %3768 = vmatmul.mubr.f32.gmra.mrb[0].mxu0 %v3698
        %v3769 = vpop.f32.mrb[0].mxu0
        %v3770 = vadd.f32 0.0, %v3769
        %v3771 = vpop.f32.mrb[0].mxu0
        %3772 = vdwg.mxu0
        %v3774 = vsel %vm3506, %v3592, 0
        %v3777 = vsel %vm3506, %v3594, 0
        %3779 = vmatprep.subr.mxu0 0.0
        %3780 = vmatpush1.xpose.msra.mxu0 %v3777
        %3781 = vmatprep.subr.mxu0 0.0
        %3782 = vmatpush1.xpose.msra.mxu0 0.0
        %3783 = vmatprep.subr.mxu0 0.0
        %3784 = vmatpush1.xpose.msra.mxu0 0.0
        %3785 = vmatprep.subr.mxu0 0.0
        %3786 = vmatpush1.xpose.msra.mxu0 0.0
        %3787 = vmatprep.subr.mxu0 0.0
        %3788 = vmatpush1.xpose.msra.mxu0 0.0
        %3789 = vmatprep.subr.mxu0 0.0
        %3790 = vmatpush1.xpose.msra.mxu0 0.0
        %3791 = vmatprep.subr.mxu0 0.0
        %3792 = vmatpush1.xpose.msra.mxu0 0.0
        %3793 = vmatprep.subr.mxu0 0.0
        %3794 = vmatpush1.xpose.msra.mxu0 0.0
        %3795 = vmatprep.subr.mxu0 0.0
        %3796 = vmatpush1.xpose.msra.mxu0 0.0
        %3797 = vmatprep.subr.mxu0 0.0
        %3798 = vmatpush1.xpose.msra.mxu0 0.0
        %3799 = vmatprep.subr.mxu0 0.0
        %3800 = vmatpush1.xpose.msra.mxu0 0.0
        %3801 = vmatprep.subr.mxu0 0.0
        %3802 = vmatpush1.xpose.msra.mxu0 0.0
        %3803 = vmatprep.subr.mxu0 0.0
        %3804 = vmatpush1.xpose.msra.mxu0 0.0
        %3805 = vmatprep.subr.mxu0 0.0
        %3806 = vmatpush1.xpose.msra.mxu0 0.0
        %3807 = vmatprep.subr.mxu0 0.0
        %3808 = vmatpush1.xpose.msra.mxu0 0.0
        %3809 = vmatprep.subr.mxu0 0.0
        %3810 = vmatpush1.xpose.msra.mxu0 0.0
        %3811 = vmatprep.subr.mxu0 0.0
        %3812 = vmatpush1.xpose.msra.mxu0 0.0
        %3813 = vmatprep.subr.mxu0 0.0
        %3814 = vmatpush1.xpose.msra.mxu0 0.0
        %3815 = vmatprep.subr.mxu0 0.0
        %3816 = vmatpush1.xpose.msra.mxu0 0.0
        %3817 = vmatprep.subr.mxu0 0.0
        %3818 = vmatpush1.xpose.msra.mxu0 0.0
        %3819 = vmatprep.subr.mxu0 0.0
        %3820 = vmatpush1.xpose.msra.mxu0 0.0
        %3821 = vmatprep.subr.mxu0 0.0
        %3822 = vmatpush1.xpose.msra.mxu0 0.0
        %3823 = vmatprep.subr.mxu0 0.0
        %3824 = vmatpush1.xpose.msra.mxu0 0.0
        %3825 = vmatprep.subr.mxu0 0.0
        %3826 = vmatpush1.xpose.msra.mxu0 0.0
        %3827 = vmatprep.subr.mxu0 0.0
        %3828 = vmatpush1.xpose.msra.mxu0 0.0
        %3829 = vmatprep.subr.mxu0 0.0
        %3830 = vmatpush1.xpose.msra.mxu0 0.0
        %3831 = vmatprep.subr.mxu0 0.0
        %3832 = vmatpush1.xpose.msra.mxu0 0.0
        %3833 = vmatprep.subr.mxu0 0.0
        %3834 = vmatpush1.xpose.msra.mxu0 0.0
        %3835 = vmatprep.subr.mxu0 0.0
        %3836 = vmatpush1.xpose.msra.mxu0 0.0
        %3837 = vmatprep.subr.mxu0 0.0
        %3838 = vmatpush1.xpose.msra.mxu0 0.0
        %3839 = vmatprep.subr.mxu0 0.0
        %3840 = vmatpush1.xpose.msra.mxu0 0.0
        %3841 = vmatprep.subr.mxu0 0.0
        %3842 = vmatpush1.xpose.msra.mxu0 0.0
        %3843 = vmatprep.mubr.f32.mxu0 0.0
        %3844 = vmatmul.mubr.f32.gmra.mrb[0].mxu0 %v3774
        %v3845 = vpop.f32.mrb[0].mxu0
        %v3846 = vadd.f32 0.0, %v3845
        %v3847 = vpop.f32.mrb[0].mxu0
        %3848 = vdwg.mxu0
        %v3850 = vsel %vm3506, %v3598, 0
        %v3853 = vsel %vm3506, %v3600, 0
        %3855 = vmatprep.subr.mxu0 0.0
        %3856 = vmatpush1.xpose.msra.mxu0 %v3853
        %3857 = vmatprep.subr.mxu0 0.0
        %3858 = vmatpush1.xpose.msra.mxu0 0.0
        %3859 = vmatprep.subr.mxu0 0.0
        %3860 = vmatpush1.xpose.msra.mxu0 0.0
        %3861 = vmatprep.subr.mxu0 0.0
        %3862 = vmatpush1.xpose.msra.mxu0 0.0
        %3863 = vmatprep.subr.mxu0 0.0
        %3864 = vmatpush1.xpose.msra.mxu0 0.0
        %3865 = vmatprep.subr.mxu0 0.0
        %3866 = vmatpush1.xpose.msra.mxu0 0.0
        %3867 = vmatprep.subr.mxu0 0.0
        %3868 = vmatpush1.xpose.msra.mxu0 0.0
        %3869 = vmatprep.subr.mxu0 0.0
        %3870 = vmatpush1.xpose.msra.mxu0 0.0
        %3871 = vmatprep.subr.mxu0 0.0
        %3872 = vmatpush1.xpose.msra.mxu0 0.0
        %3873 = vmatprep.subr.mxu0 0.0
        %3874 = vmatpush1.xpose.msra.mxu0 0.0
        %3875 = vmatprep.subr.mxu0 0.0
        %3876 = vmatpush1.xpose.msra.mxu0 0.0
        %3877 = vmatprep.subr.mxu0 0.0
        %3878 = vmatpush1.xpose.msra.mxu0 0.0
        %3879 = vmatprep.subr.mxu0 0.0
        %3880 = vmatpush1.xpose.msra.mxu0 0.0
        %3881 = vmatprep.subr.mxu0 0.0
        %3882 = vmatpush1.xpose.msra.mxu0 0.0
        %3883 = vmatprep.subr.mxu0 0.0
        %3884 = vmatpush1.xpose.msra.mxu0 0.0
        %3885 = vmatprep.subr.mxu0 0.0
        %3886 = vmatpush1.xpose.msra.mxu0 0.0
        %3887 = vmatprep.subr.mxu0 0.0
        %3888 = vmatpush1.xpose.msra.mxu0 0.0
        %3889 = vmatprep.subr.mxu0 0.0
        %3890 = vmatpush1.xpose.msra.mxu0 0.0
        %3891 = vmatprep.subr.mxu0 0.0
        %3892 = vmatpush1.xpose.msra.mxu0 0.0
        %3893 = vmatprep.subr.mxu0 0.0
        %3894 = vmatpush1.xpose.msra.mxu0 0.0
        %3895 = vmatprep.subr.mxu0 0.0
        %3896 = vmatpush1.xpose.msra.mxu0 0.0
        %3897 = vmatprep.subr.mxu0 0.0
        %3898 = vmatpush1.xpose.msra.mxu0 0.0
        %3899 = vmatprep.subr.mxu0 0.0
        %3900 = vmatpush1.xpose.msra.mxu0 0.0
        %3901 = vmatprep.subr.mxu0 0.0
        %3902 = vmatpush1.xpose.msra.mxu0 0.0
        %3903 = vmatprep.subr.mxu0 0.0
        %3904 = vmatpush1.xpose.msra.mxu0 0.0
        %3905 = vmatprep.subr.mxu0 0.0
        %3906 = vmatpush1.xpose.msra.mxu0 0.0
        %3907 = vmatprep.subr.mxu0 0.0
        %3908 = vmatpush1.xpose.msra.mxu0 0.0
        %3909 = vmatprep.subr.mxu0 0.0
        %3910 = vmatpush1.xpose.msra.mxu0 0.0
        %3911 = vmatprep.subr.mxu0 0.0
        %3912 = vmatpush1.xpose.msra.mxu0 0.0
        %3913 = vmatprep.subr.mxu0 0.0
        %3914 = vmatpush1.xpose.msra.mxu0 0.0
        %3915 = vmatprep.subr.mxu0 0.0
        %3916 = vmatpush1.xpose.msra.mxu0 0.0
        %3917 = vmatprep.subr.mxu0 0.0
        %3918 = vmatpush1.xpose.msra.mxu0 0.0
        %3919 = vmatprep.mubr.f32.mxu0 0.0
        %3920 = vmatmul.mubr.f32.gmra.mrb[0].mxu0 %v3850
        %v3921 = vpop.f32.mrb[0].mxu0
        %v3922 = vadd.f32 0.0, %v3921
        %v3923 = vpop.f32.mrb[0].mxu0
        %3924 = vdwg.mxu0
        %v3926 = vsel %vm3506, %v3604, 0
        %v3929 = vsel %vm3506, %v3606, 0
        %3931 = vmatprep.subr.mxu0 0.0
        %3932 = vmatpush1.xpose.msra.mxu0 %v3929
        %3933 = vmatprep.subr.mxu0 0.0
        %3934 = vmatpush1.xpose.msra.mxu0 0.0
        %3935 = vmatprep.subr.mxu0 0.0
        %3936 = vmatpush1.xpose.msra.mxu0 0.0
        %3937 = vmatprep.subr.mxu0 0.0
        %3938 = vmatpush1.xpose.msra.mxu0 0.0
        %3939 = vmatprep.subr.mxu0 0.0
        %3940 = vmatpush1.xpose.msra.mxu0 0.0
        %3941 = vmatprep.subr.mxu0 0.0
        %3942 = vmatpush1.xpose.msra.mxu0 0.0
        %3943 = vmatprep.subr.mxu0 0.0
        %3944 = vmatpush1.xpose.msra.mxu0 0.0
        %3945 = vmatprep.subr.mxu0 0.0
        %3946 = vmatpush1.xpose.msra.mxu0 0.0
        %3947 = vmatprep.subr.mxu0 0.0
        %3948 = vmatpush1.xpose.msra.mxu0 0.0
        %3949 = vmatprep.subr.mxu0 0.0
        %3950 = vmatpush1.xpose.msra.mxu0 0.0
        %3951 = vmatprep.subr.mxu0 0.0
        %3952 = vmatpush1.xpose.msra.mxu0 0.0
        %3953 = vmatprep.subr.mxu0 0.0
        %3954 = vmatpush1.xpose.msra.mxu0 0.0
        %3955 = vmatprep.subr.mxu0 0.0
        %3956 = vmatpush1.xpose.msra.mxu0 0.0
        %3957 = vmatprep.subr.mxu0 0.0
        %3958 = vmatpush1.xpose.msra.mxu0 0.0
        %3959 = vmatprep.subr.mxu0 0.0
        %3960 = vmatpush1.xpose.msra.mxu0 0.0
        %3961 = vmatprep.subr.mxu0 0.0
        %3962 = vmatpush1.xpose.msra.mxu0 0.0
        %3963 = vmatprep.subr.mxu0 0.0
        %3964 = vmatpush1.xpose.msra.mxu0 0.0
        %3965 = vmatprep.subr.mxu0 0.0
        %3966 = vmatpush1.xpose.msra.mxu0 0.0
        %3967 = vmatprep.subr.mxu0 0.0
        %3968 = vmatpush1.xpose.msra.mxu0 0.0
        %3969 = vmatprep.subr.mxu0 0.0
        %3970 = vmatpush1.xpose.msra.mxu0 0.0
        %3971 = vmatprep.subr.mxu0 0.0
        %3972 = vmatpush1.xpose.msra.mxu0 0.0
        %3973 = vmatprep.subr.mxu0 0.0
        %3974 = vmatpush1.xpose.msra.mxu0 0.0
        %3975 = vmatprep.subr.mxu0 0.0
        %3976 = vmatpush1.xpose.msra.mxu0 0.0
        %3977 = vmatprep.subr.mxu0 0.0
        %3978 = vmatpush1.xpose.msra.mxu0 0.0
        %3979 = vmatprep.subr.mxu0 0.0
        %3980 = vmatpush1.xpose.msra.mxu0 0.0
        %3981 = vmatprep.subr.mxu0 0.0
        %3982 = vmatpush1.xpose.msra.mxu0 0.0
        %3983 = vmatprep.subr.mxu0 0.0
        %3984 = vmatpush1.xpose.msra.mxu0 0.0
        %3985 = vmatprep.subr.mxu0 0.0
        %3986 = vmatpush1.xpose.msra.mxu0 0.0
        %3987 = vmatprep.subr.mxu0 0.0
        %3988 = vmatpush1.xpose.msra.mxu0 0.0
        %3989 = vmatprep.subr.mxu0 0.0
        %3990 = vmatpush1.xpose.msra.mxu0 0.0
        %3991 = vmatprep.subr.mxu0 0.0
        %3992 = vmatpush1.xpose.msra.mxu0 0.0
        %3993 = vmatprep.subr.mxu0 0.0
        %3994 = vmatpush1.xpose.msra.mxu0 0.0
        %3995 = vmatprep.mubr.f32.mxu0 0.0
        %3996 = vmatmul.mubr.f32.gmra.mrb[0].mxu0 %v3926
        %v3997 = vpop.f32.mrb[0].mxu0
        %v3998 = vadd.f32 0.0, %v3997
        %v3999 = vpop.f32.mrb[0].mxu0
        %4000 = vdwg.mxu0
        %v4001 = vcombine.high %v3586, %v3586
        %v4003 = vunpack.c.l.s4 1966171168
        %v4004 = vunpack.c.0.s8 %v4003
        %v4005 = vlaneseq
        %v4006 = vshrl.u32 %v4005, 7
        %v4007 = vsub.s32 %v4004, %v4006
        %v4008 = vrot.slane %v3586, %v4007
        %v4010 = vunpack.c.l.s4 1966171168
        %v4011 = vunpack.c.0.s8 %v4010
        %v4012 = vlaneseq
        %v4013 = vshrl.u32 %v4012, 7
        %v4014 = vsub.s32 %v4011, %v4013
        %v4015 = vrot.slane %v4001, %v4014
        %v4016 = vcombine.high %v4008, %v4008
        %v4017 = vcombine.high %v4015, %v4015
        %v4019 = vunpack.c.l.s4 1966171168
        %v4020 = vunpack.c.0.s8 %v4019
        %v4021 = vlaneseq
        %v4022 = vshrl.u32 %v4021, 7
        %v4023 = vsub.s32 %v4020, %v4022
        %v4024 = vrot.slane %v4008, %v4023
        %v4026 = vunpack.c.l.s4 1966171168
        %v4027 = vunpack.c.0.s8 %v4026
        %v4028 = vlaneseq
        %v4029 = vshrl.u32 %v4028, 7
        %v4030 = vsub.s32 %v4027, %v4029
        %v4031 = vrot.slane %v4015, %v4030
        %v4033 = vunpack.c.l.s4 1966171168
        %v4034 = vunpack.c.0.s8 %v4033
        %v4035 = vlaneseq
        %v4036 = vshrl.u32 %v4035, 7
        %v4037 = vsub.s32 %v4034, %v4036
        %v4038 = vrot.slane %v4016, %v4037
        %v4040 = vunpack.c.l.s4 1966171168
        %v4041 = vunpack.c.0.s8 %v4040
        %v4042 = vlaneseq
        %v4043 = vshrl.u32 %v4042, 7
        %v4044 = vsub.s32 %v4041, %v4043
        %v4045 = vrot.slane %v4017, %v4044
        %v4046 = vcombine.high %v4024, %v4024
        %v4047 = vcombine.high %v4031, %v4031
        %v4048 = vcombine.high %v4038, %v4038
        %v4049 = vcombine.high %v4045, %v4045
        %v4050 = vcombine.high %v3592, %v3592
        %v4052 = vunpack.c.l.s4 1966171168
        %v4053 = vunpack.c.0.s8 %v4052
        %v4054 = vlaneseq
        %v4055 = vshrl.u32 %v4054, 7
        %v4056 = vsub.s32 %v4053, %v4055
        %v4057 = vrot.slane %v3592, %v4056
        %v4059 = vunpack.c.l.s4 1966171168
        %v4060 = vunpack.c.0.s8 %v4059
        %v4061 = vlaneseq
        %v4062 = vshrl.u32 %v4061, 7
        %v4063 = vsub.s32 %v4060, %v4062
        %v4064 = vrot.slane %v4050, %v4063
        %v4065 = vcombine.high %v4057, %v4057
        %v4066 = vcombine.high %v4064, %v4064
        %v4068 = vunpack.c.l.s4 1966171168
        %v4069 = vunpack.c.0.s8 %v4068
        %v4070 = vlaneseq
        %v4071 = vshrl.u32 %v4070, 7
        %v4072 = vsub.s32 %v4069, %v4071
        %v4073 = vrot.slane %v4057, %v4072
        %v4075 = vunpack.c.l.s4 1966171168
        %v4076 = vunpack.c.0.s8 %v4075
        %v4077 = vlaneseq
        %v4078 = vshrl.u32 %v4077, 7
        %v4079 = vsub.s32 %v4076, %v4078
        %v4080 = vrot.slane %v4064, %v4079
        %v4082 = vunpack.c.l.s4 1966171168
        %v4083 = vunpack.c.0.s8 %v4082
        %v4084 = vlaneseq
        %v4085 = vshrl.u32 %v4084, 7
        %v4086 = vsub.s32 %v4083, %v4085
        %v4087 = vrot.slane %v4065, %v4086
        %v4089 = vunpack.c.l.s4 1966171168
        %v4090 = vunpack.c.0.s8 %v4089
        %v4091 = vlaneseq
        %v4092 = vshrl.u32 %v4091, 7
        %v4093 = vsub.s32 %v4090, %v4092
        %v4094 = vrot.slane %v4066, %v4093
        %v4095 = vcombine.high %v4073, %v4073
        %v4096 = vcombine.high %v4080, %v4080
        %v4097 = vcombine.high %v4087, %v4087
        %v4098 = vcombine.high %v4094, %v4094
        %v4099 = vcombine.high %v3598, %v3598
        %v4101 = vunpack.c.l.s4 1966171168
        %v4102 = vunpack.c.0.s8 %v4101
        %v4103 = vlaneseq
        %v4104 = vshrl.u32 %v4103, 7
        %v4105 = vsub.s32 %v4102, %v4104
        %v4106 = vrot.slane %v3598, %v4105
        %v4108 = vunpack.c.l.s4 1966171168
        %v4109 = vunpack.c.0.s8 %v4108
        %v4110 = vlaneseq
        %v4111 = vshrl.u32 %v4110, 7
        %v4112 = vsub.s32 %v4109, %v4111
        %v4113 = vrot.slane %v4099, %v4112
        %v4114 = vcombine.high %v4106, %v4106
        %v4115 = vcombine.high %v4113, %v4113
        %v4117 = vunpack.c.l.s4 1966171168
        %v4118 = vunpack.c.0.s8 %v4117
        %v4119 = vlaneseq
        %v4120 = vshrl.u32 %v4119, 7
        %v4121 = vsub.s32 %v4118, %v4120
        %v4122 = vrot.slane %v4106, %v4121
        %v4124 = vunpack.c.l.s4 1966171168
        %v4125 = vunpack.c.0.s8 %v4124
        %v4126 = vlaneseq
        %v4127 = vshrl.u32 %v4126, 7
        %v4128 = vsub.s32 %v4125, %v4127
        %v4129 = vrot.slane %v4113, %v4128
        %v4131 = vunpack.c.l.s4 1966171168
        %v4132 = vunpack.c.0.s8 %v4131
        %v4133 = vlaneseq
        %v4134 = vshrl.u32 %v4133, 7
        %v4135 = vsub.s32 %v4132, %v4134
        %v4136 = vrot.slane %v4114, %v4135
        %v4138 = vunpack.c.l.s4 1966171168
        %v4139 = vunpack.c.0.s8 %v4138
        %v4140 = vlaneseq
        %v4141 = vshrl.u32 %v4140, 7
        %v4142 = vsub.s32 %v4139, %v4141
        %v4143 = vrot.slane %v4115, %v4142
        %v4144 = vcombine.high %v4122, %v4122
        %v4145 = vcombine.high %v4129, %v4129
        %v4146 = vcombine.high %v4136, %v4136
        %v4147 = vcombine.high %v4143, %v4143
        %v4148 = vcombine.high %v3604, %v3604
        %v4150 = vunpack.c.l.s4 1966171168
        %v4151 = vunpack.c.0.s8 %v4150
        %v4152 = vlaneseq
        %v4153 = vshrl.u32 %v4152, 7
        %v4154 = vsub.s32 %v4151, %v4153
        %v4155 = vrot.slane %v3604, %v4154
        %v4157 = vunpack.c.l.s4 1966171168
        %v4158 = vunpack.c.0.s8 %v4157
        %v4159 = vlaneseq
        %v4160 = vshrl.u32 %v4159, 7
        %v4161 = vsub.s32 %v4158, %v4160
        %v4162 = vrot.slane %v4148, %v4161
        %v4163 = vcombine.high %v4155, %v4155
        %v4164 = vcombine.high %v4162, %v4162
        %v4166 = vunpack.c.l.s4 1966171168
        %v4167 = vunpack.c.0.s8 %v4166
        %v4168 = vlaneseq
        %v4169 = vshrl.u32 %v4168, 7
        %v4170 = vsub.s32 %v4167, %v4169
        %v4171 = vrot.slane %v4155, %v4170
        %v4173 = vunpack.c.l.s4 1966171168
        %v4174 = vunpack.c.0.s8 %v4173
        %v4175 = vlaneseq
        %v4176 = vshrl.u32 %v4175, 7
        %v4177 = vsub.s32 %v4174, %v4176
        %v4178 = vrot.slane %v4162, %v4177
        %v4180 = vunpack.c.l.s4 1966171168
        %v4181 = vunpack.c.0.s8 %v4180
        %v4182 = vlaneseq
        %v4183 = vshrl.u32 %v4182, 7
        %v4184 = vsub.s32 %v4181, %v4183
        %v4185 = vrot.slane %v4163, %v4184
        %v4187 = vunpack.c.l.s4 1966171168
        %v4188 = vunpack.c.0.s8 %v4187
        %v4189 = vlaneseq
        %v4190 = vshrl.u32 %v4189, 7
        %v4191 = vsub.s32 %v4188, %v4190
        %v4192 = vrot.slane %v4164, %v4191
        %v4193 = vcombine.high %v4171, %v4171
        %v4194 = vcombine.high %v4178, %v4178
        %v4195 = vcombine.high %v4185, %v4185
        %v4196 = vcombine.high %v4192, %v4192
        %v4197 = vlaneseq
        %v4198 = vshrl.u32 %v4197, 7
        %v4199 = vsub.s32 0, %v4198
        %v4200 = vrot.slane %v4024, %v4199
        %v4201 = vlaneseq
        %v4202 = vshrl.u32 %v4201, 7
        %v4203 = vsub.s32 0, %v4202
        %v4204 = vrot.slane %v4038, %v4203
        %v4205 = vlaneseq
        %v4206 = vshrl.u32 %v4205, 7
        %v4207 = vsub.s32 0, %v4206
        %v4208 = vrot.slane %v4046, %v4207
        %v4209 = vlaneseq
        %v4210 = vshrl.u32 %v4209, 7
        %v4211 = vsub.s32 0, %v4210
        %v4212 = vrot.slane %v4048, %v4211
        %v4213 = vlaneseq
        %v4214 = vshrl.u32 %v4213, 7
        %v4215 = vsub.s32 0, %v4214
        %v4216 = vrot.slane %v4031, %v4215
        %v4217 = vlaneseq
        %v4218 = vshrl.u32 %v4217, 7
        %v4219 = vsub.s32 0, %v4218
        %v4220 = vrot.slane %v4045, %v4219
        %v4221 = vlaneseq
        %v4222 = vshrl.u32 %v4221, 7
        %v4223 = vsub.s32 0, %v4222
        %v4224 = vrot.slane %v4047, %v4223
        %v4225 = vlaneseq
        %v4226 = vshrl.u32 %v4225, 7
        %v4227 = vsub.s32 0, %v4226
        %v4228 = vrot.slane %v4049, %v4227
        %v4229 = vlaneseq
        %v4230 = vshrl.u32 %v4229, 7
        %v4231 = vsub.s32 0, %v4230
        %v4232 = vrot.slane %v4073, %v4231
        %v4233 = vlaneseq
        %v4234 = vshrl.u32 %v4233, 7
        %v4235 = vsub.s32 0, %v4234
        %v4236 = vrot.slane %v4087, %v4235
        %v4237 = vlaneseq
        %v4238 = vshrl.u32 %v4237, 7
        %v4239 = vsub.s32 0, %v4238
        %v4240 = vrot.slane %v4095, %v4239
        %v4241 = vlaneseq
        %v4242 = vshrl.u32 %v4241, 7
        %v4243 = vsub.s32 0, %v4242
        %v4244 = vrot.slane %v4097, %v4243
        %v4245 = vlaneseq
        %v4246 = vshrl.u32 %v4245, 7
        %v4247 = vsub.s32 0, %v4246
        %v4248 = vrot.slane %v4080, %v4247
        %v4249 = vlaneseq
        %v4250 = vshrl.u32 %v4249, 7
        %v4251 = vsub.s32 0, %v4250
        %v4252 = vrot.slane %v4094, %v4251
        %v4253 = vlaneseq
        %v4254 = vshrl.u32 %v4253, 7
        %v4255 = vsub.s32 0, %v4254
        %v4256 = vrot.slane %v4096, %v4255
        %v4257 = vlaneseq
        %v4258 = vshrl.u32 %v4257, 7
        %v4259 = vsub.s32 0, %v4258
        %v4260 = vrot.slane %v4098, %v4259
        %v4261 = vlaneseq
        %v4262 = vshrl.u32 %v4261, 7
        %v4263 = vsub.s32 0, %v4262
        %v4264 = vrot.slane %v4122, %v4263
        %v4265 = vlaneseq
        %v4266 = vshrl.u32 %v4265, 7
        %v4267 = vsub.s32 0, %v4266
        %v4268 = vrot.slane %v4136, %v4267
        %v4269 = vlaneseq
        %v4270 = vshrl.u32 %v4269, 7
        %v4271 = vsub.s32 0, %v4270
        %v4272 = vrot.slane %v4144, %v4271
        %v4273 = vlaneseq
        %v4274 = vshrl.u32 %v4273, 7
        %v4275 = vsub.s32 0, %v4274
        %v4276 = vrot.slane %v4146, %v4275
        %v4277 = vlaneseq
        %v4278 = vshrl.u32 %v4277, 7
        %v4279 = vsub.s32 0, %v4278
        %v4280 = vrot.slane %v4129, %v4279
        %v4281 = vlaneseq
        %v4282 = vshrl.u32 %v4281, 7
        %v4283 = vsub.s32 0, %v4282
        %v4284 = vrot.slane %v4143, %v4283
        %v4285 = vlaneseq
        %v4286 = vshrl.u32 %v4285, 7
        %v4287 = vsub.s32 0, %v4286
        %v4288 = vrot.slane %v4145, %v4287
        %v4289 = vlaneseq
        %v4290 = vshrl.u32 %v4289, 7
        %v4291 = vsub.s32 0, %v4290
        %v4292 = vrot.slane %v4147, %v4291
        %v4293 = vlaneseq
        %v4294 = vshrl.u32 %v4293, 7
        %v4295 = vsub.s32 0, %v4294
        %v4296 = vrot.slane %v4171, %v4295
        %v4297 = vlaneseq
        %v4298 = vshrl.u32 %v4297, 7
        %v4299 = vsub.s32 0, %v4298
        %v4300 = vrot.slane %v4185, %v4299
        %v4301 = vlaneseq
        %v4302 = vshrl.u32 %v4301, 7
        %v4303 = vsub.s32 0, %v4302
        %v4304 = vrot.slane %v4193, %v4303
        %v4305 = vlaneseq
        %v4306 = vshrl.u32 %v4305, 7
        %v4307 = vsub.s32 0, %v4306
        %v4308 = vrot.slane %v4195, %v4307
        %v4309 = vlaneseq
        %v4310 = vshrl.u32 %v4309, 7
        %v4311 = vsub.s32 0, %v4310
        %v4312 = vrot.slane %v4178, %v4311
        %v4313 = vlaneseq
        %v4314 = vshrl.u32 %v4313, 7
        %v4315 = vsub.s32 0, %v4314
        %v4316 = vrot.slane %v4192, %v4315
        %v4317 = vlaneseq
        %v4318 = vshrl.u32 %v4317, 7
        %v4319 = vsub.s32 0, %v4318
        %v4320 = vrot.slane %v4194, %v4319
        %v4321 = vlaneseq
        %v4322 = vshrl.u32 %v4321, 7
        %v4323 = vsub.s32 0, %v4322
        %v4324 = vrot.slane %v4196, %v4323
        %v4357 = vmul.f32 %v4200, %v3422
        %v4358 = vmul.f32 %v4204, %v3423
        %v4359 = vmul.f32 %v4208, %v3424
        %v4360 = vmul.f32 %v4212, %v3425
        %v4361 = vmul.f32 %v4216, %v3426
        %v4362 = vmul.f32 %v4220, %v3427
        %v4363 = vmul.f32 %v4224, %v3428
        %v4364 = vmul.f32 %v4228, %v3429
        %v4365 = vmul.f32 %v4232, %v3430
        %v4366 = vmul.f32 %v4236, %v3431
        %v4367 = vmul.f32 %v4240, %v3432
        %v4368 = vmul.f32 %v4244, %v3433
        %v4369 = vmul.f32 %v4248, %v3434
        %v4370 = vmul.f32 %v4252, %v3435
        %v4371 = vmul.f32 %v4256, %v3436
        %v4372 = vmul.f32 %v4260, %v3437
        %v4373 = vmul.f32 %v4264, %v3438
        %v4374 = vmul.f32 %v4268, %v3439
        %v4375 = vmul.f32 %v4272, %v3440
        %v4376 = vmul.f32 %v4276, %v3441
        %v4377 = vmul.f32 %v4280, %v3442
        %v4378 = vmul.f32 %v4284, %v3443
        %v4379 = vmul.f32 %v4288, %v3444
        %v4380 = vmul.f32 %v4292, %v3445
        %v4381 = vmul.f32 %v4296, %v3446
        %v4382 = vmul.f32 %v4300, %v3447
        %v4383 = vmul.f32 %v4304, %v3448
        %v4384 = vmul.f32 %v4308, %v3449
        %v4385 = vmul.f32 %v4312, %v3450
        %v4386 = vmul.f32 %v4316, %v3451
        %v4387 = vmul.f32 %v4320, %v3452
        %v4388 = vmul.f32 %v4324, %v3453
        %v4389 = vsel %vm3506, %v4357, 0.0
        %4390 = vadd.xlane.f32.xlu0 %v4389
        %v4391 = vpop.xlane.xlu0 %4390
        %v4392 = vsel %vm3506, %v4358, 0.0
        %4393 = vadd.xlane.f32.xlu0 %v4392
        %v4394 = vpop.xlane.xlu0 %4393
        %v4395 = vsel %vm3506, %v4359, 0.0
        %4396 = vadd.xlane.f32.xlu0 %v4395
        %v4397 = vpop.xlane.xlu0 %4396
        %v4398 = vsel %vm3506, %v4360, 0.0
        %4399 = vadd.xlane.f32.xlu0 %v4398
        %v4400 = vpop.xlane.xlu0 %4399
        %v4401 = vsel %vm3506, %v4361, 0.0
        %4402 = vadd.xlane.f32.xlu0 %v4401
        %v4403 = vpop.xlane.xlu0 %4402
        %v4404 = vsel %vm3506, %v4362, 0.0
        %4405 = vadd.xlane.f32.xlu0 %v4404
        %v4406 = vpop.xlane.xlu0 %4405
        %v4407 = vsel %vm3506, %v4363, 0.0
        %4408 = vadd.xlane.f32.xlu0 %v4407
        %v4409 = vpop.xlane.xlu0 %4408
        %v4410 = vsel %vm3506, %v4364, 0.0
        %4411 = vadd.xlane.f32.xlu0 %v4410
        %v4412 = vpop.xlane.xlu0 %4411
        %v4413 = vsel %vm3506, %v4365, 0.0
        %4414 = vadd.xlane.f32.xlu0 %v4413
        %v4415 = vpop.xlane.xlu0 %4414
        %v4416 = vsel %vm3506, %v4366, 0.0
        %4417 = vadd.xlane.f32.xlu0 %v4416
        %v4418 = vpop.xlane.xlu0 %4417
        %v4419 = vsel %vm3506, %v4367, 0.0
        %4420 = vadd.xlane.f32.xlu0 %v4419
        %v4421 = vpop.xlane.xlu0 %4420
        %v4422 = vsel %vm3506, %v4368, 0.0
        %4423 = vadd.xlane.f32.xlu0 %v4422
        %v4424 = vpop.xlane.xlu0 %4423
        %v4425 = vsel %vm3506, %v4369, 0.0
        %4426 = vadd.xlane.f32.xlu0 %v4425
        %v4427 = vpop.xlane.xlu0 %4426
        %v4428 = vsel %vm3506, %v4370, 0.0
        %4429 = vadd.xlane.f32.xlu0 %v4428
        %v4430 = vpop.xlane.xlu0 %4429
        %v4431 = vsel %vm3506, %v4371, 0.0
        %4432 = vadd.xlane.f32.xlu0 %v4431
        %v4433 = vpop.xlane.xlu0 %4432
        %v4434 = vsel %vm3506, %v4372, 0.0
        %4435 = vadd.xlane.f32.xlu0 %v4434
        %v4436 = vpop.xlane.xlu0 %4435
        %v4437 = vsel %vm3506, %v4373, 0.0
        %4438 = vadd.xlane.f32.xlu0 %v4437
        %v4439 = vpop.xlane.xlu0 %4438
        %v4440 = vsel %vm3506, %v4374, 0.0
        %4441 = vadd.xlane.f32.xlu0 %v4440
        %v4442 = vpop.xlane.xlu0 %4441
        %v4443 = vsel %vm3506, %v4375, 0.0
        %4444 = vadd.xlane.f32.xlu0 %v4443
        %v4445 = vpop.xlane.xlu0 %4444
        %v4446 = vsel %vm3506, %v4376, 0.0
        %4447 = vadd.xlane.f32.xlu0 %v4446
        %v4448 = vpop.xlane.xlu0 %4447
        %v4449 = vsel %vm3506, %v4377, 0.0
        %4450 = vadd.xlane.f32.xlu0 %v4449
        %v4451 = vpop.xlane.xlu0 %4450
        %v4452 = vsel %vm3506, %v4378, 0.0
        %4453 = vadd.xlane.f32.xlu0 %v4452
        %v4454 = vpop.xlane.xlu0 %4453
        %v4455 = vsel %vm3506, %v4379, 0.0
        %4456 = vadd.xlane.f32.xlu0 %v4455
        %v4457 = vpop.xlane.xlu0 %4456
        %v4458 = vsel %vm3506, %v4380, 0.0
        %4459 = vadd.xlane.f32.xlu0 %v4458
        %v4460 = vpop.xlane.xlu0 %4459
        %v4461 = vsel %vm3506, %v4381, 0.0
        %4462 = vadd.xlane.f32.xlu0 %v4461
        %v4463 = vpop.xlane.xlu0 %4462
        %v4464 = vsel %vm3506, %v4382, 0.0
        %4465 = vadd.xlane.f32.xlu0 %v4464
        %v4466 = vpop.xlane.xlu0 %4465
        %v4467 = vsel %vm3506, %v4383, 0.0
        %4468 = vadd.xlane.f32.xlu0 %v4467
        %v4469 = vpop.xlane.xlu0 %4468
        %v4470 = vsel %vm3506, %v4384, 0.0
        %4471 = vadd.xlane.f32.xlu0 %v4470
        %v4472 = vpop.xlane.xlu0 %4471
        %v4473 = vsel %vm3506, %v4385, 0.0
        %4474 = vadd.xlane.f32.xlu0 %v4473
        %v4475 = vpop.xlane.xlu0 %4474
        %v4476 = vsel %vm3506, %v4386, 0.0
        %4477 = vadd.xlane.f32.xlu0 %v4476
        %v4478 = vpop.xlane.xlu0 %4477
        %v4479 = vsel %vm3506, %v4387, 0.0
        %4480 = vadd.xlane.f32.xlu0 %v4479
        %v4481 = vpop.xlane.xlu0 %4480
        %v4482 = vsel %vm3506, %v4388, 0.0
        %4483 = vadd.xlane.f32.xlu0 %v4482
        %v4484 = vpop.xlane.xlu0 %4483
        %v4517 = vlaneseq
        %v4518 = vand.u32 %v4517, 127
        %v4519 = vlaneseq
        %v4520 = vshrl.u32 %v4519, 7
        %v4521 = vsub.s32 %v4518, %v4520
        %v4522 = vrot.slane %v4391, %v4521
        %v4523 = vlaneseq
        %v4524 = vshrl.u32 %v4523, 7
        %v4525 = vsub.s32 %v4518, %v4524
        %v4526 = vrot.slane %v4394, %v4525
        %v4527 = vlaneseq
        %v4528 = vshrl.u32 %v4527, 7
        %v4529 = vsub.s32 %v4518, %v4528
        %v4530 = vrot.slane %v4397, %v4529
        %v4531 = vlaneseq
        %v4532 = vshrl.u32 %v4531, 7
        %v4533 = vsub.s32 %v4518, %v4532
        %v4534 = vrot.slane %v4400, %v4533
        %v4535 = vlaneseq
        %v4536 = vshrl.u32 %v4535, 7
        %v4537 = vsub.s32 %v4518, %v4536
        %v4538 = vrot.slane %v4403, %v4537
        %v4539 = vlaneseq
        %v4540 = vshrl.u32 %v4539, 7
        %v4541 = vsub.s32 %v4518, %v4540
        %v4542 = vrot.slane %v4406, %v4541
        %v4543 = vlaneseq
        %v4544 = vshrl.u32 %v4543, 7
        %v4545 = vsub.s32 %v4518, %v4544
        %v4546 = vrot.slane %v4409, %v4545
        %v4547 = vlaneseq
        %v4548 = vshrl.u32 %v4547, 7
        %v4549 = vsub.s32 %v4518, %v4548
        %v4550 = vrot.slane %v4412, %v4549
        %v4551 = vlaneseq
        %v4552 = vshrl.u32 %v4551, 7
        %v4553 = vsub.s32 %v4518, %v4552
        %v4554 = vrot.slane %v4415, %v4553
        %v4555 = vlaneseq
        %v4556 = vshrl.u32 %v4555, 7
        %v4557 = vsub.s32 %v4518, %v4556
        %v4558 = vrot.slane %v4418, %v4557
        %v4559 = vlaneseq
        %v4560 = vshrl.u32 %v4559, 7
        %v4561 = vsub.s32 %v4518, %v4560
        %v4562 = vrot.slane %v4421, %v4561
        %v4563 = vlaneseq
        %v4564 = vshrl.u32 %v4563, 7
        %v4565 = vsub.s32 %v4518, %v4564
        %v4566 = vrot.slane %v4424, %v4565
        %v4567 = vlaneseq
        %v4568 = vshrl.u32 %v4567, 7
        %v4569 = vsub.s32 %v4518, %v4568
        %v4570 = vrot.slane %v4427, %v4569
        %v4571 = vlaneseq
        %v4572 = vshrl.u32 %v4571, 7
        %v4573 = vsub.s32 %v4518, %v4572
        %v4574 = vrot.slane %v4430, %v4573
        %v4575 = vlaneseq
        %v4576 = vshrl.u32 %v4575, 7
        %v4577 = vsub.s32 %v4518, %v4576
        %v4578 = vrot.slane %v4433, %v4577
        %v4579 = vlaneseq
        %v4580 = vshrl.u32 %v4579, 7
        %v4581 = vsub.s32 %v4518, %v4580
        %v4582 = vrot.slane %v4436, %v4581
        %v4583 = vlaneseq
        %v4584 = vshrl.u32 %v4583, 7
        %v4585 = vsub.s32 %v4518, %v4584
        %v4586 = vrot.slane %v4439, %v4585
        %v4587 = vlaneseq
        %v4588 = vshrl.u32 %v4587, 7
        %v4589 = vsub.s32 %v4518, %v4588
        %v4590 = vrot.slane %v4442, %v4589
        %v4591 = vlaneseq
        %v4592 = vshrl.u32 %v4591, 7
        %v4593 = vsub.s32 %v4518, %v4592
        %v4594 = vrot.slane %v4445, %v4593
        %v4595 = vlaneseq
        %v4596 = vshrl.u32 %v4595, 7
        %v4597 = vsub.s32 %v4518, %v4596
        %v4598 = vrot.slane %v4448, %v4597
        %v4599 = vlaneseq
        %v4600 = vshrl.u32 %v4599, 7
        %v4601 = vsub.s32 %v4518, %v4600
        %v4602 = vrot.slane %v4451, %v4601
        %v4603 = vlaneseq
        %v4604 = vshrl.u32 %v4603, 7
        %v4605 = vsub.s32 %v4518, %v4604
        %v4606 = vrot.slane %v4454, %v4605
        %v4607 = vlaneseq
        %v4608 = vshrl.u32 %v4607, 7
        %v4609 = vsub.s32 %v4518, %v4608
        %v4610 = vrot.slane %v4457, %v4609
        %v4611 = vlaneseq
        %v4612 = vshrl.u32 %v4611, 7
        %v4613 = vsub.s32 %v4518, %v4612
        %v4614 = vrot.slane %v4460, %v4613
        %v4615 = vlaneseq
        %v4616 = vshrl.u32 %v4615, 7
        %v4617 = vsub.s32 %v4518, %v4616
        %v4618 = vrot.slane %v4463, %v4617
        %v4619 = vlaneseq
        %v4620 = vshrl.u32 %v4619, 7
        %v4621 = vsub.s32 %v4518, %v4620
        %v4622 = vrot.slane %v4466, %v4621
        %v4623 = vlaneseq
        %v4624 = vshrl.u32 %v4623, 7
        %v4625 = vsub.s32 %v4518, %v4624
        %v4626 = vrot.slane %v4469, %v4625
        %v4627 = vlaneseq
        %v4628 = vshrl.u32 %v4627, 7
        %v4629 = vsub.s32 %v4518, %v4628
        %v4630 = vrot.slane %v4472, %v4629
        %v4631 = vlaneseq
        %v4632 = vshrl.u32 %v4631, 7
        %v4633 = vsub.s32 %v4518, %v4632
        %v4634 = vrot.slane %v4475, %v4633
        %v4635 = vlaneseq
        %v4636 = vshrl.u32 %v4635, 7
        %v4637 = vsub.s32 %v4518, %v4636
        %v4638 = vrot.slane %v4478, %v4637
        %v4639 = vlaneseq
        %v4640 = vshrl.u32 %v4639, 7
        %v4641 = vsub.s32 %v4518, %v4640
        %v4642 = vrot.slane %v4481, %v4641
        %v4643 = vlaneseq
        %v4644 = vshrl.u32 %v4643, 7
        %v4645 = vsub.s32 %v4518, %v4644
        %v4646 = vrot.slane %v4484, %v4645
        %vm4647 = vcmask 1041409
        %v4648 = vsel %vm4647, %v4526, %v4522
        %vm4649 = vcmask 1042434
        %v4650 = vsel %vm4649, %v4530, %v4648
        %vm4651 = vcmask 1043459
        %v4652 = vsel %vm4651, %v4534, %v4650
        %vm4653 = vcmask 1044484
        %v4654 = vsel %vm4653, %v4538, %v4652
        %vm4655 = vcmask 1045509
        %v4656 = vsel %vm4655, %v4542, %v4654
        %vm4657 = vcmask 1046534
        %v4658 = vsel %vm4657, %v4546, %v4656
        %vm4659 = vcmask 1047559
        %v4660 = vsel %vm4659, %v4550, %v4658
        %v4661 = vsel %vm4647, %v4558, %v4554
        %v4662 = vsel %vm4649, %v4562, %v4661
        %v4663 = vsel %vm4651, %v4566, %v4662
        %v4664 = vsel %vm4653, %v4570, %v4663
        %v4665 = vsel %vm4655, %v4574, %v4664
        %v4666 = vsel %vm4657, %v4578, %v4665
        %v4667 = vsel %vm4659, %v4582, %v4666
        %v4668 = vsel %vm4647, %v4590, %v4586
        %v4669 = vsel %vm4649, %v4594, %v4668
        %v4670 = vsel %vm4651, %v4598, %v4669
        %v4671 = vsel %vm4653, %v4602, %v4670
        %v4672 = vsel %vm4655, %v4606, %v4671
        %v4673 = vsel %vm4657, %v4610, %v4672
        %v4674 = vsel %vm4659, %v4614, %v4673
        %v4675 = vsel %vm4647, %v4622, %v4618
        %v4676 = vsel %vm4649, %v4626, %v4675
        %v4677 = vsel %vm4651, %v4630, %v4676
        %v4678 = vsel %vm4653, %v4634, %v4677
        %v4679 = vsel %vm4655, %v4638, %v4678
        %v4680 = vsel %vm4657, %v4642, %v4679
        %v4681 = vsel %vm4659, %v4646, %v4680
        %v4686 = vadd.f32 %v3770, %v4660
        %v4687 = vadd.f32 %v3846, %v4667
        %v4688 = vadd.f32 %v3922, %v4674
        %v4689 = vadd.f32 %v3998, %v4681
        %v4690 = vmul.f32 %v4686, 0.17677669
        %v4691 = vmul.f32 %v4687, 0.17677669
        %v4692 = vmul.f32 %v4688, 0.17677669
        %v4693 = vmul.f32 %v4689, 0.17677669
        %v4694 = vadd.f32 %v4690, %v400
        %v4695 = vadd.f32 %v4691, %v401
        %v4696 = vadd.f32 %v4692, %v402
        %v4697 = vadd.f32 %v4693, %v403
        %vm4698 = vcmask 64512
        %v4699 = vsel %vm4698, %v4694, -inf
        %4700 = vmax.xlane.f32.xlu0 %v4699
        %v4701 = vpop.xlane.xlu0 %4700
        %v4702 = vsel %vm4698, %v4695, -inf
        %4703 = vmax.xlane.f32.xlu0 %v4702
        %v4704 = vpop.xlane.xlu0 %4703
        %v4705 = vsel %vm4698, %v4696, -inf
        %4706 = vmax.xlane.f32.xlu0 %v4705
        %v4707 = vpop.xlane.xlu0 %4706
        %v4708 = vsel %vm4698, %v4697, -inf
        %4709 = vmax.xlane.f32.xlu0 %v4708
        %v4710 = vpop.xlane.xlu0 %4709
        %v4711 = vsub.f32 %v4694, %v4701
        %v4712 = vsub.f32 %v4695, %v4704
        %v4713 = vsub.f32 %v4696, %v4707
        %v4714 = vsub.f32 %v4697, %v4710
        %v4715 = vmul.f32 %v4711, 1.442695
        %v4716 = vpow.pop %v4715
        %v4717 = vmul.f32 %v4712, 1.442695
        %v4718 = vpow.pop %v4717
        %v4719 = vmul.f32 %v4713, 1.442695
        %v4720 = vpow.pop %v4719
        %v4721 = vmul.f32 %v4714, 1.442695
        %v4722 = vpow.pop %v4721
        %v4723 = vsel %vm4698, %v4716, 0.0
        %4724 = vadd.xlane.f32.xlu0 %v4723
        %v4725 = vpop.xlane.xlu0 %4724
        %v4726 = vsel %vm4698, %v4718, 0.0
        %4727 = vadd.xlane.f32.xlu0 %v4726
        %v4728 = vpop.xlane.xlu0 %4727
        %v4729 = vsel %vm4698, %v4720, 0.0
        %4730 = vadd.xlane.f32.xlu0 %v4729
        %v4731 = vpop.xlane.xlu0 %4730
        %v4732 = vsel %vm4698, %v4722, 0.0
        %4733 = vadd.xlane.f32.xlu0 %v4732
        %v4734 = vpop.xlane.xlu0 %4733
        %v4735 = vrcp.pop %v4725
        %v4736 = vrcp.pop %v4728
        %v4737 = vrcp.pop %v4731
        %v4738 = vrcp.pop %v4734
        %v4739 = vmul.f32 %v4716, %v4735
        %v4740 = vmul.f32 %v4718, %v4736
        %v4741 = vmul.f32 %v4720, %v4737
        %v4742 = vmul.f32 %v4722, %v4738
        %v4743 = vmul.f32 %v4739, %v408
        %v4744 = vmul.f32 %v4740, %v409
        %v4745 = vmul.f32 %v4741, %v410
        %v4746 = vmul.f32 %v4742, %v411
        %v4748 = vsel %vm4698, %v4743, 0
        %4750 = vmatprep.subr.mxu0 0.0
        %4751 = vmatpush1.msra.mxu0 %v3675
        %4752 = vmatprep.subr.mxu0 0.0
        %4753 = vmatpush1.msra.mxu0 0.0
        %4754 = vmatprep.subr.mxu0 0.0
        %4755 = vmatpush1.msra.mxu0 0.0
        %4756 = vmatprep.subr.mxu0 0.0
        %4757 = vmatpush1.msra.mxu0 0.0
        %4758 = vmatprep.subr.mxu0 0.0
        %4759 = vmatpush1.msra.mxu0 0.0
        %4760 = vmatprep.subr.mxu0 0.0
        %4761 = vmatpush1.msra.mxu0 0.0
        %4762 = vmatprep.subr.mxu0 0.0
        %4763 = vmatpush1.msra.mxu0 0.0
        %4764 = vmatprep.subr.mxu0 0.0
        %4765 = vmatpush1.msra.mxu0 0.0
        %4766 = vmatprep.subr.mxu0 0.0
        %4767 = vmatpush1.msra.mxu0 0.0
        %4768 = vmatprep.subr.mxu0 0.0
        %4769 = vmatpush1.msra.mxu0 0.0
        %4770 = vmatprep.subr.mxu0 0.0
        %4771 = vmatpush1.msra.mxu0 0.0
        %4772 = vmatprep.subr.mxu0 0.0
        %4773 = vmatpush1.msra.mxu0 0.0
        %4774 = vmatprep.subr.mxu0 0.0
        %4775 = vmatpush1.msra.mxu0 0.0
        %4776 = vmatprep.subr.mxu0 0.0
        %4777 = vmatpush1.msra.mxu0 0.0
        %4778 = vmatprep.subr.mxu0 0.0
        %4779 = vmatpush1.msra.mxu0 0.0
        %4780 = vmatprep.subr.mxu0 0.0
        %4781 = vmatpush1.msra.mxu0 0.0
        %4782 = vmatprep.subr.mxu0 0.0
        %4783 = vmatpush1.msra.mxu0 0.0
        %4784 = vmatprep.subr.mxu0 0.0
        %4785 = vmatpush1.msra.mxu0 0.0
        %4786 = vmatprep.subr.mxu0 0.0
        %4787 = vmatpush1.msra.mxu0 0.0
        %4788 = vmatprep.subr.mxu0 0.0
        %4789 = vmatpush1.msra.mxu0 0.0
        %4790 = vmatprep.subr.mxu0 0.0
        %4791 = vmatpush1.msra.mxu0 0.0
        %4792 = vmatprep.subr.mxu0 0.0
        %4793 = vmatpush1.msra.mxu0 0.0
        %4794 = vmatprep.subr.mxu0 0.0
        %4795 = vmatpush1.msra.mxu0 0.0
        %4796 = vmatprep.subr.mxu0 0.0
        %4797 = vmatpush1.msra.mxu0 0.0
        %4798 = vmatprep.subr.mxu0 0.0
        %4799 = vmatpush1.msra.mxu0 0.0
        %4800 = vmatprep.subr.mxu0 0.0
        %4801 = vmatpush1.msra.mxu0 0.0
        %4802 = vmatprep.subr.mxu0 0.0
        %4803 = vmatpush1.msra.mxu0 0.0
        %4804 = vmatprep.subr.mxu0 0.0
        %4805 = vmatpush1.msra.mxu0 0.0
        %4806 = vmatprep.subr.mxu0 0.0
        %4807 = vmatpush1.msra.mxu0 0.0
        %4808 = vmatprep.subr.mxu0 0.0
        %4809 = vmatpush1.msra.mxu0 0.0
        %4810 = vmatprep.subr.mxu0 0.0
        %4811 = vmatpush1.msra.mxu0 0.0
        %4812 = vmatprep.subr.mxu0 0.0
        %4813 = vmatpush1.msra.mxu0 0.0
        %4814 = vmatprep.mubr.f32.mxu0 0.0
        %4815 = vmatmul.mubr.f32.gmra.mrb[0].mxu0 %v4748
        %v4816 = vpop.f32.mrb[0].mxu0
        %v4817 = vadd.f32 0.0, %v4816
        %v4818 = vpop.f32.mrb[0].mxu0
        %4819 = vdwg.mxu0
        %v4821 = vsel %vm4698, %v4744, 0
        %4823 = vmatprep.subr.mxu0 0.0
        %4824 = vmatpush1.msra.mxu0 %v3681
        %4825 = vmatprep.subr.mxu0 0.0
        %4826 = vmatpush1.msra.mxu0 0.0
        %4827 = vmatprep.subr.mxu0 0.0
        %4828 = vmatpush1.msra.mxu0 0.0
        %4829 = vmatprep.subr.mxu0 0.0
        %4830 = vmatpush1.msra.mxu0 0.0
        %4831 = vmatprep.subr.mxu0 0.0
        %4832 = vmatpush1.msra.mxu0 0.0
        %4833 = vmatprep.subr.mxu0 0.0
        %4834 = vmatpush1.msra.mxu0 0.0
        %4835 = vmatprep.subr.mxu0 0.0
        %4836 = vmatpush1.msra.mxu0 0.0
        %4837 = vmatprep.subr.mxu0 0.0
        %4838 = vmatpush1.msra.mxu0 0.0
        %4839 = vmatprep.subr.mxu0 0.0
        %4840 = vmatpush1.msra.mxu0 0.0
        %4841 = vmatprep.subr.mxu0 0.0
        %4842 = vmatpush1.msra.mxu0 0.0
        %4843 = vmatprep.subr.mxu0 0.0
        %4844 = vmatpush1.msra.mxu0 0.0
        %4845 = vmatprep.subr.mxu0 0.0
        %4846 = vmatpush1.msra.mxu0 0.0
        %4847 = vmatprep.subr.mxu0 0.0
        %4848 = vmatpush1.msra.mxu0 0.0
        %4849 = vmatprep.subr.mxu0 0.0
        %4850 = vmatpush1.msra.mxu0 0.0
        %4851 = vmatprep.subr.mxu0 0.0
        %4852 = vmatpush1.msra.mxu0 0.0
        %4853 = vmatprep.subr.mxu0 0.0
        %4854 = vmatpush1.msra.mxu0 0.0
        %4855 = vmatprep.subr.mxu0 0.0
        %4856 = vmatpush1.msra.mxu0 0.0
        %4857 = vmatprep.subr.mxu0 0.0
        %4858 = vmatpush1.msra.mxu0 0.0
        %4859 = vmatprep.subr.mxu0 0.0
        %4860 = vmatpush1.msra.mxu0 0.0
        %4861 = vmatprep.subr.mxu0 0.0
        %4862 = vmatpush1.msra.mxu0 0.0
        %4863 = vmatprep.subr.mxu0 0.0
        %4864 = vmatpush1.msra.mxu0 0.0
        %4865 = vmatprep.subr.mxu0 0.0
        %4866 = vmatpush1.msra.mxu0 0.0
        %4867 = vmatprep.subr.mxu0 0.0
        %4868 = vmatpush1.msra.mxu0 0.0
        %4869 = vmatprep.subr.mxu0 0.0
        %4870 = vmatpush1.msra.mxu0 0.0
        %4871 = vmatprep.subr.mxu0 0.0
        %4872 = vmatpush1.msra.mxu0 0.0
        %4873 = vmatprep.subr.mxu0 0.0
        %4874 = vmatpush1.msra.mxu0 0.0
        %4875 = vmatprep.subr.mxu0 0.0
        %4876 = vmatpush1.msra.mxu0 0.0
        %4877 = vmatprep.subr.mxu0 0.0
        %4878 = vmatpush1.msra.mxu0 0.0
        %4879 = vmatprep.subr.mxu0 0.0
        %4880 = vmatpush1.msra.mxu0 0.0
        %4881 = vmatprep.subr.mxu0 0.0
        %4882 = vmatpush1.msra.mxu0 0.0
        %4883 = vmatprep.subr.mxu0 0.0
        %4884 = vmatpush1.msra.mxu0 0.0
        %4885 = vmatprep.subr.mxu0 0.0
        %4886 = vmatpush1.msra.mxu0 0.0
        %4887 = vmatprep.mubr.f32.mxu0 0.0
        %4888 = vmatmul.mubr.f32.gmra.mrb[0].mxu0 %v4821
        %v4889 = vpop.f32.mrb[0].mxu0
        %v4890 = vadd.f32 0.0, %v4889
        %v4891 = vpop.f32.mrb[0].mxu0
        %4892 = vdwg.mxu0
        %v4894 = vsel %vm4698, %v4745, 0
        %4896 = vmatprep.subr.mxu0 0.0
        %4897 = vmatpush1.msra.mxu0 %v3687
        %4898 = vmatprep.subr.mxu0 0.0
        %4899 = vmatpush1.msra.mxu0 0.0
        %4900 = vmatprep.subr.mxu0 0.0
        %4901 = vmatpush1.msra.mxu0 0.0
        %4902 = vmatprep.subr.mxu0 0.0
        %4903 = vmatpush1.msra.mxu0 0.0
        %4904 = vmatprep.subr.mxu0 0.0
        %4905 = vmatpush1.msra.mxu0 0.0
        %4906 = vmatprep.subr.mxu0 0.0
        %4907 = vmatpush1.msra.mxu0 0.0
        %4908 = vmatprep.subr.mxu0 0.0
        %4909 = vmatpush1.msra.mxu0 0.0
        %4910 = vmatprep.subr.mxu0 0.0
        %4911 = vmatpush1.msra.mxu0 0.0
        %4912 = vmatprep.subr.mxu0 0.0
        %4913 = vmatpush1.msra.mxu0 0.0
        %4914 = vmatprep.subr.mxu0 0.0
        %4915 = vmatpush1.msra.mxu0 0.0
        %4916 = vmatprep.subr.mxu0 0.0
        %4917 = vmatpush1.msra.mxu0 0.0
        %4918 = vmatprep.subr.mxu0 0.0
        %4919 = vmatpush1.msra.mxu0 0.0
        %4920 = vmatprep.subr.mxu0 0.0
        %4921 = vmatpush1.msra.mxu0 0.0
        %4922 = vmatprep.subr.mxu0 0.0
        %4923 = vmatpush1.msra.mxu0 0.0
        %4924 = vmatprep.subr.mxu0 0.0
        %4925 = vmatpush1.msra.mxu0 0.0
        %4926 = vmatprep.subr.mxu0 0.0
        %4927 = vmatpush1.msra.mxu0 0.0
        %4928 = vmatprep.subr.mxu0 0.0
        %4929 = vmatpush1.msra.mxu0 0.0
        %4930 = vmatprep.subr.mxu0 0.0
        %4931 = vmatpush1.msra.mxu0 0.0
        %4932 = vmatprep.subr.mxu0 0.0
        %4933 = vmatpush1.msra.mxu0 0.0
        %4934 = vmatprep.subr.mxu0 0.0
        %4935 = vmatpush1.msra.mxu0 0.0
        %4936 = vmatprep.subr.mxu0 0.0
        %4937 = vmatpush1.msra.mxu0 0.0
        %4938 = vmatprep.subr.mxu0 0.0
        %4939 = vmatpush1.msra.mxu0 0.0
        %4940 = vmatprep.subr.mxu0 0.0
        %4941 = vmatpush1.msra.mxu0 0.0
        %4942 = vmatprep.subr.mxu0 0.0
        %4943 = vmatpush1.msra.mxu0 0.0
        %4944 = vmatprep.subr.mxu0 0.0
        %4945 = vmatpush1.msra.mxu0 0.0
        %4946 = vmatprep.subr.mxu0 0.0
        %4947 = vmatpush1.msra.mxu0 0.0
        %4948 = vmatprep.subr.mxu0 0.0
        %4949 = vmatpush1.msra.mxu0 0.0
        %4950 = vmatprep.subr.mxu0 0.0
        %4951 = vmatpush1.msra.mxu0 0.0
        %4952 = vmatprep.subr.mxu0 0.0
        %4953 = vmatpush1.msra.mxu0 0.0
        %4954 = vmatprep.subr.mxu0 0.0
        %4955 = vmatpush1.msra.mxu0 0.0
        %4956 = vmatprep.subr.mxu0 0.0
        %4957 = vmatpush1.msra.mxu0 0.0
        %4958 = vmatprep.subr.mxu0 0.0
        %4959 = vmatpush1.msra.mxu0 0.0
        %4960 = vmatprep.mubr.f32.mxu0 0.0
        %4961 = vmatmul.mubr.f32.gmra.mrb[0].mxu0 %v4894
        %v4962 = vpop.f32.mrb[0].mxu0
        %v4963 = vadd.f32 0.0, %v4962
        %v4964 = vpop.f32.mrb[0].mxu0
        %4965 = vdwg.mxu0
        %v4967 = vsel %vm4698, %v4746, 0
        %4969 = vmatprep.subr.mxu0 0.0
        %4970 = vmatpush1.msra.mxu0 %v3693
        %4971 = vmatprep.subr.mxu0 0.0
        %4972 = vmatpush1.msra.mxu0 0.0
        %4973 = vmatprep.subr.mxu0 0.0
        %4974 = vmatpush1.msra.mxu0 0.0
        %4975 = vmatprep.subr.mxu0 0.0
        %4976 = vmatpush1.msra.mxu0 0.0
        %4977 = vmatprep.subr.mxu0 0.0
        %4978 = vmatpush1.msra.mxu0 0.0
        %4979 = vmatprep.subr.mxu0 0.0
        %4980 = vmatpush1.msra.mxu0 0.0
        %4981 = vmatprep.subr.mxu0 0.0
        %4982 = vmatpush1.msra.mxu0 0.0
        %4983 = vmatprep.subr.mxu0 0.0
        %4984 = vmatpush1.msra.mxu0 0.0
        %4985 = vmatprep.subr.mxu0 0.0
        %4986 = vmatpush1.msra.mxu0 0.0
        %4987 = vmatprep.subr.mxu0 0.0
        %4988 = vmatpush1.msra.mxu0 0.0
        %4989 = vmatprep.subr.mxu0 0.0
        %4990 = vmatpush1.msra.mxu0 0.0
        %4991 = vmatprep.subr.mxu0 0.0
        %4992 = vmatpush1.msra.mxu0 0.0
        %4993 = vmatprep.subr.mxu0 0.0
        %4994 = vmatpush1.msra.mxu0 0.0
        %4995 = vmatprep.subr.mxu0 0.0
        %4996 = vmatpush1.msra.mxu0 0.0
        %4997 = vmatprep.subr.mxu0 0.0
        %4998 = vmatpush1.msra.mxu0 0.0
        %4999 = vmatprep.subr.mxu0 0.0
        %5000 = vmatpush1.msra.mxu0 0.0
        %5001 = vmatprep.subr.mxu0 0.0
        %5002 = vmatpush1.msra.mxu0 0.0
        %5003 = vmatprep.subr.mxu0 0.0
        %5004 = vmatpush1.msra.mxu0 0.0
        %5005 = vmatprep.subr.mxu0 0.0
        %5006 = vmatpush1.msra.mxu0 0.0
        %5007 = vmatprep.subr.mxu0 0.0
        %5008 = vmatpush1.msra.mxu0 0.0
        %5009 = vmatprep.subr.mxu0 0.0
        %5010 = vmatpush1.msra.mxu0 0.0
        %5011 = vmatprep.subr.mxu0 0.0
        %5012 = vmatpush1.msra.mxu0 0.0
        %5013 = vmatprep.subr.mxu0 0.0
        %5014 = vmatpush1.msra.mxu0 0.0
        %5015 = vmatprep.subr.mxu0 0.0
        %5016 = vmatpush1.msra.mxu0 0.0
        %5017 = vmatprep.subr.mxu0 0.0
        %5018 = vmatpush1.msra.mxu0 0.0
        %5019 = vmatprep.subr.mxu0 0.0
        %5020 = vmatpush1.msra.mxu0 0.0
        %5021 = vmatprep.subr.mxu0 0.0
        %5022 = vmatpush1.msra.mxu0 0.0
        %5023 = vmatprep.subr.mxu0 0.0
        %5024 = vmatpush1.msra.mxu0 0.0
        %5025 = vmatprep.subr.mxu0 0.0
        %5026 = vmatpush1.msra.mxu0 0.0
        %5027 = vmatprep.subr.mxu0 0.0
        %5028 = vmatpush1.msra.mxu0 0.0
        %5029 = vmatprep.subr.mxu0 0.0
        %5030 = vmatpush1.msra.mxu0 0.0
        %5031 = vmatprep.subr.mxu0 0.0
        %5032 = vmatpush1.msra.mxu0 0.0
        %5033 = vmatprep.mubr.f32.mxu0 0.0
        %5034 = vmatmul.mubr.f32.gmra.mrb[0].mxu0 %v4967
        %v5035 = vpop.f32.mrb[0].mxu0
        %v5036 = vadd.f32 0.0, %v5035
        %v5037 = vpop.f32.mrb[0].mxu0
        %5038 = vdwg.mxu0
        %v5039 = vlaneseq
        %v5040 = vshrl.u32 %v5039, 7
        %v5041 = vsub.s32 0, %v5040
        %v5042 = vrot.slane %v4743, %v5041
        %5044 = vbcast.lane.b32.xlu0 %v5042, 256
        %v5045 = vpop.permute.xlu0 %5044
        %v5046 = vlaneseq
        %v5047 = vshrl.u32 %v5046, 7
        %v5048 = vsub.s32 1, %v5047
        %v5049 = vrot.slane %v4743, %v5048
        %5051 = vbcast.lane.b32.xlu0 %v5049, 256
        %v5052 = vpop.permute.xlu0 %5051
        %v5053 = vlaneseq
        %v5054 = vshrl.u32 %v5053, 7
        %v5055 = vsub.s32 2, %v5054
        %v5056 = vrot.slane %v4743, %v5055
        %5058 = vbcast.lane.b32.xlu0 %v5056, 256
        %v5059 = vpop.permute.xlu0 %5058
        %v5060 = vlaneseq
        %v5061 = vshrl.u32 %v5060, 7
        %v5062 = vsub.s32 3, %v5061
        %v5063 = vrot.slane %v4743, %v5062
        %5065 = vbcast.lane.b32.xlu0 %v5063, 256
        %v5066 = vpop.permute.xlu0 %5065
        %v5067 = vlaneseq
        %v5068 = vshrl.u32 %v5067, 7
        %v5069 = vsub.s32 4, %v5068
        %v5070 = vrot.slane %v4743, %v5069
        %5072 = vbcast.lane.b32.xlu0 %v5070, 256
        %v5073 = vpop.permute.xlu0 %5072
        %v5074 = vlaneseq
        %v5075 = vshrl.u32 %v5074, 7
        %v5076 = vsub.s32 5, %v5075
        %v5077 = vrot.slane %v4743, %v5076
        %5079 = vbcast.lane.b32.xlu0 %v5077, 256
        %v5080 = vpop.permute.xlu0 %5079
        %v5081 = vlaneseq
        %v5082 = vshrl.u32 %v5081, 7
        %v5083 = vsub.s32 6, %v5082
        %v5084 = vrot.slane %v4743, %v5083
        %5086 = vbcast.lane.b32.xlu0 %v5084, 256
        %v5087 = vpop.permute.xlu0 %5086
        %v5088 = vlaneseq
        %v5089 = vshrl.u32 %v5088, 7
        %v5090 = vsub.s32 7, %v5089
        %v5091 = vrot.slane %v4743, %v5090
        %5093 = vbcast.lane.b32.xlu0 %v5091, 256
        %v5094 = vpop.permute.xlu0 %5093
        %v5095 = vlaneseq
        %v5096 = vshrl.u32 %v5095, 7
        %v5097 = vsub.s32 0, %v5096
        %v5098 = vrot.slane %v4744, %v5097
        %5100 = vbcast.lane.b32.xlu0 %v5098, 256
        %v5101 = vpop.permute.xlu0 %5100
        %v5102 = vlaneseq
        %v5103 = vshrl.u32 %v5102, 7
        %v5104 = vsub.s32 1, %v5103
        %v5105 = vrot.slane %v4744, %v5104
        %5107 = vbcast.lane.b32.xlu0 %v5105, 256
        %v5108 = vpop.permute.xlu0 %5107
        %v5109 = vlaneseq
        %v5110 = vshrl.u32 %v5109, 7
        %v5111 = vsub.s32 2, %v5110
        %v5112 = vrot.slane %v4744, %v5111
        %5114 = vbcast.lane.b32.xlu0 %v5112, 256
        %v5115 = vpop.permute.xlu0 %5114
        %v5116 = vlaneseq
        %v5117 = vshrl.u32 %v5116, 7
        %v5118 = vsub.s32 3, %v5117
        %v5119 = vrot.slane %v4744, %v5118
        %5121 = vbcast.lane.b32.xlu0 %v5119, 256
        %v5122 = vpop.permute.xlu0 %5121
        %v5123 = vlaneseq
        %v5124 = vshrl.u32 %v5123, 7
        %v5125 = vsub.s32 4, %v5124
        %v5126 = vrot.slane %v4744, %v5125
        %5128 = vbcast.lane.b32.xlu0 %v5126, 256
        %v5129 = vpop.permute.xlu0 %5128
        %v5130 = vlaneseq
        %v5131 = vshrl.u32 %v5130, 7
        %v5132 = vsub.s32 5, %v5131
        %v5133 = vrot.slane %v4744, %v5132
        %5135 = vbcast.lane.b32.xlu0 %v5133, 256
        %v5136 = vpop.permute.xlu0 %5135
        %v5137 = vlaneseq
        %v5138 = vshrl.u32 %v5137, 7
        %v5139 = vsub.s32 6, %v5138
        %v5140 = vrot.slane %v4744, %v5139
        %5142 = vbcast.lane.b32.xlu0 %v5140, 256
        %v5143 = vpop.permute.xlu0 %5142
        %v5144 = vlaneseq
        %v5145 = vshrl.u32 %v5144, 7
        %v5146 = vsub.s32 7, %v5145
        %v5147 = vrot.slane %v4744, %v5146
        %5149 = vbcast.lane.b32.xlu0 %v5147, 256
        %v5150 = vpop.permute.xlu0 %5149
        %v5151 = vlaneseq
        %v5152 = vshrl.u32 %v5151, 7
        %v5153 = vsub.s32 0, %v5152
        %v5154 = vrot.slane %v4745, %v5153
        %5156 = vbcast.lane.b32.xlu0 %v5154, 256
        %v5157 = vpop.permute.xlu0 %5156
        %v5158 = vlaneseq
        %v5159 = vshrl.u32 %v5158, 7
        %v5160 = vsub.s32 1, %v5159
        %v5161 = vrot.slane %v4745, %v5160
        %5163 = vbcast.lane.b32.xlu0 %v5161, 256
        %v5164 = vpop.permute.xlu0 %5163
        %v5165 = vlaneseq
        %v5166 = vshrl.u32 %v5165, 7
        %v5167 = vsub.s32 2, %v5166
        %v5168 = vrot.slane %v4745, %v5167
        %5170 = vbcast.lane.b32.xlu0 %v5168, 256
        %v5171 = vpop.permute.xlu0 %5170
        %v5172 = vlaneseq
        %v5173 = vshrl.u32 %v5172, 7
        %v5174 = vsub.s32 3, %v5173
        %v5175 = vrot.slane %v4745, %v5174
        %5177 = vbcast.lane.b32.xlu0 %v5175, 256
        %v5178 = vpop.permute.xlu0 %5177
        %v5179 = vlaneseq
        %v5180 = vshrl.u32 %v5179, 7
        %v5181 = vsub.s32 4, %v5180
        %v5182 = vrot.slane %v4745, %v5181
        %5184 = vbcast.lane.b32.xlu0 %v5182, 256
        %v5185 = vpop.permute.xlu0 %5184
        %v5186 = vlaneseq
        %v5187 = vshrl.u32 %v5186, 7
        %v5188 = vsub.s32 5, %v5187
        %v5189 = vrot.slane %v4745, %v5188
        %5191 = vbcast.lane.b32.xlu0 %v5189, 256
        %v5192 = vpop.permute.xlu0 %5191
        %v5193 = vlaneseq
        %v5194 = vshrl.u32 %v5193, 7
        %v5195 = vsub.s32 6, %v5194
        %v5196 = vrot.slane %v4745, %v5195
        %5198 = vbcast.lane.b32.xlu0 %v5196, 256
        %v5199 = vpop.permute.xlu0 %5198
        %v5200 = vlaneseq
        %v5201 = vshrl.u32 %v5200, 7
        %v5202 = vsub.s32 7, %v5201
        %v5203 = vrot.slane %v4745, %v5202
        %5205 = vbcast.lane.b32.xlu0 %v5203, 256
        %v5206 = vpop.permute.xlu0 %5205
        %v5207 = vlaneseq
        %v5208 = vshrl.u32 %v5207, 7
        %v5209 = vsub.s32 0, %v5208
        %v5210 = vrot.slane %v4746, %v5209
        %5212 = vbcast.lane.b32.xlu0 %v5210, 256
        %v5213 = vpop.permute.xlu0 %5212
        %v5214 = vlaneseq
        %v5215 = vshrl.u32 %v5214, 7
        %v5216 = vsub.s32 1, %v5215
        %v5217 = vrot.slane %v4746, %v5216
        %5219 = vbcast.lane.b32.xlu0 %v5217, 256
        %v5220 = vpop.permute.xlu0 %5219
        %v5221 = vlaneseq
        %v5222 = vshrl.u32 %v5221, 7
        %v5223 = vsub.s32 2, %v5222
        %v5224 = vrot.slane %v4746, %v5223
        %5226 = vbcast.lane.b32.xlu0 %v5224, 256
        %v5227 = vpop.permute.xlu0 %5226
        %v5228 = vlaneseq
        %v5229 = vshrl.u32 %v5228, 7
        %v5230 = vsub.s32 3, %v5229
        %v5231 = vrot.slane %v4746, %v5230
        %5233 = vbcast.lane.b32.xlu0 %v5231, 256
        %v5234 = vpop.permute.xlu0 %5233
        %v5235 = vlaneseq
        %v5236 = vshrl.u32 %v5235, 7
        %v5237 = vsub.s32 4, %v5236
        %v5238 = vrot.slane %v4746, %v5237
        %5240 = vbcast.lane.b32.xlu0 %v5238, 256
        %v5241 = vpop.permute.xlu0 %5240
        %v5242 = vlaneseq
        %v5243 = vshrl.u32 %v5242, 7
        %v5244 = vsub.s32 5, %v5243
        %v5245 = vrot.slane %v4746, %v5244
        %5247 = vbcast.lane.b32.xlu0 %v5245, 256
        %v5248 = vpop.permute.xlu0 %5247
        %v5249 = vlaneseq
        %v5250 = vshrl.u32 %v5249, 7
        %v5251 = vsub.s32 6, %v5250
        %v5252 = vrot.slane %v4746, %v5251
        %5254 = vbcast.lane.b32.xlu0 %v5252, 256
        %v5255 = vpop.permute.xlu0 %5254
        %v5256 = vlaneseq
        %v5257 = vshrl.u32 %v5256, 7
        %v5258 = vsub.s32 7, %v5257
        %v5259 = vrot.slane %v4746, %v5258
        %5261 = vbcast.lane.b32.xlu0 %v5259, 256
        %v5262 = vpop.permute.xlu0 %5261
        %v5263 = vmul.f32 %v5045, %v3422
        %v5264 = vmul.f32 %v5052, %v3423
        %v5265 = vmul.f32 %v5059, %v3424
        %v5266 = vmul.f32 %v5066, %v3425
        %v5267 = vmul.f32 %v5073, %v3426
        %v5268 = vmul.f32 %v5080, %v3427
        %v5269 = vmul.f32 %v5087, %v3428
        %v5270 = vmul.f32 %v5094, %v3429
        %v5271 = vmul.f32 %v5101, %v3430
        %v5272 = vmul.f32 %v5108, %v3431
        %v5273 = vmul.f32 %v5115, %v3432
        %v5274 = vmul.f32 %v5122, %v3433
        %v5275 = vmul.f32 %v5129, %v3434
        %v5276 = vmul.f32 %v5136, %v3435
        %v5277 = vmul.f32 %v5143, %v3436
        %v5278 = vmul.f32 %v5150, %v3437
        %v5279 = vmul.f32 %v5157, %v3438
        %v5280 = vmul.f32 %v5164, %v3439
        %v5281 = vmul.f32 %v5171, %v3440
        %v5282 = vmul.f32 %v5178, %v3441
        %v5283 = vmul.f32 %v5185, %v3442
        %v5284 = vmul.f32 %v5192, %v3443
        %v5285 = vmul.f32 %v5199, %v3444
        %v5286 = vmul.f32 %v5206, %v3445
        %v5287 = vmul.f32 %v5213, %v3446
        %v5288 = vmul.f32 %v5220, %v3447
        %v5289 = vmul.f32 %v5227, %v3448
        %v5290 = vmul.f32 %v5234, %v3449
        %v5291 = vmul.f32 %v5241, %v3450
        %v5292 = vmul.f32 %v5248, %v3451
        %v5293 = vmul.f32 %v5255, %v3452
        %v5294 = vmul.f32 %v5262, %v3453
        %v5295 = vsel %vm3506, %v5263, 0.0
        %v5296 = vrot.slane %v5295, 4
        %v5297 = vadd.f32 %v5295, %v5296
        %v5298 = vrot.slane %v5297, 2
        %v5299 = vadd.f32 %v5297, %v5298
        %v5300 = vrot.slane %v5299, 1
        %v5301 = vadd.f32 %v5299, %v5300
        %v5302 = vsel %vm3506, %v5264, 0.0
        %v5303 = vrot.slane %v5302, 4
        %v5304 = vadd.f32 %v5302, %v5303
        %v5305 = vrot.slane %v5304, 2
        %v5306 = vadd.f32 %v5304, %v5305
        %v5307 = vrot.slane %v5306, 1
        %v5308 = vadd.f32 %v5306, %v5307
        %v5309 = vsel %vm3506, %v5265, 0.0
        %v5310 = vrot.slane %v5309, 4
        %v5311 = vadd.f32 %v5309, %v5310
        %v5312 = vrot.slane %v5311, 2
        %v5313 = vadd.f32 %v5311, %v5312
        %v5314 = vrot.slane %v5313, 1
        %v5315 = vadd.f32 %v5313, %v5314
        %v5316 = vsel %vm3506, %v5266, 0.0
        %v5317 = vrot.slane %v5316, 4
        %v5318 = vadd.f32 %v5316, %v5317
        %v5319 = vrot.slane %v5318, 2
        %v5320 = vadd.f32 %v5318, %v5319
        %v5321 = vrot.slane %v5320, 1
        %v5322 = vadd.f32 %v5320, %v5321
        %v5323 = vsel %vm3506, %v5267, 0.0
        %v5324 = vrot.slane %v5323, 4
        %v5325 = vadd.f32 %v5323, %v5324
        %v5326 = vrot.slane %v5325, 2
        %v5327 = vadd.f32 %v5325, %v5326
        %v5328 = vrot.slane %v5327, 1
        %v5329 = vadd.f32 %v5327, %v5328
        %v5330 = vsel %vm3506, %v5268, 0.0
        %v5331 = vrot.slane %v5330, 4
        %v5332 = vadd.f32 %v5330, %v5331
        %v5333 = vrot.slane %v5332, 2
        %v5334 = vadd.f32 %v5332, %v5333
        %v5335 = vrot.slane %v5334, 1
        %v5336 = vadd.f32 %v5334, %v5335
        %v5337 = vsel %vm3506, %v5269, 0.0
        %v5338 = vrot.slane %v5337, 4
        %v5339 = vadd.f32 %v5337, %v5338
        %v5340 = vrot.slane %v5339, 2
        %v5341 = vadd.f32 %v5339, %v5340
        %v5342 = vrot.slane %v5341, 1
        %v5343 = vadd.f32 %v5341, %v5342
        %v5344 = vsel %vm3506, %v5270, 0.0
        %v5345 = vrot.slane %v5344, 4
        %v5346 = vadd.f32 %v5344, %v5345
        %v5347 = vrot.slane %v5346, 2
        %v5348 = vadd.f32 %v5346, %v5347
        %v5349 = vrot.slane %v5348, 1
        %v5350 = vadd.f32 %v5348, %v5349
        %v5351 = vsel %vm3506, %v5271, 0.0
        %v5352 = vrot.slane %v5351, 4
        %v5353 = vadd.f32 %v5351, %v5352
        %v5354 = vrot.slane %v5353, 2
        %v5355 = vadd.f32 %v5353, %v5354
        %v5356 = vrot.slane %v5355, 1
        %v5357 = vadd.f32 %v5355, %v5356
        %v5358 = vsel %vm3506, %v5272, 0.0
        %v5359 = vrot.slane %v5358, 4
        %v5360 = vadd.f32 %v5358, %v5359
        %v5361 = vrot.slane %v5360, 2
        %v5362 = vadd.f32 %v5360, %v5361
        %v5363 = vrot.slane %v5362, 1
        %v5364 = vadd.f32 %v5362, %v5363
        %v5365 = vsel %vm3506, %v5273, 0.0
        %v5366 = vrot.slane %v5365, 4
        %v5367 = vadd.f32 %v5365, %v5366
        %v5368 = vrot.slane %v5367, 2
        %v5369 = vadd.f32 %v5367, %v5368
        %v5370 = vrot.slane %v5369, 1
        %v5371 = vadd.f32 %v5369, %v5370
        %v5372 = vsel %vm3506, %v5274, 0.0
        %v5373 = vrot.slane %v5372, 4
        %v5374 = vadd.f32 %v5372, %v5373
        %v5375 = vrot.slane %v5374, 2
        %v5376 = vadd.f32 %v5374, %v5375
        %v5377 = vrot.slane %v5376, 1
        %v5378 = vadd.f32 %v5376, %v5377
        %v5379 = vsel %vm3506, %v5275, 0.0
        %v5380 = vrot.slane %v5379, 4
        %v5381 = vadd.f32 %v5379, %v5380
        %v5382 = vrot.slane %v5381, 2
        %v5383 = vadd.f32 %v5381, %v5382
        %v5384 = vrot.slane %v5383, 1
        %v5385 = vadd.f32 %v5383, %v5384
        %v5386 = vsel %vm3506, %v5276, 0.0
        %v5387 = vrot.slane %v5386, 4
        %v5388 = vadd.f32 %v5386, %v5387
        %v5389 = vrot.slane %v5388, 2
        %v5390 = vadd.f32 %v5388, %v5389
        %v5391 = vrot.slane %v5390, 1
        %v5392 = vadd.f32 %v5390, %v5391
        %v5393 = vsel %vm3506, %v5277, 0.0
        %v5394 = vrot.slane %v5393, 4
        %v5395 = vadd.f32 %v5393, %v5394
        %v5396 = vrot.slane %v5395, 2
        %v5397 = vadd.f32 %v5395, %v5396
        %v5398 = vrot.slane %v5397, 1
        %v5399 = vadd.f32 %v5397, %v5398
        %v5400 = vsel %vm3506, %v5278, 0.0
        %v5401 = vrot.slane %v5400, 4
        %v5402 = vadd.f32 %v5400, %v5401
        %v5403 = vrot.slane %v5402, 2
        %v5404 = vadd.f32 %v5402, %v5403
        %v5405 = vrot.slane %v5404, 1
        %v5406 = vadd.f32 %v5404, %v5405
        %v5407 = vsel %vm3506, %v5279, 0.0
        %v5408 = vrot.slane %v5407, 4
        %v5409 = vadd.f32 %v5407, %v5408
        %v5410 = vrot.slane %v5409, 2
        %v5411 = vadd.f32 %v5409, %v5410
        %v5412 = vrot.slane %v5411, 1
        %v5413 = vadd.f32 %v5411, %v5412
        %v5414 = vsel %vm3506, %v5280, 0.0
        %v5415 = vrot.slane %v5414, 4
        %v5416 = vadd.f32 %v5414, %v5415
        %v5417 = vrot.slane %v5416, 2
        %v5418 = vadd.f32 %v5416, %v5417
        %v5419 = vrot.slane %v5418, 1
        %v5420 = vadd.f32 %v5418, %v5419
        %v5421 = vsel %vm3506, %v5281, 0.0
        %v5422 = vrot.slane %v5421, 4
        %v5423 = vadd.f32 %v5421, %v5422
        %v5424 = vrot.slane %v5423, 2
        %v5425 = vadd.f32 %v5423, %v5424
        %v5426 = vrot.slane %v5425, 1
        %v5427 = vadd.f32 %v5425, %v5426
        %v5428 = vsel %vm3506, %v5282, 0.0
        %v5429 = vrot.slane %v5428, 4
        %v5430 = vadd.f32 %v5428, %v5429
        %v5431 = vrot.slane %v5430, 2
        %v5432 = vadd.f32 %v5430, %v5431
        %v5433 = vrot.slane %v5432, 1
        %v5434 = vadd.f32 %v5432, %v5433
        %v5435 = vsel %vm3506, %v5283, 0.0
        %v5436 = vrot.slane %v5435, 4
        %v5437 = vadd.f32 %v5435, %v5436
        %v5438 = vrot.slane %v5437, 2
        %v5439 = vadd.f32 %v5437, %v5438
        %v5440 = vrot.slane %v5439, 1
        %v5441 = vadd.f32 %v5439, %v5440
        %v5442 = vsel %vm3506, %v5284, 0.0
        %v5443 = vrot.slane %v5442, 4
        %v5444 = vadd.f32 %v5442, %v5443
        %v5445 = vrot.slane %v5444, 2
        %v5446 = vadd.f32 %v5444, %v5445
        %v5447 = vrot.slane %v5446, 1
        %v5448 = vadd.f32 %v5446, %v5447
        %v5449 = vsel %vm3506, %v5285, 0.0
        %v5450 = vrot.slane %v5449, 4
        %v5451 = vadd.f32 %v5449, %v5450
        %v5452 = vrot.slane %v5451, 2
        %v5453 = vadd.f32 %v5451, %v5452
        %v5454 = vrot.slane %v5453, 1
        %v5455 = vadd.f32 %v5453, %v5454
        %v5456 = vsel %vm3506, %v5286, 0.0
        %v5457 = vrot.slane %v5456, 4
        %v5458 = vadd.f32 %v5456, %v5457
        %v5459 = vrot.slane %v5458, 2
        %v5460 = vadd.f32 %v5458, %v5459
        %v5461 = vrot.slane %v5460, 1
        %v5462 = vadd.f32 %v5460, %v5461
        %v5463 = vsel %vm3506, %v5287, 0.0
        %v5464 = vrot.slane %v5463, 4
        %v5465 = vadd.f32 %v5463, %v5464
        %v5466 = vrot.slane %v5465, 2
        %v5467 = vadd.f32 %v5465, %v5466
        %v5468 = vrot.slane %v5467, 1
        %v5469 = vadd.f32 %v5467, %v5468
        %v5470 = vsel %vm3506, %v5288, 0.0
        %v5471 = vrot.slane %v5470, 4
        %v5472 = vadd.f32 %v5470, %v5471
        %v5473 = vrot.slane %v5472, 2
        %v5474 = vadd.f32 %v5472, %v5473
        %v5475 = vrot.slane %v5474, 1
        %v5476 = vadd.f32 %v5474, %v5475
        %v5477 = vsel %vm3506, %v5289, 0.0
        %v5478 = vrot.slane %v5477, 4
        %v5479 = vadd.f32 %v5477, %v5478
        %v5480 = vrot.slane %v5479, 2
        %v5481 = vadd.f32 %v5479, %v5480
        %v5482 = vrot.slane %v5481, 1
        %v5483 = vadd.f32 %v5481, %v5482
        %v5484 = vsel %vm3506, %v5290, 0.0
        %v5485 = vrot.slane %v5484, 4
        %v5486 = vadd.f32 %v5484, %v5485
        %v5487 = vrot.slane %v5486, 2
        %v5488 = vadd.f32 %v5486, %v5487
        %v5489 = vrot.slane %v5488, 1
        %v5490 = vadd.f32 %v5488, %v5489
        %v5491 = vsel %vm3506, %v5291, 0.0
        %v5492 = vrot.slane %v5491, 4
        %v5493 = vadd.f32 %v5491, %v5492
        %v5494 = vrot.slane %v5493, 2
        %v5495 = vadd.f32 %v5493, %v5494
        %v5496 = vrot.slane %v5495, 1
        %v5497 = vadd.f32 %v5495, %v5496
        %v5498 = vsel %vm3506, %v5292, 0.0
        %v5499 = vrot.slane %v5498, 4
        %v5500 = vadd.f32 %v5498, %v5499
        %v5501 = vrot.slane %v5500, 2
        %v5502 = vadd.f32 %v5500, %v5501
        %v5503 = vrot.slane %v5502, 1
        %v5504 = vadd.f32 %v5502, %v5503
        %v5505 = vsel %vm3506, %v5293, 0.0
        %v5506 = vrot.slane %v5505, 4
        %v5507 = vadd.f32 %v5505, %v5506
        %v5508 = vrot.slane %v5507, 2
        %v5509 = vadd.f32 %v5507, %v5508
        %v5510 = vrot.slane %v5509, 1
        %v5511 = vadd.f32 %v5509, %v5510
        %v5512 = vsel %vm3506, %v5294, 0.0
        %v5513 = vrot.slane %v5512, 4
        %v5514 = vadd.f32 %v5512, %v5513
        %v5515 = vrot.slane %v5514, 2
        %v5516 = vadd.f32 %v5514, %v5515
        %v5517 = vrot.slane %v5516, 1
        %v5518 = vadd.f32 %v5516, %v5517
        %v5519 = vadd.f32 %v4817, 0.0
        %v5520 = vadd.f32 %v4890, 0.0
        %v5521 = vadd.f32 %v4963, 0.0
        %v5522 = vadd.f32 %v5036, 0.0
        %v5555 = vsel %vm4647, %v5308, %v5301
        %v5556 = vsel %vm4649, %v5315, %v5555
        %v5557 = vsel %vm4651, %v5322, %v5556
        %v5558 = vsel %vm4653, %v5329, %v5557
        %v5559 = vsel %vm4655, %v5336, %v5558
        %v5560 = vsel %vm4657, %v5343, %v5559
        %v5561 = vsel %vm4659, %v5350, %v5560
        %v5562 = vsel %vm4647, %v5364, %v5357
        %v5563 = vsel %vm4649, %v5371, %v5562
        %v5564 = vsel %vm4651, %v5378, %v5563
        %v5565 = vsel %vm4653, %v5385, %v5564
        %v5566 = vsel %vm4655, %v5392, %v5565
        %v5567 = vsel %vm4657, %v5399, %v5566
        %v5568 = vsel %vm4659, %v5406, %v5567
        %v5569 = vsel %vm4647, %v5420, %v5413
        %v5570 = vsel %vm4649, %v5427, %v5569
        %v5571 = vsel %vm4651, %v5434, %v5570
        %v5572 = vsel %vm4653, %v5441, %v5571
        %v5573 = vsel %vm4655, %v5448, %v5572
        %v5574 = vsel %vm4657, %v5455, %v5573
        %v5575 = vsel %vm4659, %v5462, %v5574
        %v5576 = vsel %vm4647, %v5476, %v5469
        %v5577 = vsel %vm4649, %v5483, %v5576
        %v5578 = vsel %vm4651, %v5490, %v5577
        %v5579 = vsel %vm4653, %v5497, %v5578
        %v5580 = vsel %vm4655, %v5504, %v5579
        %v5581 = vsel %vm4657, %v5511, %v5580
        %v5582 = vsel %vm4659, %v5518, %v5581
        %v5587 = vadd.f32 %v5519, %v5561
        %v5588 = vadd.f32 %v5520, %v5568
        %v5589 = vadd.f32 %v5521, %v5575
        %v5590 = vadd.f32 %v5522, %v5582
        %5591 = vrot.lane.b32.xlu0 %v3586, 96
        %v5592 = vpop.permute.xlu0 %5591
        %5593 = vrot.lane.b32.xlu0 %v3588, 96
        %v5594 = vpop.permute.xlu0 %5593
        %v5595 = vsel %vm3506, %v5592, 0
        %v5597 = vsel %vm3506, %v5594, 0
        %5599 = vmatprep.subr.mxu0 0.0
        %5600 = vmatpush1.xpose.msra.mxu0 %v5597
        %5601 = vmatprep.subr.mxu0 0.0
        %5602 = vmatpush1.xpose.msra.mxu0 0.0
        %5603 = vmatprep.subr.mxu0 0.0
        %5604 = vmatpush1.xpose.msra.mxu0 0.0
        %5605 = vmatprep.subr.mxu0 0.0
        %5606 = vmatpush1.xpose.msra.mxu0 0.0
        %5607 = vmatprep.subr.mxu0 0.0
        %5608 = vmatpush1.xpose.msra.mxu0 0.0
        %5609 = vmatprep.subr.mxu0 0.0
        %5610 = vmatpush1.xpose.msra.mxu0 0.0
        %5611 = vmatprep.subr.mxu0 0.0
        %5612 = vmatpush1.xpose.msra.mxu0 0.0
        %5613 = vmatprep.subr.mxu0 0.0
        %5614 = vmatpush1.xpose.msra.mxu0 0.0
        %5615 = vmatprep.subr.mxu0 0.0
        %5616 = vmatpush1.xpose.msra.mxu0 0.0
        %5617 = vmatprep.subr.mxu0 0.0
        %5618 = vmatpush1.xpose.msra.mxu0 0.0
        %5619 = vmatprep.subr.mxu0 0.0
        %5620 = vmatpush1.xpose.msra.mxu0 0.0
        %5621 = vmatprep.subr.mxu0 0.0
        %5622 = vmatpush1.xpose.msra.mxu0 0.0
        %5623 = vmatprep.subr.mxu0 0.0
        %5624 = vmatpush1.xpose.msra.mxu0 0.0
        %5625 = vmatprep.subr.mxu0 0.0
        %5626 = vmatpush1.xpose.msra.mxu0 0.0
        %5627 = vmatprep.subr.mxu0 0.0
        %5628 = vmatpush1.xpose.msra.mxu0 0.0
        %5629 = vmatprep.subr.mxu0 0.0
        %5630 = vmatpush1.xpose.msra.mxu0 0.0
        %5631 = vmatprep.subr.mxu0 0.0
        %5632 = vmatpush1.xpose.msra.mxu0 0.0
        %5633 = vmatprep.subr.mxu0 0.0
        %5634 = vmatpush1.xpose.msra.mxu0 0.0
        %5635 = vmatprep.subr.mxu0 0.0
        %5636 = vmatpush1.xpose.msra.mxu0 0.0
        %5637 = vmatprep.subr.mxu0 0.0
        %5638 = vmatpush1.xpose.msra.mxu0 0.0
        %5639 = vmatprep.subr.mxu0 0.0
        %5640 = vmatpush1.xpose.msra.mxu0 0.0
        %5641 = vmatprep.subr.mxu0 0.0
        %5642 = vmatpush1.xpose.msra.mxu0 0.0
        %5643 = vmatprep.subr.mxu0 0.0
        %5644 = vmatpush1.xpose.msra.mxu0 0.0
        %5645 = vmatprep.subr.mxu0 0.0
        %5646 = vmatpush1.xpose.msra.mxu0 0.0
        %5647 = vmatprep.subr.mxu0 0.0
        %5648 = vmatpush1.xpose.msra.mxu0 0.0
        %5649 = vmatprep.subr.mxu0 0.0
        %5650 = vmatpush1.xpose.msra.mxu0 0.0
        %5651 = vmatprep.subr.mxu0 0.0
        %5652 = vmatpush1.xpose.msra.mxu0 0.0
        %5653 = vmatprep.subr.mxu0 0.0
        %5654 = vmatpush1.xpose.msra.mxu0 0.0
        %5655 = vmatprep.subr.mxu0 0.0
        %5656 = vmatpush1.xpose.msra.mxu0 0.0
        %5657 = vmatprep.subr.mxu0 0.0
        %5658 = vmatpush1.xpose.msra.mxu0 0.0
        %5659 = vmatprep.subr.mxu0 0.0
        %5660 = vmatpush1.xpose.msra.mxu0 0.0
        %5661 = vmatprep.subr.mxu0 0.0
        %5662 = vmatpush1.xpose.msra.mxu0 0.0
        %5663 = vmatprep.mubr.f32.mxu0 0.0
        %5664 = vmatmul.mubr.f32.gmra.mrb[0].mxu0 %v5595
        %v5665 = vpop.f32.mrb[0].mxu0
        %v5666 = vadd.f32 0.0, %v5665
        %v5667 = vpop.f32.mrb[0].mxu0
        %5668 = vdwg.mxu0
        %5669 = vrot.lane.b32.xlu0 %v3592, 96
        %v5670 = vpop.permute.xlu0 %5669
        %5671 = vrot.lane.b32.xlu0 %v3594, 96
        %v5672 = vpop.permute.xlu0 %5671
        %v5673 = vsel %vm3506, %v5670, 0
        %v5675 = vsel %vm3506, %v5672, 0
        %5677 = vmatprep.subr.mxu0 0.0
        %5678 = vmatpush1.xpose.msra.mxu0 %v5675
        %5679 = vmatprep.subr.mxu0 0.0
        %5680 = vmatpush1.xpose.msra.mxu0 0.0
        %5681 = vmatprep.subr.mxu0 0.0
        %5682 = vmatpush1.xpose.msra.mxu0 0.0
        %5683 = vmatprep.subr.mxu0 0.0
        %5684 = vmatpush1.xpose.msra.mxu0 0.0
        %5685 = vmatprep.subr.mxu0 0.0
        %5686 = vmatpush1.xpose.msra.mxu0 0.0
        %5687 = vmatprep.subr.mxu0 0.0
        %5688 = vmatpush1.xpose.msra.mxu0 0.0
        %5689 = vmatprep.subr.mxu0 0.0
        %5690 = vmatpush1.xpose.msra.mxu0 0.0
        %5691 = vmatprep.subr.mxu0 0.0
        %5692 = vmatpush1.xpose.msra.mxu0 0.0
        %5693 = vmatprep.subr.mxu0 0.0
        %5694 = vmatpush1.xpose.msra.mxu0 0.0
        %5695 = vmatprep.subr.mxu0 0.0
        %5696 = vmatpush1.xpose.msra.mxu0 0.0
        %5697 = vmatprep.subr.mxu0 0.0
        %5698 = vmatpush1.xpose.msra.mxu0 0.0
        %5699 = vmatprep.subr.mxu0 0.0
        %5700 = vmatpush1.xpose.msra.mxu0 0.0
        %5701 = vmatprep.subr.mxu0 0.0
        %5702 = vmatpush1.xpose.msra.mxu0 0.0
        %5703 = vmatprep.subr.mxu0 0.0
        %5704 = vmatpush1.xpose.msra.mxu0 0.0
        %5705 = vmatprep.subr.mxu0 0.0
        %5706 = vmatpush1.xpose.msra.mxu0 0.0
        %5707 = vmatprep.subr.mxu0 0.0
        %5708 = vmatpush1.xpose.msra.mxu0 0.0
        %5709 = vmatprep.subr.mxu0 0.0
        %5710 = vmatpush1.xpose.msra.mxu0 0.0
        %5711 = vmatprep.subr.mxu0 0.0
        %5712 = vmatpush1.xpose.msra.mxu0 0.0
        %5713 = vmatprep.subr.mxu0 0.0
        %5714 = vmatpush1.xpose.msra.mxu0 0.0
        %5715 = vmatprep.subr.mxu0 0.0
        %5716 = vmatpush1.xpose.msra.mxu0 0.0
        %5717 = vmatprep.subr.mxu0 0.0
        %5718 = vmatpush1.xpose.msra.mxu0 0.0
        %5719 = vmatprep.subr.mxu0 0.0
        %5720 = vmatpush1.xpose.msra.mxu0 0.0
        %5721 = vmatprep.subr.mxu0 0.0
        %5722 = vmatpush1.xpose.msra.mxu0 0.0
        %5723 = vmatprep.subr.mxu0 0.0
        %5724 = vmatpush1.xpose.msra.mxu0 0.0
        %5725 = vmatprep.subr.mxu0 0.0
        %5726 = vmatpush1.xpose.msra.mxu0 0.0
        %5727 = vmatprep.subr.mxu0 0.0
        %5728 = vmatpush1.xpose.msra.mxu0 0.0
        %5729 = vmatprep.subr.mxu0 0.0
        %5730 = vmatpush1.xpose.msra.mxu0 0.0
        %5731 = vmatprep.subr.mxu0 0.0
        %5732 = vmatpush1.xpose.msra.mxu0 0.0
        %5733 = vmatprep.subr.mxu0 0.0
        %5734 = vmatpush1.xpose.msra.mxu0 0.0
        %5735 = vmatprep.subr.mxu0 0.0
        %5736 = vmatpush1.xpose.msra.mxu0 0.0
        %5737 = vmatprep.subr.mxu0 0.0
        %5738 = vmatpush1.xpose.msra.mxu0 0.0
        %5739 = vmatprep.subr.mxu0 0.0
        %5740 = vmatpush1.xpose.msra.mxu0 0.0
        %5741 = vmatprep.mubr.f32.mxu0 0.0
        %5742 = vmatmul.mubr.f32.gmra.mrb[0].mxu0 %v5673
        %v5743 = vpop.f32.mrb[0].mxu0
        %v5744 = vadd.f32 0.0, %v5743
        %v5745 = vpop.f32.mrb[0].mxu0
        %5746 = vdwg.mxu0
        %5747 = vrot.lane.b32.xlu0 %v3598, 96
        %v5748 = vpop.permute.xlu0 %5747
        %5749 = vrot.lane.b32.xlu0 %v3600, 96
        %v5750 = vpop.permute.xlu0 %5749
        %v5751 = vsel %vm3506, %v5748, 0
        %v5753 = vsel %vm3506, %v5750, 0
        %5755 = vmatprep.subr.mxu0 0.0
        %5756 = vmatpush1.xpose.msra.mxu0 %v5753
        %5757 = vmatprep.subr.mxu0 0.0
        %5758 = vmatpush1.xpose.msra.mxu0 0.0
        %5759 = vmatprep.subr.mxu0 0.0
        %5760 = vmatpush1.xpose.msra.mxu0 0.0
        %5761 = vmatprep.subr.mxu0 0.0
        %5762 = vmatpush1.xpose.msra.mxu0 0.0
        %5763 = vmatprep.subr.mxu0 0.0
        %5764 = vmatpush1.xpose.msra.mxu0 0.0
        %5765 = vmatprep.subr.mxu0 0.0
        %5766 = vmatpush1.xpose.msra.mxu0 0.0
        %5767 = vmatprep.subr.mxu0 0.0
        %5768 = vmatpush1.xpose.msra.mxu0 0.0
        %5769 = vmatprep.subr.mxu0 0.0
        %5770 = vmatpush1.xpose.msra.mxu0 0.0
        %5771 = vmatprep.subr.mxu0 0.0
        %5772 = vmatpush1.xpose.msra.mxu0 0.0
        %5773 = vmatprep.subr.mxu0 0.0
        %5774 = vmatpush1.xpose.msra.mxu0 0.0
        %5775 = vmatprep.subr.mxu0 0.0
        %5776 = vmatpush1.xpose.msra.mxu0 0.0
        %5777 = vmatprep.subr.mxu0 0.0
        %5778 = vmatpush1.xpose.msra.mxu0 0.0
        %5779 = vmatprep.subr.mxu0 0.0
        %5780 = vmatpush1.xpose.msra.mxu0 0.0
        %5781 = vmatprep.subr.mxu0 0.0
        %5782 = vmatpush1.xpose.msra.mxu0 0.0
        %5783 = vmatprep.subr.mxu0 0.0
        %5784 = vmatpush1.xpose.msra.mxu0 0.0
        %5785 = vmatprep.subr.mxu0 0.0
        %5786 = vmatpush1.xpose.msra.mxu0 0.0
        %5787 = vmatprep.subr.mxu0 0.0
        %5788 = vmatpush1.xpose.msra.mxu0 0.0
        %5789 = vmatprep.subr.mxu0 0.0
        %5790 = vmatpush1.xpose.msra.mxu0 0.0
        %5791 = vmatprep.subr.mxu0 0.0
        %5792 = vmatpush1.xpose.msra.mxu0 0.0
        %5793 = vmatprep.subr.mxu0 0.0
        %5794 = vmatpush1.xpose.msra.mxu0 0.0
        %5795 = vmatprep.subr.mxu0 0.0
        %5796 = vmatpush1.xpose.msra.mxu0 0.0
        %5797 = vmatprep.subr.mxu0 0.0
        %5798 = vmatpush1.xpose.msra.mxu0 0.0
        %5799 = vmatprep.subr.mxu0 0.0
        %5800 = vmatpush1.xpose.msra.mxu0 0.0
        %5801 = vmatprep.subr.mxu0 0.0
        %5802 = vmatpush1.xpose.msra.mxu0 0.0
        %5803 = vmatprep.subr.mxu0 0.0
        %5804 = vmatpush1.xpose.msra.mxu0 0.0
        %5805 = vmatprep.subr.mxu0 0.0
        %5806 = vmatpush1.xpose.msra.mxu0 0.0
        %5807 = vmatprep.subr.mxu0 0.0
        %5808 = vmatpush1.xpose.msra.mxu0 0.0
        %5809 = vmatprep.subr.mxu0 0.0
        %5810 = vmatpush1.xpose.msra.mxu0 0.0
        %5811 = vmatprep.subr.mxu0 0.0
        %5812 = vmatpush1.xpose.msra.mxu0 0.0
        %5813 = vmatprep.subr.mxu0 0.0
        %5814 = vmatpush1.xpose.msra.mxu0 0.0
        %5815 = vmatprep.subr.mxu0 0.0
        %5816 = vmatpush1.xpose.msra.mxu0 0.0
        %5817 = vmatprep.subr.mxu0 0.0
        %5818 = vmatpush1.xpose.msra.mxu0 0.0
        %5819 = vmatprep.mubr.f32.mxu0 0.0
        %5820 = vmatmul.mubr.f32.gmra.mrb[0].mxu0 %v5751
        %v5821 = vpop.f32.mrb[0].mxu0
        %v5822 = vadd.f32 0.0, %v5821
        %v5823 = vpop.f32.mrb[0].mxu0
        %5824 = vdwg.mxu0
        %5825 = vrot.lane.b32.xlu0 %v3604, 96
        %v5826 = vpop.permute.xlu0 %5825
        %5827 = vrot.lane.b32.xlu0 %v3606, 96
        %v5828 = vpop.permute.xlu0 %5827
        %v5829 = vsel %vm3506, %v5826, 0
        %v5831 = vsel %vm3506, %v5828, 0
        %5833 = vmatprep.subr.mxu0 0.0
        %5834 = vmatpush1.xpose.msra.mxu0 %v5831
        %5835 = vmatprep.subr.mxu0 0.0
        %5836 = vmatpush1.xpose.msra.mxu0 0.0
        %5837 = vmatprep.subr.mxu0 0.0
        %5838 = vmatpush1.xpose.msra.mxu0 0.0
        %5839 = vmatprep.subr.mxu0 0.0
        %5840 = vmatpush1.xpose.msra.mxu0 0.0
        %5841 = vmatprep.subr.mxu0 0.0
        %5842 = vmatpush1.xpose.msra.mxu0 0.0
        %5843 = vmatprep.subr.mxu0 0.0
        %5844 = vmatpush1.xpose.msra.mxu0 0.0
        %5845 = vmatprep.subr.mxu0 0.0
        %5846 = vmatpush1.xpose.msra.mxu0 0.0
        %5847 = vmatprep.subr.mxu0 0.0
        %5848 = vmatpush1.xpose.msra.mxu0 0.0
        %5849 = vmatprep.subr.mxu0 0.0
        %5850 = vmatpush1.xpose.msra.mxu0 0.0
        %5851 = vmatprep.subr.mxu0 0.0
        %5852 = vmatpush1.xpose.msra.mxu0 0.0
        %5853 = vmatprep.subr.mxu0 0.0
        %5854 = vmatpush1.xpose.msra.mxu0 0.0
        %5855 = vmatprep.subr.mxu0 0.0
        %5856 = vmatpush1.xpose.msra.mxu0 0.0
        %5857 = vmatprep.subr.mxu0 0.0
        %5858 = vmatpush1.xpose.msra.mxu0 0.0
        %5859 = vmatprep.subr.mxu0 0.0
        %5860 = vmatpush1.xpose.msra.mxu0 0.0
        %5861 = vmatprep.subr.mxu0 0.0
        %5862 = vmatpush1.xpose.msra.mxu0 0.0
        %5863 = vmatprep.subr.mxu0 0.0
        %5864 = vmatpush1.xpose.msra.mxu0 0.0
        %5865 = vmatprep.subr.mxu0 0.0
        %5866 = vmatpush1.xpose.msra.mxu0 0.0
        %5867 = vmatprep.subr.mxu0 0.0
        %5868 = vmatpush1.xpose.msra.mxu0 0.0
        %5869 = vmatprep.subr.mxu0 0.0
        %5870 = vmatpush1.xpose.msra.mxu0 0.0
        %5871 = vmatprep.subr.mxu0 0.0
        %5872 = vmatpush1.xpose.msra.mxu0 0.0
        %5873 = vmatprep.subr.mxu0 0.0
        %5874 = vmatpush1.xpose.msra.mxu0 0.0
        %5875 = vmatprep.subr.mxu0 0.0
        %5876 = vmatpush1.xpose.msra.mxu0 0.0
        %5877 = vmatprep.subr.mxu0 0.0
        %5878 = vmatpush1.xpose.msra.mxu0 0.0
        %5879 = vmatprep.subr.mxu0 0.0
        %5880 = vmatpush1.xpose.msra.mxu0 0.0
        %5881 = vmatprep.subr.mxu0 0.0
        %5882 = vmatpush1.xpose.msra.mxu0 0.0
        %5883 = vmatprep.subr.mxu0 0.0
        %5884 = vmatpush1.xpose.msra.mxu0 0.0
        %5885 = vmatprep.subr.mxu0 0.0
        %5886 = vmatpush1.xpose.msra.mxu0 0.0
        %5887 = vmatprep.subr.mxu0 0.0
        %5888 = vmatpush1.xpose.msra.mxu0 0.0
        %5889 = vmatprep.subr.mxu0 0.0
        %5890 = vmatpush1.xpose.msra.mxu0 0.0
        %5891 = vmatprep.subr.mxu0 0.0
        %5892 = vmatpush1.xpose.msra.mxu0 0.0
        %5893 = vmatprep.subr.mxu0 0.0
        %5894 = vmatpush1.xpose.msra.mxu0 0.0
        %5895 = vmatprep.subr.mxu0 0.0
        %5896 = vmatpush1.xpose.msra.mxu0 0.0
        %5897 = vmatprep.mubr.f32.mxu0 0.0
        %5898 = vmatmul.mubr.f32.gmra.mrb[0].mxu0 %v5829
        %v5899 = vpop.f32.mrb[0].mxu0
        %v5900 = vadd.f32 0.0, %v5899
        %v5901 = vpop.f32.mrb[0].mxu0
        %5902 = vdwg.mxu0
        %5935 = vrot.lane.b32.xlu0 %v4357, 96
        %v5936 = vpop.permute.xlu0 %5935
        %5937 = vrot.lane.b32.xlu0 %v4358, 96
        %v5938 = vpop.permute.xlu0 %5937
        %5939 = vrot.lane.b32.xlu0 %v4359, 96
        %v5940 = vpop.permute.xlu0 %5939
        %5941 = vrot.lane.b32.xlu0 %v4360, 96
        %v5942 = vpop.permute.xlu0 %5941
        %5943 = vrot.lane.b32.xlu0 %v4361, 96
        %v5944 = vpop.permute.xlu0 %5943
        %5945 = vrot.lane.b32.xlu0 %v4362, 96
        %v5946 = vpop.permute.xlu0 %5945
        %5947 = vrot.lane.b32.xlu0 %v4363, 96
        %v5948 = vpop.permute.xlu0 %5947
        %5949 = vrot.lane.b32.xlu0 %v4364, 96
        %v5950 = vpop.permute.xlu0 %5949
        %5951 = vrot.lane.b32.xlu0 %v4365, 96
        %v5952 = vpop.permute.xlu0 %5951
        %5953 = vrot.lane.b32.xlu0 %v4366, 96
        %v5954 = vpop.permute.xlu0 %5953
        %5955 = vrot.lane.b32.xlu0 %v4367, 96
        %v5956 = vpop.permute.xlu0 %5955
        %5957 = vrot.lane.b32.xlu0 %v4368, 96
        %v5958 = vpop.permute.xlu0 %5957
        %5959 = vrot.lane.b32.xlu0 %v4369, 96
        %v5960 = vpop.permute.xlu0 %5959
        %5961 = vrot.lane.b32.xlu0 %v4370, 96
        %v5962 = vpop.permute.xlu0 %5961
        %5963 = vrot.lane.b32.xlu0 %v4371, 96
        %v5964 = vpop.permute.xlu0 %5963
        %5965 = vrot.lane.b32.xlu0 %v4372, 96
        %v5966 = vpop.permute.xlu0 %5965
        %5967 = vrot.lane.b32.xlu0 %v4373, 96
        %v5968 = vpop.permute.xlu0 %5967
        %5969 = vrot.lane.b32.xlu0 %v4374, 96
        %v5970 = vpop.permute.xlu0 %5969
        %5971 = vrot.lane.b32.xlu0 %v4375, 96
        %v5972 = vpop.permute.xlu0 %5971
        %5973 = vrot.lane.b32.xlu0 %v4376, 96
        %v5974 = vpop.permute.xlu0 %5973
        %5975 = vrot.lane.b32.xlu0 %v4377, 96
        %v5976 = vpop.permute.xlu0 %5975
        %5977 = vrot.lane.b32.xlu0 %v4378, 96
        %v5978 = vpop.permute.xlu0 %5977
        %5979 = vrot.lane.b32.xlu0 %v4379, 96
        %v5980 = vpop.permute.xlu0 %5979
        %5981 = vrot.lane.b32.xlu0 %v4380, 96
        %v5982 = vpop.permute.xlu0 %5981
        %5983 = vrot.lane.b32.xlu0 %v4381, 96
        %v5984 = vpop.permute.xlu0 %5983
        %5985 = vrot.lane.b32.xlu0 %v4382, 96
        %v5986 = vpop.permute.xlu0 %5985
        %5987 = vrot.lane.b32.xlu0 %v4383, 96
        %v5988 = vpop.permute.xlu0 %5987
        %5989 = vrot.lane.b32.xlu0 %v4384, 96
        %v5990 = vpop.permute.xlu0 %5989
        %5991 = vrot.lane.b32.xlu0 %v4385, 96
        %v5992 = vpop.permute.xlu0 %5991
        %5993 = vrot.lane.b32.xlu0 %v4386, 96
        %v5994 = vpop.permute.xlu0 %5993
        %5995 = vrot.lane.b32.xlu0 %v4387, 96
        %v5996 = vpop.permute.xlu0 %5995
        %5997 = vrot.lane.b32.xlu0 %v4388, 96
        %v5998 = vpop.permute.xlu0 %5997
        %v6031 = vsel %vm3506, %v5936, 0.0
        %6032 = vadd.xlane.f32.xlu0 %v6031
        %v6033 = vpop.xlane.xlu0 %6032
        %v6034 = vsel %vm3506, %v5938, 0.0
        %6035 = vadd.xlane.f32.xlu0 %v6034
        %v6036 = vpop.xlane.xlu0 %6035
        %v6037 = vsel %vm3506, %v5940, 0.0
        %6038 = vadd.xlane.f32.xlu0 %v6037
        %v6039 = vpop.xlane.xlu0 %6038
        %v6040 = vsel %vm3506, %v5942, 0.0
        %6041 = vadd.xlane.f32.xlu0 %v6040
        %v6042 = vpop.xlane.xlu0 %6041
        %v6043 = vsel %vm3506, %v5944, 0.0
        %6044 = vadd.xlane.f32.xlu0 %v6043
        %v6045 = vpop.xlane.xlu0 %6044
        %v6046 = vsel %vm3506, %v5946, 0.0
        %6047 = vadd.xlane.f32.xlu0 %v6046
        %v6048 = vpop.xlane.xlu0 %6047
        %v6049 = vsel %vm3506, %v5948, 0.0
        %6050 = vadd.xlane.f32.xlu0 %v6049
        %v6051 = vpop.xlane.xlu0 %6050
        %v6052 = vsel %vm3506, %v5950, 0.0
        %6053 = vadd.xlane.f32.xlu0 %v6052
        %v6054 = vpop.xlane.xlu0 %6053
        %v6055 = vsel %vm3506, %v5952, 0.0
        %6056 = vadd.xlane.f32.xlu0 %v6055
        %v6057 = vpop.xlane.xlu0 %6056
        %v6058 = vsel %vm3506, %v5954, 0.0
        %6059 = vadd.xlane.f32.xlu0 %v6058
        %v6060 = vpop.xlane.xlu0 %6059
        %v6061 = vsel %vm3506, %v5956, 0.0
        %6062 = vadd.xlane.f32.xlu0 %v6061
        %v6063 = vpop.xlane.xlu0 %6062
        %v6064 = vsel %vm3506, %v5958, 0.0
        %6065 = vadd.xlane.f32.xlu0 %v6064
        %v6066 = vpop.xlane.xlu0 %6065
        %v6067 = vsel %vm3506, %v5960, 0.0
        %6068 = vadd.xlane.f32.xlu0 %v6067
        %v6069 = vpop.xlane.xlu0 %6068
        %v6070 = vsel %vm3506, %v5962, 0.0
        %6071 = vadd.xlane.f32.xlu0 %v6070
        %v6072 = vpop.xlane.xlu0 %6071
        %v6073 = vsel %vm3506, %v5964, 0.0
        %6074 = vadd.xlane.f32.xlu0 %v6073
        %v6075 = vpop.xlane.xlu0 %6074
        %v6076 = vsel %vm3506, %v5966, 0.0
        %6077 = vadd.xlane.f32.xlu0 %v6076
        %v6078 = vpop.xlane.xlu0 %6077
        %v6079 = vsel %vm3506, %v5968, 0.0
        %6080 = vadd.xlane.f32.xlu0 %v6079
        %v6081 = vpop.xlane.xlu0 %6080
        %v6082 = vsel %vm3506, %v5970, 0.0
        %6083 = vadd.xlane.f32.xlu0 %v6082
        %v6084 = vpop.xlane.xlu0 %6083
        %v6085 = vsel %vm3506, %v5972, 0.0
        %6086 = vadd.xlane.f32.xlu0 %v6085
        %v6087 = vpop.xlane.xlu0 %6086
        %v6088 = vsel %vm3506, %v5974, 0.0
        %6089 = vadd.xlane.f32.xlu0 %v6088
        %v6090 = vpop.xlane.xlu0 %6089
        %v6091 = vsel %vm3506, %v5976, 0.0
        %6092 = vadd.xlane.f32.xlu0 %v6091
        %v6093 = vpop.xlane.xlu0 %6092
        %v6094 = vsel %vm3506, %v5978, 0.0
        %6095 = vadd.xlane.f32.xlu0 %v6094
        %v6096 = vpop.xlane.xlu0 %6095
        %v6097 = vsel %vm3506, %v5980, 0.0
        %6098 = vadd.xlane.f32.xlu0 %v6097
        %v6099 = vpop.xlane.xlu0 %6098
        %v6100 = vsel %vm3506, %v5982, 0.0
        %6101 = vadd.xlane.f32.xlu0 %v6100
        %v6102 = vpop.xlane.xlu0 %6101
        %v6103 = vsel %vm3506, %v5984, 0.0
        %6104 = vadd.xlane.f32.xlu0 %v6103
        %v6105 = vpop.xlane.xlu0 %6104
        %v6106 = vsel %vm3506, %v5986, 0.0
        %6107 = vadd.xlane.f32.xlu0 %v6106
        %v6108 = vpop.xlane.xlu0 %6107
        %v6109 = vsel %vm3506, %v5988, 0.0
        %6110 = vadd.xlane.f32.xlu0 %v6109
        %v6111 = vpop.xlane.xlu0 %6110
        %v6112 = vsel %vm3506, %v5990, 0.0
        %6113 = vadd.xlane.f32.xlu0 %v6112
        %v6114 = vpop.xlane.xlu0 %6113
        %v6115 = vsel %vm3506, %v5992, 0.0
        %6116 = vadd.xlane.f32.xlu0 %v6115
        %v6117 = vpop.xlane.xlu0 %6116
        %v6118 = vsel %vm3506, %v5994, 0.0
        %6119 = vadd.xlane.f32.xlu0 %v6118
        %v6120 = vpop.xlane.xlu0 %6119
        %v6121 = vsel %vm3506, %v5996, 0.0
        %6122 = vadd.xlane.f32.xlu0 %v6121
        %v6123 = vpop.xlane.xlu0 %6122
        %v6124 = vsel %vm3506, %v5998, 0.0
        %6125 = vadd.xlane.f32.xlu0 %v6124
        %v6126 = vpop.xlane.xlu0 %6125
        %v6159 = vlaneseq
        %v6160 = vshrl.u32 %v6159, 7
        %v6161 = vsub.s32 %v4518, %v6160
        %v6162 = vrot.slane %v6033, %v6161
        %v6163 = vlaneseq
        %v6164 = vshrl.u32 %v6163, 7
        %v6165 = vsub.s32 %v4518, %v6164
        %v6166 = vrot.slane %v6036, %v6165
        %v6167 = vlaneseq
        %v6168 = vshrl.u32 %v6167, 7
        %v6169 = vsub.s32 %v4518, %v6168
        %v6170 = vrot.slane %v6039, %v6169
        %v6171 = vlaneseq
        %v6172 = vshrl.u32 %v6171, 7
        %v6173 = vsub.s32 %v4518, %v6172
        %v6174 = vrot.slane %v6042, %v6173
        %v6175 = vlaneseq
        %v6176 = vshrl.u32 %v6175, 7
        %v6177 = vsub.s32 %v4518, %v6176
        %v6178 = vrot.slane %v6045, %v6177
        %v6179 = vlaneseq
        %v6180 = vshrl.u32 %v6179, 7
        %v6181 = vsub.s32 %v4518, %v6180
        %v6182 = vrot.slane %v6048, %v6181
        %v6183 = vlaneseq
        %v6184 = vshrl.u32 %v6183, 7
        %v6185 = vsub.s32 %v4518, %v6184
        %v6186 = vrot.slane %v6051, %v6185
        %v6187 = vlaneseq
        %v6188 = vshrl.u32 %v6187, 7
        %v6189 = vsub.s32 %v4518, %v6188
        %v6190 = vrot.slane %v6054, %v6189
        %v6191 = vlaneseq
        %v6192 = vshrl.u32 %v6191, 7
        %v6193 = vsub.s32 %v4518, %v6192
        %v6194 = vrot.slane %v6057, %v6193
        %v6195 = vlaneseq
        %v6196 = vshrl.u32 %v6195, 7
        %v6197 = vsub.s32 %v4518, %v6196
        %v6198 = vrot.slane %v6060, %v6197
        %v6199 = vlaneseq
        %v6200 = vshrl.u32 %v6199, 7
        %v6201 = vsub.s32 %v4518, %v6200
        %v6202 = vrot.slane %v6063, %v6201
        %v6203 = vlaneseq
        %v6204 = vshrl.u32 %v6203, 7
        %v6205 = vsub.s32 %v4518, %v6204
        %v6206 = vrot.slane %v6066, %v6205
        %v6207 = vlaneseq
        %v6208 = vshrl.u32 %v6207, 7
        %v6209 = vsub.s32 %v4518, %v6208
        %v6210 = vrot.slane %v6069, %v6209
        %v6211 = vlaneseq
        %v6212 = vshrl.u32 %v6211, 7
        %v6213 = vsub.s32 %v4518, %v6212
        %v6214 = vrot.slane %v6072, %v6213
        %v6215 = vlaneseq
        %v6216 = vshrl.u32 %v6215, 7
        %v6217 = vsub.s32 %v4518, %v6216
        %v6218 = vrot.slane %v6075, %v6217
        %v6219 = vlaneseq
        %v6220 = vshrl.u32 %v6219, 7
        %v6221 = vsub.s32 %v4518, %v6220
        %v6222 = vrot.slane %v6078, %v6221
        %v6223 = vlaneseq
        %v6224 = vshrl.u32 %v6223, 7
        %v6225 = vsub.s32 %v4518, %v6224
        %v6226 = vrot.slane %v6081, %v6225
        %v6227 = vlaneseq
        %v6228 = vshrl.u32 %v6227, 7
        %v6229 = vsub.s32 %v4518, %v6228
        %v6230 = vrot.slane %v6084, %v6229
        %v6231 = vlaneseq
        %v6232 = vshrl.u32 %v6231, 7
        %v6233 = vsub.s32 %v4518, %v6232
        %v6234 = vrot.slane %v6087, %v6233
        %v6235 = vlaneseq
        %v6236 = vshrl.u32 %v6235, 7
        %v6237 = vsub.s32 %v4518, %v6236
        %v6238 = vrot.slane %v6090, %v6237
        %v6239 = vlaneseq
        %v6240 = vshrl.u32 %v6239, 7
        %v6241 = vsub.s32 %v4518, %v6240
        %v6242 = vrot.slane %v6093, %v6241
        %v6243 = vlaneseq
        %v6244 = vshrl.u32 %v6243, 7
        %v6245 = vsub.s32 %v4518, %v6244
        %v6246 = vrot.slane %v6096, %v6245
        %v6247 = vlaneseq
        %v6248 = vshrl.u32 %v6247, 7
        %v6249 = vsub.s32 %v4518, %v6248
        %v6250 = vrot.slane %v6099, %v6249
        %v6251 = vlaneseq
        %v6252 = vshrl.u32 %v6251, 7
        %v6253 = vsub.s32 %v4518, %v6252
        %v6254 = vrot.slane %v6102, %v6253
        %v6255 = vlaneseq
        %v6256 = vshrl.u32 %v6255, 7
        %v6257 = vsub.s32 %v4518, %v6256
        %v6258 = vrot.slane %v6105, %v6257
        %v6259 = vlaneseq
        %v6260 = vshrl.u32 %v6259, 7
        %v6261 = vsub.s32 %v4518, %v6260
        %v6262 = vrot.slane %v6108, %v6261
        %v6263 = vlaneseq
        %v6264 = vshrl.u32 %v6263, 7
        %v6265 = vsub.s32 %v4518, %v6264
        %v6266 = vrot.slane %v6111, %v6265
        %v6267 = vlaneseq
        %v6268 = vshrl.u32 %v6267, 7
        %v6269 = vsub.s32 %v4518, %v6268
        %v6270 = vrot.slane %v6114, %v6269
        %v6271 = vlaneseq
        %v6272 = vshrl.u32 %v6271, 7
        %v6273 = vsub.s32 %v4518, %v6272
        %v6274 = vrot.slane %v6117, %v6273
        %v6275 = vlaneseq
        %v6276 = vshrl.u32 %v6275, 7
        %v6277 = vsub.s32 %v4518, %v6276
        %v6278 = vrot.slane %v6120, %v6277
        %v6279 = vlaneseq
        %v6280 = vshrl.u32 %v6279, 7
        %v6281 = vsub.s32 %v4518, %v6280
        %v6282 = vrot.slane %v6123, %v6281
        %v6283 = vlaneseq
        %v6284 = vshrl.u32 %v6283, 7
        %v6285 = vsub.s32 %v4518, %v6284
        %v6286 = vrot.slane %v6126, %v6285
        %v6287 = vsel %vm4647, %v6166, %v6162
        %v6288 = vsel %vm4649, %v6170, %v6287
        %v6289 = vsel %vm4651, %v6174, %v6288
        %v6290 = vsel %vm4653, %v6178, %v6289
        %v6291 = vsel %vm4655, %v6182, %v6290
        %v6292 = vsel %vm4657, %v6186, %v6291
        %v6293 = vsel %vm4659, %v6190, %v6292
        %v6294 = vsel %vm4647, %v6198, %v6194
        %v6295 = vsel %vm4649, %v6202, %v6294
        %v6296 = vsel %vm4651, %v6206, %v6295
        %v6297 = vsel %vm4653, %v6210, %v6296
        %v6298 = vsel %vm4655, %v6214, %v6297
        %v6299 = vsel %vm4657, %v6218, %v6298
        %v6300 = vsel %vm4659, %v6222, %v6299
        %v6301 = vsel %vm4647, %v6230, %v6226
        %v6302 = vsel %vm4649, %v6234, %v6301
        %v6303 = vsel %vm4651, %v6238, %v6302
        %v6304 = vsel %vm4653, %v6242, %v6303
        %v6305 = vsel %vm4655, %v6246, %v6304
        %v6306 = vsel %vm4657, %v6250, %v6305
        %v6307 = vsel %vm4659, %v6254, %v6306
        %v6308 = vsel %vm4647, %v6262, %v6258
        %v6309 = vsel %vm4649, %v6266, %v6308
        %v6310 = vsel %vm4651, %v6270, %v6309
        %v6311 = vsel %vm4653, %v6274, %v6310
        %v6312 = vsel %vm4655, %v6278, %v6311
        %v6313 = vsel %vm4657, %v6282, %v6312
        %v6314 = vsel %vm4659, %v6286, %v6313
        %v6319 = vadd.f32 %v5666, %v6293
        %v6320 = vadd.f32 %v5744, %v6300
        %v6321 = vadd.f32 %v5822, %v6307
        %v6322 = vadd.f32 %v5900, %v6314
        %v6323 = vmul.f32 %v6319, 0.17677669
        %v6324 = vmul.f32 %v6320, 0.17677669
        %v6325 = vmul.f32 %v6321, 0.17677669
        %v6326 = vmul.f32 %v6322, 0.17677669
        %v6327 = vadd.f32 %v6323, %v400
        %v6328 = vadd.f32 %v6324, %v401
        %v6329 = vadd.f32 %v6325, %v402
        %v6330 = vadd.f32 %v6326, %v403
        %v6331 = vsel %vm4698, %v6327, -inf
        %6332 = vmax.xlane.f32.xlu0 %v6331
        %v6333 = vpop.xlane.xlu0 %6332
        %v6334 = vsel %vm4698, %v6328, -inf
        %6335 = vmax.xlane.f32.xlu0 %v6334
        %v6336 = vpop.xlane.xlu0 %6335
        %v6337 = vsel %vm4698, %v6329, -inf
        %6338 = vmax.xlane.f32.xlu0 %v6337
        %v6339 = vpop.xlane.xlu0 %6338
        %v6340 = vsel %vm4698, %v6330, -inf
        %6341 = vmax.xlane.f32.xlu0 %v6340
        %v6342 = vpop.xlane.xlu0 %6341
        %v6343 = vsub.f32 %v6327, %v6333
        %v6344 = vsub.f32 %v6328, %v6336
        %v6345 = vsub.f32 %v6329, %v6339
        %v6346 = vsub.f32 %v6330, %v6342
        %v6347 = vmul.f32 %v6343, 1.442695
        %v6348 = vpow.pop %v6347
        %v6349 = vmul.f32 %v6344, 1.442695
        %v6350 = vpow.pop %v6349
        %v6351 = vmul.f32 %v6345, 1.442695
        %v6352 = vpow.pop %v6351
        %v6353 = vmul.f32 %v6346, 1.442695
        %v6354 = vpow.pop %v6353
        %v6355 = vsel %vm4698, %v6348, 0.0
        %6356 = vadd.xlane.f32.xlu0 %v6355
        %v6357 = vpop.xlane.xlu0 %6356
        %v6358 = vsel %vm4698, %v6350, 0.0
        %6359 = vadd.xlane.f32.xlu0 %v6358
        %v6360 = vpop.xlane.xlu0 %6359
        %v6361 = vsel %vm4698, %v6352, 0.0
        %6362 = vadd.xlane.f32.xlu0 %v6361
        %v6363 = vpop.xlane.xlu0 %6362
        %v6364 = vsel %vm4698, %v6354, 0.0
        %6365 = vadd.xlane.f32.xlu0 %v6364
        %v6366 = vpop.xlane.xlu0 %6365
        %v6367 = vrcp.pop %v6357
        %v6368 = vrcp.pop %v6360
        %v6369 = vrcp.pop %v6363
        %v6370 = vrcp.pop %v6366
        %v6371 = vmul.f32 %v6348, %v6367
        %v6372 = vmul.f32 %v6350, %v6368
        %v6373 = vmul.f32 %v6352, %v6369
        %v6374 = vmul.f32 %v6354, %v6370
        %v6375 = vmul.f32 %v6371, %v408
        %v6376 = vmul.f32 %v6372, %v409
        %v6377 = vmul.f32 %v6373, %v410
        %v6378 = vmul.f32 %v6374, %v411
        %6380 = vrot.lane.b32.xlu0 %v3675, 96
        %v6381 = vpop.permute.xlu0 %6380
        %v6384 = vsel %vm4698, %v6375, 0
        %6386 = vmatprep.subr.mxu0 0.0
        %6387 = vmatpush1.msra.mxu0 %v6381
        %6388 = vmatprep.subr.mxu0 0.0
        %6389 = vmatpush1.msra.mxu0 0.0
        %6390 = vmatprep.subr.mxu0 0.0
        %6391 = vmatpush1.msra.mxu0 0.0
        %6392 = vmatprep.subr.mxu0 0.0
        %6393 = vmatpush1.msra.mxu0 0.0
        %6394 = vmatprep.subr.mxu0 0.0
        %6395 = vmatpush1.msra.mxu0 0.0
        %6396 = vmatprep.subr.mxu0 0.0
        %6397 = vmatpush1.msra.mxu0 0.0
        %6398 = vmatprep.subr.mxu0 0.0
        %6399 = vmatpush1.msra.mxu0 0.0
        %6400 = vmatprep.subr.mxu0 0.0
        %6401 = vmatpush1.msra.mxu0 0.0
        %6402 = vmatprep.subr.mxu0 0.0
        %6403 = vmatpush1.msra.mxu0 0.0
        %6404 = vmatprep.subr.mxu0 0.0
        %6405 = vmatpush1.msra.mxu0 0.0
        %6406 = vmatprep.subr.mxu0 0.0
        %6407 = vmatpush1.msra.mxu0 0.0
        %6408 = vmatprep.subr.mxu0 0.0
        %6409 = vmatpush1.msra.mxu0 0.0
        %6410 = vmatprep.subr.mxu0 0.0
        %6411 = vmatpush1.msra.mxu0 0.0
        %6412 = vmatprep.subr.mxu0 0.0
        %6413 = vmatpush1.msra.mxu0 0.0
        %6414 = vmatprep.subr.mxu0 0.0
        %6415 = vmatpush1.msra.mxu0 0.0
        %6416 = vmatprep.subr.mxu0 0.0
        %6417 = vmatpush1.msra.mxu0 0.0
        %6418 = vmatprep.subr.mxu0 0.0
        %6419 = vmatpush1.msra.mxu0 0.0
        %6420 = vmatprep.subr.mxu0 0.0
        %6421 = vmatpush1.msra.mxu0 0.0
        %6422 = vmatprep.subr.mxu0 0.0
        %6423 = vmatpush1.msra.mxu0 0.0
        %6424 = vmatprep.subr.mxu0 0.0
        %6425 = vmatpush1.msra.mxu0 0.0
        %6426 = vmatprep.subr.mxu0 0.0
        %6427 = vmatpush1.msra.mxu0 0.0
        %6428 = vmatprep.subr.mxu0 0.0
        %6429 = vmatpush1.msra.mxu0 0.0
        %6430 = vmatprep.subr.mxu0 0.0
        %6431 = vmatpush1.msra.mxu0 0.0
        %6432 = vmatprep.subr.mxu0 0.0
        %6433 = vmatpush1.msra.mxu0 0.0
        %6434 = vmatprep.subr.mxu0 0.0
        %6435 = vmatpush1.msra.mxu0 0.0
        %6436 = vmatprep.subr.mxu0 0.0
        %6437 = vmatpush1.msra.mxu0 0.0
        %6438 = vmatprep.subr.mxu0 0.0
        %6439 = vmatpush1.msra.mxu0 0.0
        %6440 = vmatprep.subr.mxu0 0.0
        %6441 = vmatpush1.msra.mxu0 0.0
        %6442 = vmatprep.subr.mxu0 0.0
        %6443 = vmatpush1.msra.mxu0 0.0
        %6444 = vmatprep.subr.mxu0 0.0
        %6445 = vmatpush1.msra.mxu0 0.0
        %6446 = vmatprep.subr.mxu0 0.0
        %6447 = vmatpush1.msra.mxu0 0.0
        %6448 = vmatprep.subr.mxu0 0.0
        %6449 = vmatpush1.msra.mxu0 0.0
        %6450 = vmatprep.mubr.f32.mxu0 0.0
        %6451 = vmatmul.mubr.f32.gmra.mrb[0].mxu0 %v6384
        %v6452 = vpop.f32.mrb[0].mxu0
        %v6453 = vadd.f32 0.0, %v6452
        %v6454 = vpop.f32.mrb[0].mxu0
        %6455 = vdwg.mxu0
        %6457 = vrot.lane.b32.xlu0 %v3681, 96
        %v6458 = vpop.permute.xlu0 %6457
        %v6461 = vsel %vm4698, %v6376, 0
        %6463 = vmatprep.subr.mxu0 0.0
        %6464 = vmatpush1.msra.mxu0 %v6458
        %6465 = vmatprep.subr.mxu0 0.0
        %6466 = vmatpush1.msra.mxu0 0.0
        %6467 = vmatprep.subr.mxu0 0.0
        %6468 = vmatpush1.msra.mxu0 0.0
        %6469 = vmatprep.subr.mxu0 0.0
        %6470 = vmatpush1.msra.mxu0 0.0
        %6471 = vmatprep.subr.mxu0 0.0
        %6472 = vmatpush1.msra.mxu0 0.0
        %6473 = vmatprep.subr.mxu0 0.0
        %6474 = vmatpush1.msra.mxu0 0.0
        %6475 = vmatprep.subr.mxu0 0.0
        %6476 = vmatpush1.msra.mxu0 0.0
        %6477 = vmatprep.subr.mxu0 0.0
        %6478 = vmatpush1.msra.mxu0 0.0
        %6479 = vmatprep.subr.mxu0 0.0
        %6480 = vmatpush1.msra.mxu0 0.0
        %6481 = vmatprep.subr.mxu0 0.0
        %6482 = vmatpush1.msra.mxu0 0.0
        %6483 = vmatprep.subr.mxu0 0.0
        %6484 = vmatpush1.msra.mxu0 0.0
        %6485 = vmatprep.subr.mxu0 0.0
        %6486 = vmatpush1.msra.mxu0 0.0
        %6487 = vmatprep.subr.mxu0 0.0
        %6488 = vmatpush1.msra.mxu0 0.0
        %6489 = vmatprep.subr.mxu0 0.0
        %6490 = vmatpush1.msra.mxu0 0.0
        %6491 = vmatprep.subr.mxu0 0.0
        %6492 = vmatpush1.msra.mxu0 0.0
        %6493 = vmatprep.subr.mxu0 0.0
        %6494 = vmatpush1.msra.mxu0 0.0
        %6495 = vmatprep.subr.mxu0 0.0
        %6496 = vmatpush1.msra.mxu0 0.0
        %6497 = vmatprep.subr.mxu0 0.0
        %6498 = vmatpush1.msra.mxu0 0.0
        %6499 = vmatprep.subr.mxu0 0.0
        %6500 = vmatpush1.msra.mxu0 0.0
        %6501 = vmatprep.subr.mxu0 0.0
        %6502 = vmatpush1.msra.mxu0 0.0
        %6503 = vmatprep.subr.mxu0 0.0
        %6504 = vmatpush1.msra.mxu0 0.0
        %6505 = vmatprep.subr.mxu0 0.0
        %6506 = vmatpush1.msra.mxu0 0.0
        %6507 = vmatprep.subr.mxu0 0.0
        %6508 = vmatpush1.msra.mxu0 0.0
        %6509 = vmatprep.subr.mxu0 0.0
        %6510 = vmatpush1.msra.mxu0 0.0
        %6511 = vmatprep.subr.mxu0 0.0
        %6512 = vmatpush1.msra.mxu0 0.0
        %6513 = vmatprep.subr.mxu0 0.0
        %6514 = vmatpush1.msra.mxu0 0.0
        %6515 = vmatprep.subr.mxu0 0.0
        %6516 = vmatpush1.msra.mxu0 0.0
        %6517 = vmatprep.subr.mxu0 0.0
        %6518 = vmatpush1.msra.mxu0 0.0
        %6519 = vmatprep.subr.mxu0 0.0
        %6520 = vmatpush1.msra.mxu0 0.0
        %6521 = vmatprep.subr.mxu0 0.0
        %6522 = vmatpush1.msra.mxu0 0.0
        %6523 = vmatprep.subr.mxu0 0.0
        %6524 = vmatpush1.msra.mxu0 0.0
        %6525 = vmatprep.subr.mxu0 0.0
        %6526 = vmatpush1.msra.mxu0 0.0
        %6527 = vmatprep.mubr.f32.mxu0 0.0
        %6528 = vmatmul.mubr.f32.gmra.mrb[0].mxu0 %v6461
        %v6529 = vpop.f32.mrb[0].mxu0
        %v6530 = vadd.f32 0.0, %v6529
        %v6531 = vpop.f32.mrb[0].mxu0
        %6532 = vdwg.mxu0
        %6534 = vrot.lane.b32.xlu0 %v3687, 96
        %v6535 = vpop.permute.xlu0 %6534
        %v6538 = vsel %vm4698, %v6377, 0
        %6540 = vmatprep.subr.mxu0 0.0
        %6541 = vmatpush1.msra.mxu0 %v6535
        %6542 = vmatprep.subr.mxu0 0.0
        %6543 = vmatpush1.msra.mxu0 0.0
        %6544 = vmatprep.subr.mxu0 0.0
        %6545 = vmatpush1.msra.mxu0 0.0
        %6546 = vmatprep.subr.mxu0 0.0
        %6547 = vmatpush1.msra.mxu0 0.0
        %6548 = vmatprep.subr.mxu0 0.0
        %6549 = vmatpush1.msra.mxu0 0.0
        %6550 = vmatprep.subr.mxu0 0.0
        %6551 = vmatpush1.msra.mxu0 0.0
        %6552 = vmatprep.subr.mxu0 0.0
        %6553 = vmatpush1.msra.mxu0 0.0
        %6554 = vmatprep.subr.mxu0 0.0
        %6555 = vmatpush1.msra.mxu0 0.0
        %6556 = vmatprep.subr.mxu0 0.0
        %6557 = vmatpush1.msra.mxu0 0.0
        %6558 = vmatprep.subr.mxu0 0.0
        %6559 = vmatpush1.msra.mxu0 0.0
        %6560 = vmatprep.subr.mxu0 0.0
        %6561 = vmatpush1.msra.mxu0 0.0
        %6562 = vmatprep.subr.mxu0 0.0
        %6563 = vmatpush1.msra.mxu0 0.0
        %6564 = vmatprep.subr.mxu0 0.0
        %6565 = vmatpush1.msra.mxu0 0.0
        %6566 = vmatprep.subr.mxu0 0.0
        %6567 = vmatpush1.msra.mxu0 0.0
        %6568 = vmatprep.subr.mxu0 0.0
        %6569 = vmatpush1.msra.mxu0 0.0
        %6570 = vmatprep.subr.mxu0 0.0
        %6571 = vmatpush1.msra.mxu0 0.0
        %6572 = vmatprep.subr.mxu0 0.0
        %6573 = vmatpush1.msra.mxu0 0.0
        %6574 = vmatprep.subr.mxu0 0.0
        %6575 = vmatpush1.msra.mxu0 0.0
        %6576 = vmatprep.subr.mxu0 0.0
        %6577 = vmatpush1.msra.mxu0 0.0
        %6578 = vmatprep.subr.mxu0 0.0
        %6579 = vmatpush1.msra.mxu0 0.0
        %6580 = vmatprep.subr.mxu0 0.0
        %6581 = vmatpush1.msra.mxu0 0.0
        %6582 = vmatprep.subr.mxu0 0.0
        %6583 = vmatpush1.msra.mxu0 0.0
        %6584 = vmatprep.subr.mxu0 0.0
        %6585 = vmatpush1.msra.mxu0 0.0
        %6586 = vmatprep.subr.mxu0 0.0
        %6587 = vmatpush1.msra.mxu0 0.0
        %6588 = vmatprep.subr.mxu0 0.0
        %6589 = vmatpush1.msra.mxu0 0.0
        %6590 = vmatprep.subr.mxu0 0.0
        %6591 = vmatpush1.msra.mxu0 0.0
        %6592 = vmatprep.subr.mxu0 0.0
        %6593 = vmatpush1.msra.mxu0 0.0
        %6594 = vmatprep.subr.mxu0 0.0
        %6595 = vmatpush1.msra.mxu0 0.0
        %6596 = vmatprep.subr.mxu0 0.0
        %6597 = vmatpush1.msra.mxu0 0.0
        %6598 = vmatprep.subr.mxu0 0.0
        %6599 = vmatpush1.msra.mxu0 0.0
        %6600 = vmatprep.subr.mxu0 0.0
        %6601 = vmatpush1.msra.mxu0 0.0
        %6602 = vmatprep.subr.mxu0 0.0
        %6603 = vmatpush1.msra.mxu0 0.0
        %6604 = vmatprep.mubr.f32.mxu0 0.0
        %6605 = vmatmul.mubr.f32.gmra.mrb[0].mxu0 %v6538
        %v6606 = vpop.f32.mrb[0].mxu0
        %v6607 = vadd.f32 0.0, %v6606
        %v6608 = vpop.f32.mrb[0].mxu0
        %6609 = vdwg.mxu0
        %6611 = vrot.lane.b32.xlu0 %v3693, 96
        %v6612 = vpop.permute.xlu0 %6611
        %v6615 = vsel %vm4698, %v6378, 0
        %6617 = vmatprep.subr.mxu0 0.0
        %6618 = vmatpush1.msra.mxu0 %v6612
        %6619 = vmatprep.subr.mxu0 0.0
        %6620 = vmatpush1.msra.mxu0 0.0
        %6621 = vmatprep.subr.mxu0 0.0
        %6622 = vmatpush1.msra.mxu0 0.0
        %6623 = vmatprep.subr.mxu0 0.0
        %6624 = vmatpush1.msra.mxu0 0.0
        %6625 = vmatprep.subr.mxu0 0.0
        %6626 = vmatpush1.msra.mxu0 0.0
        %6627 = vmatprep.subr.mxu0 0.0
        %6628 = vmatpush1.msra.mxu0 0.0
        %6629 = vmatprep.subr.mxu0 0.0
        %6630 = vmatpush1.msra.mxu0 0.0
        %6631 = vmatprep.subr.mxu0 0.0
        %6632 = vmatpush1.msra.mxu0 0.0
        %6633 = vmatprep.subr.mxu0 0.0
        %6634 = vmatpush1.msra.mxu0 0.0
        %6635 = vmatprep.subr.mxu0 0.0
        %6636 = vmatpush1.msra.mxu0 0.0
        %6637 = vmatprep.subr.mxu0 0.0
        %6638 = vmatpush1.msra.mxu0 0.0
        %6639 = vmatprep.subr.mxu0 0.0
        %6640 = vmatpush1.msra.mxu0 0.0
        %6641 = vmatprep.subr.mxu0 0.0
        %6642 = vmatpush1.msra.mxu0 0.0
        %6643 = vmatprep.subr.mxu0 0.0
        %6644 = vmatpush1.msra.mxu0 0.0
        %6645 = vmatprep.subr.mxu0 0.0
        %6646 = vmatpush1.msra.mxu0 0.0
        %6647 = vmatprep.subr.mxu0 0.0
        %6648 = vmatpush1.msra.mxu0 0.0
        %6649 = vmatprep.subr.mxu0 0.0
        %6650 = vmatpush1.msra.mxu0 0.0
        %6651 = vmatprep.subr.mxu0 0.0
        %6652 = vmatpush1.msra.mxu0 0.0
        %6653 = vmatprep.subr.mxu0 0.0
        %6654 = vmatpush1.msra.mxu0 0.0
        %6655 = vmatprep.subr.mxu0 0.0
        %6656 = vmatpush1.msra.mxu0 0.0
        %6657 = vmatprep.subr.mxu0 0.0
        %6658 = vmatpush1.msra.mxu0 0.0
        %6659 = vmatprep.subr.mxu0 0.0
        %6660 = vmatpush1.msra.mxu0 0.0
        %6661 = vmatprep.subr.mxu0 0.0
        %6662 = vmatpush1.msra.mxu0 0.0
        %6663 = vmatprep.subr.mxu0 0.0
        %6664 = vmatpush1.msra.mxu0 0.0
        %6665 = vmatprep.subr.mxu0 0.0
        %6666 = vmatpush1.msra.mxu0 0.0
        %6667 = vmatprep.subr.mxu0 0.0
        %6668 = vmatpush1.msra.mxu0 0.0
        %6669 = vmatprep.subr.mxu0 0.0
        %6670 = vmatpush1.msra.mxu0 0.0
        %6671 = vmatprep.subr.mxu0 0.0
        %6672 = vmatpush1.msra.mxu0 0.0
        %6673 = vmatprep.subr.mxu0 0.0
        %6674 = vmatpush1.msra.mxu0 0.0
        %6675 = vmatprep.subr.mxu0 0.0
        %6676 = vmatpush1.msra.mxu0 0.0
        %6677 = vmatprep.subr.mxu0 0.0
        %6678 = vmatpush1.msra.mxu0 0.0
        %6679 = vmatprep.subr.mxu0 0.0
        %6680 = vmatpush1.msra.mxu0 0.0
        %6681 = vmatprep.mubr.f32.mxu0 0.0
        %6682 = vmatmul.mubr.f32.gmra.mrb[0].mxu0 %v6615
        %v6683 = vpop.f32.mrb[0].mxu0
        %v6684 = vadd.f32 0.0, %v6683
        %v6685 = vpop.f32.mrb[0].mxu0
        %6686 = vdwg.mxu0
        %v6687 = vlaneseq
        %v6688 = vshrl.u32 %v6687, 7
        %v6689 = vsub.s32 0, %v6688
        %v6690 = vrot.slane %v6375, %v6689
        %6692 = vbcast.lane.b32.xlu0 %v6690, 256
        %v6693 = vpop.permute.xlu0 %6692
        %v6694 = vlaneseq
        %v6695 = vshrl.u32 %v6694, 7
        %v6696 = vsub.s32 1, %v6695
        %v6697 = vrot.slane %v6375, %v6696
        %6699 = vbcast.lane.b32.xlu0 %v6697, 256
        %v6700 = vpop.permute.xlu0 %6699
        %v6701 = vlaneseq
        %v6702 = vshrl.u32 %v6701, 7
        %v6703 = vsub.s32 2, %v6702
        %v6704 = vrot.slane %v6375, %v6703
        %6706 = vbcast.lane.b32.xlu0 %v6704, 256
        %v6707 = vpop.permute.xlu0 %6706
        %v6708 = vlaneseq
        %v6709 = vshrl.u32 %v6708, 7
        %v6710 = vsub.s32 3, %v6709
        %v6711 = vrot.slane %v6375, %v6710
        %6713 = vbcast.lane.b32.xlu0 %v6711, 256
        %v6714 = vpop.permute.xlu0 %6713
        %v6715 = vlaneseq
        %v6716 = vshrl.u32 %v6715, 7
        %v6717 = vsub.s32 4, %v6716
        %v6718 = vrot.slane %v6375, %v6717
        %6720 = vbcast.lane.b32.xlu0 %v6718, 256
        %v6721 = vpop.permute.xlu0 %6720
        %v6722 = vlaneseq
        %v6723 = vshrl.u32 %v6722, 7
        %v6724 = vsub.s32 5, %v6723
        %v6725 = vrot.slane %v6375, %v6724
        %6727 = vbcast.lane.b32.xlu0 %v6725, 256
        %v6728 = vpop.permute.xlu0 %6727
        %v6729 = vlaneseq
        %v6730 = vshrl.u32 %v6729, 7
        %v6731 = vsub.s32 6, %v6730
        %v6732 = vrot.slane %v6375, %v6731
        %6734 = vbcast.lane.b32.xlu0 %v6732, 256
        %v6735 = vpop.permute.xlu0 %6734
        %v6736 = vlaneseq
        %v6737 = vshrl.u32 %v6736, 7
        %v6738 = vsub.s32 7, %v6737
        %v6739 = vrot.slane %v6375, %v6738
        %6741 = vbcast.lane.b32.xlu0 %v6739, 256
        %v6742 = vpop.permute.xlu0 %6741
        %v6743 = vlaneseq
        %v6744 = vshrl.u32 %v6743, 7
        %v6745 = vsub.s32 0, %v6744
        %v6746 = vrot.slane %v6376, %v6745
        %6748 = vbcast.lane.b32.xlu0 %v6746, 256
        %v6749 = vpop.permute.xlu0 %6748
        %v6750 = vlaneseq
        %v6751 = vshrl.u32 %v6750, 7
        %v6752 = vsub.s32 1, %v6751
        %v6753 = vrot.slane %v6376, %v6752
        %6755 = vbcast.lane.b32.xlu0 %v6753, 256
        %v6756 = vpop.permute.xlu0 %6755
        %v6757 = vlaneseq
        %v6758 = vshrl.u32 %v6757, 7
        %v6759 = vsub.s32 2, %v6758
        %v6760 = vrot.slane %v6376, %v6759
        %6762 = vbcast.lane.b32.xlu0 %v6760, 256
        %v6763 = vpop.permute.xlu0 %6762
        %v6764 = vlaneseq
        %v6765 = vshrl.u32 %v6764, 7
        %v6766 = vsub.s32 3, %v6765
        %v6767 = vrot.slane %v6376, %v6766
        %6769 = vbcast.lane.b32.xlu0 %v6767, 256
        %v6770 = vpop.permute.xlu0 %6769
        %v6771 = vlaneseq
        %v6772 = vshrl.u32 %v6771, 7
        %v6773 = vsub.s32 4, %v6772
        %v6774 = vrot.slane %v6376, %v6773
        %6776 = vbcast.lane.b32.xlu0 %v6774, 256
        %v6777 = vpop.permute.xlu0 %6776
        %v6778 = vlaneseq
        %v6779 = vshrl.u32 %v6778, 7
        %v6780 = vsub.s32 5, %v6779
        %v6781 = vrot.slane %v6376, %v6780
        %6783 = vbcast.lane.b32.xlu0 %v6781, 256
        %v6784 = vpop.permute.xlu0 %6783
        %v6785 = vlaneseq
        %v6786 = vshrl.u32 %v6785, 7
        %v6787 = vsub.s32 6, %v6786
        %v6788 = vrot.slane %v6376, %v6787
        %6790 = vbcast.lane.b32.xlu0 %v6788, 256
        %v6791 = vpop.permute.xlu0 %6790
        %v6792 = vlaneseq
        %v6793 = vshrl.u32 %v6792, 7
        %v6794 = vsub.s32 7, %v6793
        %v6795 = vrot.slane %v6376, %v6794
        %6797 = vbcast.lane.b32.xlu0 %v6795, 256
        %v6798 = vpop.permute.xlu0 %6797
        %v6799 = vlaneseq
        %v6800 = vshrl.u32 %v6799, 7
        %v6801 = vsub.s32 0, %v6800
        %v6802 = vrot.slane %v6377, %v6801
        %6804 = vbcast.lane.b32.xlu0 %v6802, 256
        %v6805 = vpop.permute.xlu0 %6804
        %v6806 = vlaneseq
        %v6807 = vshrl.u32 %v6806, 7
        %v6808 = vsub.s32 1, %v6807
        %v6809 = vrot.slane %v6377, %v6808
        %6811 = vbcast.lane.b32.xlu0 %v6809, 256
        %v6812 = vpop.permute.xlu0 %6811
        %v6813 = vlaneseq
        %v6814 = vshrl.u32 %v6813, 7
        %v6815 = vsub.s32 2, %v6814
        %v6816 = vrot.slane %v6377, %v6815
        %6818 = vbcast.lane.b32.xlu0 %v6816, 256
        %v6819 = vpop.permute.xlu0 %6818
        %v6820 = vlaneseq
        %v6821 = vshrl.u32 %v6820, 7
        %v6822 = vsub.s32 3, %v6821
        %v6823 = vrot.slane %v6377, %v6822
        %6825 = vbcast.lane.b32.xlu0 %v6823, 256
        %v6826 = vpop.permute.xlu0 %6825
        %v6827 = vlaneseq
        %v6828 = vshrl.u32 %v6827, 7
        %v6829 = vsub.s32 4, %v6828
        %v6830 = vrot.slane %v6377, %v6829
        %6832 = vbcast.lane.b32.xlu0 %v6830, 256
        %v6833 = vpop.permute.xlu0 %6832
        %v6834 = vlaneseq
        %v6835 = vshrl.u32 %v6834, 7
        %v6836 = vsub.s32 5, %v6835
        %v6837 = vrot.slane %v6377, %v6836
        %6839 = vbcast.lane.b32.xlu0 %v6837, 256
        %v6840 = vpop.permute.xlu0 %6839
        %v6841 = vlaneseq
        %v6842 = vshrl.u32 %v6841, 7
        %v6843 = vsub.s32 6, %v6842
        %v6844 = vrot.slane %v6377, %v6843
        %6846 = vbcast.lane.b32.xlu0 %v6844, 256
        %v6847 = vpop.permute.xlu0 %6846
        %v6848 = vlaneseq
        %v6849 = vshrl.u32 %v6848, 7
        %v6850 = vsub.s32 7, %v6849
        %v6851 = vrot.slane %v6377, %v6850
        %6853 = vbcast.lane.b32.xlu0 %v6851, 256
        %v6854 = vpop.permute.xlu0 %6853
        %v6855 = vlaneseq
        %v6856 = vshrl.u32 %v6855, 7
        %v6857 = vsub.s32 0, %v6856
        %v6858 = vrot.slane %v6378, %v6857
        %6860 = vbcast.lane.b32.xlu0 %v6858, 256
        %v6861 = vpop.permute.xlu0 %6860
        %v6862 = vlaneseq
        %v6863 = vshrl.u32 %v6862, 7
        %v6864 = vsub.s32 1, %v6863
        %v6865 = vrot.slane %v6378, %v6864
        %6867 = vbcast.lane.b32.xlu0 %v6865, 256
        %v6868 = vpop.permute.xlu0 %6867
        %v6869 = vlaneseq
        %v6870 = vshrl.u32 %v6869, 7
        %v6871 = vsub.s32 2, %v6870
        %v6872 = vrot.slane %v6378, %v6871
        %6874 = vbcast.lane.b32.xlu0 %v6872, 256
        %v6875 = vpop.permute.xlu0 %6874
        %v6876 = vlaneseq
        %v6877 = vshrl.u32 %v6876, 7
        %v6878 = vsub.s32 3, %v6877
        %v6879 = vrot.slane %v6378, %v6878
        %6881 = vbcast.lane.b32.xlu0 %v6879, 256
        %v6882 = vpop.permute.xlu0 %6881
        %v6883 = vlaneseq
        %v6884 = vshrl.u32 %v6883, 7
        %v6885 = vsub.s32 4, %v6884
        %v6886 = vrot.slane %v6378, %v6885
        %6888 = vbcast.lane.b32.xlu0 %v6886, 256
        %v6889 = vpop.permute.xlu0 %6888
        %v6890 = vlaneseq
        %v6891 = vshrl.u32 %v6890, 7
        %v6892 = vsub.s32 5, %v6891
        %v6893 = vrot.slane %v6378, %v6892
        %6895 = vbcast.lane.b32.xlu0 %v6893, 256
        %v6896 = vpop.permute.xlu0 %6895
        %v6897 = vlaneseq
        %v6898 = vshrl.u32 %v6897, 7
        %v6899 = vsub.s32 6, %v6898
        %v6900 = vrot.slane %v6378, %v6899
        %6902 = vbcast.lane.b32.xlu0 %v6900, 256
        %v6903 = vpop.permute.xlu0 %6902
        %v6904 = vlaneseq
        %v6905 = vshrl.u32 %v6904, 7
        %v6906 = vsub.s32 7, %v6905
        %v6907 = vrot.slane %v6378, %v6906
        %6909 = vbcast.lane.b32.xlu0 %v6907, 256
        %v6910 = vpop.permute.xlu0 %6909
        %v6911 = vmul.f32 %v6693, %v3422
        %v6912 = vmul.f32 %v6700, %v3423
        %v6913 = vmul.f32 %v6707, %v3424
        %v6914 = vmul.f32 %v6714, %v3425
        %v6915 = vmul.f32 %v6721, %v3426
        %v6916 = vmul.f32 %v6728, %v3427
        %v6917 = vmul.f32 %v6735, %v3428
        %v6918 = vmul.f32 %v6742, %v3429
        %v6919 = vmul.f32 %v6749, %v3430
        %v6920 = vmul.f32 %v6756, %v3431
        %v6921 = vmul.f32 %v6763, %v3432
        %v6922 = vmul.f32 %v6770, %v3433
        %v6923 = vmul.f32 %v6777, %v3434
        %v6924 = vmul.f32 %v6784, %v3435
        %v6925 = vmul.f32 %v6791, %v3436
        %v6926 = vmul.f32 %v6798, %v3437
        %v6927 = vmul.f32 %v6805, %v3438
        %v6928 = vmul.f32 %v6812, %v3439
        %v6929 = vmul.f32 %v6819, %v3440
        %v6930 = vmul.f32 %v6826, %v3441
        %v6931 = vmul.f32 %v6833, %v3442
        %v6932 = vmul.f32 %v6840, %v3443
        %v6933 = vmul.f32 %v6847, %v3444
        %v6934 = vmul.f32 %v6854, %v3445
        %v6935 = vmul.f32 %v6861, %v3446
        %v6936 = vmul.f32 %v6868, %v3447
        %v6937 = vmul.f32 %v6875, %v3448
        %v6938 = vmul.f32 %v6882, %v3449
        %v6939 = vmul.f32 %v6889, %v3450
        %v6940 = vmul.f32 %v6896, %v3451
        %v6941 = vmul.f32 %v6903, %v3452
        %v6942 = vmul.f32 %v6910, %v3453
        %vm6943 = vcmask 523520
        %v6944 = vsel %vm6943, %v6911, 0.0
        %v6945 = vrot.slane %v6944, 4
        %v6946 = vadd.f32 %v6944, %v6945
        %v6947 = vrot.slane %v6946, 2
        %v6948 = vadd.f32 %v6946, %v6947
        %v6949 = vrot.slane %v6948, 1
        %v6950 = vadd.f32 %v6948, %v6949
        %v6951 = vsel %vm6943, %v6912, 0.0
        %v6952 = vrot.slane %v6951, 4
        %v6953 = vadd.f32 %v6951, %v6952
        %v6954 = vrot.slane %v6953, 2
        %v6955 = vadd.f32 %v6953, %v6954
        %v6956 = vrot.slane %v6955, 1
        %v6957 = vadd.f32 %v6955, %v6956
        %v6958 = vsel %vm6943, %v6913, 0.0
        %v6959 = vrot.slane %v6958, 4
        %v6960 = vadd.f32 %v6958, %v6959
        %v6961 = vrot.slane %v6960, 2
        %v6962 = vadd.f32 %v6960, %v6961
        %v6963 = vrot.slane %v6962, 1
        %v6964 = vadd.f32 %v6962, %v6963
        %v6965 = vsel %vm6943, %v6914, 0.0
        %v6966 = vrot.slane %v6965, 4
        %v6967 = vadd.f32 %v6965, %v6966
        %v6968 = vrot.slane %v6967, 2
        %v6969 = vadd.f32 %v6967, %v6968
        %v6970 = vrot.slane %v6969, 1
        %v6971 = vadd.f32 %v6969, %v6970
        %v6972 = vsel %vm6943, %v6915, 0.0
        %v6973 = vrot.slane %v6972, 4
        %v6974 = vadd.f32 %v6972, %v6973
        %v6975 = vrot.slane %v6974, 2
        %v6976 = vadd.f32 %v6974, %v6975
        %v6977 = vrot.slane %v6976, 1
        %v6978 = vadd.f32 %v6976, %v6977
        %v6979 = vsel %vm6943, %v6916, 0.0
        %v6980 = vrot.slane %v6979, 4
        %v6981 = vadd.f32 %v6979, %v6980
        %v6982 = vrot.slane %v6981, 2
        %v6983 = vadd.f32 %v6981, %v6982
        %v6984 = vrot.slane %v6983, 1
        %v6985 = vadd.f32 %v6983, %v6984
        %v6986 = vsel %vm6943, %v6917, 0.0
        %v6987 = vrot.slane %v6986, 4
        %v6988 = vadd.f32 %v6986, %v6987
        %v6989 = vrot.slane %v6988, 2
        %v6990 = vadd.f32 %v6988, %v6989
        %v6991 = vrot.slane %v6990, 1
        %v6992 = vadd.f32 %v6990, %v6991
        %v6993 = vsel %vm6943, %v6918, 0.0
        %v6994 = vrot.slane %v6993, 4
        %v6995 = vadd.f32 %v6993, %v6994
        %v6996 = vrot.slane %v6995, 2
        %v6997 = vadd.f32 %v6995, %v6996
        %v6998 = vrot.slane %v6997, 1
        %v6999 = vadd.f32 %v6997, %v6998
        %v7000 = vsel %vm6943, %v6919, 0.0
        %v7001 = vrot.slane %v7000, 4
        %v7002 = vadd.f32 %v7000, %v7001
        %v7003 = vrot.slane %v7002, 2
        %v7004 = vadd.f32 %v7002, %v7003
        %v7005 = vrot.slane %v7004, 1
        %v7006 = vadd.f32 %v7004, %v7005
        %v7007 = vsel %vm6943, %v6920, 0.0
        %v7008 = vrot.slane %v7007, 4
        %v7009 = vadd.f32 %v7007, %v7008
        %v7010 = vrot.slane %v7009, 2
        %v7011 = vadd.f32 %v7009, %v7010
        %v7012 = vrot.slane %v7011, 1
        %v7013 = vadd.f32 %v7011, %v7012
        %v7014 = vsel %vm6943, %v6921, 0.0
        %v7015 = vrot.slane %v7014, 4
        %v7016 = vadd.f32 %v7014, %v7015
        %v7017 = vrot.slane %v7016, 2
        %v7018 = vadd.f32 %v7016, %v7017
        %v7019 = vrot.slane %v7018, 1
        %v7020 = vadd.f32 %v7018, %v7019
        %v7021 = vsel %vm6943, %v6922, 0.0
        %v7022 = vrot.slane %v7021, 4
        %v7023 = vadd.f32 %v7021, %v7022
        %v7024 = vrot.slane %v7023, 2
        %v7025 = vadd.f32 %v7023, %v7024
        %v7026 = vrot.slane %v7025, 1
        %v7027 = vadd.f32 %v7025, %v7026
        %v7028 = vsel %vm6943, %v6923, 0.0
        %v7029 = vrot.slane %v7028, 4
        %v7030 = vadd.f32 %v7028, %v7029
        %v7031 = vrot.slane %v7030, 2
        %v7032 = vadd.f32 %v7030, %v7031
        %v7033 = vrot.slane %v7032, 1
        %v7034 = vadd.f32 %v7032, %v7033
        %v7035 = vsel %vm6943, %v6924, 0.0
        %v7036 = vrot.slane %v7035, 4
        %v7037 = vadd.f32 %v7035, %v7036
        %v7038 = vrot.slane %v7037, 2
        %v7039 = vadd.f32 %v7037, %v7038
        %v7040 = vrot.slane %v7039, 1
        %v7041 = vadd.f32 %v7039, %v7040
        %v7042 = vsel %vm6943, %v6925, 0.0
        %v7043 = vrot.slane %v7042, 4
        %v7044 = vadd.f32 %v7042, %v7043
        %v7045 = vrot.slane %v7044, 2
        %v7046 = vadd.f32 %v7044, %v7045
        %v7047 = vrot.slane %v7046, 1
        %v7048 = vadd.f32 %v7046, %v7047
        %v7049 = vsel %vm6943, %v6926, 0.0
        %v7050 = vrot.slane %v7049, 4
        %v7051 = vadd.f32 %v7049, %v7050
        %v7052 = vrot.slane %v7051, 2
        %v7053 = vadd.f32 %v7051, %v7052
        %v7054 = vrot.slane %v7053, 1
        %v7055 = vadd.f32 %v7053, %v7054
        %v7056 = vsel %vm6943, %v6927, 0.0
        %v7057 = vrot.slane %v7056, 4
        %v7058 = vadd.f32 %v7056, %v7057
        %v7059 = vrot.slane %v7058, 2
        %v7060 = vadd.f32 %v7058, %v7059
        %v7061 = vrot.slane %v7060, 1
        %v7062 = vadd.f32 %v7060, %v7061
        %v7063 = vsel %vm6943, %v6928, 0.0
        %v7064 = vrot.slane %v7063, 4
        %v7065 = vadd.f32 %v7063, %v7064
        %v7066 = vrot.slane %v7065, 2
        %v7067 = vadd.f32 %v7065, %v7066
        %v7068 = vrot.slane %v7067, 1
        %v7069 = vadd.f32 %v7067, %v7068
        %v7070 = vsel %vm6943, %v6929, 0.0
        %v7071 = vrot.slane %v7070, 4
        %v7072 = vadd.f32 %v7070, %v7071
        %v7073 = vrot.slane %v7072, 2
        %v7074 = vadd.f32 %v7072, %v7073
        %v7075 = vrot.slane %v7074, 1
        %v7076 = vadd.f32 %v7074, %v7075
        %v7077 = vsel %vm6943, %v6930, 0.0
        %v7078 = vrot.slane %v7077, 4
        %v7079 = vadd.f32 %v7077, %v7078
        %v7080 = vrot.slane %v7079, 2
        %v7081 = vadd.f32 %v7079, %v7080
        %v7082 = vrot.slane %v7081, 1
        %v7083 = vadd.f32 %v7081, %v7082
        %v7084 = vsel %vm6943, %v6931, 0.0
        %v7085 = vrot.slane %v7084, 4
        %v7086 = vadd.f32 %v7084, %v7085
        %v7087 = vrot.slane %v7086, 2
        %v7088 = vadd.f32 %v7086, %v7087
        %v7089 = vrot.slane %v7088, 1
        %v7090 = vadd.f32 %v7088, %v7089
        %v7091 = vsel %vm6943, %v6932, 0.0
        %v7092 = vrot.slane %v7091, 4
        %v7093 = vadd.f32 %v7091, %v7092
        %v7094 = vrot.slane %v7093, 2
        %v7095 = vadd.f32 %v7093, %v7094
        %v7096 = vrot.slane %v7095, 1
        %v7097 = vadd.f32 %v7095, %v7096
        %v7098 = vsel %vm6943, %v6933, 0.0
        %v7099 = vrot.slane %v7098, 4
        %v7100 = vadd.f32 %v7098, %v7099
        %v7101 = vrot.slane %v7100, 2
        %v7102 = vadd.f32 %v7100, %v7101
        %v7103 = vrot.slane %v7102, 1
        %v7104 = vadd.f32 %v7102, %v7103
        %v7105 = vsel %vm6943, %v6934, 0.0
        %v7106 = vrot.slane %v7105, 4
        %v7107 = vadd.f32 %v7105, %v7106
        %v7108 = vrot.slane %v7107, 2
        %v7109 = vadd.f32 %v7107, %v7108
        %v7110 = vrot.slane %v7109, 1
        %v7111 = vadd.f32 %v7109, %v7110
        %v7112 = vsel %vm6943, %v6935, 0.0
        %v7113 = vrot.slane %v7112, 4
        %v7114 = vadd.f32 %v7112, %v7113
        %v7115 = vrot.slane %v7114, 2
        %v7116 = vadd.f32 %v7114, %v7115
        %v7117 = vrot.slane %v7116, 1
        %v7118 = vadd.f32 %v7116, %v7117
        %v7119 = vsel %vm6943, %v6936, 0.0
        %v7120 = vrot.slane %v7119, 4
        %v7121 = vadd.f32 %v7119, %v7120
        %v7122 = vrot.slane %v7121, 2
        %v7123 = vadd.f32 %v7121, %v7122
        %v7124 = vrot.slane %v7123, 1
        %v7125 = vadd.f32 %v7123, %v7124
        %v7126 = vsel %vm6943, %v6937, 0.0
        %v7127 = vrot.slane %v7126, 4
        %v7128 = vadd.f32 %v7126, %v7127
        %v7129 = vrot.slane %v7128, 2
        %v7130 = vadd.f32 %v7128, %v7129
        %v7131 = vrot.slane %v7130, 1
        %v7132 = vadd.f32 %v7130, %v7131
        %v7133 = vsel %vm6943, %v6938, 0.0
        %v7134 = vrot.slane %v7133, 4
        %v7135 = vadd.f32 %v7133, %v7134
        %v7136 = vrot.slane %v7135, 2
        %v7137 = vadd.f32 %v7135, %v7136
        %v7138 = vrot.slane %v7137, 1
        %v7139 = vadd.f32 %v7137, %v7138
        %v7140 = vsel %vm6943, %v6939, 0.0
        %v7141 = vrot.slane %v7140, 4
        %v7142 = vadd.f32 %v7140, %v7141
        %v7143 = vrot.slane %v7142, 2
        %v7144 = vadd.f32 %v7142, %v7143
        %v7145 = vrot.slane %v7144, 1
        %v7146 = vadd.f32 %v7144, %v7145
        %v7147 = vsel %vm6943, %v6940, 0.0
        %v7148 = vrot.slane %v7147, 4
        %v7149 = vadd.f32 %v7147, %v7148
        %v7150 = vrot.slane %v7149, 2
        %v7151 = vadd.f32 %v7149, %v7150
        %v7152 = vrot.slane %v7151, 1
        %v7153 = vadd.f32 %v7151, %v7152
        %v7154 = vsel %vm6943, %v6941, 0.0
        %v7155 = vrot.slane %v7154, 4
        %v7156 = vadd.f32 %v7154, %v7155
        %v7157 = vrot.slane %v7156, 2
        %v7158 = vadd.f32 %v7156, %v7157
        %v7159 = vrot.slane %v7158, 1
        %v7160 = vadd.f32 %v7158, %v7159
        %v7161 = vsel %vm6943, %v6942, 0.0
        %v7162 = vrot.slane %v7161, 4
        %v7163 = vadd.f32 %v7161, %v7162
        %v7164 = vrot.slane %v7163, 2
        %v7165 = vadd.f32 %v7163, %v7164
        %v7166 = vrot.slane %v7165, 1
        %v7167 = vadd.f32 %v7165, %v7166
        %v7168 = vadd.f32 %v5587, %v6453
        %v7169 = vadd.f32 %v5588, %v6530
        %v7170 = vadd.f32 %v5589, %v6607
        %v7171 = vadd.f32 %v5590, %v6684
        %v7204 = vsel %vm4647, %v6957, %v6950
        %v7205 = vsel %vm4649, %v6964, %v7204
        %v7206 = vsel %vm4651, %v6971, %v7205
        %v7207 = vsel %vm4653, %v6978, %v7206
        %v7208 = vsel %vm4655, %v6985, %v7207
        %v7209 = vsel %vm4657, %v6992, %v7208
        %v7210 = vsel %vm4659, %v6999, %v7209
        %v7211 = vsel %vm4647, %v7013, %v7006
        %v7212 = vsel %vm4649, %v7020, %v7211
        %v7213 = vsel %vm4651, %v7027, %v7212
        %v7214 = vsel %vm4653, %v7034, %v7213
        %v7215 = vsel %vm4655, %v7041, %v7214
        %v7216 = vsel %vm4657, %v7048, %v7215
        %v7217 = vsel %vm4659, %v7055, %v7216
        %v7218 = vsel %vm4647, %v7069, %v7062
        %v7219 = vsel %vm4649, %v7076, %v7218
        %v7220 = vsel %vm4651, %v7083, %v7219
        %v7221 = vsel %vm4653, %v7090, %v7220
        %v7222 = vsel %vm4655, %v7097, %v7221
        %v7223 = vsel %vm4657, %v7104, %v7222
        %v7224 = vsel %vm4659, %v7111, %v7223
        %v7225 = vsel %vm4647, %v7125, %v7118
        %v7226 = vsel %vm4649, %v7132, %v7225
        %v7227 = vsel %vm4651, %v7139, %v7226
        %v7228 = vsel %vm4653, %v7146, %v7227
        %v7229 = vsel %vm4655, %v7153, %v7228
        %v7230 = vsel %vm4657, %v7160, %v7229
        %v7231 = vsel %vm4659, %v7167, %v7230
        %7232 = vrot.lane.b32.xlu0 %v7210, 96
        %v7233 = vpop.permute.xlu0 %7232
        %7234 = vrot.lane.b32.xlu0 %v7217, 96
        %v7235 = vpop.permute.xlu0 %7234
        %7236 = vrot.lane.b32.xlu0 %v7224, 96
        %v7237 = vpop.permute.xlu0 %7236
        %7238 = vrot.lane.b32.xlu0 %v7231, 96
        %v7239 = vpop.permute.xlu0 %7238
        %v7244 = vadd.f32 %v7168, %v7233
        %v7245 = vadd.f32 %v7169, %v7235
        %v7246 = vadd.f32 %v7170, %v7237
        %v7247 = vadd.f32 %v7171, %v7239
        %v7248 = vmul.f32 %v7244, 0.5
        %v7249 = vmul.f32 %v7245, 0.5
        %v7250 = vmul.f32 %v7246, 0.5
        %v7251 = vmul.f32 %v7247, 0.5
        %v7252 = vadd.f32 %v7248, %v3677
        %v7253 = vadd.f32 %v7249, %v3683
        %v7254 = vadd.f32 %v7250, %v3689
        %v7255 = vadd.f32 %v7251, %v3695
        %v7256 = vadd.f32 %v7252, %v388
        %v7257 = vadd.f32 %v7253, %v389
        %v7258 = vadd.f32 %v7254, %v390
        %v7259 = vadd.f32 %v7255, %v391
        %v7260 = vsel %vm3506, %v7256, 0.0
        %7261 = vadd.xlane.f32.xlu0 %v7260
        %v7262 = vpop.xlane.xlu0 %7261
        %v7263 = vsel %vm3506, %v7257, 0.0
        %7264 = vadd.xlane.f32.xlu0 %v7263
        %v7265 = vpop.xlane.xlu0 %7264
        %v7266 = vsel %vm3506, %v7258, 0.0
        %7267 = vadd.xlane.f32.xlu0 %v7266
        %v7268 = vpop.xlane.xlu0 %7267
        %v7269 = vsel %vm3506, %v7259, 0.0
        %7270 = vadd.xlane.f32.xlu0 %v7269
        %v7271 = vpop.xlane.xlu0 %7270
        %v7272 = vrcp.pop 32.0
        %v7273 = vmul.f32 %v7262, %v7272
        %v7274 = vmul.f32 %v7265, %v7272
        %v7275 = vmul.f32 %v7268, %v7272
        %v7276 = vmul.f32 %v7271, %v7272
        %v7277 = vsub.f32 %v7256, %v7273
        %v7278 = vsub.f32 %v7257, %v7274
        %v7279 = vsub.f32 %v7258, %v7275
        %v7280 = vsub.f32 %v7259, %v7276
        %v7281 = vmul.f32 %v7277, %v7277
        %v7282 = vmul.f32 %v7278, %v7278
        %v7283 = vmul.f32 %v7279, %v7279
        %v7284 = vmul.f32 %v7280, %v7280
        %v7285 = vsel %vm3506, %v7281, 0.0
        %7286 = vadd.xlane.f32.xlu0 %v7285
        %v7287 = vpop.xlane.xlu0 %7286
        %v7288 = vsel %vm3506, %v7282, 0.0
        %7289 = vadd.xlane.f32.xlu0 %v7288
        %v7290 = vpop.xlane.xlu0 %7289
        %v7291 = vsel %vm3506, %v7283, 0.0
        %7292 = vadd.xlane.f32.xlu0 %v7291
        %v7293 = vpop.xlane.xlu0 %7292
        %v7294 = vsel %vm3506, %v7284, 0.0
        %7295 = vadd.xlane.f32.xlu0 %v7294
        %v7296 = vpop.xlane.xlu0 %7295
        %v7297 = vmul.f32 %v7287, %v7272
        %v7298 = vmul.f32 %v7290, %v7272
        %v7299 = vmul.f32 %v7293, %v7272
        %v7300 = vmul.f32 %v7296, %v7272
        %v7301 = vadd.f32 %v7297, 1e-06
        %v7302 = vadd.f32 %v7298, 1e-06
        %v7303 = vadd.f32 %v7299, 1e-06
        %v7304 = vadd.f32 %v7300, 1e-06
        %v7305 = vrsqrt.pop %v7301
        %v7306 = vrsqrt.pop %v7302
        %v7307 = vrsqrt.pop %v7303
        %v7308 = vrsqrt.pop %v7304
        %v7309 = vmul.f32 %v7277, %v7305
        %v7310 = vmul.f32 %v7278, %v7306
        %v7311 = vmul.f32 %v7279, %v7307
        %v7312 = vmul.f32 %v7280, %v7308
        %v7314 = vlaneseq
        %v7315 = vshrl.u32 %v7314, 7
        %v7316 = vsub.s32 0, %v7315
        %v7317 = vrot.slane %v3471, %v7316
        %v7319 = vmul.f32 %v7309, %v7317
        %v7320 = vmul.f32 %v7310, %v7317
        %v7321 = vmul.f32 %v7311, %v7317
        %v7322 = vmul.f32 %v7312, %v7317
        %v7324 = vlaneseq
        %v7325 = vshrl.u32 %v7324, 7
        %v7326 = vsub.s32 0, %v7325
        %v7327 = vrot.slane %v3473, %v7326
        %v7329 = vadd.f32 %v7319, %v7327
        %v7330 = vadd.f32 %v7320, %v7327
        %v7331 = vadd.f32 %v7321, %v7327
        %v7332 = vadd.f32 %v7322, %v7327
        %v7334 = vlaneseq
        %v7335 = vshrl.u32 %v7334, 7
        %v7336 = vsub.s32 0, %v7335
        %v7337 = vrot.slane %v3483, %v7336
        %v7340 = vsel %vm3506, %v7329, 0
        %v7343 = vsel %vm3506, %v7330, 0
        %v7346 = vsel %vm3506, %v7331, 0
        %v7349 = vsel %vm3506, %v7332, 0
        %7351 = vmatprep.subr.mxu0 0.0
        %7352 = vmatpush1.msra.mxu0 %v3475
        %7353 = vmatprep.subr.mxu0 0.0
        %7354 = vmatpush1.msra.mxu0 %v3476
        %7355 = vmatprep.subr.mxu0 0.0
        %7356 = vmatpush1.msra.mxu0 %v3477
        %7357 = vmatprep.subr.mxu0 0.0
        %7358 = vmatpush1.msra.mxu0 %v3478
        %7359 = vmatprep.subr.mxu0 0.0
        %7360 = vmatpush1.msra.mxu0 0.0
        %7361 = vmatprep.subr.mxu0 0.0
        %7362 = vmatpush1.msra.mxu0 0.0
        %7363 = vmatprep.subr.mxu0 0.0
        %7364 = vmatpush1.msra.mxu0 0.0
        %7365 = vmatprep.subr.mxu0 0.0
        %7366 = vmatpush1.msra.mxu0 0.0
        %7367 = vmatprep.subr.mxu0 0.0
        %7368 = vmatpush1.msra.mxu0 0.0
        %7369 = vmatprep.subr.mxu0 0.0
        %7370 = vmatpush1.msra.mxu0 0.0
        %7371 = vmatprep.subr.mxu0 0.0
        %7372 = vmatpush1.msra.mxu0 0.0
        %7373 = vmatprep.subr.mxu0 0.0
        %7374 = vmatpush1.msra.mxu0 0.0
        %7375 = vmatprep.subr.mxu0 0.0
        %7376 = vmatpush1.msra.mxu0 0.0
        %7377 = vmatprep.subr.mxu0 0.0
        %7378 = vmatpush1.msra.mxu0 0.0
        %7379 = vmatprep.subr.mxu0 0.0
        %7380 = vmatpush1.msra.mxu0 0.0
        %7381 = vmatprep.subr.mxu0 0.0
        %7382 = vmatpush1.msra.mxu0 0.0
        %7383 = vmatprep.subr.mxu0 0.0
        %7384 = vmatpush1.msra.mxu0 0.0
        %7385 = vmatprep.subr.mxu0 0.0
        %7386 = vmatpush1.msra.mxu0 0.0
        %7387 = vmatprep.subr.mxu0 0.0
        %7388 = vmatpush1.msra.mxu0 0.0
        %7389 = vmatprep.subr.mxu0 0.0
        %7390 = vmatpush1.msra.mxu0 0.0
        %7391 = vmatprep.subr.mxu0 0.0
        %7392 = vmatpush1.msra.mxu0 0.0
        %7393 = vmatprep.subr.mxu0 0.0
        %7394 = vmatpush1.msra.mxu0 0.0
        %7395 = vmatprep.subr.mxu0 0.0
        %7396 = vmatpush1.msra.mxu0 0.0
        %7397 = vmatprep.subr.mxu0 0.0
        %7398 = vmatpush1.msra.mxu0 0.0
        %7399 = vmatprep.subr.mxu0 0.0
        %7400 = vmatpush1.msra.mxu0 0.0
        %7401 = vmatprep.subr.mxu0 0.0
        %7402 = vmatpush1.msra.mxu0 0.0
        %7403 = vmatprep.subr.mxu0 0.0
        %7404 = vmatpush1.msra.mxu0 0.0
        %7405 = vmatprep.subr.mxu0 0.0
        %7406 = vmatpush1.msra.mxu0 0.0
        %7407 = vmatprep.subr.mxu0 0.0
        %7408 = vmatpush1.msra.mxu0 0.0
        %7409 = vmatprep.subr.mxu0 0.0
        %7410 = vmatpush1.msra.mxu0 0.0
        %7411 = vmatprep.subr.mxu0 0.0
        %7412 = vmatpush1.msra.mxu0 0.0
        %7413 = vmatprep.subr.mxu0 0.0
        %7414 = vmatpush1.msra.mxu0 0.0
        %7415 = vmatprep.mubr.f32.mxu0 0.0
        %7416 = vmatmul.mubr.f32.gmra.mrb[0].mxu0 %v7340
        %v7417 = vpop.f32.mrb[0].mxu0
        %v7418 = vadd.f32 %v7337, %v7417
        %v7419 = vpop.f32.mrb[0].mxu0
        %7420 = vmatprep.mubr.f32.mxu0 0.0
        %7421 = vmatmul.mubr.f32.gmra.mrb[0].mxu0 %v7343
        %v7422 = vpop.f32.mrb[0].mxu0
        %v7423 = vadd.f32 %v7337, %v7422
        %v7424 = vpop.f32.mrb[0].mxu0
        %7425 = vmatprep.mubr.f32.mxu0 0.0
        %7426 = vmatmul.mubr.f32.gmra.mrb[0].mxu0 %v7346
        %v7427 = vpop.f32.mrb[0].mxu0
        %v7428 = vadd.f32 %v7337, %v7427
        %v7429 = vpop.f32.mrb[0].mxu0
        %7430 = vmatprep.mubr.f32.mxu0 0.0
        %7431 = vmatmul.mubr.f32.gmra.mrb[0].mxu0 %v7349
        %v7432 = vpop.f32.mrb[0].mxu0
        %v7433 = vadd.f32 %v7337, %v7432
        %v7434 = vpop.f32.mrb[0].mxu0
        %7435 = vdwg.mxu0
        %v7437 = vsel %vm3506, %v7418, 0
        %v7440 = vsel %vm3506, %v7423, 0
        %v7443 = vsel %vm3506, %v7428, 0
        %v7446 = vsel %vm3506, %v7433, 0
        %7448 = vmatprep.subr.mxu0 %v3455
        %7449 = vmatpush1.msra.mxu0 %v3454
        %7450 = vmatprep.subr.mxu0 %v3459
        %7451 = vmatpush1.msra.mxu0 %v3458
        %7452 = vmatprep.subr.mxu0 %v3463
        %7453 = vmatpush1.msra.mxu0 %v3462
        %7454 = vmatprep.subr.mxu0 %v3467
        %7455 = vmatpush1.msra.mxu0 %v3466
        %7456 = vmatprep.subr.mxu0 0.0
        %7457 = vmatpush1.msra.mxu0 0.0
        %7458 = vmatprep.subr.mxu0 0.0
        %7459 = vmatpush1.msra.mxu0 0.0
        %7460 = vmatprep.subr.mxu0 0.0
        %7461 = vmatpush1.msra.mxu0 0.0
        %7462 = vmatprep.subr.mxu0 0.0
        %7463 = vmatpush1.msra.mxu0 0.0
        %7464 = vmatprep.subr.mxu0 0.0
        %7465 = vmatpush1.msra.mxu0 0.0
        %7466 = vmatprep.subr.mxu0 0.0
        %7467 = vmatpush1.msra.mxu0 0.0
        %7468 = vmatprep.subr.mxu0 0.0
        %7469 = vmatpush1.msra.mxu0 0.0
        %7470 = vmatprep.subr.mxu0 0.0
        %7471 = vmatpush1.msra.mxu0 0.0
        %7472 = vmatprep.subr.mxu0 0.0
        %7473 = vmatpush1.msra.mxu0 0.0
        %7474 = vmatprep.subr.mxu0 0.0
        %7475 = vmatpush1.msra.mxu0 0.0
        %7476 = vmatprep.subr.mxu0 0.0
        %7477 = vmatpush1.msra.mxu0 0.0
        %7478 = vmatprep.subr.mxu0 0.0
        %7479 = vmatpush1.msra.mxu0 0.0
        %7480 = vmatprep.subr.mxu0 0.0
        %7481 = vmatpush1.msra.mxu0 0.0
        %7482 = vmatprep.subr.mxu0 0.0
        %7483 = vmatpush1.msra.mxu0 0.0
        %7484 = vmatprep.subr.mxu0 0.0
        %7485 = vmatpush1.msra.mxu0 0.0
        %7486 = vmatprep.subr.mxu0 0.0
        %7487 = vmatpush1.msra.mxu0 0.0
        %7488 = vmatprep.subr.mxu0 0.0
        %7489 = vmatpush1.msra.mxu0 0.0
        %7490 = vmatprep.subr.mxu0 0.0
        %7491 = vmatpush1.msra.mxu0 0.0
        %7492 = vmatprep.subr.mxu0 0.0
        %7493 = vmatpush1.msra.mxu0 0.0
        %7494 = vmatprep.subr.mxu0 0.0
        %7495 = vmatpush1.msra.mxu0 0.0
        %7496 = vmatprep.subr.mxu0 0.0
        %7497 = vmatpush1.msra.mxu0 0.0
        %7498 = vmatprep.subr.mxu0 0.0
        %7499 = vmatpush1.msra.mxu0 0.0
        %7500 = vmatprep.subr.mxu0 0.0
        %7501 = vmatpush1.msra.mxu0 0.0
        %7502 = vmatprep.subr.mxu0 0.0
        %7503 = vmatpush1.msra.mxu0 0.0
        %7504 = vmatprep.subr.mxu0 0.0
        %7505 = vmatpush1.msra.mxu0 0.0
        %7506 = vmatprep.subr.mxu0 0.0
        %7507 = vmatpush1.msra.mxu0 0.0
        %7508 = vmatprep.subr.mxu0 0.0
        %7509 = vmatpush1.msra.mxu0 0.0
        %7510 = vmatprep.subr.mxu0 0.0
        %7511 = vmatpush1.msra.mxu0 0.0
        %7512 = vmatprep.mubr.f32.mxu0 0.0
        %7513 = vmatmul.mubr.f32.gmra.mrb[0].mxu0 %v7437
        %v7514 = vpop.f32.mrb[0].mxu0
        %v7515 = vadd.f32 %v3489, %v7514
        %v7516 = vpop.f32.mrb[0].mxu0
        %v7517 = vadd.f32 %v3493, %v7516
        %7518 = vmatprep.mubr.f32.mxu0 0.0
        %7519 = vmatmul.mubr.f32.gmra.mrb[0].mxu0 %v7440
        %v7520 = vpop.f32.mrb[0].mxu0
        %v7521 = vadd.f32 %v3489, %v7520
        %v7522 = vpop.f32.mrb[0].mxu0
        %v7523 = vadd.f32 %v3493, %v7522
        %7524 = vmatprep.mubr.f32.mxu0 0.0
        %7525 = vmatmul.mubr.f32.gmra.mrb[0].mxu0 %v7443
        %v7526 = vpop.f32.mrb[0].mxu0
        %v7527 = vadd.f32 %v3489, %v7526
        %v7528 = vpop.f32.mrb[0].mxu0
        %v7529 = vadd.f32 %v3493, %v7528
        %7530 = vmatprep.mubr.f32.mxu0 0.0
        %7531 = vmatmul.mubr.f32.gmra.mrb[0].mxu0 %v7446
        %v7532 = vpop.f32.mrb[0].mxu0
        %v7533 = vadd.f32 %v3489, %v7532
        %v7534 = vpop.f32.mrb[0].mxu0
        %v7535 = vadd.f32 %v3493, %v7534
        %7536 = vdwg.mxu0
        %7537 = vmatprep.subr.mxu0 %v3457
        %7538 = vmatpush1.msra.mxu0 %v3456
        %7539 = vmatprep.subr.mxu0 %v3461
        %7540 = vmatpush1.msra.mxu0 %v3460
        %7541 = vmatprep.subr.mxu0 %v3465
        %7542 = vmatpush1.msra.mxu0 %v3464
        %7543 = vmatprep.subr.mxu0 %v3469
        %7544 = vmatpush1.msra.mxu0 %v3468
        %7545 = vmatprep.subr.mxu0 0.0
        %7546 = vmatpush1.msra.mxu0 0.0
        %7547 = vmatprep.subr.mxu0 0.0
        %7548 = vmatpush1.msra.mxu0 0.0
        %7549 = vmatprep.subr.mxu0 0.0
        %7550 = vmatpush1.msra.mxu0 0.0
        %7551 = vmatprep.subr.mxu0 0.0
        %7552 = vmatpush1.msra.mxu0 0.0
        %7553 = vmatprep.subr.mxu0 0.0
        %7554 = vmatpush1.msra.mxu0 0.0
        %7555 = vmatprep.subr.mxu0 0.0
        %7556 = vmatpush1.msra.mxu0 0.0
        %7557 = vmatprep.subr.mxu0 0.0
        %7558 = vmatpush1.msra.mxu0 0.0
        %7559 = vmatprep.subr.mxu0 0.0
        %7560 = vmatpush1.msra.mxu0 0.0
        %7561 = vmatprep.subr.mxu0 0.0
        %7562 = vmatpush1.msra.mxu0 0.0
        %7563 = vmatprep.subr.mxu0 0.0
        %7564 = vmatpush1.msra.mxu0 0.0
        %7565 = vmatprep.subr.mxu0 0.0
        %7566 = vmatpush1.msra.mxu0 0.0
        %7567 = vmatprep.subr.mxu0 0.0
        %7568 = vmatpush1.msra.mxu0 0.0
        %7569 = vmatprep.subr.mxu0 0.0
        %7570 = vmatpush1.msra.mxu0 0.0
        %7571 = vmatprep.subr.mxu0 0.0
        %7572 = vmatpush1.msra.mxu0 0.0
        %7573 = vmatprep.subr.mxu0 0.0
        %7574 = vmatpush1.msra.mxu0 0.0
        %7575 = vmatprep.subr.mxu0 0.0
        %7576 = vmatpush1.msra.mxu0 0.0
        %7577 = vmatprep.subr.mxu0 0.0
        %7578 = vmatpush1.msra.mxu0 0.0
        %7579 = vmatprep.subr.mxu0 0.0
        %7580 = vmatpush1.msra.mxu0 0.0
        %7581 = vmatprep.subr.mxu0 0.0
        %7582 = vmatpush1.msra.mxu0 0.0
        %7583 = vmatprep.subr.mxu0 0.0
        %7584 = vmatpush1.msra.mxu0 0.0
        %7585 = vmatprep.subr.mxu0 0.0
        %7586 = vmatpush1.msra.mxu0 0.0
        %7587 = vmatprep.subr.mxu0 0.0
        %7588 = vmatpush1.msra.mxu0 0.0
        %7589 = vmatprep.subr.mxu0 0.0
        %7590 = vmatpush1.msra.mxu0 0.0
        %7591 = vmatprep.subr.mxu0 0.0
        %7592 = vmatpush1.msra.mxu0 0.0
        %7593 = vmatprep.subr.mxu0 0.0
        %7594 = vmatpush1.msra.mxu0 0.0
        %7595 = vmatprep.subr.mxu0 0.0
        %7596 = vmatpush1.msra.mxu0 0.0
        %7597 = vmatprep.subr.mxu0 0.0
        %7598 = vmatpush1.msra.mxu0 0.0
        %7599 = vmatprep.subr.mxu0 0.0
        %7600 = vmatpush1.msra.mxu0 0.0
        %7601 = vmatprep.mubr.f32.mxu0 0.0
        %7602 = vmatmul.mubr.f32.gmra.mrb[0].mxu0 %v7437
        %v7603 = vpop.f32.mrb[0].mxu0
        %v7604 = vadd.f32 %v3497, %v7603
        %v7605 = vpop.f32.mrb[0].mxu0
        %v7606 = vadd.f32 %v3501, %v7605
        %7607 = vmatprep.mubr.f32.mxu0 0.0
        %7608 = vmatmul.mubr.f32.gmra.mrb[0].mxu0 %v7440
        %v7609 = vpop.f32.mrb[0].mxu0
        %v7610 = vadd.f32 %v3497, %v7609
        %v7611 = vpop.f32.mrb[0].mxu0
        %v7612 = vadd.f32 %v3501, %v7611
        %7613 = vmatprep.mubr.f32.mxu0 0.0
        %7614 = vmatmul.mubr.f32.gmra.mrb[0].mxu0 %v7443
        %v7615 = vpop.f32.mrb[0].mxu0
        %v7616 = vadd.f32 %v3497, %v7615
        %v7617 = vpop.f32.mrb[0].mxu0
        %v7618 = vadd.f32 %v3501, %v7617
        %7619 = vmatprep.mubr.f32.mxu0 0.0
        %7620 = vmatmul.mubr.f32.gmra.mrb[0].mxu0 %v7446
        %v7621 = vpop.f32.mrb[0].mxu0
        %v7622 = vadd.f32 %v3497, %v7621
        %v7623 = vpop.f32.mrb[0].mxu0
        %v7624 = vadd.f32 %v3501, %v7623
        %7625 = vdwg.mxu0
        %v7627 = vsel %vm3506, %v7515, 0
        %v7630 = vsel %vm3506, %v7517, 0
        %7632 = vmatprep.subr.mxu0 0.0
        %7633 = vmatpush1.xpose.msra.mxu0 %v7630
        %7634 = vmatprep.subr.mxu0 0.0
        %7635 = vmatpush1.xpose.msra.mxu0 0.0
        %7636 = vmatprep.subr.mxu0 0.0
        %7637 = vmatpush1.xpose.msra.mxu0 0.0
        %7638 = vmatprep.subr.mxu0 0.0
        %7639 = vmatpush1.xpose.msra.mxu0 0.0
        %7640 = vmatprep.subr.mxu0 0.0
        %7641 = vmatpush1.xpose.msra.mxu0 0.0
        %7642 = vmatprep.subr.mxu0 0.0
        %7643 = vmatpush1.xpose.msra.mxu0 0.0
        %7644 = vmatprep.subr.mxu0 0.0
        %7645 = vmatpush1.xpose.msra.mxu0 0.0
        %7646 = vmatprep.subr.mxu0 0.0
        %7647 = vmatpush1.xpose.msra.mxu0 0.0
        %7648 = vmatprep.subr.mxu0 0.0
        %7649 = vmatpush1.xpose.msra.mxu0 0.0
        %7650 = vmatprep.subr.mxu0 0.0
        %7651 = vmatpush1.xpose.msra.mxu0 0.0
        %7652 = vmatprep.subr.mxu0 0.0
        %7653 = vmatpush1.xpose.msra.mxu0 0.0
        %7654 = vmatprep.subr.mxu0 0.0
        %7655 = vmatpush1.xpose.msra.mxu0 0.0
        %7656 = vmatprep.subr.mxu0 0.0
        %7657 = vmatpush1.xpose.msra.mxu0 0.0
        %7658 = vmatprep.subr.mxu0 0.0
        %7659 = vmatpush1.xpose.msra.mxu0 0.0
        %7660 = vmatprep.subr.mxu0 0.0
        %7661 = vmatpush1.xpose.msra.mxu0 0.0
        %7662 = vmatprep.subr.mxu0 0.0
        %7663 = vmatpush1.xpose.msra.mxu0 0.0
        %7664 = vmatprep.subr.mxu0 0.0
        %7665 = vmatpush1.xpose.msra.mxu0 0.0
        %7666 = vmatprep.subr.mxu0 0.0
        %7667 = vmatpush1.xpose.msra.mxu0 0.0
        %7668 = vmatprep.subr.mxu0 0.0
        %7669 = vmatpush1.xpose.msra.mxu0 0.0
        %7670 = vmatprep.subr.mxu0 0.0
        %7671 = vmatpush1.xpose.msra.mxu0 0.0
        %7672 = vmatprep.subr.mxu0 0.0
        %7673 = vmatpush1.xpose.msra.mxu0 0.0
        %7674 = vmatprep.subr.mxu0 0.0
        %7675 = vmatpush1.xpose.msra.mxu0 0.0
        %7676 = vmatprep.subr.mxu0 0.0
        %7677 = vmatpush1.xpose.msra.mxu0 0.0
        %7678 = vmatprep.subr.mxu0 0.0
        %7679 = vmatpush1.xpose.msra.mxu0 0.0
        %7680 = vmatprep.subr.mxu0 0.0
        %7681 = vmatpush1.xpose.msra.mxu0 0.0
        %7682 = vmatprep.subr.mxu0 0.0
        %7683 = vmatpush1.xpose.msra.mxu0 0.0
        %7684 = vmatprep.subr.mxu0 0.0
        %7685 = vmatpush1.xpose.msra.mxu0 0.0
        %7686 = vmatprep.subr.mxu0 0.0
        %7687 = vmatpush1.xpose.msra.mxu0 0.0
        %7688 = vmatprep.subr.mxu0 0.0
        %7689 = vmatpush1.xpose.msra.mxu0 0.0
        %7690 = vmatprep.subr.mxu0 0.0
        %7691 = vmatpush1.xpose.msra.mxu0 0.0
        %7692 = vmatprep.subr.mxu0 0.0
        %7693 = vmatpush1.xpose.msra.mxu0 0.0
        %7694 = vmatprep.subr.mxu0 0.0
        %7695 = vmatpush1.xpose.msra.mxu0 0.0
        %7696 = vmatprep.mubr.f32.mxu0 0.0
        %7697 = vmatmul.mubr.f32.gmra.mrb[0].mxu0 %v7627
        %v7698 = vpop.f32.mrb[0].mxu0
        %v7699 = vadd.f32 0.0, %v7698
        %v7700 = vpop.f32.mrb[0].mxu0
        %7701 = vdwg.mxu0
        %v7703 = vsel %vm3506, %v7521, 0
        %v7706 = vsel %vm3506, %v7523, 0
        %7708 = vmatprep.subr.mxu0 0.0
        %7709 = vmatpush1.xpose.msra.mxu0 %v7706
        %7710 = vmatprep.subr.mxu0 0.0
        %7711 = vmatpush1.xpose.msra.mxu0 0.0
        %7712 = vmatprep.subr.mxu0 0.0
        %7713 = vmatpush1.xpose.msra.mxu0 0.0
        %7714 = vmatprep.subr.mxu0 0.0
        %7715 = vmatpush1.xpose.msra.mxu0 0.0
        %7716 = vmatprep.subr.mxu0 0.0
        %7717 = vmatpush1.xpose.msra.mxu0 0.0
        %7718 = vmatprep.subr.mxu0 0.0
        %7719 = vmatpush1.xpose.msra.mxu0 0.0
        %7720 = vmatprep.subr.mxu0 0.0
        %7721 = vmatpush1.xpose.msra.mxu0 0.0
        %7722 = vmatprep.subr.mxu0 0.0
        %7723 = vmatpush1.xpose.msra.mxu0 0.0
        %7724 = vmatprep.subr.mxu0 0.0
        %7725 = vmatpush1.xpose.msra.mxu0 0.0
        %7726 = vmatprep.subr.mxu0 0.0
        %7727 = vmatpush1.xpose.msra.mxu0 0.0
        %7728 = vmatprep.subr.mxu0 0.0
        %7729 = vmatpush1.xpose.msra.mxu0 0.0
        %7730 = vmatprep.subr.mxu0 0.0
        %7731 = vmatpush1.xpose.msra.mxu0 0.0
        %7732 = vmatprep.subr.mxu0 0.0
        %7733 = vmatpush1.xpose.msra.mxu0 0.0
        %7734 = vmatprep.subr.mxu0 0.0
        %7735 = vmatpush1.xpose.msra.mxu0 0.0
        %7736 = vmatprep.subr.mxu0 0.0
        %7737 = vmatpush1.xpose.msra.mxu0 0.0
        %7738 = vmatprep.subr.mxu0 0.0
        %7739 = vmatpush1.xpose.msra.mxu0 0.0
        %7740 = vmatprep.subr.mxu0 0.0
        %7741 = vmatpush1.xpose.msra.mxu0 0.0
        %7742 = vmatprep.subr.mxu0 0.0
        %7743 = vmatpush1.xpose.msra.mxu0 0.0
        %7744 = vmatprep.subr.mxu0 0.0
        %7745 = vmatpush1.xpose.msra.mxu0 0.0
        %7746 = vmatprep.subr.mxu0 0.0
        %7747 = vmatpush1.xpose.msra.mxu0 0.0
        %7748 = vmatprep.subr.mxu0 0.0
        %7749 = vmatpush1.xpose.msra.mxu0 0.0
        %7750 = vmatprep.subr.mxu0 0.0
        %7751 = vmatpush1.xpose.msra.mxu0 0.0
        %7752 = vmatprep.subr.mxu0 0.0
        %7753 = vmatpush1.xpose.msra.mxu0 0.0
        %7754 = vmatprep.subr.mxu0 0.0
        %7755 = vmatpush1.xpose.msra.mxu0 0.0
        %7756 = vmatprep.subr.mxu0 0.0
        %7757 = vmatpush1.xpose.msra.mxu0 0.0
        %7758 = vmatprep.subr.mxu0 0.0
        %7759 = vmatpush1.xpose.msra.mxu0 0.0
        %7760 = vmatprep.subr.mxu0 0.0
        %7761 = vmatpush1.xpose.msra.mxu0 0.0
        %7762 = vmatprep.subr.mxu0 0.0
        %7763 = vmatpush1.xpose.msra.mxu0 0.0
        %7764 = vmatprep.subr.mxu0 0.0
        %7765 = vmatpush1.xpose.msra.mxu0 0.0
        %7766 = vmatprep.subr.mxu0 0.0
        %7767 = vmatpush1.xpose.msra.mxu0 0.0
        %7768 = vmatprep.subr.mxu0 0.0
        %7769 = vmatpush1.xpose.msra.mxu0 0.0
        %7770 = vmatprep.subr.mxu0 0.0
        %7771 = vmatpush1.xpose.msra.mxu0 0.0
        %7772 = vmatprep.mubr.f32.mxu0 0.0
        %7773 = vmatmul.mubr.f32.gmra.mrb[0].mxu0 %v7703
        %v7774 = vpop.f32.mrb[0].mxu0
        %v7775 = vadd.f32 0.0, %v7774
        %v7776 = vpop.f32.mrb[0].mxu0
        %7777 = vdwg.mxu0
        %v7779 = vsel %vm3506, %v7527, 0
        %v7782 = vsel %vm3506, %v7529, 0
        %7784 = vmatprep.subr.mxu0 0.0
        %7785 = vmatpush1.xpose.msra.mxu0 %v7782
        %7786 = vmatprep.subr.mxu0 0.0
        %7787 = vmatpush1.xpose.msra.mxu0 0.0
        %7788 = vmatprep.subr.mxu0 0.0
        %7789 = vmatpush1.xpose.msra.mxu0 0.0
        %7790 = vmatprep.subr.mxu0 0.0
        %7791 = vmatpush1.xpose.msra.mxu0 0.0
        %7792 = vmatprep.subr.mxu0 0.0
        %7793 = vmatpush1.xpose.msra.mxu0 0.0
        %7794 = vmatprep.subr.mxu0 0.0
        %7795 = vmatpush1.xpose.msra.mxu0 0.0
        %7796 = vmatprep.subr.mxu0 0.0
        %7797 = vmatpush1.xpose.msra.mxu0 0.0
        %7798 = vmatprep.subr.mxu0 0.0
        %7799 = vmatpush1.xpose.msra.mxu0 0.0
        %7800 = vmatprep.subr.mxu0 0.0
        %7801 = vmatpush1.xpose.msra.mxu0 0.0
        %7802 = vmatprep.subr.mxu0 0.0
        %7803 = vmatpush1.xpose.msra.mxu0 0.0
        %7804 = vmatprep.subr.mxu0 0.0
        %7805 = vmatpush1.xpose.msra.mxu0 0.0
        %7806 = vmatprep.subr.mxu0 0.0
        %7807 = vmatpush1.xpose.msra.mxu0 0.0
        %7808 = vmatprep.subr.mxu0 0.0
        %7809 = vmatpush1.xpose.msra.mxu0 0.0
        %7810 = vmatprep.subr.mxu0 0.0
        %7811 = vmatpush1.xpose.msra.mxu0 0.0
        %7812 = vmatprep.subr.mxu0 0.0
        %7813 = vmatpush1.xpose.msra.mxu0 0.0
        %7814 = vmatprep.subr.mxu0 0.0
        %7815 = vmatpush1.xpose.msra.mxu0 0.0
        %7816 = vmatprep.subr.mxu0 0.0
        %7817 = vmatpush1.xpose.msra.mxu0 0.0
        %7818 = vmatprep.subr.mxu0 0.0
        %7819 = vmatpush1.xpose.msra.mxu0 0.0
        %7820 = vmatprep.subr.mxu0 0.0
        %7821 = vmatpush1.xpose.msra.mxu0 0.0
        %7822 = vmatprep.subr.mxu0 0.0
        %7823 = vmatpush1.xpose.msra.mxu0 0.0
        %7824 = vmatprep.subr.mxu0 0.0
        %7825 = vmatpush1.xpose.msra.mxu0 0.0
        %7826 = vmatprep.subr.mxu0 0.0
        %7827 = vmatpush1.xpose.msra.mxu0 0.0
        %7828 = vmatprep.subr.mxu0 0.0
        %7829 = vmatpush1.xpose.msra.mxu0 0.0
        %7830 = vmatprep.subr.mxu0 0.0
        %7831 = vmatpush1.xpose.msra.mxu0 0.0
        %7832 = vmatprep.subr.mxu0 0.0
        %7833 = vmatpush1.xpose.msra.mxu0 0.0
        %7834 = vmatprep.subr.mxu0 0.0
        %7835 = vmatpush1.xpose.msra.mxu0 0.0
        %7836 = vmatprep.subr.mxu0 0.0
        %7837 = vmatpush1.xpose.msra.mxu0 0.0
        %7838 = vmatprep.subr.mxu0 0.0
        %7839 = vmatpush1.xpose.msra.mxu0 0.0
        %7840 = vmatprep.subr.mxu0 0.0
        %7841 = vmatpush1.xpose.msra.mxu0 0.0
        %7842 = vmatprep.subr.mxu0 0.0
        %7843 = vmatpush1.xpose.msra.mxu0 0.0
        %7844 = vmatprep.subr.mxu0 0.0
        %7845 = vmatpush1.xpose.msra.mxu0 0.0
        %7846 = vmatprep.subr.mxu0 0.0
        %7847 = vmatpush1.xpose.msra.mxu0 0.0
        %7848 = vmatprep.mubr.f32.mxu0 0.0
        %7849 = vmatmul.mubr.f32.gmra.mrb[0].mxu0 %v7779
        %v7850 = vpop.f32.mrb[0].mxu0
        %v7851 = vadd.f32 0.0, %v7850
        %v7852 = vpop.f32.mrb[0].mxu0
        %7853 = vdwg.mxu0
        %v7855 = vsel %vm3506, %v7533, 0
        %v7858 = vsel %vm3506, %v7535, 0
        %7860 = vmatprep.subr.mxu0 0.0
        %7861 = vmatpush1.xpose.msra.mxu0 %v7858
        %7862 = vmatprep.subr.mxu0 0.0
        %7863 = vmatpush1.xpose.msra.mxu0 0.0
        %7864 = vmatprep.subr.mxu0 0.0
        %7865 = vmatpush1.xpose.msra.mxu0 0.0
        %7866 = vmatprep.subr.mxu0 0.0
        %7867 = vmatpush1.xpose.msra.mxu0 0.0
        %7868 = vmatprep.subr.mxu0 0.0
        %7869 = vmatpush1.xpose.msra.mxu0 0.0
        %7870 = vmatprep.subr.mxu0 0.0
        %7871 = vmatpush1.xpose.msra.mxu0 0.0
        %7872 = vmatprep.subr.mxu0 0.0
        %7873 = vmatpush1.xpose.msra.mxu0 0.0
        %7874 = vmatprep.subr.mxu0 0.0
        %7875 = vmatpush1.xpose.msra.mxu0 0.0
        %7876 = vmatprep.subr.mxu0 0.0
        %7877 = vmatpush1.xpose.msra.mxu0 0.0
        %7878 = vmatprep.subr.mxu0 0.0
        %7879 = vmatpush1.xpose.msra.mxu0 0.0
        %7880 = vmatprep.subr.mxu0 0.0
        %7881 = vmatpush1.xpose.msra.mxu0 0.0
        %7882 = vmatprep.subr.mxu0 0.0
        %7883 = vmatpush1.xpose.msra.mxu0 0.0
        %7884 = vmatprep.subr.mxu0 0.0
        %7885 = vmatpush1.xpose.msra.mxu0 0.0
        %7886 = vmatprep.subr.mxu0 0.0
        %7887 = vmatpush1.xpose.msra.mxu0 0.0
        %7888 = vmatprep.subr.mxu0 0.0
        %7889 = vmatpush1.xpose.msra.mxu0 0.0
        %7890 = vmatprep.subr.mxu0 0.0
        %7891 = vmatpush1.xpose.msra.mxu0 0.0
        %7892 = vmatprep.subr.mxu0 0.0
        %7893 = vmatpush1.xpose.msra.mxu0 0.0
        %7894 = vmatprep.subr.mxu0 0.0
        %7895 = vmatpush1.xpose.msra.mxu0 0.0
        %7896 = vmatprep.subr.mxu0 0.0
        %7897 = vmatpush1.xpose.msra.mxu0 0.0
        %7898 = vmatprep.subr.mxu0 0.0
        %7899 = vmatpush1.xpose.msra.mxu0 0.0
        %7900 = vmatprep.subr.mxu0 0.0
        %7901 = vmatpush1.xpose.msra.mxu0 0.0
        %7902 = vmatprep.subr.mxu0 0.0
        %7903 = vmatpush1.xpose.msra.mxu0 0.0
        %7904 = vmatprep.subr.mxu0 0.0
        %7905 = vmatpush1.xpose.msra.mxu0 0.0
        %7906 = vmatprep.subr.mxu0 0.0
        %7907 = vmatpush1.xpose.msra.mxu0 0.0
        %7908 = vmatprep.subr.mxu0 0.0
        %7909 = vmatpush1.xpose.msra.mxu0 0.0
        %7910 = vmatprep.subr.mxu0 0.0
        %7911 = vmatpush1.xpose.msra.mxu0 0.0
        %7912 = vmatprep.subr.mxu0 0.0
        %7913 = vmatpush1.xpose.msra.mxu0 0.0
        %7914 = vmatprep.subr.mxu0 0.0
        %7915 = vmatpush1.xpose.msra.mxu0 0.0
        %7916 = vmatprep.subr.mxu0 0.0
        %7917 = vmatpush1.xpose.msra.mxu0 0.0
        %7918 = vmatprep.subr.mxu0 0.0
        %7919 = vmatpush1.xpose.msra.mxu0 0.0
        %7920 = vmatprep.subr.mxu0 0.0
        %7921 = vmatpush1.xpose.msra.mxu0 0.0
        %7922 = vmatprep.subr.mxu0 0.0
        %7923 = vmatpush1.xpose.msra.mxu0 0.0
        %7924 = vmatprep.mubr.f32.mxu0 0.0
        %7925 = vmatmul.mubr.f32.gmra.mrb[0].mxu0 %v7855
        %v7926 = vpop.f32.mrb[0].mxu0
        %v7927 = vadd.f32 0.0, %v7926
        %v7928 = vpop.f32.mrb[0].mxu0
        %7929 = vdwg.mxu0
        %v7930 = vcombine.high %v7515, %v7515
        %v7932 = vunpack.c.l.s4 1966171168
        %v7933 = vunpack.c.0.s8 %v7932
        %v7934 = vlaneseq
        %v7935 = vshrl.u32 %v7934, 7
        %v7936 = vsub.s32 %v7933, %v7935
        %v7937 = vrot.slane %v7515, %v7936
        %v7939 = vunpack.c.l.s4 1966171168
        %v7940 = vunpack.c.0.s8 %v7939
        %v7941 = vlaneseq
        %v7942 = vshrl.u32 %v7941, 7
        %v7943 = vsub.s32 %v7940, %v7942
        %v7944 = vrot.slane %v7930, %v7943
        %v7945 = vcombine.high %v7937, %v7937
        %v7946 = vcombine.high %v7944, %v7944
        %v7948 = vunpack.c.l.s4 1966171168
        %v7949 = vunpack.c.0.s8 %v7948
        %v7950 = vlaneseq
        %v7951 = vshrl.u32 %v7950, 7
        %v7952 = vsub.s32 %v7949, %v7951
        %v7953 = vrot.slane %v7937, %v7952
        %v7955 = vunpack.c.l.s4 1966171168
        %v7956 = vunpack.c.0.s8 %v7955
        %v7957 = vlaneseq
        %v7958 = vshrl.u32 %v7957, 7
        %v7959 = vsub.s32 %v7956, %v7958
        %v7960 = vrot.slane %v7944, %v7959
        %v7962 = vunpack.c.l.s4 1966171168
        %v7963 = vunpack.c.0.s8 %v7962
        %v7964 = vlaneseq
        %v7965 = vshrl.u32 %v7964, 7
        %v7966 = vsub.s32 %v7963, %v7965
        %v7967 = vrot.slane %v7945, %v7966
        %v7969 = vunpack.c.l.s4 1966171168
        %v7970 = vunpack.c.0.s8 %v7969
        %v7971 = vlaneseq
        %v7972 = vshrl.u32 %v7971, 7
        %v7973 = vsub.s32 %v7970, %v7972
        %v7974 = vrot.slane %v7946, %v7973
        %v7975 = vcombine.high %v7953, %v7953
        %v7976 = vcombine.high %v7960, %v7960
        %v7977 = vcombine.high %v7967, %v7967
        %v7978 = vcombine.high %v7974, %v7974
        %v7979 = vcombine.high %v7521, %v7521
        %v7981 = vunpack.c.l.s4 1966171168
        %v7982 = vunpack.c.0.s8 %v7981
        %v7983 = vlaneseq
        %v7984 = vshrl.u32 %v7983, 7
        %v7985 = vsub.s32 %v7982, %v7984
        %v7986 = vrot.slane %v7521, %v7985
        %v7988 = vunpack.c.l.s4 1966171168
        %v7989 = vunpack.c.0.s8 %v7988
        %v7990 = vlaneseq
        %v7991 = vshrl.u32 %v7990, 7
        %v7992 = vsub.s32 %v7989, %v7991
        %v7993 = vrot.slane %v7979, %v7992
        %v7994 = vcombine.high %v7986, %v7986
        %v7995 = vcombine.high %v7993, %v7993
        %v7997 = vunpack.c.l.s4 1966171168
        %v7998 = vunpack.c.0.s8 %v7997
        %v7999 = vlaneseq
        %v8000 = vshrl.u32 %v7999, 7
        %v8001 = vsub.s32 %v7998, %v8000
        %v8002 = vrot.slane %v7986, %v8001
        %v8004 = vunpack.c.l.s4 1966171168
        %v8005 = vunpack.c.0.s8 %v8004
        %v8006 = vlaneseq
        %v8007 = vshrl.u32 %v8006, 7
        %v8008 = vsub.s32 %v8005, %v8007
        %v8009 = vrot.slane %v7993, %v8008
        %v8011 = vunpack.c.l.s4 1966171168
        %v8012 = vunpack.c.0.s8 %v8011
        %v8013 = vlaneseq
        %v8014 = vshrl.u32 %v8013, 7
        %v8015 = vsub.s32 %v8012, %v8014
        %v8016 = vrot.slane %v7994, %v8015
        %v8018 = vunpack.c.l.s4 1966171168
        %v8019 = vunpack.c.0.s8 %v8018
        %v8020 = vlaneseq
        %v8021 = vshrl.u32 %v8020, 7
        %v8022 = vsub.s32 %v8019, %v8021
        %v8023 = vrot.slane %v7995, %v8022
        %v8024 = vcombine.high %v8002, %v8002
        %v8025 = vcombine.high %v8009, %v8009
        %v8026 = vcombine.high %v8016, %v8016
        %v8027 = vcombine.high %v8023, %v8023
        %v8028 = vcombine.high %v7527, %v7527
        %v8030 = vunpack.c.l.s4 1966171168
        %v8031 = vunpack.c.0.s8 %v8030
        %v8032 = vlaneseq
        %v8033 = vshrl.u32 %v8032, 7
        %v8034 = vsub.s32 %v8031, %v8033
        %v8035 = vrot.slane %v7527, %v8034
        %v8037 = vunpack.c.l.s4 1966171168
        %v8038 = vunpack.c.0.s8 %v8037
        %v8039 = vlaneseq
        %v8040 = vshrl.u32 %v8039, 7
        %v8041 = vsub.s32 %v8038, %v8040
        %v8042 = vrot.slane %v8028, %v8041
        %v8043 = vcombine.high %v8035, %v8035
        %v8044 = vcombine.high %v8042, %v8042
        %v8046 = vunpack.c.l.s4 1966171168
        %v8047 = vunpack.c.0.s8 %v8046
        %v8048 = vlaneseq
        %v8049 = vshrl.u32 %v8048, 7
        %v8050 = vsub.s32 %v8047, %v8049
        %v8051 = vrot.slane %v8035, %v8050
        %v8053 = vunpack.c.l.s4 1966171168
        %v8054 = vunpack.c.0.s8 %v8053
        %v8055 = vlaneseq
        %v8056 = vshrl.u32 %v8055, 7
        %v8057 = vsub.s32 %v8054, %v8056
        %v8058 = vrot.slane %v8042, %v8057
        %v8060 = vunpack.c.l.s4 1966171168
        %v8061 = vunpack.c.0.s8 %v8060
        %v8062 = vlaneseq
        %v8063 = vshrl.u32 %v8062, 7
        %v8064 = vsub.s32 %v8061, %v8063
        %v8065 = vrot.slane %v8043, %v8064
        %v8067 = vunpack.c.l.s4 1966171168
        %v8068 = vunpack.c.0.s8 %v8067
        %v8069 = vlaneseq
        %v8070 = vshrl.u32 %v8069, 7
        %v8071 = vsub.s32 %v8068, %v8070
        %v8072 = vrot.slane %v8044, %v8071
        %v8073 = vcombine.high %v8051, %v8051
        %v8074 = vcombine.high %v8058, %v8058
        %v8075 = vcombine.high %v8065, %v8065
        %v8076 = vcombine.high %v8072, %v8072
        %v8077 = vcombine.high %v7533, %v7533
        %v8079 = vunpack.c.l.s4 1966171168
        %v8080 = vunpack.c.0.s8 %v8079
        %v8081 = vlaneseq
        %v8082 = vshrl.u32 %v8081, 7
        %v8083 = vsub.s32 %v8080, %v8082
        %v8084 = vrot.slane %v7533, %v8083
        %v8086 = vunpack.c.l.s4 1966171168
        %v8087 = vunpack.c.0.s8 %v8086
        %v8088 = vlaneseq
        %v8089 = vshrl.u32 %v8088, 7
        %v8090 = vsub.s32 %v8087, %v8089
        %v8091 = vrot.slane %v8077, %v8090
        %v8092 = vcombine.high %v8084, %v8084
        %v8093 = vcombine.high %v8091, %v8091
        %v8095 = vunpack.c.l.s4 1966171168
        %v8096 = vunpack.c.0.s8 %v8095
        %v8097 = vlaneseq
        %v8098 = vshrl.u32 %v8097, 7
        %v8099 = vsub.s32 %v8096, %v8098
        %v8100 = vrot.slane %v8084, %v8099
        %v8102 = vunpack.c.l.s4 1966171168
        %v8103 = vunpack.c.0.s8 %v8102
        %v8104 = vlaneseq
        %v8105 = vshrl.u32 %v8104, 7
        %v8106 = vsub.s32 %v8103, %v8105
        %v8107 = vrot.slane %v8091, %v8106
        %v8109 = vunpack.c.l.s4 1966171168
        %v8110 = vunpack.c.0.s8 %v8109
        %v8111 = vlaneseq
        %v8112 = vshrl.u32 %v8111, 7
        %v8113 = vsub.s32 %v8110, %v8112
        %v8114 = vrot.slane %v8092, %v8113
        %v8116 = vunpack.c.l.s4 1966171168
        %v8117 = vunpack.c.0.s8 %v8116
        %v8118 = vlaneseq
        %v8119 = vshrl.u32 %v8118, 7
        %v8120 = vsub.s32 %v8117, %v8119
        %v8121 = vrot.slane %v8093, %v8120
        %v8122 = vcombine.high %v8100, %v8100
        %v8123 = vcombine.high %v8107, %v8107
        %v8124 = vcombine.high %v8114, %v8114
        %v8125 = vcombine.high %v8121, %v8121
        %v8126 = vlaneseq
        %v8127 = vshrl.u32 %v8126, 7
        %v8128 = vsub.s32 0, %v8127
        %v8129 = vrot.slane %v7953, %v8128
        %v8130 = vlaneseq
        %v8131 = vshrl.u32 %v8130, 7
        %v8132 = vsub.s32 0, %v8131
        %v8133 = vrot.slane %v7967, %v8132
        %v8134 = vlaneseq
        %v8135 = vshrl.u32 %v8134, 7
        %v8136 = vsub.s32 0, %v8135
        %v8137 = vrot.slane %v7975, %v8136
        %v8138 = vlaneseq
        %v8139 = vshrl.u32 %v8138, 7
        %v8140 = vsub.s32 0, %v8139
        %v8141 = vrot.slane %v7977, %v8140
        %v8142 = vlaneseq
        %v8143 = vshrl.u32 %v8142, 7
        %v8144 = vsub.s32 0, %v8143
        %v8145 = vrot.slane %v7960, %v8144
        %v8146 = vlaneseq
        %v8147 = vshrl.u32 %v8146, 7
        %v8148 = vsub.s32 0, %v8147
        %v8149 = vrot.slane %v7974, %v8148
        %v8150 = vlaneseq
        %v8151 = vshrl.u32 %v8150, 7
        %v8152 = vsub.s32 0, %v8151
        %v8153 = vrot.slane %v7976, %v8152
        %v8154 = vlaneseq
        %v8155 = vshrl.u32 %v8154, 7
        %v8156 = vsub.s32 0, %v8155
        %v8157 = vrot.slane %v7978, %v8156
        %v8158 = vlaneseq
        %v8159 = vshrl.u32 %v8158, 7
        %v8160 = vsub.s32 0, %v8159
        %v8161 = vrot.slane %v8002, %v8160
        %v8162 = vlaneseq
        %v8163 = vshrl.u32 %v8162, 7
        %v8164 = vsub.s32 0, %v8163
        %v8165 = vrot.slane %v8016, %v8164
        %v8166 = vlaneseq
        %v8167 = vshrl.u32 %v8166, 7
        %v8168 = vsub.s32 0, %v8167
        %v8169 = vrot.slane %v8024, %v8168
        %v8170 = vlaneseq
        %v8171 = vshrl.u32 %v8170, 7
        %v8172 = vsub.s32 0, %v8171
        %v8173 = vrot.slane %v8026, %v8172
        %v8174 = vlaneseq
        %v8175 = vshrl.u32 %v8174, 7
        %v8176 = vsub.s32 0, %v8175
        %v8177 = vrot.slane %v8009, %v8176
        %v8178 = vlaneseq
        %v8179 = vshrl.u32 %v8178, 7
        %v8180 = vsub.s32 0, %v8179
        %v8181 = vrot.slane %v8023, %v8180
        %v8182 = vlaneseq
        %v8183 = vshrl.u32 %v8182, 7
        %v8184 = vsub.s32 0, %v8183
        %v8185 = vrot.slane %v8025, %v8184
        %v8186 = vlaneseq
        %v8187 = vshrl.u32 %v8186, 7
        %v8188 = vsub.s32 0, %v8187
        %v8189 = vrot.slane %v8027, %v8188
        %v8190 = vlaneseq
        %v8191 = vshrl.u32 %v8190, 7
        %v8192 = vsub.s32 0, %v8191
        %v8193 = vrot.slane %v8051, %v8192
        %v8194 = vlaneseq
        %v8195 = vshrl.u32 %v8194, 7
        %v8196 = vsub.s32 0, %v8195
        %v8197 = vrot.slane %v8065, %v8196
        %v8198 = vlaneseq
        %v8199 = vshrl.u32 %v8198, 7
        %v8200 = vsub.s32 0, %v8199
        %v8201 = vrot.slane %v8073, %v8200
        %v8202 = vlaneseq
        %v8203 = vshrl.u32 %v8202, 7
        %v8204 = vsub.s32 0, %v8203
        %v8205 = vrot.slane %v8075, %v8204
        %v8206 = vlaneseq
        %v8207 = vshrl.u32 %v8206, 7
        %v8208 = vsub.s32 0, %v8207
        %v8209 = vrot.slane %v8058, %v8208
        %v8210 = vlaneseq
        %v8211 = vshrl.u32 %v8210, 7
        %v8212 = vsub.s32 0, %v8211
        %v8213 = vrot.slane %v8072, %v8212
        %v8214 = vlaneseq
        %v8215 = vshrl.u32 %v8214, 7
        %v8216 = vsub.s32 0, %v8215
        %v8217 = vrot.slane %v8074, %v8216
        %v8218 = vlaneseq
        %v8219 = vshrl.u32 %v8218, 7
        %v8220 = vsub.s32 0, %v8219
        %v8221 = vrot.slane %v8076, %v8220
        %v8222 = vlaneseq
        %v8223 = vshrl.u32 %v8222, 7
        %v8224 = vsub.s32 0, %v8223
        %v8225 = vrot.slane %v8100, %v8224
        %v8226 = vlaneseq
        %v8227 = vshrl.u32 %v8226, 7
        %v8228 = vsub.s32 0, %v8227
        %v8229 = vrot.slane %v8114, %v8228
        %v8230 = vlaneseq
        %v8231 = vshrl.u32 %v8230, 7
        %v8232 = vsub.s32 0, %v8231
        %v8233 = vrot.slane %v8122, %v8232
        %v8234 = vlaneseq
        %v8235 = vshrl.u32 %v8234, 7
        %v8236 = vsub.s32 0, %v8235
        %v8237 = vrot.slane %v8124, %v8236
        %v8238 = vlaneseq
        %v8239 = vshrl.u32 %v8238, 7
        %v8240 = vsub.s32 0, %v8239
        %v8241 = vrot.slane %v8107, %v8240
        %v8242 = vlaneseq
        %v8243 = vshrl.u32 %v8242, 7
        %v8244 = vsub.s32 0, %v8243
        %v8245 = vrot.slane %v8121, %v8244
        %v8246 = vlaneseq
        %v8247 = vshrl.u32 %v8246, 7
        %v8248 = vsub.s32 0, %v8247
        %v8249 = vrot.slane %v8123, %v8248
        %v8250 = vlaneseq
        %v8251 = vshrl.u32 %v8250, 7
        %v8252 = vsub.s32 0, %v8251
        %v8253 = vrot.slane %v8125, %v8252
        %v8286 = vmul.f32 %v8129, %v3422
        %v8287 = vmul.f32 %v8133, %v3423
        %v8288 = vmul.f32 %v8137, %v3424
        %v8289 = vmul.f32 %v8141, %v3425
        %v8290 = vmul.f32 %v8145, %v3426
        %v8291 = vmul.f32 %v8149, %v3427
        %v8292 = vmul.f32 %v8153, %v3428
        %v8293 = vmul.f32 %v8157, %v3429
        %v8294 = vmul.f32 %v8161, %v3430
        %v8295 = vmul.f32 %v8165, %v3431
        %v8296 = vmul.f32 %v8169, %v3432
        %v8297 = vmul.f32 %v8173, %v3433
        %v8298 = vmul.f32 %v8177, %v3434
        %v8299 = vmul.f32 %v8181, %v3435
        %v8300 = vmul.f32 %v8185, %v3436
        %v8301 = vmul.f32 %v8189, %v3437
        %v8302 = vmul.f32 %v8193, %v3438
        %v8303 = vmul.f32 %v8197, %v3439
        %v8304 = vmul.f32 %v8201, %v3440
        %v8305 = vmul.f32 %v8205, %v3441
        %v8306 = vmul.f32 %v8209, %v3442
        %v8307 = vmul.f32 %v8213, %v3443
        %v8308 = vmul.f32 %v8217, %v3444
        %v8309 = vmul.f32 %v8221, %v3445
        %v8310 = vmul.f32 %v8225, %v3446
        %v8311 = vmul.f32 %v8229, %v3447
        %v8312 = vmul.f32 %v8233, %v3448
        %v8313 = vmul.f32 %v8237, %v3449
        %v8314 = vmul.f32 %v8241, %v3450
        %v8315 = vmul.f32 %v8245, %v3451
        %v8316 = vmul.f32 %v8249, %v3452
        %v8317 = vmul.f32 %v8253, %v3453
        %v8318 = vsel %vm3506, %v8286, 0.0
        %8319 = vadd.xlane.f32.xlu0 %v8318
        %v8320 = vpop.xlane.xlu0 %8319
        %v8321 = vsel %vm3506, %v8287, 0.0
        %8322 = vadd.xlane.f32.xlu0 %v8321
        %v8323 = vpop.xlane.xlu0 %8322
        %v8324 = vsel %vm3506, %v8288, 0.0
        %8325 = vadd.xlane.f32.xlu0 %v8324
        %v8326 = vpop.xlane.xlu0 %8325
        %v8327 = vsel %vm3506, %v8289, 0.0
        %8328 = vadd.xlane.f32.xlu0 %v8327
        %v8329 = vpop.xlane.xlu0 %8328
        %v8330 = vsel %vm3506, %v8290, 0.0
        %8331 = vadd.xlane.f32.xlu0 %v8330
        %v8332 = vpop.xlane.xlu0 %8331
        %v8333 = vsel %vm3506, %v8291, 0.0
        %8334 = vadd.xlane.f32.xlu0 %v8333
        %v8335 = vpop.xlane.xlu0 %8334
        %v8336 = vsel %vm3506, %v8292, 0.0
        %8337 = vadd.xlane.f32.xlu0 %v8336
        %v8338 = vpop.xlane.xlu0 %8337
        %v8339 = vsel %vm3506, %v8293, 0.0
        %8340 = vadd.xlane.f32.xlu0 %v8339
        %v8341 = vpop.xlane.xlu0 %8340
        %v8342 = vsel %vm3506, %v8294, 0.0
        %8343 = vadd.xlane.f32.xlu0 %v8342
        %v8344 = vpop.xlane.xlu0 %8343
        %v8345 = vsel %vm3506, %v8295, 0.0
        %8346 = vadd.xlane.f32.xlu0 %v8345
        %v8347 = vpop.xlane.xlu0 %8346
        %v8348 = vsel %vm3506, %v8296, 0.0
        %8349 = vadd.xlane.f32.xlu0 %v8348
        %v8350 = vpop.xlane.xlu0 %8349
        %v8351 = vsel %vm3506, %v8297, 0.0
        %8352 = vadd.xlane.f32.xlu0 %v8351
        %v8353 = vpop.xlane.xlu0 %8352
        %v8354 = vsel %vm3506, %v8298, 0.0
        %8355 = vadd.xlane.f32.xlu0 %v8354
        %v8356 = vpop.xlane.xlu0 %8355
        %v8357 = vsel %vm3506, %v8299, 0.0
        %8358 = vadd.xlane.f32.xlu0 %v8357
        %v8359 = vpop.xlane.xlu0 %8358
        %v8360 = vsel %vm3506, %v8300, 0.0
        %8361 = vadd.xlane.f32.xlu0 %v8360
        %v8362 = vpop.xlane.xlu0 %8361
        %v8363 = vsel %vm3506, %v8301, 0.0
        %8364 = vadd.xlane.f32.xlu0 %v8363
        %v8365 = vpop.xlane.xlu0 %8364
        %v8366 = vsel %vm3506, %v8302, 0.0
        %8367 = vadd.xlane.f32.xlu0 %v8366
        %v8368 = vpop.xlane.xlu0 %8367
        %v8369 = vsel %vm3506, %v8303, 0.0
        %8370 = vadd.xlane.f32.xlu0 %v8369
        %v8371 = vpop.xlane.xlu0 %8370
        %v8372 = vsel %vm3506, %v8304, 0.0
        %8373 = vadd.xlane.f32.xlu0 %v8372
        %v8374 = vpop.xlane.xlu0 %8373
        %v8375 = vsel %vm3506, %v8305, 0.0
        %8376 = vadd.xlane.f32.xlu0 %v8375
        %v8377 = vpop.xlane.xlu0 %8376
        %v8378 = vsel %vm3506, %v8306, 0.0
        %8379 = vadd.xlane.f32.xlu0 %v8378
        %v8380 = vpop.xlane.xlu0 %8379
        %v8381 = vsel %vm3506, %v8307, 0.0
        %8382 = vadd.xlane.f32.xlu0 %v8381
        %v8383 = vpop.xlane.xlu0 %8382
        %v8384 = vsel %vm3506, %v8308, 0.0
        %8385 = vadd.xlane.f32.xlu0 %v8384
        %v8386 = vpop.xlane.xlu0 %8385
        %v8387 = vsel %vm3506, %v8309, 0.0
        %8388 = vadd.xlane.f32.xlu0 %v8387
        %v8389 = vpop.xlane.xlu0 %8388
        %v8390 = vsel %vm3506, %v8310, 0.0
        %8391 = vadd.xlane.f32.xlu0 %v8390
        %v8392 = vpop.xlane.xlu0 %8391
        %v8393 = vsel %vm3506, %v8311, 0.0
        %8394 = vadd.xlane.f32.xlu0 %v8393
        %v8395 = vpop.xlane.xlu0 %8394
        %v8396 = vsel %vm3506, %v8312, 0.0
        %8397 = vadd.xlane.f32.xlu0 %v8396
        %v8398 = vpop.xlane.xlu0 %8397
        %v8399 = vsel %vm3506, %v8313, 0.0
        %8400 = vadd.xlane.f32.xlu0 %v8399
        %v8401 = vpop.xlane.xlu0 %8400
        %v8402 = vsel %vm3506, %v8314, 0.0
        %8403 = vadd.xlane.f32.xlu0 %v8402
        %v8404 = vpop.xlane.xlu0 %8403
        %v8405 = vsel %vm3506, %v8315, 0.0
        %8406 = vadd.xlane.f32.xlu0 %v8405
        %v8407 = vpop.xlane.xlu0 %8406
        %v8408 = vsel %vm3506, %v8316, 0.0
        %8409 = vadd.xlane.f32.xlu0 %v8408
        %v8410 = vpop.xlane.xlu0 %8409
        %v8411 = vsel %vm3506, %v8317, 0.0
        %8412 = vadd.xlane.f32.xlu0 %v8411
        %v8413 = vpop.xlane.xlu0 %8412
        %v8446 = vlaneseq
        %v8447 = vshrl.u32 %v8446, 7
        %v8448 = vsub.s32 %v4518, %v8447
        %v8449 = vrot.slane %v8320, %v8448
        %v8450 = vlaneseq
        %v8451 = vshrl.u32 %v8450, 7
        %v8452 = vsub.s32 %v4518, %v8451
        %v8453 = vrot.slane %v8323, %v8452
        %v8454 = vlaneseq
        %v8455 = vshrl.u32 %v8454, 7
        %v8456 = vsub.s32 %v4518, %v8455
        %v8457 = vrot.slane %v8326, %v8456
        %v8458 = vlaneseq
        %v8459 = vshrl.u32 %v8458, 7
        %v8460 = vsub.s32 %v4518, %v8459
        %v8461 = vrot.slane %v8329, %v8460
        %v8462 = vlaneseq
        %v8463 = vshrl.u32 %v8462, 7
        %v8464 = vsub.s32 %v4518, %v8463
        %v8465 = vrot.slane %v8332, %v8464
        %v8466 = vlaneseq
        %v8467 = vshrl.u32 %v8466, 7
        %v8468 = vsub.s32 %v4518, %v8467
        %v8469 = vrot.slane %v8335, %v8468
        %v8470 = vlaneseq
        %v8471 = vshrl.u32 %v8470, 7
        %v8472 = vsub.s32 %v4518, %v8471
        %v8473 = vrot.slane %v8338, %v8472
        %v8474 = vlaneseq
        %v8475 = vshrl.u32 %v8474, 7
        %v8476 = vsub.s32 %v4518, %v8475
        %v8477 = vrot.slane %v8341, %v8476
        %v8478 = vlaneseq
        %v8479 = vshrl.u32 %v8478, 7
        %v8480 = vsub.s32 %v4518, %v8479
        %v8481 = vrot.slane %v8344, %v8480
        %v8482 = vlaneseq
        %v8483 = vshrl.u32 %v8482, 7
        %v8484 = vsub.s32 %v4518, %v8483
        %v8485 = vrot.slane %v8347, %v8484
        %v8486 = vlaneseq
        %v8487 = vshrl.u32 %v8486, 7
        %v8488 = vsub.s32 %v4518, %v8487
        %v8489 = vrot.slane %v8350, %v8488
        %v8490 = vlaneseq
        %v8491 = vshrl.u32 %v8490, 7
        %v8492 = vsub.s32 %v4518, %v8491
        %v8493 = vrot.slane %v8353, %v8492
        %v8494 = vlaneseq
        %v8495 = vshrl.u32 %v8494, 7
        %v8496 = vsub.s32 %v4518, %v8495
        %v8497 = vrot.slane %v8356, %v8496
        %v8498 = vlaneseq
        %v8499 = vshrl.u32 %v8498, 7
        %v8500 = vsub.s32 %v4518, %v8499
        %v8501 = vrot.slane %v8359, %v8500
        %v8502 = vlaneseq
        %v8503 = vshrl.u32 %v8502, 7
        %v8504 = vsub.s32 %v4518, %v8503
        %v8505 = vrot.slane %v8362, %v8504
        %v8506 = vlaneseq
        %v8507 = vshrl.u32 %v8506, 7
        %v8508 = vsub.s32 %v4518, %v8507
        %v8509 = vrot.slane %v8365, %v8508
        %v8510 = vlaneseq
        %v8511 = vshrl.u32 %v8510, 7
        %v8512 = vsub.s32 %v4518, %v8511
        %v8513 = vrot.slane %v8368, %v8512
        %v8514 = vlaneseq
        %v8515 = vshrl.u32 %v8514, 7
        %v8516 = vsub.s32 %v4518, %v8515
        %v8517 = vrot.slane %v8371, %v8516
        %v8518 = vlaneseq
        %v8519 = vshrl.u32 %v8518, 7
        %v8520 = vsub.s32 %v4518, %v8519
        %v8521 = vrot.slane %v8374, %v8520
        %v8522 = vlaneseq
        %v8523 = vshrl.u32 %v8522, 7
        %v8524 = vsub.s32 %v4518, %v8523
        %v8525 = vrot.slane %v8377, %v8524
        %v8526 = vlaneseq
        %v8527 = vshrl.u32 %v8526, 7
        %v8528 = vsub.s32 %v4518, %v8527
        %v8529 = vrot.slane %v8380, %v8528
        %v8530 = vlaneseq
        %v8531 = vshrl.u32 %v8530, 7
        %v8532 = vsub.s32 %v4518, %v8531
        %v8533 = vrot.slane %v8383, %v8532
        %v8534 = vlaneseq
        %v8535 = vshrl.u32 %v8534, 7
        %v8536 = vsub.s32 %v4518, %v8535
        %v8537 = vrot.slane %v8386, %v8536
        %v8538 = vlaneseq
        %v8539 = vshrl.u32 %v8538, 7
        %v8540 = vsub.s32 %v4518, %v8539
        %v8541 = vrot.slane %v8389, %v8540
        %v8542 = vlaneseq
        %v8543 = vshrl.u32 %v8542, 7
        %v8544 = vsub.s32 %v4518, %v8543
        %v8545 = vrot.slane %v8392, %v8544
        %v8546 = vlaneseq
        %v8547 = vshrl.u32 %v8546, 7
        %v8548 = vsub.s32 %v4518, %v8547
        %v8549 = vrot.slane %v8395, %v8548
        %v8550 = vlaneseq
        %v8551 = vshrl.u32 %v8550, 7
        %v8552 = vsub.s32 %v4518, %v8551
        %v8553 = vrot.slane %v8398, %v8552
        %v8554 = vlaneseq
        %v8555 = vshrl.u32 %v8554, 7
        %v8556 = vsub.s32 %v4518, %v8555
        %v8557 = vrot.slane %v8401, %v8556
        %v8558 = vlaneseq
        %v8559 = vshrl.u32 %v8558, 7
        %v8560 = vsub.s32 %v4518, %v8559
        %v8561 = vrot.slane %v8404, %v8560
        %v8562 = vlaneseq
        %v8563 = vshrl.u32 %v8562, 7
        %v8564 = vsub.s32 %v4518, %v8563
        %v8565 = vrot.slane %v8407, %v8564
        %v8566 = vlaneseq
        %v8567 = vshrl.u32 %v8566, 7
        %v8568 = vsub.s32 %v4518, %v8567
        %v8569 = vrot.slane %v8410, %v8568
        %v8570 = vlaneseq
        %v8571 = vshrl.u32 %v8570, 7
        %v8572 = vsub.s32 %v4518, %v8571
        %v8573 = vrot.slane %v8413, %v8572
        %v8574 = vsel %vm4647, %v8453, %v8449
        %v8575 = vsel %vm4649, %v8457, %v8574
        %v8576 = vsel %vm4651, %v8461, %v8575
        %v8577 = vsel %vm4653, %v8465, %v8576
        %v8578 = vsel %vm4655, %v8469, %v8577
        %v8579 = vsel %vm4657, %v8473, %v8578
        %v8580 = vsel %vm4659, %v8477, %v8579
        %v8581 = vsel %vm4647, %v8485, %v8481
        %v8582 = vsel %vm4649, %v8489, %v8581
        %v8583 = vsel %vm4651, %v8493, %v8582
        %v8584 = vsel %vm4653, %v8497, %v8583
        %v8585 = vsel %vm4655, %v8501, %v8584
        %v8586 = vsel %vm4657, %v8505, %v8585
        %v8587 = vsel %vm4659, %v8509, %v8586
        %v8588 = vsel %vm4647, %v8517, %v8513
        %v8589 = vsel %vm4649, %v8521, %v8588
        %v8590 = vsel %vm4651, %v8525, %v8589
        %v8591 = vsel %vm4653, %v8529, %v8590
        %v8592 = vsel %vm4655, %v8533, %v8591
        %v8593 = vsel %vm4657, %v8537, %v8592
        %v8594 = vsel %vm4659, %v8541, %v8593
        %v8595 = vsel %vm4647, %v8549, %v8545
        %v8596 = vsel %vm4649, %v8553, %v8595
        %v8597 = vsel %vm4651, %v8557, %v8596
        %v8598 = vsel %vm4653, %v8561, %v8597
        %v8599 = vsel %vm4655, %v8565, %v8598
        %v8600 = vsel %vm4657, %v8569, %v8599
        %v8601 = vsel %vm4659, %v8573, %v8600
        %v8606 = vadd.f32 %v7699, %v8580
        %v8607 = vadd.f32 %v7775, %v8587
        %v8608 = vadd.f32 %v7851, %v8594
        %v8609 = vadd.f32 %v7927, %v8601
        %v8610 = vmul.f32 %v8606, 0.17677669
        %v8611 = vmul.f32 %v8607, 0.17677669
        %v8612 = vmul.f32 %v8608, 0.17677669
        %v8613 = vmul.f32 %v8609, 0.17677669
        %v8614 = vadd.f32 %v8610, %v400
        %v8615 = vadd.f32 %v8611, %v401
        %v8616 = vadd.f32 %v8612, %v402
        %v8617 = vadd.f32 %v8613, %v403
        %v8618 = vsel %vm4698, %v8614, -inf
        %8619 = vmax.xlane.f32.xlu0 %v8618
        %v8620 = vpop.xlane.xlu0 %8619
        %v8621 = vsel %vm4698, %v8615, -inf
        %8622 = vmax.xlane.f32.xlu0 %v8621
        %v8623 = vpop.xlane.xlu0 %8622
        %v8624 = vsel %vm4698, %v8616, -inf
        %8625 = vmax.xlane.f32.xlu0 %v8624
        %v8626 = vpop.xlane.xlu0 %8625
        %v8627 = vsel %vm4698, %v8617, -inf
        %8628 = vmax.xlane.f32.xlu0 %v8627
        %v8629 = vpop.xlane.xlu0 %8628
        %v8630 = vsub.f32 %v8614, %v8620
        %v8631 = vsub.f32 %v8615, %v8623
        %v8632 = vsub.f32 %v8616, %v8626
        %v8633 = vsub.f32 %v8617, %v8629
        %v8634 = vmul.f32 %v8630, 1.442695
        %v8635 = vpow.pop %v8634
        %v8636 = vmul.f32 %v8631, 1.442695
        %v8637 = vpow.pop %v8636
        %v8638 = vmul.f32 %v8632, 1.442695
        %v8639 = vpow.pop %v8638
        %v8640 = vmul.f32 %v8633, 1.442695
        %v8641 = vpow.pop %v8640
        %v8642 = vsel %vm4698, %v8635, 0.0
        %8643 = vadd.xlane.f32.xlu0 %v8642
        %v8644 = vpop.xlane.xlu0 %8643
        %v8645 = vsel %vm4698, %v8637, 0.0
        %8646 = vadd.xlane.f32.xlu0 %v8645
        %v8647 = vpop.xlane.xlu0 %8646
        %v8648 = vsel %vm4698, %v8639, 0.0
        %8649 = vadd.xlane.f32.xlu0 %v8648
        %v8650 = vpop.xlane.xlu0 %8649
        %v8651 = vsel %vm4698, %v8641, 0.0
        %8652 = vadd.xlane.f32.xlu0 %v8651
        %v8653 = vpop.xlane.xlu0 %8652
        %v8654 = vrcp.pop %v8644
        %v8655 = vrcp.pop %v8647
        %v8656 = vrcp.pop %v8650
        %v8657 = vrcp.pop %v8653
        %v8658 = vmul.f32 %v8635, %v8654
        %v8659 = vmul.f32 %v8637, %v8655
        %v8660 = vmul.f32 %v8639, %v8656
        %v8661 = vmul.f32 %v8641, %v8657
        %v8662 = vmul.f32 %v8658, %v408
        %v8663 = vmul.f32 %v8659, %v409
        %v8664 = vmul.f32 %v8660, %v410
        %v8665 = vmul.f32 %v8661, %v411
        %v8667 = vsel %vm4698, %v8662, 0
        %8669 = vmatprep.subr.mxu0 0.0
        %8670 = vmatpush1.msra.mxu0 %v7604
        %8671 = vmatprep.subr.mxu0 0.0
        %8672 = vmatpush1.msra.mxu0 0.0
        %8673 = vmatprep.subr.mxu0 0.0
        %8674 = vmatpush1.msra.mxu0 0.0
        %8675 = vmatprep.subr.mxu0 0.0
        %8676 = vmatpush1.msra.mxu0 0.0
        %8677 = vmatprep.subr.mxu0 0.0
        %8678 = vmatpush1.msra.mxu0 0.0
        %8679 = vmatprep.subr.mxu0 0.0
        %8680 = vmatpush1.msra.mxu0 0.0
        %8681 = vmatprep.subr.mxu0 0.0
        %8682 = vmatpush1.msra.mxu0 0.0
        %8683 = vmatprep.subr.mxu0 0.0
        %8684 = vmatpush1.msra.mxu0 0.0
        %8685 = vmatprep.subr.mxu0 0.0
        %8686 = vmatpush1.msra.mxu0 0.0
        %8687 = vmatprep.subr.mxu0 0.0
        %8688 = vmatpush1.msra.mxu0 0.0
        %8689 = vmatprep.subr.mxu0 0.0
        %8690 = vmatpush1.msra.mxu0 0.0
        %8691 = vmatprep.subr.mxu0 0.0
        %8692 = vmatpush1.msra.mxu0 0.0
        %8693 = vmatprep.subr.mxu0 0.0
        %8694 = vmatpush1.msra.mxu0 0.0
        %8695 = vmatprep.subr.mxu0 0.0
        %8696 = vmatpush1.msra.mxu0 0.0
        %8697 = vmatprep.subr.mxu0 0.0
        %8698 = vmatpush1.msra.mxu0 0.0
        %8699 = vmatprep.subr.mxu0 0.0
        %8700 = vmatpush1.msra.mxu0 0.0
        %8701 = vmatprep.subr.mxu0 0.0
        %8702 = vmatpush1.msra.mxu0 0.0
        %8703 = vmatprep.subr.mxu0 0.0
        %8704 = vmatpush1.msra.mxu0 0.0
        %8705 = vmatprep.subr.mxu0 0.0
        %8706 = vmatpush1.msra.mxu0 0.0
        %8707 = vmatprep.subr.mxu0 0.0
        %8708 = vmatpush1.msra.mxu0 0.0
        %8709 = vmatprep.subr.mxu0 0.0
        %8710 = vmatpush1.msra.mxu0 0.0
        %8711 = vmatprep.subr.mxu0 0.0
        %8712 = vmatpush1.msra.mxu0 0.0
        %8713 = vmatprep.subr.mxu0 0.0
        %8714 = vmatpush1.msra.mxu0 0.0
        %8715 = vmatprep.subr.mxu0 0.0
        %8716 = vmatpush1.msra.mxu0 0.0
        %8717 = vmatprep.subr.mxu0 0.0
        %8718 = vmatpush1.msra.mxu0 0.0
        %8719 = vmatprep.subr.mxu0 0.0
        %8720 = vmatpush1.msra.mxu0 0.0
        %8721 = vmatprep.subr.mxu0 0.0
        %8722 = vmatpush1.msra.mxu0 0.0
        %8723 = vmatprep.subr.mxu0 0.0
        %8724 = vmatpush1.msra.mxu0 0.0
        %8725 = vmatprep.subr.mxu0 0.0
        %8726 = vmatpush1.msra.mxu0 0.0
        %8727 = vmatprep.subr.mxu0 0.0
        %8728 = vmatpush1.msra.mxu0 0.0
        %8729 = vmatprep.subr.mxu0 0.0
        %8730 = vmatpush1.msra.mxu0 0.0
        %8731 = vmatprep.subr.mxu0 0.0
        %8732 = vmatpush1.msra.mxu0 0.0
        %8733 = vmatprep.mubr.f32.mxu0 0.0
        %8734 = vmatmul.mubr.f32.gmra.mrb[0].mxu0 %v8667
        %v8735 = vpop.f32.mrb[0].mxu0
        %v8736 = vadd.f32 0.0, %v8735
        %v8737 = vpop.f32.mrb[0].mxu0
        %8738 = vdwg.mxu0
        %v8740 = vsel %vm4698, %v8663, 0
        %8742 = vmatprep.subr.mxu0 0.0
        %8743 = vmatpush1.msra.mxu0 %v7610
        %8744 = vmatprep.subr.mxu0 0.0
        %8745 = vmatpush1.msra.mxu0 0.0
        %8746 = vmatprep.subr.mxu0 0.0
        %8747 = vmatpush1.msra.mxu0 0.0
        %8748 = vmatprep.subr.mxu0 0.0
        %8749 = vmatpush1.msra.mxu0 0.0
        %8750 = vmatprep.subr.mxu0 0.0
        %8751 = vmatpush1.msra.mxu0 0.0
        %8752 = vmatprep.subr.mxu0 0.0
        %8753 = vmatpush1.msra.mxu0 0.0
        %8754 = vmatprep.subr.mxu0 0.0
        %8755 = vmatpush1.msra.mxu0 0.0
        %8756 = vmatprep.subr.mxu0 0.0
        %8757 = vmatpush1.msra.mxu0 0.0
        %8758 = vmatprep.subr.mxu0 0.0
        %8759 = vmatpush1.msra.mxu0 0.0
        %8760 = vmatprep.subr.mxu0 0.0
        %8761 = vmatpush1.msra.mxu0 0.0
        %8762 = vmatprep.subr.mxu0 0.0
        %8763 = vmatpush1.msra.mxu0 0.0
        %8764 = vmatprep.subr.mxu0 0.0
        %8765 = vmatpush1.msra.mxu0 0.0
        %8766 = vmatprep.subr.mxu0 0.0
        %8767 = vmatpush1.msra.mxu0 0.0
        %8768 = vmatprep.subr.mxu0 0.0
        %8769 = vmatpush1.msra.mxu0 0.0
        %8770 = vmatprep.subr.mxu0 0.0
        %8771 = vmatpush1.msra.mxu0 0.0
        %8772 = vmatprep.subr.mxu0 0.0
        %8773 = vmatpush1.msra.mxu0 0.0
        %8774 = vmatprep.subr.mxu0 0.0
        %8775 = vmatpush1.msra.mxu0 0.0
        %8776 = vmatprep.subr.mxu0 0.0
        %8777 = vmatpush1.msra.mxu0 0.0
        %8778 = vmatprep.subr.mxu0 0.0
        %8779 = vmatpush1.msra.mxu0 0.0
        %8780 = vmatprep.subr.mxu0 0.0
        %8781 = vmatpush1.msra.mxu0 0.0
        %8782 = vmatprep.subr.mxu0 0.0
        %8783 = vmatpush1.msra.mxu0 0.0
        %8784 = vmatprep.subr.mxu0 0.0
        %8785 = vmatpush1.msra.mxu0 0.0
        %8786 = vmatprep.subr.mxu0 0.0
        %8787 = vmatpush1.msra.mxu0 0.0
        %8788 = vmatprep.subr.mxu0 0.0
        %8789 = vmatpush1.msra.mxu0 0.0
        %8790 = vmatprep.subr.mxu0 0.0
        %8791 = vmatpush1.msra.mxu0 0.0
        %8792 = vmatprep.subr.mxu0 0.0
        %8793 = vmatpush1.msra.mxu0 0.0
        %8794 = vmatprep.subr.mxu0 0.0
        %8795 = vmatpush1.msra.mxu0 0.0
        %8796 = vmatprep.subr.mxu0 0.0
        %8797 = vmatpush1.msra.mxu0 0.0
        %8798 = vmatprep.subr.mxu0 0.0
        %8799 = vmatpush1.msra.mxu0 0.0
        %8800 = vmatprep.subr.mxu0 0.0
        %8801 = vmatpush1.msra.mxu0 0.0
        %8802 = vmatprep.subr.mxu0 0.0
        %8803 = vmatpush1.msra.mxu0 0.0
        %8804 = vmatprep.subr.mxu0 0.0
        %8805 = vmatpush1.msra.mxu0 0.0
        %8806 = vmatprep.mubr.f32.mxu0 0.0
        %8807 = vmatmul.mubr.f32.gmra.mrb[0].mxu0 %v8740
        %v8808 = vpop.f32.mrb[0].mxu0
        %v8809 = vadd.f32 0.0, %v8808
        %v8810 = vpop.f32.mrb[0].mxu0
        %8811 = vdwg.mxu0
        %v8813 = vsel %vm4698, %v8664, 0
        %8815 = vmatprep.subr.mxu0 0.0
        %8816 = vmatpush1.msra.mxu0 %v7616
        %8817 = vmatprep.subr.mxu0 0.0
        %8818 = vmatpush1.msra.mxu0 0.0
        %8819 = vmatprep.subr.mxu0 0.0
        %8820 = vmatpush1.msra.mxu0 0.0
        %8821 = vmatprep.subr.mxu0 0.0
        %8822 = vmatpush1.msra.mxu0 0.0
        %8823 = vmatprep.subr.mxu0 0.0
        %8824 = vmatpush1.msra.mxu0 0.0
        %8825 = vmatprep.subr.mxu0 0.0
        %8826 = vmatpush1.msra.mxu0 0.0
        %8827 = vmatprep.subr.mxu0 0.0
        %8828 = vmatpush1.msra.mxu0 0.0
        %8829 = vmatprep.subr.mxu0 0.0
        %8830 = vmatpush1.msra.mxu0 0.0
        %8831 = vmatprep.subr.mxu0 0.0
        %8832 = vmatpush1.msra.mxu0 0.0
        %8833 = vmatprep.subr.mxu0 0.0
        %8834 = vmatpush1.msra.mxu0 0.0
        %8835 = vmatprep.subr.mxu0 0.0
        %8836 = vmatpush1.msra.mxu0 0.0
        %8837 = vmatprep.subr.mxu0 0.0
        %8838 = vmatpush1.msra.mxu0 0.0
        %8839 = vmatprep.subr.mxu0 0.0
        %8840 = vmatpush1.msra.mxu0 0.0
        %8841 = vmatprep.subr.mxu0 0.0
        %8842 = vmatpush1.msra.mxu0 0.0
        %8843 = vmatprep.subr.mxu0 0.0
        %8844 = vmatpush1.msra.mxu0 0.0
        %8845 = vmatprep.subr.mxu0 0.0
        %8846 = vmatpush1.msra.mxu0 0.0
        %8847 = vmatprep.subr.mxu0 0.0
        %8848 = vmatpush1.msra.mxu0 0.0
        %8849 = vmatprep.subr.mxu0 0.0
        %8850 = vmatpush1.msra.mxu0 0.0
        %8851 = vmatprep.subr.mxu0 0.0
        %8852 = vmatpush1.msra.mxu0 0.0
        %8853 = vmatprep.subr.mxu0 0.0
        %8854 = vmatpush1.msra.mxu0 0.0
        %8855 = vmatprep.subr.mxu0 0.0
        %8856 = vmatpush1.msra.mxu0 0.0
        %8857 = vmatprep.subr.mxu0 0.0
        %8858 = vmatpush1.msra.mxu0 0.0
        %8859 = vmatprep.subr.mxu0 0.0
        %8860 = vmatpush1.msra.mxu0 0.0
        %8861 = vmatprep.subr.mxu0 0.0
        %8862 = vmatpush1.msra.mxu0 0.0
        %8863 = vmatprep.subr.mxu0 0.0
        %8864 = vmatpush1.msra.mxu0 0.0
        %8865 = vmatprep.subr.mxu0 0.0
        %8866 = vmatpush1.msra.mxu0 0.0
        %8867 = vmatprep.subr.mxu0 0.0
        %8868 = vmatpush1.msra.mxu0 0.0
        %8869 = vmatprep.subr.mxu0 0.0
        %8870 = vmatpush1.msra.mxu0 0.0
        %8871 = vmatprep.subr.mxu0 0.0
        %8872 = vmatpush1.msra.mxu0 0.0
        %8873 = vmatprep.subr.mxu0 0.0
        %8874 = vmatpush1.msra.mxu0 0.0
        %8875 = vmatprep.subr.mxu0 0.0
        %8876 = vmatpush1.msra.mxu0 0.0
        %8877 = vmatprep.subr.mxu0 0.0
        %8878 = vmatpush1.msra.mxu0 0.0
        %8879 = vmatprep.mubr.f32.mxu0 0.0
        %8880 = vmatmul.mubr.f32.gmra.mrb[0].mxu0 %v8813
        %v8881 = vpop.f32.mrb[0].mxu0
        %v8882 = vadd.f32 0.0, %v8881
        %v8883 = vpop.f32.mrb[0].mxu0
        %8884 = vdwg.mxu0
        %v8886 = vsel %vm4698, %v8665, 0
        %8888 = vmatprep.subr.mxu0 0.0
        %8889 = vmatpush1.msra.mxu0 %v7622
        %8890 = vmatprep.subr.mxu0 0.0
        %8891 = vmatpush1.msra.mxu0 0.0
        %8892 = vmatprep.subr.mxu0 0.0
        %8893 = vmatpush1.msra.mxu0 0.0
        %8894 = vmatprep.subr.mxu0 0.0
        %8895 = vmatpush1.msra.mxu0 0.0
        %8896 = vmatprep.subr.mxu0 0.0
        %8897 = vmatpush1.msra.mxu0 0.0
        %8898 = vmatprep.subr.mxu0 0.0
        %8899 = vmatpush1.msra.mxu0 0.0
        %8900 = vmatprep.subr.mxu0 0.0
        %8901 = vmatpush1.msra.mxu0 0.0
        %8902 = vmatprep.subr.mxu0 0.0
        %8903 = vmatpush1.msra.mxu0 0.0
        %8904 = vmatprep.subr.mxu0 0.0
        %8905 = vmatpush1.msra.mxu0 0.0
        %8906 = vmatprep.subr.mxu0 0.0
        %8907 = vmatpush1.msra.mxu0 0.0
        %8908 = vmatprep.subr.mxu0 0.0
        %8909 = vmatpush1.msra.mxu0 0.0
        %8910 = vmatprep.subr.mxu0 0.0
        %8911 = vmatpush1.msra.mxu0 0.0
        %8912 = vmatprep.subr.mxu0 0.0
        %8913 = vmatpush1.msra.mxu0 0.0
        %8914 = vmatprep.subr.mxu0 0.0
        %8915 = vmatpush1.msra.mxu0 0.0
        %8916 = vmatprep.subr.mxu0 0.0
        %8917 = vmatpush1.msra.mxu0 0.0
        %8918 = vmatprep.subr.mxu0 0.0
        %8919 = vmatpush1.msra.mxu0 0.0
        %8920 = vmatprep.subr.mxu0 0.0
        %8921 = vmatpush1.msra.mxu0 0.0
        %8922 = vmatprep.subr.mxu0 0.0
        %8923 = vmatpush1.msra.mxu0 0.0
        %8924 = vmatprep.subr.mxu0 0.0
        %8925 = vmatpush1.msra.mxu0 0.0
        %8926 = vmatprep.subr.mxu0 0.0
        %8927 = vmatpush1.msra.mxu0 0.0
        %8928 = vmatprep.subr.mxu0 0.0
        %8929 = vmatpush1.msra.mxu0 0.0
        %8930 = vmatprep.subr.mxu0 0.0
        %8931 = vmatpush1.msra.mxu0 0.0
        %8932 = vmatprep.subr.mxu0 0.0
        %8933 = vmatpush1.msra.mxu0 0.0
        %8934 = vmatprep.subr.mxu0 0.0
        %8935 = vmatpush1.msra.mxu0 0.0
        %8936 = vmatprep.subr.mxu0 0.0
        %8937 = vmatpush1.msra.mxu0 0.0
        %8938 = vmatprep.subr.mxu0 0.0
        %8939 = vmatpush1.msra.mxu0 0.0
        %8940 = vmatprep.subr.mxu0 0.0
        %8941 = vmatpush1.msra.mxu0 0.0
        %8942 = vmatprep.subr.mxu0 0.0
        %8943 = vmatpush1.msra.mxu0 0.0
        %8944 = vmatprep.subr.mxu0 0.0
        %8945 = vmatpush1.msra.mxu0 0.0
        %8946 = vmatprep.subr.mxu0 0.0
        %8947 = vmatpush1.msra.mxu0 0.0
        %8948 = vmatprep.subr.mxu0 0.0
        %8949 = vmatpush1.msra.mxu0 0.0
        %8950 = vmatprep.subr.mxu0 0.0
        %8951 = vmatpush1.msra.mxu0 0.0
        %8952 = vmatprep.mubr.f32.mxu0 0.0
        %8953 = vmatmul.mubr.f32.gmra.mrb[0].mxu0 %v8886
        %v8954 = vpop.f32.mrb[0].mxu0
        %v8955 = vadd.f32 0.0, %v8954
        %v8956 = vpop.f32.mrb[0].mxu0
        %8957 = vdwg.mxu0
        %v8958 = vlaneseq
        %v8959 = vshrl.u32 %v8958, 7
        %v8960 = vsub.s32 0, %v8959
        %v8961 = vrot.slane %v8662, %v8960
        %8963 = vbcast.lane.b32.xlu0 %v8961, 256
        %v8964 = vpop.permute.xlu0 %8963
        %v8965 = vlaneseq
        %v8966 = vshrl.u32 %v8965, 7
        %v8967 = vsub.s32 1, %v8966
        %v8968 = vrot.slane %v8662, %v8967
        %8970 = vbcast.lane.b32.xlu0 %v8968, 256
        %v8971 = vpop.permute.xlu0 %8970
        %v8972 = vlaneseq
        %v8973 = vshrl.u32 %v8972, 7
        %v8974 = vsub.s32 2, %v8973
        %v8975 = vrot.slane %v8662, %v8974
        %8977 = vbcast.lane.b32.xlu0 %v8975, 256
        %v8978 = vpop.permute.xlu0 %8977
        %v8979 = vlaneseq
        %v8980 = vshrl.u32 %v8979, 7
        %v8981 = vsub.s32 3, %v8980
        %v8982 = vrot.slane %v8662, %v8981
        %8984 = vbcast.lane.b32.xlu0 %v8982, 256
        %v8985 = vpop.permute.xlu0 %8984
        %v8986 = vlaneseq
        %v8987 = vshrl.u32 %v8986, 7
        %v8988 = vsub.s32 4, %v8987
        %v8989 = vrot.slane %v8662, %v8988
        %8991 = vbcast.lane.b32.xlu0 %v8989, 256
        %v8992 = vpop.permute.xlu0 %8991
        %v8993 = vlaneseq
        %v8994 = vshrl.u32 %v8993, 7
        %v8995 = vsub.s32 5, %v8994
        %v8996 = vrot.slane %v8662, %v8995
        %8998 = vbcast.lane.b32.xlu0 %v8996, 256
        %v8999 = vpop.permute.xlu0 %8998
        %v9000 = vlaneseq
        %v9001 = vshrl.u32 %v9000, 7
        %v9002 = vsub.s32 6, %v9001
        %v9003 = vrot.slane %v8662, %v9002
        %9005 = vbcast.lane.b32.xlu0 %v9003, 256
        %v9006 = vpop.permute.xlu0 %9005
        %v9007 = vlaneseq
        %v9008 = vshrl.u32 %v9007, 7
        %v9009 = vsub.s32 7, %v9008
        %v9010 = vrot.slane %v8662, %v9009
        %9012 = vbcast.lane.b32.xlu0 %v9010, 256
        %v9013 = vpop.permute.xlu0 %9012
        %v9014 = vlaneseq
        %v9015 = vshrl.u32 %v9014, 7
        %v9016 = vsub.s32 0, %v9015
        %v9017 = vrot.slane %v8663, %v9016
        %9019 = vbcast.lane.b32.xlu0 %v9017, 256
        %v9020 = vpop.permute.xlu0 %9019
        %v9021 = vlaneseq
        %v9022 = vshrl.u32 %v9021, 7
        %v9023 = vsub.s32 1, %v9022
        %v9024 = vrot.slane %v8663, %v9023
        %9026 = vbcast.lane.b32.xlu0 %v9024, 256
        %v9027 = vpop.permute.xlu0 %9026
        %v9028 = vlaneseq
        %v9029 = vshrl.u32 %v9028, 7
        %v9030 = vsub.s32 2, %v9029
        %v9031 = vrot.slane %v8663, %v9030
        %9033 = vbcast.lane.b32.xlu0 %v9031, 256
        %v9034 = vpop.permute.xlu0 %9033
        %v9035 = vlaneseq
        %v9036 = vshrl.u32 %v9035, 7
        %v9037 = vsub.s32 3, %v9036
        %v9038 = vrot.slane %v8663, %v9037
        %9040 = vbcast.lane.b32.xlu0 %v9038, 256
        %v9041 = vpop.permute.xlu0 %9040
        %v9042 = vlaneseq
        %v9043 = vshrl.u32 %v9042, 7
        %v9044 = vsub.s32 4, %v9043
        %v9045 = vrot.slane %v8663, %v9044
        %9047 = vbcast.lane.b32.xlu0 %v9045, 256
        %v9048 = vpop.permute.xlu0 %9047
        %v9049 = vlaneseq
        %v9050 = vshrl.u32 %v9049, 7
        %v9051 = vsub.s32 5, %v9050
        %v9052 = vrot.slane %v8663, %v9051
        %9054 = vbcast.lane.b32.xlu0 %v9052, 256
        %v9055 = vpop.permute.xlu0 %9054
        %v9056 = vlaneseq
        %v9057 = vshrl.u32 %v9056, 7
        %v9058 = vsub.s32 6, %v9057
        %v9059 = vrot.slane %v8663, %v9058
        %9061 = vbcast.lane.b32.xlu0 %v9059, 256
        %v9062 = vpop.permute.xlu0 %9061
        %v9063 = vlaneseq
        %v9064 = vshrl.u32 %v9063, 7
        %v9065 = vsub.s32 7, %v9064
        %v9066 = vrot.slane %v8663, %v9065
        %9068 = vbcast.lane.b32.xlu0 %v9066, 256
        %v9069 = vpop.permute.xlu0 %9068
        %v9070 = vlaneseq
        %v9071 = vshrl.u32 %v9070, 7
        %v9072 = vsub.s32 0, %v9071
        %v9073 = vrot.slane %v8664, %v9072
        %9075 = vbcast.lane.b32.xlu0 %v9073, 256
        %v9076 = vpop.permute.xlu0 %9075
        %v9077 = vlaneseq
        %v9078 = vshrl.u32 %v9077, 7
        %v9079 = vsub.s32 1, %v9078
        %v9080 = vrot.slane %v8664, %v9079
        %9082 = vbcast.lane.b32.xlu0 %v9080, 256
        %v9083 = vpop.permute.xlu0 %9082
        %v9084 = vlaneseq
        %v9085 = vshrl.u32 %v9084, 7
        %v9086 = vsub.s32 2, %v9085
        %v9087 = vrot.slane %v8664, %v9086
        %9089 = vbcast.lane.b32.xlu0 %v9087, 256
        %v9090 = vpop.permute.xlu0 %9089
        %v9091 = vlaneseq
        %v9092 = vshrl.u32 %v9091, 7
        %v9093 = vsub.s32 3, %v9092
        %v9094 = vrot.slane %v8664, %v9093
        %9096 = vbcast.lane.b32.xlu0 %v9094, 256
        %v9097 = vpop.permute.xlu0 %9096
        %v9098 = vlaneseq
        %v9099 = vshrl.u32 %v9098, 7
        %v9100 = vsub.s32 4, %v9099
        %v9101 = vrot.slane %v8664, %v9100
        %9103 = vbcast.lane.b32.xlu0 %v9101, 256
        %v9104 = vpop.permute.xlu0 %9103
        %v9105 = vlaneseq
        %v9106 = vshrl.u32 %v9105, 7
        %v9107 = vsub.s32 5, %v9106
        %v9108 = vrot.slane %v8664, %v9107
        %9110 = vbcast.lane.b32.xlu0 %v9108, 256
        %v9111 = vpop.permute.xlu0 %9110
        %v9112 = vlaneseq
        %v9113 = vshrl.u32 %v9112, 7
        %v9114 = vsub.s32 6, %v9113
        %v9115 = vrot.slane %v8664, %v9114
        %9117 = vbcast.lane.b32.xlu0 %v9115, 256
        %v9118 = vpop.permute.xlu0 %9117
        %v9119 = vlaneseq
        %v9120 = vshrl.u32 %v9119, 7
        %v9121 = vsub.s32 7, %v9120
        %v9122 = vrot.slane %v8664, %v9121
        %9124 = vbcast.lane.b32.xlu0 %v9122, 256
        %v9125 = vpop.permute.xlu0 %9124
        %v9126 = vlaneseq
        %v9127 = vshrl.u32 %v9126, 7
        %v9128 = vsub.s32 0, %v9127
        %v9129 = vrot.slane %v8665, %v9128
        %9131 = vbcast.lane.b32.xlu0 %v9129, 256
        %v9132 = vpop.permute.xlu0 %9131
        %v9133 = vlaneseq
        %v9134 = vshrl.u32 %v9133, 7
        %v9135 = vsub.s32 1, %v9134
        %v9136 = vrot.slane %v8665, %v9135
        %9138 = vbcast.lane.b32.xlu0 %v9136, 256
        %v9139 = vpop.permute.xlu0 %9138
        %v9140 = vlaneseq
        %v9141 = vshrl.u32 %v9140, 7
        %v9142 = vsub.s32 2, %v9141
        %v9143 = vrot.slane %v8665, %v9142
        %9145 = vbcast.lane.b32.xlu0 %v9143, 256
        %v9146 = vpop.permute.xlu0 %9145
        %v9147 = vlaneseq
        %v9148 = vshrl.u32 %v9147, 7
        %v9149 = vsub.s32 3, %v9148
        %v9150 = vrot.slane %v8665, %v9149
        %9152 = vbcast.lane.b32.xlu0 %v9150, 256
        %v9153 = vpop.permute.xlu0 %9152
        %v9154 = vlaneseq
        %v9155 = vshrl.u32 %v9154, 7
        %v9156 = vsub.s32 4, %v9155
        %v9157 = vrot.slane %v8665, %v9156
        %9159 = vbcast.lane.b32.xlu0 %v9157, 256
        %v9160 = vpop.permute.xlu0 %9159
        %v9161 = vlaneseq
        %v9162 = vshrl.u32 %v9161, 7
        %v9163 = vsub.s32 5, %v9162
        %v9164 = vrot.slane %v8665, %v9163
        %9166 = vbcast.lane.b32.xlu0 %v9164, 256
        %v9167 = vpop.permute.xlu0 %9166
        %v9168 = vlaneseq
        %v9169 = vshrl.u32 %v9168, 7
        %v9170 = vsub.s32 6, %v9169
        %v9171 = vrot.slane %v8665, %v9170
        %9173 = vbcast.lane.b32.xlu0 %v9171, 256
        %v9174 = vpop.permute.xlu0 %9173
        %v9175 = vlaneseq
        %v9176 = vshrl.u32 %v9175, 7
        %v9177 = vsub.s32 7, %v9176
        %v9178 = vrot.slane %v8665, %v9177
        %9180 = vbcast.lane.b32.xlu0 %v9178, 256
        %v9181 = vpop.permute.xlu0 %9180
        %v9182 = vmul.f32 %v8964, %v3422
        %v9183 = vmul.f32 %v8971, %v3423
        %v9184 = vmul.f32 %v8978, %v3424
        %v9185 = vmul.f32 %v8985, %v3425
        %v9186 = vmul.f32 %v8992, %v3426
        %v9187 = vmul.f32 %v8999, %v3427
        %v9188 = vmul.f32 %v9006, %v3428
        %v9189 = vmul.f32 %v9013, %v3429
        %v9190 = vmul.f32 %v9020, %v3430
        %v9191 = vmul.f32 %v9027, %v3431
        %v9192 = vmul.f32 %v9034, %v3432
        %v9193 = vmul.f32 %v9041, %v3433
        %v9194 = vmul.f32 %v9048, %v3434
        %v9195 = vmul.f32 %v9055, %v3435
        %v9196 = vmul.f32 %v9062, %v3436
        %v9197 = vmul.f32 %v9069, %v3437
        %v9198 = vmul.f32 %v9076, %v3438
        %v9199 = vmul.f32 %v9083, %v3439
        %v9200 = vmul.f32 %v9090, %v3440
        %v9201 = vmul.f32 %v9097, %v3441
        %v9202 = vmul.f32 %v9104, %v3442
        %v9203 = vmul.f32 %v9111, %v3443
        %v9204 = vmul.f32 %v9118, %v3444
        %v9205 = vmul.f32 %v9125, %v3445
        %v9206 = vmul.f32 %v9132, %v3446
        %v9207 = vmul.f32 %v9139, %v3447
        %v9208 = vmul.f32 %v9146, %v3448
        %v9209 = vmul.f32 %v9153, %v3449
        %v9210 = vmul.f32 %v9160, %v3450
        %v9211 = vmul.f32 %v9167, %v3451
        %v9212 = vmul.f32 %v9174, %v3452
        %v9213 = vmul.f32 %v9181, %v3453
        %v9214 = vsel %vm3506, %v9182, 0.0
        %v9215 = vrot.slane %v9214, 4
        %v9216 = vadd.f32 %v9214, %v9215
        %v9217 = vrot.slane %v9216, 2
        %v9218 = vadd.f32 %v9216, %v9217
        %v9219 = vrot.slane %v9218, 1
        %v9220 = vadd.f32 %v9218, %v9219
        %v9221 = vsel %vm3506, %v9183, 0.0
        %v9222 = vrot.slane %v9221, 4
        %v9223 = vadd.f32 %v9221, %v9222
        %v9224 = vrot.slane %v9223, 2
        %v9225 = vadd.f32 %v9223, %v9224
        %v9226 = vrot.slane %v9225, 1
        %v9227 = vadd.f32 %v9225, %v9226
        %v9228 = vsel %vm3506, %v9184, 0.0
        %v9229 = vrot.slane %v9228, 4
        %v9230 = vadd.f32 %v9228, %v9229
        %v9231 = vrot.slane %v9230, 2
        %v9232 = vadd.f32 %v9230, %v9231
        %v9233 = vrot.slane %v9232, 1
        %v9234 = vadd.f32 %v9232, %v9233
        %v9235 = vsel %vm3506, %v9185, 0.0
        %v9236 = vrot.slane %v9235, 4
        %v9237 = vadd.f32 %v9235, %v9236
        %v9238 = vrot.slane %v9237, 2
        %v9239 = vadd.f32 %v9237, %v9238
        %v9240 = vrot.slane %v9239, 1
        %v9241 = vadd.f32 %v9239, %v9240
        %v9242 = vsel %vm3506, %v9186, 0.0
        %v9243 = vrot.slane %v9242, 4
        %v9244 = vadd.f32 %v9242, %v9243
        %v9245 = vrot.slane %v9244, 2
        %v9246 = vadd.f32 %v9244, %v9245
        %v9247 = vrot.slane %v9246, 1
        %v9248 = vadd.f32 %v9246, %v9247
        %v9249 = vsel %vm3506, %v9187, 0.0
        %v9250 = vrot.slane %v9249, 4
        %v9251 = vadd.f32 %v9249, %v9250
        %v9252 = vrot.slane %v9251, 2
        %v9253 = vadd.f32 %v9251, %v9252
        %v9254 = vrot.slane %v9253, 1
        %v9255 = vadd.f32 %v9253, %v9254
        %v9256 = vsel %vm3506, %v9188, 0.0
        %v9257 = vrot.slane %v9256, 4
        %v9258 = vadd.f32 %v9256, %v9257
        %v9259 = vrot.slane %v9258, 2
        %v9260 = vadd.f32 %v9258, %v9259
        %v9261 = vrot.slane %v9260, 1
        %v9262 = vadd.f32 %v9260, %v9261
        %v9263 = vsel %vm3506, %v9189, 0.0
        %v9264 = vrot.slane %v9263, 4
        %v9265 = vadd.f32 %v9263, %v9264
        %v9266 = vrot.slane %v9265, 2
        %v9267 = vadd.f32 %v9265, %v9266
        %v9268 = vrot.slane %v9267, 1
        %v9269 = vadd.f32 %v9267, %v9268
        %v9270 = vsel %vm3506, %v9190, 0.0
        %v9271 = vrot.slane %v9270, 4
        %v9272 = vadd.f32 %v9270, %v9271
        %v9273 = vrot.slane %v9272, 2
        %v9274 = vadd.f32 %v9272, %v9273
        %v9275 = vrot.slane %v9274, 1
        %v9276 = vadd.f32 %v9274, %v9275
        %v9277 = vsel %vm3506, %v9191, 0.0
        %v9278 = vrot.slane %v9277, 4
        %v9279 = vadd.f32 %v9277, %v9278
        %v9280 = vrot.slane %v9279, 2
        %v9281 = vadd.f32 %v9279, %v9280
        %v9282 = vrot.slane %v9281, 1
        %v9283 = vadd.f32 %v9281, %v9282
        %v9284 = vsel %vm3506, %v9192, 0.0
        %v9285 = vrot.slane %v9284, 4
        %v9286 = vadd.f32 %v9284, %v9285
        %v9287 = vrot.slane %v9286, 2
        %v9288 = vadd.f32 %v9286, %v9287
        %v9289 = vrot.slane %v9288, 1
        %v9290 = vadd.f32 %v9288, %v9289
        %v9291 = vsel %vm3506, %v9193, 0.0
        %v9292 = vrot.slane %v9291, 4
        %v9293 = vadd.f32 %v9291, %v9292
        %v9294 = vrot.slane %v9293, 2
        %v9295 = vadd.f32 %v9293, %v9294
        %v9296 = vrot.slane %v9295, 1
        %v9297 = vadd.f32 %v9295, %v9296
        %v9298 = vsel %vm3506, %v9194, 0.0
        %v9299 = vrot.slane %v9298, 4
        %v9300 = vadd.f32 %v9298, %v9299
        %v9301 = vrot.slane %v9300, 2
        %v9302 = vadd.f32 %v9300, %v9301
        %v9303 = vrot.slane %v9302, 1
        %v9304 = vadd.f32 %v9302, %v9303
        %v9305 = vsel %vm3506, %v9195, 0.0
        %v9306 = vrot.slane %v9305, 4
        %v9307 = vadd.f32 %v9305, %v9306
        %v9308 = vrot.slane %v9307, 2
        %v9309 = vadd.f32 %v9307, %v9308
        %v9310 = vrot.slane %v9309, 1
        %v9311 = vadd.f32 %v9309, %v9310
        %v9312 = vsel %vm3506, %v9196, 0.0
        %v9313 = vrot.slane %v9312, 4
        %v9314 = vadd.f32 %v9312, %v9313
        %v9315 = vrot.slane %v9314, 2
        %v9316 = vadd.f32 %v9314, %v9315
        %v9317 = vrot.slane %v9316, 1
        %v9318 = vadd.f32 %v9316, %v9317
        %v9319 = vsel %vm3506, %v9197, 0.0
        %v9320 = vrot.slane %v9319, 4
        %v9321 = vadd.f32 %v9319, %v9320
        %v9322 = vrot.slane %v9321, 2
        %v9323 = vadd.f32 %v9321, %v9322
        %v9324 = vrot.slane %v9323, 1
        %v9325 = vadd.f32 %v9323, %v9324
        %v9326 = vsel %vm3506, %v9198, 0.0
        %v9327 = vrot.slane %v9326, 4
        %v9328 = vadd.f32 %v9326, %v9327
        %v9329 = vrot.slane %v9328, 2
        %v9330 = vadd.f32 %v9328, %v9329
        %v9331 = vrot.slane %v9330, 1
        %v9332 = vadd.f32 %v9330, %v9331
        %v9333 = vsel %vm3506, %v9199, 0.0
        %v9334 = vrot.slane %v9333, 4
        %v9335 = vadd.f32 %v9333, %v9334
        %v9336 = vrot.slane %v9335, 2
        %v9337 = vadd.f32 %v9335, %v9336
        %v9338 = vrot.slane %v9337, 1
        %v9339 = vadd.f32 %v9337, %v9338
        %v9340 = vsel %vm3506, %v9200, 0.0
        %v9341 = vrot.slane %v9340, 4
        %v9342 = vadd.f32 %v9340, %v9341
        %v9343 = vrot.slane %v9342, 2
        %v9344 = vadd.f32 %v9342, %v9343
        %v9345 = vrot.slane %v9344, 1
        %v9346 = vadd.f32 %v9344, %v9345
        %v9347 = vsel %vm3506, %v9201, 0.0
        %v9348 = vrot.slane %v9347, 4
        %v9349 = vadd.f32 %v9347, %v9348
        %v9350 = vrot.slane %v9349, 2
        %v9351 = vadd.f32 %v9349, %v9350
        %v9352 = vrot.slane %v9351, 1
        %v9353 = vadd.f32 %v9351, %v9352
        %v9354 = vsel %vm3506, %v9202, 0.0
        %v9355 = vrot.slane %v9354, 4
        %v9356 = vadd.f32 %v9354, %v9355
        %v9357 = vrot.slane %v9356, 2
        %v9358 = vadd.f32 %v9356, %v9357
        %v9359 = vrot.slane %v9358, 1
        %v9360 = vadd.f32 %v9358, %v9359
        %v9361 = vsel %vm3506, %v9203, 0.0
        %v9362 = vrot.slane %v9361, 4
        %v9363 = vadd.f32 %v9361, %v9362
        %v9364 = vrot.slane %v9363, 2
        %v9365 = vadd.f32 %v9363, %v9364
        %v9366 = vrot.slane %v9365, 1
        %v9367 = vadd.f32 %v9365, %v9366
        %v9368 = vsel %vm3506, %v9204, 0.0
        %v9369 = vrot.slane %v9368, 4
        %v9370 = vadd.f32 %v9368, %v9369
        %v9371 = vrot.slane %v9370, 2
        %v9372 = vadd.f32 %v9370, %v9371
        %v9373 = vrot.slane %v9372, 1
        %v9374 = vadd.f32 %v9372, %v9373
        %v9375 = vsel %vm3506, %v9205, 0.0
        %v9376 = vrot.slane %v9375, 4
        %v9377 = vadd.f32 %v9375, %v9376
        %v9378 = vrot.slane %v9377, 2
        %v9379 = vadd.f32 %v9377, %v9378
        %v9380 = vrot.slane %v9379, 1
        %v9381 = vadd.f32 %v9379, %v9380
        %v9382 = vsel %vm3506, %v9206, 0.0
        %v9383 = vrot.slane %v9382, 4
        %v9384 = vadd.f32 %v9382, %v9383
        %v9385 = vrot.slane %v9384, 2
        %v9386 = vadd.f32 %v9384, %v9385
        %v9387 = vrot.slane %v9386, 1
        %v9388 = vadd.f32 %v9386, %v9387
        %v9389 = vsel %vm3506, %v9207, 0.0
        %v9390 = vrot.slane %v9389, 4
        %v9391 = vadd.f32 %v9389, %v9390
        %v9392 = vrot.slane %v9391, 2
        %v9393 = vadd.f32 %v9391, %v9392
        %v9394 = vrot.slane %v9393, 1
        %v9395 = vadd.f32 %v9393, %v9394
        %v9396 = vsel %vm3506, %v9208, 0.0
        %v9397 = vrot.slane %v9396, 4
        %v9398 = vadd.f32 %v9396, %v9397
        %v9399 = vrot.slane %v9398, 2
        %v9400 = vadd.f32 %v9398, %v9399
        %v9401 = vrot.slane %v9400, 1
        %v9402 = vadd.f32 %v9400, %v9401
        %v9403 = vsel %vm3506, %v9209, 0.0
        %v9404 = vrot.slane %v9403, 4
        %v9405 = vadd.f32 %v9403, %v9404
        %v9406 = vrot.slane %v9405, 2
        %v9407 = vadd.f32 %v9405, %v9406
        %v9408 = vrot.slane %v9407, 1
        %v9409 = vadd.f32 %v9407, %v9408
        %v9410 = vsel %vm3506, %v9210, 0.0
        %v9411 = vrot.slane %v9410, 4
        %v9412 = vadd.f32 %v9410, %v9411
        %v9413 = vrot.slane %v9412, 2
        %v9414 = vadd.f32 %v9412, %v9413
        %v9415 = vrot.slane %v9414, 1
        %v9416 = vadd.f32 %v9414, %v9415
        %v9417 = vsel %vm3506, %v9211, 0.0
        %v9418 = vrot.slane %v9417, 4
        %v9419 = vadd.f32 %v9417, %v9418
        %v9420 = vrot.slane %v9419, 2
        %v9421 = vadd.f32 %v9419, %v9420
        %v9422 = vrot.slane %v9421, 1
        %v9423 = vadd.f32 %v9421, %v9422
        %v9424 = vsel %vm3506, %v9212, 0.0
        %v9425 = vrot.slane %v9424, 4
        %v9426 = vadd.f32 %v9424, %v9425
        %v9427 = vrot.slane %v9426, 2
        %v9428 = vadd.f32 %v9426, %v9427
        %v9429 = vrot.slane %v9428, 1
        %v9430 = vadd.f32 %v9428, %v9429
        %v9431 = vsel %vm3506, %v9213, 0.0
        %v9432 = vrot.slane %v9431, 4
        %v9433 = vadd.f32 %v9431, %v9432
        %v9434 = vrot.slane %v9433, 2
        %v9435 = vadd.f32 %v9433, %v9434
        %v9436 = vrot.slane %v9435, 1
        %v9437 = vadd.f32 %v9435, %v9436
        %v9438 = vadd.f32 %v8736, 0.0
        %v9439 = vadd.f32 %v8809, 0.0
        %v9440 = vadd.f32 %v8882, 0.0
        %v9441 = vadd.f32 %v8955, 0.0
        %v9474 = vsel %vm4647, %v9227, %v9220
        %v9475 = vsel %vm4649, %v9234, %v9474
        %v9476 = vsel %vm4651, %v9241, %v9475
        %v9477 = vsel %vm4653, %v9248, %v9476
        %v9478 = vsel %vm4655, %v9255, %v9477
        %v9479 = vsel %vm4657, %v9262, %v9478
        %v9480 = vsel %vm4659, %v9269, %v9479
        %v9481 = vsel %vm4647, %v9283, %v9276
        %v9482 = vsel %vm4649, %v9290, %v9481
        %v9483 = vsel %vm4651, %v9297, %v9482
        %v9484 = vsel %vm4653, %v9304, %v9483
        %v9485 = vsel %vm4655, %v9311, %v9484
        %v9486 = vsel %vm4657, %v9318, %v9485
        %v9487 = vsel %vm4659, %v9325, %v9486
        %v9488 = vsel %vm4647, %v9339, %v9332
        %v9489 = vsel %vm4649, %v9346, %v9488
        %v9490 = vsel %vm4651, %v9353, %v9489
        %v9491 = vsel %vm4653, %v9360, %v9490
        %v9492 = vsel %vm4655, %v9367, %v9491
        %v9493 = vsel %vm4657, %v9374, %v9492
        %v9494 = vsel %vm4659, %v9381, %v9493
        %v9495 = vsel %vm4647, %v9395, %v9388
        %v9496 = vsel %vm4649, %v9402, %v9495
        %v9497 = vsel %vm4651, %v9409, %v9496
        %v9498 = vsel %vm4653, %v9416, %v9497
        %v9499 = vsel %vm4655, %v9423, %v9498
        %v9500 = vsel %vm4657, %v9430, %v9499
        %v9501 = vsel %vm4659, %v9437, %v9500
        %v9506 = vadd.f32 %v9438, %v9480
        %v9507 = vadd.f32 %v9439, %v9487
        %v9508 = vadd.f32 %v9440, %v9494
        %v9509 = vadd.f32 %v9441, %v9501
        %9510 = vrot.lane.b32.xlu0 %v7515, 96
        %v9511 = vpop.permute.xlu0 %9510
        %9512 = vrot.lane.b32.xlu0 %v7517, 96
        %v9513 = vpop.permute.xlu0 %9512
        %v9514 = vsel %vm3506, %v9511, 0
        %v9516 = vsel %vm3506, %v9513, 0
        %9518 = vmatprep.subr.mxu0 0.0
        %9519 = vmatpush1.xpose.msra.mxu0 %v9516
        %9520 = vmatprep.subr.mxu0 0.0
        %9521 = vmatpush1.xpose.msra.mxu0 0.0
        %9522 = vmatprep.subr.mxu0 0.0
        %9523 = vmatpush1.xpose.msra.mxu0 0.0
        %9524 = vmatprep.subr.mxu0 0.0
        %9525 = vmatpush1.xpose.msra.mxu0 0.0
        %9526 = vmatprep.subr.mxu0 0.0
        %9527 = vmatpush1.xpose.msra.mxu0 0.0
        %9528 = vmatprep.subr.mxu0 0.0
        %9529 = vmatpush1.xpose.msra.mxu0 0.0
        %9530 = vmatprep.subr.mxu0 0.0
        %9531 = vmatpush1.xpose.msra.mxu0 0.0
        %9532 = vmatprep.subr.mxu0 0.0
        %9533 = vmatpush1.xpose.msra.mxu0 0.0
        %9534 = vmatprep.subr.mxu0 0.0
        %9535 = vmatpush1.xpose.msra.mxu0 0.0
        %9536 = vmatprep.subr.mxu0 0.0
        %9537 = vmatpush1.xpose.msra.mxu0 0.0
        %9538 = vmatprep.subr.mxu0 0.0
        %9539 = vmatpush1.xpose.msra.mxu0 0.0
        %9540 = vmatprep.subr.mxu0 0.0
        %9541 = vmatpush1.xpose.msra.mxu0 0.0
        %9542 = vmatprep.subr.mxu0 0.0
        %9543 = vmatpush1.xpose.msra.mxu0 0.0
        %9544 = vmatprep.subr.mxu0 0.0
        %9545 = vmatpush1.xpose.msra.mxu0 0.0
        %9546 = vmatprep.subr.mxu0 0.0
        %9547 = vmatpush1.xpose.msra.mxu0 0.0
        %9548 = vmatprep.subr.mxu0 0.0
        %9549 = vmatpush1.xpose.msra.mxu0 0.0
        %9550 = vmatprep.subr.mxu0 0.0
        %9551 = vmatpush1.xpose.msra.mxu0 0.0
        %9552 = vmatprep.subr.mxu0 0.0
        %9553 = vmatpush1.xpose.msra.mxu0 0.0
        %9554 = vmatprep.subr.mxu0 0.0
        %9555 = vmatpush1.xpose.msra.mxu0 0.0
        %9556 = vmatprep.subr.mxu0 0.0
        %9557 = vmatpush1.xpose.msra.mxu0 0.0
        %9558 = vmatprep.subr.mxu0 0.0
        %9559 = vmatpush1.xpose.msra.mxu0 0.0
        %9560 = vmatprep.subr.mxu0 0.0
        %9561 = vmatpush1.xpose.msra.mxu0 0.0
        %9562 = vmatprep.subr.mxu0 0.0
        %9563 = vmatpush1.xpose.msra.mxu0 0.0
        %9564 = vmatprep.subr.mxu0 0.0
        %9565 = vmatpush1.xpose.msra.mxu0 0.0
        %9566 = vmatprep.subr.mxu0 0.0
        %9567 = vmatpush1.xpose.msra.mxu0 0.0
        %9568 = vmatprep.subr.mxu0 0.0
        %9569 = vmatpush1.xpose.msra.mxu0 0.0
        %9570 = vmatprep.subr.mxu0 0.0
        %9571 = vmatpush1.xpose.msra.mxu0 0.0
        %9572 = vmatprep.subr.mxu0 0.0
        %9573 = vmatpush1.xpose.msra.mxu0 0.0
        %9574 = vmatprep.subr.mxu0 0.0
        %9575 = vmatpush1.xpose.msra.mxu0 0.0
        %9576 = vmatprep.subr.mxu0 0.0
        %9577 = vmatpush1.xpose.msra.mxu0 0.0
        %9578 = vmatprep.subr.mxu0 0.0
        %9579 = vmatpush1.xpose.msra.mxu0 0.0
        %9580 = vmatprep.subr.mxu0 0.0
        %9581 = vmatpush1.xpose.msra.mxu0 0.0
        %9582 = vmatprep.mubr.f32.mxu0 0.0
        %9583 = vmatmul.mubr.f32.gmra.mrb[0].mxu0 %v9514
        %v9584 = vpop.f32.mrb[0].mxu0
        %v9585 = vadd.f32 0.0, %v9584
        %v9586 = vpop.f32.mrb[0].mxu0
        %9587 = vdwg.mxu0
        %9588 = vrot.lane.b32.xlu0 %v7521, 96
        %v9589 = vpop.permute.xlu0 %9588
        %9590 = vrot.lane.b32.xlu0 %v7523, 96
        %v9591 = vpop.permute.xlu0 %9590
        %v9592 = vsel %vm3506, %v9589, 0
        %v9594 = vsel %vm3506, %v9591, 0
        %9596 = vmatprep.subr.mxu0 0.0
        %9597 = vmatpush1.xpose.msra.mxu0 %v9594
        %9598 = vmatprep.subr.mxu0 0.0
        %9599 = vmatpush1.xpose.msra.mxu0 0.0
        %9600 = vmatprep.subr.mxu0 0.0
        %9601 = vmatpush1.xpose.msra.mxu0 0.0
        %9602 = vmatprep.subr.mxu0 0.0
        %9603 = vmatpush1.xpose.msra.mxu0 0.0
        %9604 = vmatprep.subr.mxu0 0.0
        %9605 = vmatpush1.xpose.msra.mxu0 0.0
        %9606 = vmatprep.subr.mxu0 0.0
        %9607 = vmatpush1.xpose.msra.mxu0 0.0
        %9608 = vmatprep.subr.mxu0 0.0
        %9609 = vmatpush1.xpose.msra.mxu0 0.0
        %9610 = vmatprep.subr.mxu0 0.0
        %9611 = vmatpush1.xpose.msra.mxu0 0.0
        %9612 = vmatprep.subr.mxu0 0.0
        %9613 = vmatpush1.xpose.msra.mxu0 0.0
        %9614 = vmatprep.subr.mxu0 0.0
        %9615 = vmatpush1.xpose.msra.mxu0 0.0
        %9616 = vmatprep.subr.mxu0 0.0
        %9617 = vmatpush1.xpose.msra.mxu0 0.0
        %9618 = vmatprep.subr.mxu0 0.0
        %9619 = vmatpush1.xpose.msra.mxu0 0.0
        %9620 = vmatprep.subr.mxu0 0.0
        %9621 = vmatpush1.xpose.msra.mxu0 0.0
        %9622 = vmatprep.subr.mxu0 0.0
        %9623 = vmatpush1.xpose.msra.mxu0 0.0
        %9624 = vmatprep.subr.mxu0 0.0
        %9625 = vmatpush1.xpose.msra.mxu0 0.0
        %9626 = vmatprep.subr.mxu0 0.0
        %9627 = vmatpush1.xpose.msra.mxu0 0.0
        %9628 = vmatprep.subr.mxu0 0.0
        %9629 = vmatpush1.xpose.msra.mxu0 0.0
        %9630 = vmatprep.subr.mxu0 0.0
        %9631 = vmatpush1.xpose.msra.mxu0 0.0
        %9632 = vmatprep.subr.mxu0 0.0
        %9633 = vmatpush1.xpose.msra.mxu0 0.0
        %9634 = vmatprep.subr.mxu0 0.0
        %9635 = vmatpush1.xpose.msra.mxu0 0.0
        %9636 = vmatprep.subr.mxu0 0.0
        %9637 = vmatpush1.xpose.msra.mxu0 0.0
        %9638 = vmatprep.subr.mxu0 0.0
        %9639 = vmatpush1.xpose.msra.mxu0 0.0
        %9640 = vmatprep.subr.mxu0 0.0
        %9641 = vmatpush1.xpose.msra.mxu0 0.0
        %9642 = vmatprep.subr.mxu0 0.0
        %9643 = vmatpush1.xpose.msra.mxu0 0.0
        %9644 = vmatprep.subr.mxu0 0.0
        %9645 = vmatpush1.xpose.msra.mxu0 0.0
        %9646 = vmatprep.subr.mxu0 0.0
        %9647 = vmatpush1.xpose.msra.mxu0 0.0
        %9648 = vmatprep.subr.mxu0 0.0
        %9649 = vmatpush1.xpose.msra.mxu0 0.0
        %9650 = vmatprep.subr.mxu0 0.0
        %9651 = vmatpush1.xpose.msra.mxu0 0.0
        %9652 = vmatprep.subr.mxu0 0.0
        %9653 = vmatpush1.xpose.msra.mxu0 0.0
        %9654 = vmatprep.subr.mxu0 0.0
        %9655 = vmatpush1.xpose.msra.mxu0 0.0
        %9656 = vmatprep.subr.mxu0 0.0
        %9657 = vmatpush1.xpose.msra.mxu0 0.0
        %9658 = vmatprep.subr.mxu0 0.0
        %9659 = vmatpush1.xpose.msra.mxu0 0.0
        %9660 = vmatprep.mubr.f32.mxu0 0.0
        %9661 = vmatmul.mubr.f32.gmra.mrb[0].mxu0 %v9592
        %v9662 = vpop.f32.mrb[0].mxu0
        %v9663 = vadd.f32 0.0, %v9662
        %v9664 = vpop.f32.mrb[0].mxu0
        %9665 = vdwg.mxu0
        %9666 = vrot.lane.b32.xlu0 %v7527, 96
        %v9667 = vpop.permute.xlu0 %9666
        %9668 = vrot.lane.b32.xlu0 %v7529, 96
        %v9669 = vpop.permute.xlu0 %9668
        %v9670 = vsel %vm3506, %v9667, 0
        %v9672 = vsel %vm3506, %v9669, 0
        %9674 = vmatprep.subr.mxu0 0.0
        %9675 = vmatpush1.xpose.msra.mxu0 %v9672
        %9676 = vmatprep.subr.mxu0 0.0
        %9677 = vmatpush1.xpose.msra.mxu0 0.0
        %9678 = vmatprep.subr.mxu0 0.0
        %9679 = vmatpush1.xpose.msra.mxu0 0.0
        %9680 = vmatprep.subr.mxu0 0.0
        %9681 = vmatpush1.xpose.msra.mxu0 0.0
        %9682 = vmatprep.subr.mxu0 0.0
        %9683 = vmatpush1.xpose.msra.mxu0 0.0
        %9684 = vmatprep.subr.mxu0 0.0
        %9685 = vmatpush1.xpose.msra.mxu0 0.0
        %9686 = vmatprep.subr.mxu0 0.0
        %9687 = vmatpush1.xpose.msra.mxu0 0.0
        %9688 = vmatprep.subr.mxu0 0.0
        %9689 = vmatpush1.xpose.msra.mxu0 0.0
        %9690 = vmatprep.subr.mxu0 0.0
        %9691 = vmatpush1.xpose.msra.mxu0 0.0
        %9692 = vmatprep.subr.mxu0 0.0
        %9693 = vmatpush1.xpose.msra.mxu0 0.0
        %9694 = vmatprep.subr.mxu0 0.0
        %9695 = vmatpush1.xpose.msra.mxu0 0.0
        %9696 = vmatprep.subr.mxu0 0.0
        %9697 = vmatpush1.xpose.msra.mxu0 0.0
        %9698 = vmatprep.subr.mxu0 0.0
        %9699 = vmatpush1.xpose.msra.mxu0 0.0
        %9700 = vmatprep.subr.mxu0 0.0
        %9701 = vmatpush1.xpose.msra.mxu0 0.0
        %9702 = vmatprep.subr.mxu0 0.0
        %9703 = vmatpush1.xpose.msra.mxu0 0.0
        %9704 = vmatprep.subr.mxu0 0.0
        %9705 = vmatpush1.xpose.msra.mxu0 0.0
        %9706 = vmatprep.subr.mxu0 0.0
        %9707 = vmatpush1.xpose.msra.mxu0 0.0
        %9708 = vmatprep.subr.mxu0 0.0
        %9709 = vmatpush1.xpose.msra.mxu0 0.0
        %9710 = vmatprep.subr.mxu0 0.0
        %9711 = vmatpush1.xpose.msra.mxu0 0.0
        %9712 = vmatprep.subr.mxu0 0.0
        %9713 = vmatpush1.xpose.msra.mxu0 0.0
        %9714 = vmatprep.subr.mxu0 0.0
        %9715 = vmatpush1.xpose.msra.mxu0 0.0
        %9716 = vmatprep.subr.mxu0 0.0
        %9717 = vmatpush1.xpose.msra.mxu0 0.0
        %9718 = vmatprep.subr.mxu0 0.0
        %9719 = vmatpush1.xpose.msra.mxu0 0.0
        %9720 = vmatprep.subr.mxu0 0.0
        %9721 = vmatpush1.xpose.msra.mxu0 0.0
        %9722 = vmatprep.subr.mxu0 0.0
        %9723 = vmatpush1.xpose.msra.mxu0 0.0
        %9724 = vmatprep.subr.mxu0 0.0
        %9725 = vmatpush1.xpose.msra.mxu0 0.0
        %9726 = vmatprep.subr.mxu0 0.0
        %9727 = vmatpush1.xpose.msra.mxu0 0.0
        %9728 = vmatprep.subr.mxu0 0.0
        %9729 = vmatpush1.xpose.msra.mxu0 0.0
        %9730 = vmatprep.subr.mxu0 0.0
        %9731 = vmatpush1.xpose.msra.mxu0 0.0
        %9732 = vmatprep.subr.mxu0 0.0
        %9733 = vmatpush1.xpose.msra.mxu0 0.0
        %9734 = vmatprep.subr.mxu0 0.0
        %9735 = vmatpush1.xpose.msra.mxu0 0.0
        %9736 = vmatprep.subr.mxu0 0.0
        %9737 = vmatpush1.xpose.msra.mxu0 0.0
        %9738 = vmatprep.mubr.f32.mxu0 0.0
        %9739 = vmatmul.mubr.f32.gmra.mrb[0].mxu0 %v9670
        %v9740 = vpop.f32.mrb[0].mxu0
        %v9741 = vadd.f32 0.0, %v9740
        %v9742 = vpop.f32.mrb[0].mxu0
        %9743 = vdwg.mxu0
        %9744 = vrot.lane.b32.xlu0 %v7533, 96
        %v9745 = vpop.permute.xlu0 %9744
        %9746 = vrot.lane.b32.xlu0 %v7535, 96
        %v9747 = vpop.permute.xlu0 %9746
        %v9748 = vsel %vm3506, %v9745, 0
        %v9750 = vsel %vm3506, %v9747, 0
        %9752 = vmatprep.subr.mxu0 0.0
        %9753 = vmatpush1.xpose.msra.mxu0 %v9750
        %9754 = vmatprep.subr.mxu0 0.0
        %9755 = vmatpush1.xpose.msra.mxu0 0.0
        %9756 = vmatprep.subr.mxu0 0.0
        %9757 = vmatpush1.xpose.msra.mxu0 0.0
        %9758 = vmatprep.subr.mxu0 0.0
        %9759 = vmatpush1.xpose.msra.mxu0 0.0
        %9760 = vmatprep.subr.mxu0 0.0
        %9761 = vmatpush1.xpose.msra.mxu0 0.0
        %9762 = vmatprep.subr.mxu0 0.0
        %9763 = vmatpush1.xpose.msra.mxu0 0.0
        %9764 = vmatprep.subr.mxu0 0.0
        %9765 = vmatpush1.xpose.msra.mxu0 0.0
        %9766 = vmatprep.subr.mxu0 0.0
        %9767 = vmatpush1.xpose.msra.mxu0 0.0
        %9768 = vmatprep.subr.mxu0 0.0
        %9769 = vmatpush1.xpose.msra.mxu0 0.0
        %9770 = vmatprep.subr.mxu0 0.0
        %9771 = vmatpush1.xpose.msra.mxu0 0.0
        %9772 = vmatprep.subr.mxu0 0.0
        %9773 = vmatpush1.xpose.msra.mxu0 0.0
        %9774 = vmatprep.subr.mxu0 0.0
        %9775 = vmatpush1.xpose.msra.mxu0 0.0
        %9776 = vmatprep.subr.mxu0 0.0
        %9777 = vmatpush1.xpose.msra.mxu0 0.0
        %9778 = vmatprep.subr.mxu0 0.0
        %9779 = vmatpush1.xpose.msra.mxu0 0.0
        %9780 = vmatprep.subr.mxu0 0.0
        %9781 = vmatpush1.xpose.msra.mxu0 0.0
        %9782 = vmatprep.subr.mxu0 0.0
        %9783 = vmatpush1.xpose.msra.mxu0 0.0
        %9784 = vmatprep.subr.mxu0 0.0
        %9785 = vmatpush1.xpose.msra.mxu0 0.0
        %9786 = vmatprep.subr.mxu0 0.0
        %9787 = vmatpush1.xpose.msra.mxu0 0.0
        %9788 = vmatprep.subr.mxu0 0.0
        %9789 = vmatpush1.xpose.msra.mxu0 0.0
        %9790 = vmatprep.subr.mxu0 0.0
        %9791 = vmatpush1.xpose.msra.mxu0 0.0
        %9792 = vmatprep.subr.mxu0 0.0
        %9793 = vmatpush1.xpose.msra.mxu0 0.0
        %9794 = vmatprep.subr.mxu0 0.0
        %9795 = vmatpush1.xpose.msra.mxu0 0.0
        %9796 = vmatprep.subr.mxu0 0.0
        %9797 = vmatpush1.xpose.msra.mxu0 0.0
        %9798 = vmatprep.subr.mxu0 0.0
        %9799 = vmatpush1.xpose.msra.mxu0 0.0
        %9800 = vmatprep.subr.mxu0 0.0
        %9801 = vmatpush1.xpose.msra.mxu0 0.0
        %9802 = vmatprep.subr.mxu0 0.0
        %9803 = vmatpush1.xpose.msra.mxu0 0.0
        %9804 = vmatprep.subr.mxu0 0.0
        %9805 = vmatpush1.xpose.msra.mxu0 0.0
        %9806 = vmatprep.subr.mxu0 0.0
        %9807 = vmatpush1.xpose.msra.mxu0 0.0
        %9808 = vmatprep.subr.mxu0 0.0
        %9809 = vmatpush1.xpose.msra.mxu0 0.0
        %9810 = vmatprep.subr.mxu0 0.0
        %9811 = vmatpush1.xpose.msra.mxu0 0.0
        %9812 = vmatprep.subr.mxu0 0.0
        %9813 = vmatpush1.xpose.msra.mxu0 0.0
        %9814 = vmatprep.subr.mxu0 0.0
        %9815 = vmatpush1.xpose.msra.mxu0 0.0
        %9816 = vmatprep.mubr.f32.mxu0 0.0
        %9817 = vmatmul.mubr.f32.gmra.mrb[0].mxu0 %v9748
        %v9818 = vpop.f32.mrb[0].mxu0
        %v9819 = vadd.f32 0.0, %v9818
        %v9820 = vpop.f32.mrb[0].mxu0
        %9821 = vdwg.mxu0
        %9854 = vrot.lane.b32.xlu0 %v8286, 96
        %v9855 = vpop.permute.xlu0 %9854
        %9856 = vrot.lane.b32.xlu0 %v8287, 96
        %v9857 = vpop.permute.xlu0 %9856
        %9858 = vrot.lane.b32.xlu0 %v8288, 96
        %v9859 = vpop.permute.xlu0 %9858
        %9860 = vrot.lane.b32.xlu0 %v8289, 96
        %v9861 = vpop.permute.xlu0 %9860
        %9862 = vrot.lane.b32.xlu0 %v8290, 96
        %v9863 = vpop.permute.xlu0 %9862
        %9864 = vrot.lane.b32.xlu0 %v8291, 96
        %v9865 = vpop.permute.xlu0 %9864
        %9866 = vrot.lane.b32.xlu0 %v8292, 96
        %v9867 = vpop.permute.xlu0 %9866
        %9868 = vrot.lane.b32.xlu0 %v8293, 96
        %v9869 = vpop.permute.xlu0 %9868
        %9870 = vrot.lane.b32.xlu0 %v8294, 96
        %v9871 = vpop.permute.xlu0 %9870
        %9872 = vrot.lane.b32.xlu0 %v8295, 96
        %v9873 = vpop.permute.xlu0 %9872
        %9874 = vrot.lane.b32.xlu0 %v8296, 96
        %v9875 = vpop.permute.xlu0 %9874
        %9876 = vrot.lane.b32.xlu0 %v8297, 96
        %v9877 = vpop.permute.xlu0 %9876
        %9878 = vrot.lane.b32.xlu0 %v8298, 96
        %v9879 = vpop.permute.xlu0 %9878
        %9880 = vrot.lane.b32.xlu0 %v8299, 96
        %v9881 = vpop.permute.xlu0 %9880
        %9882 = vrot.lane.b32.xlu0 %v8300, 96
        %v9883 = vpop.permute.xlu0 %9882
        %9884 = vrot.lane.b32.xlu0 %v8301, 96
        %v9885 = vpop.permute.xlu0 %9884
        %9886 = vrot.lane.b32.xlu0 %v8302, 96
        %v9887 = vpop.permute.xlu0 %9886
        %9888 = vrot.lane.b32.xlu0 %v8303, 96
        %v9889 = vpop.permute.xlu0 %9888
        %9890 = vrot.lane.b32.xlu0 %v8304, 96
        %v9891 = vpop.permute.xlu0 %9890
        %9892 = vrot.lane.b32.xlu0 %v8305, 96
        %v9893 = vpop.permute.xlu0 %9892
        %9894 = vrot.lane.b32.xlu0 %v8306, 96
        %v9895 = vpop.permute.xlu0 %9894
        %9896 = vrot.lane.b32.xlu0 %v8307, 96
        %v9897 = vpop.permute.xlu0 %9896
        %9898 = vrot.lane.b32.xlu0 %v8308, 96
        %v9899 = vpop.permute.xlu0 %9898
        %9900 = vrot.lane.b32.xlu0 %v8309, 96
        %v9901 = vpop.permute.xlu0 %9900
        %9902 = vrot.lane.b32.xlu0 %v8310, 96
        %v9903 = vpop.permute.xlu0 %9902
        %9904 = vrot.lane.b32.xlu0 %v8311, 96
        %v9905 = vpop.permute.xlu0 %9904
        %9906 = vrot.lane.b32.xlu0 %v8312, 96
        %v9907 = vpop.permute.xlu0 %9906
        %9908 = vrot.lane.b32.xlu0 %v8313, 96
        %v9909 = vpop.permute.xlu0 %9908
        %9910 = vrot.lane.b32.xlu0 %v8314, 96
        %v9911 = vpop.permute.xlu0 %9910
        %9912 = vrot.lane.b32.xlu0 %v8315, 96
        %v9913 = vpop.permute.xlu0 %9912
        %9914 = vrot.lane.b32.xlu0 %v8316, 96
        %v9915 = vpop.permute.xlu0 %9914
        %9916 = vrot.lane.b32.xlu0 %v8317, 96
        %v9917 = vpop.permute.xlu0 %9916
        %v9950 = vsel %vm3506, %v9855, 0.0
        %9951 = vadd.xlane.f32.xlu0 %v9950
        %v9952 = vpop.xlane.xlu0 %9951
        %v9953 = vsel %vm3506, %v9857, 0.0
        %9954 = vadd.xlane.f32.xlu0 %v9953
        %v9955 = vpop.xlane.xlu0 %9954
        %v9956 = vsel %vm3506, %v9859, 0.0
        %9957 = vadd.xlane.f32.xlu0 %v9956
        %v9958 = vpop.xlane.xlu0 %9957
        %v9959 = vsel %vm3506, %v9861, 0.0
        %9960 = vadd.xlane.f32.xlu0 %v9959
        %v9961 = vpop.xlane.xlu0 %9960
        %v9962 = vsel %vm3506, %v9863, 0.0
        %9963 = vadd.xlane.f32.xlu0 %v9962
        %v9964 = vpop.xlane.xlu0 %9963
        %v9965 = vsel %vm3506, %v9865, 0.0
        %9966 = vadd.xlane.f32.xlu0 %v9965
        %v9967 = vpop.xlane.xlu0 %9966
        %v9968 = vsel %vm3506, %v9867, 0.0
        %9969 = vadd.xlane.f32.xlu0 %v9968
        %v9970 = vpop.xlane.xlu0 %9969
        %v9971 = vsel %vm3506, %v9869, 0.0
        %9972 = vadd.xlane.f32.xlu0 %v9971
        %v9973 = vpop.xlane.xlu0 %9972
        %v9974 = vsel %vm3506, %v9871, 0.0
        %9975 = vadd.xlane.f32.xlu0 %v9974
        %v9976 = vpop.xlane.xlu0 %9975
        %v9977 = vsel %vm3506, %v9873, 0.0
        %9978 = vadd.xlane.f32.xlu0 %v9977
        %v9979 = vpop.xlane.xlu0 %9978
        %v9980 = vsel %vm3506, %v9875, 0.0
        %9981 = vadd.xlane.f32.xlu0 %v9980
        %v9982 = vpop.xlane.xlu0 %9981
        %v9983 = vsel %vm3506, %v9877, 0.0
        %9984 = vadd.xlane.f32.xlu0 %v9983
        %v9985 = vpop.xlane.xlu0 %9984
        %v9986 = vsel %vm3506, %v9879, 0.0
        %9987 = vadd.xlane.f32.xlu0 %v9986
        %v9988 = vpop.xlane.xlu0 %9987
        %v9989 = vsel %vm3506, %v9881, 0.0
        %9990 = vadd.xlane.f32.xlu0 %v9989
        %v9991 = vpop.xlane.xlu0 %9990
        %v9992 = vsel %vm3506, %v9883, 0.0
        %9993 = vadd.xlane.f32.xlu0 %v9992
        %v9994 = vpop.xlane.xlu0 %9993
        %v9995 = vsel %vm3506, %v9885, 0.0
        %9996 = vadd.xlane.f32.xlu0 %v9995
        %v9997 = vpop.xlane.xlu0 %9996
        %v9998 = vsel %vm3506, %v9887, 0.0
        %9999 = vadd.xlane.f32.xlu0 %v9998
        %v10000 = vpop.xlane.xlu0 %9999
        %v10001 = vsel %vm3506, %v9889, 0.0
        %10002 = vadd.xlane.f32.xlu0 %v10001
        %v10003 = vpop.xlane.xlu0 %10002
        %v10004 = vsel %vm3506, %v9891, 0.0
        %10005 = vadd.xlane.f32.xlu0 %v10004
        %v10006 = vpop.xlane.xlu0 %10005
        %v10007 = vsel %vm3506, %v9893, 0.0
        %10008 = vadd.xlane.f32.xlu0 %v10007
        %v10009 = vpop.xlane.xlu0 %10008
        %v10010 = vsel %vm3506, %v9895, 0.0
        %10011 = vadd.xlane.f32.xlu0 %v10010
        %v10012 = vpop.xlane.xlu0 %10011
        %v10013 = vsel %vm3506, %v9897, 0.0
        %10014 = vadd.xlane.f32.xlu0 %v10013
        %v10015 = vpop.xlane.xlu0 %10014
        %v10016 = vsel %vm3506, %v9899, 0.0
        %10017 = vadd.xlane.f32.xlu0 %v10016
        %v10018 = vpop.xlane.xlu0 %10017
        %v10019 = vsel %vm3506, %v9901, 0.0
        %10020 = vadd.xlane.f32.xlu0 %v10019
        %v10021 = vpop.xlane.xlu0 %10020
        %v10022 = vsel %vm3506, %v9903, 0.0
        %10023 = vadd.xlane.f32.xlu0 %v10022
        %v10024 = vpop.xlane.xlu0 %10023
        %v10025 = vsel %vm3506, %v9905, 0.0
        %10026 = vadd.xlane.f32.xlu0 %v10025
        %v10027 = vpop.xlane.xlu0 %10026
        %v10028 = vsel %vm3506, %v9907, 0.0
        %10029 = vadd.xlane.f32.xlu0 %v10028
        %v10030 = vpop.xlane.xlu0 %10029
        %v10031 = vsel %vm3506, %v9909, 0.0
        %10032 = vadd.xlane.f32.xlu0 %v10031
        %v10033 = vpop.xlane.xlu0 %10032
        %v10034 = vsel %vm3506, %v9911, 0.0
        %10035 = vadd.xlane.f32.xlu0 %v10034
        %v10036 = vpop.xlane.xlu0 %10035
        %v10037 = vsel %vm3506, %v9913, 0.0
        %10038 = vadd.xlane.f32.xlu0 %v10037
        %v10039 = vpop.xlane.xlu0 %10038
        %v10040 = vsel %vm3506, %v9915, 0.0
        %10041 = vadd.xlane.f32.xlu0 %v10040
        %v10042 = vpop.xlane.xlu0 %10041
        %v10043 = vsel %vm3506, %v9917, 0.0
        %10044 = vadd.xlane.f32.xlu0 %v10043
        %v10045 = vpop.xlane.xlu0 %10044
        %v10078 = vlaneseq
        %v10079 = vshrl.u32 %v10078, 7
        %v10080 = vsub.s32 %v4518, %v10079
        %v10081 = vrot.slane %v9952, %v10080
        %v10082 = vlaneseq
        %v10083 = vshrl.u32 %v10082, 7
        %v10084 = vsub.s32 %v4518, %v10083
        %v10085 = vrot.slane %v9955, %v10084
        %v10086 = vlaneseq
        %v10087 = vshrl.u32 %v10086, 7
        %v10088 = vsub.s32 %v4518, %v10087
        %v10089 = vrot.slane %v9958, %v10088
        %v10090 = vlaneseq
        %v10091 = vshrl.u32 %v10090, 7
        %v10092 = vsub.s32 %v4518, %v10091
        %v10093 = vrot.slane %v9961, %v10092
        %v10094 = vlaneseq
        %v10095 = vshrl.u32 %v10094, 7
        %v10096 = vsub.s32 %v4518, %v10095
        %v10097 = vrot.slane %v9964, %v10096
        %v10098 = vlaneseq
        %v10099 = vshrl.u32 %v10098, 7
        %v10100 = vsub.s32 %v4518, %v10099
        %v10101 = vrot.slane %v9967, %v10100
        %v10102 = vlaneseq
        %v10103 = vshrl.u32 %v10102, 7
        %v10104 = vsub.s32 %v4518, %v10103
        %v10105 = vrot.slane %v9970, %v10104
        %v10106 = vlaneseq
        %v10107 = vshrl.u32 %v10106, 7
        %v10108 = vsub.s32 %v4518, %v10107
        %v10109 = vrot.slane %v9973, %v10108
        %v10110 = vlaneseq
        %v10111 = vshrl.u32 %v10110, 7
        %v10112 = vsub.s32 %v4518, %v10111
        %v10113 = vrot.slane %v9976, %v10112
        %v10114 = vlaneseq
        %v10115 = vshrl.u32 %v10114, 7
        %v10116 = vsub.s32 %v4518, %v10115
        %v10117 = vrot.slane %v9979, %v10116
        %v10118 = vlaneseq
        %v10119 = vshrl.u32 %v10118, 7
        %v10120 = vsub.s32 %v4518, %v10119
        %v10121 = vrot.slane %v9982, %v10120
        %v10122 = vlaneseq
        %v10123 = vshrl.u32 %v10122, 7
        %v10124 = vsub.s32 %v4518, %v10123
        %v10125 = vrot.slane %v9985, %v10124
        %v10126 = vlaneseq
        %v10127 = vshrl.u32 %v10126, 7
        %v10128 = vsub.s32 %v4518, %v10127
        %v10129 = vrot.slane %v9988, %v10128
        %v10130 = vlaneseq
        %v10131 = vshrl.u32 %v10130, 7
        %v10132 = vsub.s32 %v4518, %v10131
        %v10133 = vrot.slane %v9991, %v10132
        %v10134 = vlaneseq
        %v10135 = vshrl.u32 %v10134, 7
        %v10136 = vsub.s32 %v4518, %v10135
        %v10137 = vrot.slane %v9994, %v10136
        %v10138 = vlaneseq
        %v10139 = vshrl.u32 %v10138, 7
        %v10140 = vsub.s32 %v4518, %v10139
        %v10141 = vrot.slane %v9997, %v10140
        %v10142 = vlaneseq
        %v10143 = vshrl.u32 %v10142, 7
        %v10144 = vsub.s32 %v4518, %v10143
        %v10145 = vrot.slane %v10000, %v10144
        %v10146 = vlaneseq
        %v10147 = vshrl.u32 %v10146, 7
        %v10148 = vsub.s32 %v4518, %v10147
        %v10149 = vrot.slane %v10003, %v10148
        %v10150 = vlaneseq
        %v10151 = vshrl.u32 %v10150, 7
        %v10152 = vsub.s32 %v4518, %v10151
        %v10153 = vrot.slane %v10006, %v10152
        %v10154 = vlaneseq
        %v10155 = vshrl.u32 %v10154, 7
        %v10156 = vsub.s32 %v4518, %v10155
        %v10157 = vrot.slane %v10009, %v10156
        %v10158 = vlaneseq
        %v10159 = vshrl.u32 %v10158, 7
        %v10160 = vsub.s32 %v4518, %v10159
        %v10161 = vrot.slane %v10012, %v10160
        %v10162 = vlaneseq
        %v10163 = vshrl.u32 %v10162, 7
        %v10164 = vsub.s32 %v4518, %v10163
        %v10165 = vrot.slane %v10015, %v10164
        %v10166 = vlaneseq
        %v10167 = vshrl.u32 %v10166, 7
        %v10168 = vsub.s32 %v4518, %v10167
        %v10169 = vrot.slane %v10018, %v10168
        %v10170 = vlaneseq
        %v10171 = vshrl.u32 %v10170, 7
        %v10172 = vsub.s32 %v4518, %v10171
        %v10173 = vrot.slane %v10021, %v10172
        %v10174 = vlaneseq
        %v10175 = vshrl.u32 %v10174, 7
        %v10176 = vsub.s32 %v4518, %v10175
        %v10177 = vrot.slane %v10024, %v10176
        %v10178 = vlaneseq
        %v10179 = vshrl.u32 %v10178, 7
        %v10180 = vsub.s32 %v4518, %v10179
        %v10181 = vrot.slane %v10027, %v10180
        %v10182 = vlaneseq
        %v10183 = vshrl.u32 %v10182, 7
        %v10184 = vsub.s32 %v4518, %v10183
        %v10185 = vrot.slane %v10030, %v10184
        %v10186 = vlaneseq
        %v10187 = vshrl.u32 %v10186, 7
        %v10188 = vsub.s32 %v4518, %v10187
        %v10189 = vrot.slane %v10033, %v10188
        %v10190 = vlaneseq
        %v10191 = vshrl.u32 %v10190, 7
        %v10192 = vsub.s32 %v4518, %v10191
        %v10193 = vrot.slane %v10036, %v10192
        %v10194 = vlaneseq
        %v10195 = vshrl.u32 %v10194, 7
        %v10196 = vsub.s32 %v4518, %v10195
        %v10197 = vrot.slane %v10039, %v10196
        %v10198 = vlaneseq
        %v10199 = vshrl.u32 %v10198, 7
        %v10200 = vsub.s32 %v4518, %v10199
        %v10201 = vrot.slane %v10042, %v10200
        %v10202 = vlaneseq
        %v10203 = vshrl.u32 %v10202, 7
        %v10204 = vsub.s32 %v4518, %v10203
        %v10205 = vrot.slane %v10045, %v10204
        %v10206 = vsel %vm4647, %v10085, %v10081
        %v10207 = vsel %vm4649, %v10089, %v10206
        %v10208 = vsel %vm4651, %v10093, %v10207
        %v10209 = vsel %vm4653, %v10097, %v10208
        %v10210 = vsel %vm4655, %v10101, %v10209
        %v10211 = vsel %vm4657, %v10105, %v10210
        %v10212 = vsel %vm4659, %v10109, %v10211
        %v10213 = vsel %vm4647, %v10117, %v10113
        %v10214 = vsel %vm4649, %v10121, %v10213
        %v10215 = vsel %vm4651, %v10125, %v10214
        %v10216 = vsel %vm4653, %v10129, %v10215
        %v10217 = vsel %vm4655, %v10133, %v10216
        %v10218 = vsel %vm4657, %v10137, %v10217
        %v10219 = vsel %vm4659, %v10141, %v10218
        %v10220 = vsel %vm4647, %v10149, %v10145
        %v10221 = vsel %vm4649, %v10153, %v10220
        %v10222 = vsel %vm4651, %v10157, %v10221
        %v10223 = vsel %vm4653, %v10161, %v10222
        %v10224 = vsel %vm4655, %v10165, %v10223
        %v10225 = vsel %vm4657, %v10169, %v10224
        %v10226 = vsel %vm4659, %v10173, %v10225
        %v10227 = vsel %vm4647, %v10181, %v10177
        %v10228 = vsel %vm4649, %v10185, %v10227
        %v10229 = vsel %vm4651, %v10189, %v10228
        %v10230 = vsel %vm4653, %v10193, %v10229
        %v10231 = vsel %vm4655, %v10197, %v10230
        %v10232 = vsel %vm4657, %v10201, %v10231
        %v10233 = vsel %vm4659, %v10205, %v10232
        %v10238 = vadd.f32 %v9585, %v10212
        %v10239 = vadd.f32 %v9663, %v10219
        %v10240 = vadd.f32 %v9741, %v10226
        %v10241 = vadd.f32 %v9819, %v10233
        %v10242 = vmul.f32 %v10238, 0.17677669
        %v10243 = vmul.f32 %v10239, 0.17677669
        %v10244 = vmul.f32 %v10240, 0.17677669
        %v10245 = vmul.f32 %v10241, 0.17677669
        %v10246 = vadd.f32 %v10242, %v400
        %v10247 = vadd.f32 %v10243, %v401
        %v10248 = vadd.f32 %v10244, %v402
        %v10249 = vadd.f32 %v10245, %v403
        %v10250 = vsel %vm4698, %v10246, -inf
        %10251 = vmax.xlane.f32.xlu0 %v10250
        %v10252 = vpop.xlane.xlu0 %10251
        %v10253 = vsel %vm4698, %v10247, -inf
        %10254 = vmax.xlane.f32.xlu0 %v10253
        %v10255 = vpop.xlane.xlu0 %10254
        %v10256 = vsel %vm4698, %v10248, -inf
        %10257 = vmax.xlane.f32.xlu0 %v10256
        %v10258 = vpop.xlane.xlu0 %10257
        %v10259 = vsel %vm4698, %v10249, -inf
        %10260 = vmax.xlane.f32.xlu0 %v10259
        %v10261 = vpop.xlane.xlu0 %10260
        %v10262 = vsub.f32 %v10246, %v10252
        %v10263 = vsub.f32 %v10247, %v10255
        %v10264 = vsub.f32 %v10248, %v10258
        %v10265 = vsub.f32 %v10249, %v10261
        %v10266 = vmul.f32 %v10262, 1.442695
        %v10267 = vpow.pop %v10266
        %v10268 = vmul.f32 %v10263, 1.442695
        %v10269 = vpow.pop %v10268
        %v10270 = vmul.f32 %v10264, 1.442695
        %v10271 = vpow.pop %v10270
        %v10272 = vmul.f32 %v10265, 1.442695
        %v10273 = vpow.pop %v10272
        %v10274 = vsel %vm4698, %v10267, 0.0
        %10275 = vadd.xlane.f32.xlu0 %v10274
        %v10276 = vpop.xlane.xlu0 %10275
        %v10277 = vsel %vm4698, %v10269, 0.0
        %10278 = vadd.xlane.f32.xlu0 %v10277
        %v10279 = vpop.xlane.xlu0 %10278
        %v10280 = vsel %vm4698, %v10271, 0.0
        %10281 = vadd.xlane.f32.xlu0 %v10280
        %v10282 = vpop.xlane.xlu0 %10281
        %v10283 = vsel %vm4698, %v10273, 0.0
        %10284 = vadd.xlane.f32.xlu0 %v10283
        %v10285 = vpop.xlane.xlu0 %10284
        %v10286 = vrcp.pop %v10276
        %v10287 = vrcp.pop %v10279
        %v10288 = vrcp.pop %v10282
        %v10289 = vrcp.pop %v10285
        %v10290 = vmul.f32 %v10267, %v10286
        %v10291 = vmul.f32 %v10269, %v10287
        %v10292 = vmul.f32 %v10271, %v10288
        %v10293 = vmul.f32 %v10273, %v10289
        %v10294 = vmul.f32 %v10290, %v408
        %v10295 = vmul.f32 %v10291, %v409
        %v10296 = vmul.f32 %v10292, %v410
        %v10297 = vmul.f32 %v10293, %v411
        %10299 = vrot.lane.b32.xlu0 %v7604, 96
        %v10300 = vpop.permute.xlu0 %10299
        %v10303 = vsel %vm4698, %v10294, 0
        %10305 = vmatprep.subr.mxu0 0.0
        %10306 = vmatpush1.msra.mxu0 %v10300
        %10307 = vmatprep.subr.mxu0 0.0
        %10308 = vmatpush1.msra.mxu0 0.0
        %10309 = vmatprep.subr.mxu0 0.0
        %10310 = vmatpush1.msra.mxu0 0.0
        %10311 = vmatprep.subr.mxu0 0.0
        %10312 = vmatpush1.msra.mxu0 0.0
        %10313 = vmatprep.subr.mxu0 0.0
        %10314 = vmatpush1.msra.mxu0 0.0
        %10315 = vmatprep.subr.mxu0 0.0
        %10316 = vmatpush1.msra.mxu0 0.0
        %10317 = vmatprep.subr.mxu0 0.0
        %10318 = vmatpush1.msra.mxu0 0.0
        %10319 = vmatprep.subr.mxu0 0.0
        %10320 = vmatpush1.msra.mxu0 0.0
        %10321 = vmatprep.subr.mxu0 0.0
        %10322 = vmatpush1.msra.mxu0 0.0
        %10323 = vmatprep.subr.mxu0 0.0
        %10324 = vmatpush1.msra.mxu0 0.0
        %10325 = vmatprep.subr.mxu0 0.0
        %10326 = vmatpush1.msra.mxu0 0.0
        %10327 = vmatprep.subr.mxu0 0.0
        %10328 = vmatpush1.msra.mxu0 0.0
        %10329 = vmatprep.subr.mxu0 0.0
        %10330 = vmatpush1.msra.mxu0 0.0
        %10331 = vmatprep.subr.mxu0 0.0
        %10332 = vmatpush1.msra.mxu0 0.0
        %10333 = vmatprep.subr.mxu0 0.0
        %10334 = vmatpush1.msra.mxu0 0.0
        %10335 = vmatprep.subr.mxu0 0.0
        %10336 = vmatpush1.msra.mxu0 0.0
        %10337 = vmatprep.subr.mxu0 0.0
        %10338 = vmatpush1.msra.mxu0 0.0
        %10339 = vmatprep.subr.mxu0 0.0
        %10340 = vmatpush1.msra.mxu0 0.0
        %10341 = vmatprep.subr.mxu0 0.0
        %10342 = vmatpush1.msra.mxu0 0.0
        %10343 = vmatprep.subr.mxu0 0.0
        %10344 = vmatpush1.msra.mxu0 0.0
        %10345 = vmatprep.subr.mxu0 0.0
        %10346 = vmatpush1.msra.mxu0 0.0
        %10347 = vmatprep.subr.mxu0 0.0
        %10348 = vmatpush1.msra.mxu0 0.0
        %10349 = vmatprep.subr.mxu0 0.0
        %10350 = vmatpush1.msra.mxu0 0.0
        %10351 = vmatprep.subr.mxu0 0.0
        %10352 = vmatpush1.msra.mxu0 0.0
        %10353 = vmatprep.subr.mxu0 0.0
        %10354 = vmatpush1.msra.mxu0 0.0
        %10355 = vmatprep.subr.mxu0 0.0
        %10356 = vmatpush1.msra.mxu0 0.0
        %10357 = vmatprep.subr.mxu0 0.0
        %10358 = vmatpush1.msra.mxu0 0.0
        %10359 = vmatprep.subr.mxu0 0.0
        %10360 = vmatpush1.msra.mxu0 0.0
        %10361 = vmatprep.subr.mxu0 0.0
        %10362 = vmatpush1.msra.mxu0 0.0
        %10363 = vmatprep.subr.mxu0 0.0
        %10364 = vmatpush1.msra.mxu0 0.0
        %10365 = vmatprep.subr.mxu0 0.0
        %10366 = vmatpush1.msra.mxu0 0.0
        %10367 = vmatprep.subr.mxu0 0.0
        %10368 = vmatpush1.msra.mxu0 0.0
        %10369 = vmatprep.mubr.f32.mxu0 0.0
        %10370 = vmatmul.mubr.f32.gmra.mrb[0].mxu0 %v10303
        %v10371 = vpop.f32.mrb[0].mxu0
        %v10372 = vadd.f32 0.0, %v10371
        %v10373 = vpop.f32.mrb[0].mxu0
        %10374 = vdwg.mxu0
        %10376 = vrot.lane.b32.xlu0 %v7610, 96
        %v10377 = vpop.permute.xlu0 %10376
        %v10380 = vsel %vm4698, %v10295, 0
        %10382 = vmatprep.subr.mxu0 0.0
        %10383 = vmatpush1.msra.mxu0 %v10377
        %10384 = vmatprep.subr.mxu0 0.0
        %10385 = vmatpush1.msra.mxu0 0.0
        %10386 = vmatprep.subr.mxu0 0.0
        %10387 = vmatpush1.msra.mxu0 0.0
        %10388 = vmatprep.subr.mxu0 0.0
        %10389 = vmatpush1.msra.mxu0 0.0
        %10390 = vmatprep.subr.mxu0 0.0
        %10391 = vmatpush1.msra.mxu0 0.0
        %10392 = vmatprep.subr.mxu0 0.0
        %10393 = vmatpush1.msra.mxu0 0.0
        %10394 = vmatprep.subr.mxu0 0.0
        %10395 = vmatpush1.msra.mxu0 0.0
        %10396 = vmatprep.subr.mxu0 0.0
        %10397 = vmatpush1.msra.mxu0 0.0
        %10398 = vmatprep.subr.mxu0 0.0
        %10399 = vmatpush1.msra.mxu0 0.0
        %10400 = vmatprep.subr.mxu0 0.0
        %10401 = vmatpush1.msra.mxu0 0.0
        %10402 = vmatprep.subr.mxu0 0.0
        %10403 = vmatpush1.msra.mxu0 0.0
        %10404 = vmatprep.subr.mxu0 0.0
        %10405 = vmatpush1.msra.mxu0 0.0
        %10406 = vmatprep.subr.mxu0 0.0
        %10407 = vmatpush1.msra.mxu0 0.0
        %10408 = vmatprep.subr.mxu0 0.0
        %10409 = vmatpush1.msra.mxu0 0.0
        %10410 = vmatprep.subr.mxu0 0.0
        %10411 = vmatpush1.msra.mxu0 0.0
        %10412 = vmatprep.subr.mxu0 0.0
        %10413 = vmatpush1.msra.mxu0 0.0
        %10414 = vmatprep.subr.mxu0 0.0
        %10415 = vmatpush1.msra.mxu0 0.0
        %10416 = vmatprep.subr.mxu0 0.0
        %10417 = vmatpush1.msra.mxu0 0.0
        %10418 = vmatprep.subr.mxu0 0.0
        %10419 = vmatpush1.msra.mxu0 0.0
        %10420 = vmatprep.subr.mxu0 0.0
        %10421 = vmatpush1.msra.mxu0 0.0
        %10422 = vmatprep.subr.mxu0 0.0
        %10423 = vmatpush1.msra.mxu0 0.0
        %10424 = vmatprep.subr.mxu0 0.0
        %10425 = vmatpush1.msra.mxu0 0.0
        %10426 = vmatprep.subr.mxu0 0.0
        %10427 = vmatpush1.msra.mxu0 0.0
        %10428 = vmatprep.subr.mxu0 0.0
        %10429 = vmatpush1.msra.mxu0 0.0
        %10430 = vmatprep.subr.mxu0 0.0
        %10431 = vmatpush1.msra.mxu0 0.0
        %10432 = vmatprep.subr.mxu0 0.0
        %10433 = vmatpush1.msra.mxu0 0.0
        %10434 = vmatprep.subr.mxu0 0.0
        %10435 = vmatpush1.msra.mxu0 0.0
        %10436 = vmatprep.subr.mxu0 0.0
        %10437 = vmatpush1.msra.mxu0 0.0
        %10438 = vmatprep.subr.mxu0 0.0
        %10439 = vmatpush1.msra.mxu0 0.0
        %10440 = vmatprep.subr.mxu0 0.0
        %10441 = vmatpush1.msra.mxu0 0.0
        %10442 = vmatprep.subr.mxu0 0.0
        %10443 = vmatpush1.msra.mxu0 0.0
        %10444 = vmatprep.subr.mxu0 0.0
        %10445 = vmatpush1.msra.mxu0 0.0
        %10446 = vmatprep.mubr.f32.mxu0 0.0
        %10447 = vmatmul.mubr.f32.gmra.mrb[0].mxu0 %v10380
        %v10448 = vpop.f32.mrb[0].mxu0
        %v10449 = vadd.f32 0.0, %v10448
        %v10450 = vpop.f32.mrb[0].mxu0
        %10451 = vdwg.mxu0
        %10453 = vrot.lane.b32.xlu0 %v7616, 96
        %v10454 = vpop.permute.xlu0 %10453
        %v10457 = vsel %vm4698, %v10296, 0
        %10459 = vmatprep.subr.mxu0 0.0
        %10460 = vmatpush1.msra.mxu0 %v10454
        %10461 = vmatprep.subr.mxu0 0.0
        %10462 = vmatpush1.msra.mxu0 0.0
        %10463 = vmatprep.subr.mxu0 0.0
        %10464 = vmatpush1.msra.mxu0 0.0
        %10465 = vmatprep.subr.mxu0 0.0
        %10466 = vmatpush1.msra.mxu0 0.0
        %10467 = vmatprep.subr.mxu0 0.0
        %10468 = vmatpush1.msra.mxu0 0.0
        %10469 = vmatprep.subr.mxu0 0.0
        %10470 = vmatpush1.msra.mxu0 0.0
        %10471 = vmatprep.subr.mxu0 0.0
        %10472 = vmatpush1.msra.mxu0 0.0
        %10473 = vmatprep.subr.mxu0 0.0
        %10474 = vmatpush1.msra.mxu0 0.0
        %10475 = vmatprep.subr.mxu0 0.0
        %10476 = vmatpush1.msra.mxu0 0.0
        %10477 = vmatprep.subr.mxu0 0.0
        %10478 = vmatpush1.msra.mxu0 0.0
        %10479 = vmatprep.subr.mxu0 0.0
        %10480 = vmatpush1.msra.mxu0 0.0
        %10481 = vmatprep.subr.mxu0 0.0
        %10482 = vmatpush1.msra.mxu0 0.0
        %10483 = vmatprep.subr.mxu0 0.0
        %10484 = vmatpush1.msra.mxu0 0.0
        %10485 = vmatprep.subr.mxu0 0.0
        %10486 = vmatpush1.msra.mxu0 0.0
        %10487 = vmatprep.subr.mxu0 0.0
        %10488 = vmatpush1.msra.mxu0 0.0
        %10489 = vmatprep.subr.mxu0 0.0
        %10490 = vmatpush1.msra.mxu0 0.0
        %10491 = vmatprep.subr.mxu0 0.0
        %10492 = vmatpush1.msra.mxu0 0.0
        %10493 = vmatprep.subr.mxu0 0.0
        %10494 = vmatpush1.msra.mxu0 0.0
        %10495 = vmatprep.subr.mxu0 0.0
        %10496 = vmatpush1.msra.mxu0 0.0
        %10497 = vmatprep.subr.mxu0 0.0
        %10498 = vmatpush1.msra.mxu0 0.0
        %10499 = vmatprep.subr.mxu0 0.0
        %10500 = vmatpush1.msra.mxu0 0.0
        %10501 = vmatprep.subr.mxu0 0.0
        %10502 = vmatpush1.msra.mxu0 0.0
        %10503 = vmatprep.subr.mxu0 0.0
        %10504 = vmatpush1.msra.mxu0 0.0
        %10505 = vmatprep.subr.mxu0 0.0
        %10506 = vmatpush1.msra.mxu0 0.0
        %10507 = vmatprep.subr.mxu0 0.0
        %10508 = vmatpush1.msra.mxu0 0.0
        %10509 = vmatprep.subr.mxu0 0.0
        %10510 = vmatpush1.msra.mxu0 0.0
        %10511 = vmatprep.subr.mxu0 0.0
        %10512 = vmatpush1.msra.mxu0 0.0
        %10513 = vmatprep.subr.mxu0 0.0
        %10514 = vmatpush1.msra.mxu0 0.0
        %10515 = vmatprep.subr.mxu0 0.0
        %10516 = vmatpush1.msra.mxu0 0.0
        %10517 = vmatprep.subr.mxu0 0.0
        %10518 = vmatpush1.msra.mxu0 0.0
        %10519 = vmatprep.subr.mxu0 0.0
        %10520 = vmatpush1.msra.mxu0 0.0
        %10521 = vmatprep.subr.mxu0 0.0
        %10522 = vmatpush1.msra.mxu0 0.0
        %10523 = vmatprep.mubr.f32.mxu0 0.0
        %10524 = vmatmul.mubr.f32.gmra.mrb[0].mxu0 %v10457
        %v10525 = vpop.f32.mrb[0].mxu0
        %v10526 = vadd.f32 0.0, %v10525
        %v10527 = vpop.f32.mrb[0].mxu0
        %10528 = vdwg.mxu0
        %10530 = vrot.lane.b32.xlu0 %v7622, 96
        %v10531 = vpop.permute.xlu0 %10530
        %v10534 = vsel %vm4698, %v10297, 0
        %10536 = vmatprep.subr.mxu0 0.0
        %10537 = vmatpush1.msra.mxu0 %v10531
        %10538 = vmatprep.subr.mxu0 0.0
        %10539 = vmatpush1.msra.mxu0 0.0
        %10540 = vmatprep.subr.mxu0 0.0
        %10541 = vmatpush1.msra.mxu0 0.0
        %10542 = vmatprep.subr.mxu0 0.0
        %10543 = vmatpush1.msra.mxu0 0.0
        %10544 = vmatprep.subr.mxu0 0.0
        %10545 = vmatpush1.msra.mxu0 0.0
        %10546 = vmatprep.subr.mxu0 0.0
        %10547 = vmatpush1.msra.mxu0 0.0
        %10548 = vmatprep.subr.mxu0 0.0
        %10549 = vmatpush1.msra.mxu0 0.0
        %10550 = vmatprep.subr.mxu0 0.0
        %10551 = vmatpush1.msra.mxu0 0.0
        %10552 = vmatprep.subr.mxu0 0.0
        %10553 = vmatpush1.msra.mxu0 0.0
        %10554 = vmatprep.subr.mxu0 0.0
        %10555 = vmatpush1.msra.mxu0 0.0
        %10556 = vmatprep.subr.mxu0 0.0
        %10557 = vmatpush1.msra.mxu0 0.0
        %10558 = vmatprep.subr.mxu0 0.0
        %10559 = vmatpush1.msra.mxu0 0.0
        %10560 = vmatprep.subr.mxu0 0.0
        %10561 = vmatpush1.msra.mxu0 0.0
        %10562 = vmatprep.subr.mxu0 0.0
        %10563 = vmatpush1.msra.mxu0 0.0
        %10564 = vmatprep.subr.mxu0 0.0
        %10565 = vmatpush1.msra.mxu0 0.0
        %10566 = vmatprep.subr.mxu0 0.0
        %10567 = vmatpush1.msra.mxu0 0.0
        %10568 = vmatprep.subr.mxu0 0.0
        %10569 = vmatpush1.msra.mxu0 0.0
        %10570 = vmatprep.subr.mxu0 0.0
        %10571 = vmatpush1.msra.mxu0 0.0
        %10572 = vmatprep.subr.mxu0 0.0
        %10573 = vmatpush1.msra.mxu0 0.0
        %10574 = vmatprep.subr.mxu0 0.0
        %10575 = vmatpush1.msra.mxu0 0.0
        %10576 = vmatprep.subr.mxu0 0.0
        %10577 = vmatpush1.msra.mxu0 0.0
        %10578 = vmatprep.subr.mxu0 0.0
        %10579 = vmatpush1.msra.mxu0 0.0
        %10580 = vmatprep.subr.mxu0 0.0
        %10581 = vmatpush1.msra.mxu0 0.0
        %10582 = vmatprep.subr.mxu0 0.0
        %10583 = vmatpush1.msra.mxu0 0.0
        %10584 = vmatprep.subr.mxu0 0.0
        %10585 = vmatpush1.msra.mxu0 0.0
        %10586 = vmatprep.subr.mxu0 0.0
        %10587 = vmatpush1.msra.mxu0 0.0
        %10588 = vmatprep.subr.mxu0 0.0
        %10589 = vmatpush1.msra.mxu0 0.0
        %10590 = vmatprep.subr.mxu0 0.0
        %10591 = vmatpush1.msra.mxu0 0.0
        %10592 = vmatprep.subr.mxu0 0.0
        %10593 = vmatpush1.msra.mxu0 0.0
        %10594 = vmatprep.subr.mxu0 0.0
        %10595 = vmatpush1.msra.mxu0 0.0
        %10596 = vmatprep.subr.mxu0 0.0
        %10597 = vmatpush1.msra.mxu0 0.0
        %10598 = vmatprep.subr.mxu0 0.0
        %10599 = vmatpush1.msra.mxu0 0.0
        %10600 = vmatprep.mubr.f32.mxu0 0.0
        %10601 = vmatmul.mubr.f32.gmra.mrb[0].mxu0 %v10534
        %v10602 = vpop.f32.mrb[0].mxu0
        %v10603 = vadd.f32 0.0, %v10602
        %v10604 = vpop.f32.mrb[0].mxu0
        %10605 = vdwg.mxu0
        %v10606 = vlaneseq
        %v10607 = vshrl.u32 %v10606, 7
        %v10608 = vsub.s32 0, %v10607
        %v10609 = vrot.slane %v10294, %v10608
        %10611 = vbcast.lane.b32.xlu0 %v10609, 256
        %v10612 = vpop.permute.xlu0 %10611
        %v10613 = vlaneseq
        %v10614 = vshrl.u32 %v10613, 7
        %v10615 = vsub.s32 1, %v10614
        %v10616 = vrot.slane %v10294, %v10615
        %10618 = vbcast.lane.b32.xlu0 %v10616, 256
        %v10619 = vpop.permute.xlu0 %10618
        %v10620 = vlaneseq
        %v10621 = vshrl.u32 %v10620, 7
        %v10622 = vsub.s32 2, %v10621
        %v10623 = vrot.slane %v10294, %v10622
        %10625 = vbcast.lane.b32.xlu0 %v10623, 256
        %v10626 = vpop.permute.xlu0 %10625
        %v10627 = vlaneseq
        %v10628 = vshrl.u32 %v10627, 7
        %v10629 = vsub.s32 3, %v10628
        %v10630 = vrot.slane %v10294, %v10629
        %10632 = vbcast.lane.b32.xlu0 %v10630, 256
        %v10633 = vpop.permute.xlu0 %10632
        %v10634 = vlaneseq
        %v10635 = vshrl.u32 %v10634, 7
        %v10636 = vsub.s32 4, %v10635
        %v10637 = vrot.slane %v10294, %v10636
        %10639 = vbcast.lane.b32.xlu0 %v10637, 256
        %v10640 = vpop.permute.xlu0 %10639
        %v10641 = vlaneseq
        %v10642 = vshrl.u32 %v10641, 7
        %v10643 = vsub.s32 5, %v10642
        %v10644 = vrot.slane %v10294, %v10643
        %10646 = vbcast.lane.b32.xlu0 %v10644, 256
        %v10647 = vpop.permute.xlu0 %10646
        %v10648 = vlaneseq
        %v10649 = vshrl.u32 %v10648, 7
        %v10650 = vsub.s32 6, %v10649
        %v10651 = vrot.slane %v10294, %v10650
        %10653 = vbcast.lane.b32.xlu0 %v10651, 256
        %v10654 = vpop.permute.xlu0 %10653
        %v10655 = vlaneseq
        %v10656 = vshrl.u32 %v10655, 7
        %v10657 = vsub.s32 7, %v10656
        %v10658 = vrot.slane %v10294, %v10657
        %10660 = vbcast.lane.b32.xlu0 %v10658, 256
        %v10661 = vpop.permute.xlu0 %10660
        %v10662 = vlaneseq
        %v10663 = vshrl.u32 %v10662, 7
        %v10664 = vsub.s32 0, %v10663
        %v10665 = vrot.slane %v10295, %v10664
        %10667 = vbcast.lane.b32.xlu0 %v10665, 256
        %v10668 = vpop.permute.xlu0 %10667
        %v10669 = vlaneseq
        %v10670 = vshrl.u32 %v10669, 7
        %v10671 = vsub.s32 1, %v10670
        %v10672 = vrot.slane %v10295, %v10671
        %10674 = vbcast.lane.b32.xlu0 %v10672, 256
        %v10675 = vpop.permute.xlu0 %10674
        %v10676 = vlaneseq
        %v10677 = vshrl.u32 %v10676, 7
        %v10678 = vsub.s32 2, %v10677
        %v10679 = vrot.slane %v10295, %v10678
        %10681 = vbcast.lane.b32.xlu0 %v10679, 256
        %v10682 = vpop.permute.xlu0 %10681
        %v10683 = vlaneseq
        %v10684 = vshrl.u32 %v10683, 7
        %v10685 = vsub.s32 3, %v10684
        %v10686 = vrot.slane %v10295, %v10685
        %10688 = vbcast.lane.b32.xlu0 %v10686, 256
        %v10689 = vpop.permute.xlu0 %10688
        %v10690 = vlaneseq
        %v10691 = vshrl.u32 %v10690, 7
        %v10692 = vsub.s32 4, %v10691
        %v10693 = vrot.slane %v10295, %v10692
        %10695 = vbcast.lane.b32.xlu0 %v10693, 256
        %v10696 = vpop.permute.xlu0 %10695
        %v10697 = vlaneseq
        %v10698 = vshrl.u32 %v10697, 7
        %v10699 = vsub.s32 5, %v10698
        %v10700 = vrot.slane %v10295, %v10699
        %10702 = vbcast.lane.b32.xlu0 %v10700, 256
        %v10703 = vpop.permute.xlu0 %10702
        %v10704 = vlaneseq
        %v10705 = vshrl.u32 %v10704, 7
        %v10706 = vsub.s32 6, %v10705
        %v10707 = vrot.slane %v10295, %v10706
        %10709 = vbcast.lane.b32.xlu0 %v10707, 256
        %v10710 = vpop.permute.xlu0 %10709
        %v10711 = vlaneseq
        %v10712 = vshrl.u32 %v10711, 7
        %v10713 = vsub.s32 7, %v10712
        %v10714 = vrot.slane %v10295, %v10713
        %10716 = vbcast.lane.b32.xlu0 %v10714, 256
        %v10717 = vpop.permute.xlu0 %10716
        %v10718 = vlaneseq
        %v10719 = vshrl.u32 %v10718, 7
        %v10720 = vsub.s32 0, %v10719
        %v10721 = vrot.slane %v10296, %v10720
        %10723 = vbcast.lane.b32.xlu0 %v10721, 256
        %v10724 = vpop.permute.xlu0 %10723
        %v10725 = vlaneseq
        %v10726 = vshrl.u32 %v10725, 7
        %v10727 = vsub.s32 1, %v10726
        %v10728 = vrot.slane %v10296, %v10727
        %10730 = vbcast.lane.b32.xlu0 %v10728, 256
        %v10731 = vpop.permute.xlu0 %10730
        %v10732 = vlaneseq
        %v10733 = vshrl.u32 %v10732, 7
        %v10734 = vsub.s32 2, %v10733
        %v10735 = vrot.slane %v10296, %v10734
        %10737 = vbcast.lane.b32.xlu0 %v10735, 256
        %v10738 = vpop.permute.xlu0 %10737
        %v10739 = vlaneseq
        %v10740 = vshrl.u32 %v10739, 7
        %v10741 = vsub.s32 3, %v10740
        %v10742 = vrot.slane %v10296, %v10741
        %10744 = vbcast.lane.b32.xlu0 %v10742, 256
        %v10745 = vpop.permute.xlu0 %10744
        %v10746 = vlaneseq
        %v10747 = vshrl.u32 %v10746, 7
        %v10748 = vsub.s32 4, %v10747
        %v10749 = vrot.slane %v10296, %v10748
        %10751 = vbcast.lane.b32.xlu0 %v10749, 256
        %v10752 = vpop.permute.xlu0 %10751
        %v10753 = vlaneseq
        %v10754 = vshrl.u32 %v10753, 7
        %v10755 = vsub.s32 5, %v10754
        %v10756 = vrot.slane %v10296, %v10755
        %10758 = vbcast.lane.b32.xlu0 %v10756, 256
        %v10759 = vpop.permute.xlu0 %10758
        %v10760 = vlaneseq
        %v10761 = vshrl.u32 %v10760, 7
        %v10762 = vsub.s32 6, %v10761
        %v10763 = vrot.slane %v10296, %v10762
        %10765 = vbcast.lane.b32.xlu0 %v10763, 256
        %v10766 = vpop.permute.xlu0 %10765
        %v10767 = vlaneseq
        %v10768 = vshrl.u32 %v10767, 7
        %v10769 = vsub.s32 7, %v10768
        %v10770 = vrot.slane %v10296, %v10769
        %10772 = vbcast.lane.b32.xlu0 %v10770, 256
        %v10773 = vpop.permute.xlu0 %10772
        %v10774 = vlaneseq
        %v10775 = vshrl.u32 %v10774, 7
        %v10776 = vsub.s32 0, %v10775
        %v10777 = vrot.slane %v10297, %v10776
        %10779 = vbcast.lane.b32.xlu0 %v10777, 256
        %v10780 = vpop.permute.xlu0 %10779
        %v10781 = vlaneseq
        %v10782 = vshrl.u32 %v10781, 7
        %v10783 = vsub.s32 1, %v10782
        %v10784 = vrot.slane %v10297, %v10783
        %10786 = vbcast.lane.b32.xlu0 %v10784, 256
        %v10787 = vpop.permute.xlu0 %10786
        %v10788 = vlaneseq
        %v10789 = vshrl.u32 %v10788, 7
        %v10790 = vsub.s32 2, %v10789
        %v10791 = vrot.slane %v10297, %v10790
        %10793 = vbcast.lane.b32.xlu0 %v10791, 256
        %v10794 = vpop.permute.xlu0 %10793
        %v10795 = vlaneseq
        %v10796 = vshrl.u32 %v10795, 7
        %v10797 = vsub.s32 3, %v10796
        %v10798 = vrot.slane %v10297, %v10797
        %10800 = vbcast.lane.b32.xlu0 %v10798, 256
        %v10801 = vpop.permute.xlu0 %10800
        %v10802 = vlaneseq
        %v10803 = vshrl.u32 %v10802, 7
        %v10804 = vsub.s32 4, %v10803
        %v10805 = vrot.slane %v10297, %v10804
        %10807 = vbcast.lane.b32.xlu0 %v10805, 256
        %v10808 = vpop.permute.xlu0 %10807
        %v10809 = vlaneseq
        %v10810 = vshrl.u32 %v10809, 7
        %v10811 = vsub.s32 5, %v10810
        %v10812 = vrot.slane %v10297, %v10811
        %10814 = vbcast.lane.b32.xlu0 %v10812, 256
        %v10815 = vpop.permute.xlu0 %10814
        %v10816 = vlaneseq
        %v10817 = vshrl.u32 %v10816, 7
        %v10818 = vsub.s32 6, %v10817
        %v10819 = vrot.slane %v10297, %v10818
        %10821 = vbcast.lane.b32.xlu0 %v10819, 256
        %v10822 = vpop.permute.xlu0 %10821
        %v10823 = vlaneseq
        %v10824 = vshrl.u32 %v10823, 7
        %v10825 = vsub.s32 7, %v10824
        %v10826 = vrot.slane %v10297, %v10825
        %10828 = vbcast.lane.b32.xlu0 %v10826, 256
        %v10829 = vpop.permute.xlu0 %10828
        %v10830 = vmul.f32 %v10612, %v3422
        %v10831 = vmul.f32 %v10619, %v3423
        %v10832 = vmul.f32 %v10626, %v3424
        %v10833 = vmul.f32 %v10633, %v3425
        %v10834 = vmul.f32 %v10640, %v3426
        %v10835 = vmul.f32 %v10647, %v3427
        %v10836 = vmul.f32 %v10654, %v3428
        %v10837 = vmul.f32 %v10661, %v3429
        %v10838 = vmul.f32 %v10668, %v3430
        %v10839 = vmul.f32 %v10675, %v3431
        %v10840 = vmul.f32 %v10682, %v3432
        %v10841 = vmul.f32 %v10689, %v3433
        %v10842 = vmul.f32 %v10696, %v3434
        %v10843 = vmul.f32 %v10703, %v3435
        %v10844 = vmul.f32 %v10710, %v3436
        %v10845 = vmul.f32 %v10717, %v3437
        %v10846 = vmul.f32 %v10724, %v3438
        %v10847 = vmul.f32 %v10731, %v3439
        %v10848 = vmul.f32 %v10738, %v3440
        %v10849 = vmul.f32 %v10745, %v3441
        %v10850 = vmul.f32 %v10752, %v3442
        %v10851 = vmul.f32 %v10759, %v3443
        %v10852 = vmul.f32 %v10766, %v3444
        %v10853 = vmul.f32 %v10773, %v3445
        %v10854 = vmul.f32 %v10780, %v3446
        %v10855 = vmul.f32 %v10787, %v3447
        %v10856 = vmul.f32 %v10794, %v3448
        %v10857 = vmul.f32 %v10801, %v3449
        %v10858 = vmul.f32 %v10808, %v3450
        %v10859 = vmul.f32 %v10815, %v3451
        %v10860 = vmul.f32 %v10822, %v3452
        %v10861 = vmul.f32 %v10829, %v3453
        %v10862 = vsel %vm6943, %v10830, 0.0
        %v10863 = vrot.slane %v10862, 4
        %v10864 = vadd.f32 %v10862, %v10863
        %v10865 = vrot.slane %v10864, 2
        %v10866 = vadd.f32 %v10864, %v10865
        %v10867 = vrot.slane %v10866, 1
        %v10868 = vadd.f32 %v10866, %v10867
        %v10869 = vsel %vm6943, %v10831, 0.0
        %v10870 = vrot.slane %v10869, 4
        %v10871 = vadd.f32 %v10869, %v10870
        %v10872 = vrot.slane %v10871, 2
        %v10873 = vadd.f32 %v10871, %v10872
        %v10874 = vrot.slane %v10873, 1
        %v10875 = vadd.f32 %v10873, %v10874
        %v10876 = vsel %vm6943, %v10832, 0.0
        %v10877 = vrot.slane %v10876, 4
        %v10878 = vadd.f32 %v10876, %v10877
        %v10879 = vrot.slane %v10878, 2
        %v10880 = vadd.f32 %v10878, %v10879
        %v10881 = vrot.slane %v10880, 1
        %v10882 = vadd.f32 %v10880, %v10881
        %v10883 = vsel %vm6943, %v10833, 0.0
        %v10884 = vrot.slane %v10883, 4
        %v10885 = vadd.f32 %v10883, %v10884
        %v10886 = vrot.slane %v10885, 2
        %v10887 = vadd.f32 %v10885, %v10886
        %v10888 = vrot.slane %v10887, 1
        %v10889 = vadd.f32 %v10887, %v10888
        %v10890 = vsel %vm6943, %v10834, 0.0
        %v10891 = vrot.slane %v10890, 4
        %v10892 = vadd.f32 %v10890, %v10891
        %v10893 = vrot.slane %v10892, 2
        %v10894 = vadd.f32 %v10892, %v10893
        %v10895 = vrot.slane %v10894, 1
        %v10896 = vadd.f32 %v10894, %v10895
        %v10897 = vsel %vm6943, %v10835, 0.0
        %v10898 = vrot.slane %v10897, 4
        %v10899 = vadd.f32 %v10897, %v10898
        %v10900 = vrot.slane %v10899, 2
        %v10901 = vadd.f32 %v10899, %v10900
        %v10902 = vrot.slane %v10901, 1
        %v10903 = vadd.f32 %v10901, %v10902
        %v10904 = vsel %vm6943, %v10836, 0.0
        %v10905 = vrot.slane %v10904, 4
        %v10906 = vadd.f32 %v10904, %v10905
        %v10907 = vrot.slane %v10906, 2
        %v10908 = vadd.f32 %v10906, %v10907
        %v10909 = vrot.slane %v10908, 1
        %v10910 = vadd.f32 %v10908, %v10909
        %v10911 = vsel %vm6943, %v10837, 0.0
        %v10912 = vrot.slane %v10911, 4
        %v10913 = vadd.f32 %v10911, %v10912
        %v10914 = vrot.slane %v10913, 2
        %v10915 = vadd.f32 %v10913, %v10914
        %v10916 = vrot.slane %v10915, 1
        %v10917 = vadd.f32 %v10915, %v10916
        %v10918 = vsel %vm6943, %v10838, 0.0
        %v10919 = vrot.slane %v10918, 4
        %v10920 = vadd.f32 %v10918, %v10919
        %v10921 = vrot.slane %v10920, 2
        %v10922 = vadd.f32 %v10920, %v10921
        %v10923 = vrot.slane %v10922, 1
        %v10924 = vadd.f32 %v10922, %v10923
        %v10925 = vsel %vm6943, %v10839, 0.0
        %v10926 = vrot.slane %v10925, 4
        %v10927 = vadd.f32 %v10925, %v10926
        %v10928 = vrot.slane %v10927, 2
        %v10929 = vadd.f32 %v10927, %v10928
        %v10930 = vrot.slane %v10929, 1
        %v10931 = vadd.f32 %v10929, %v10930
        %v10932 = vsel %vm6943, %v10840, 0.0
        %v10933 = vrot.slane %v10932, 4
        %v10934 = vadd.f32 %v10932, %v10933
        %v10935 = vrot.slane %v10934, 2
        %v10936 = vadd.f32 %v10934, %v10935
        %v10937 = vrot.slane %v10936, 1
        %v10938 = vadd.f32 %v10936, %v10937
        %v10939 = vsel %vm6943, %v10841, 0.0
        %v10940 = vrot.slane %v10939, 4
        %v10941 = vadd.f32 %v10939, %v10940
        %v10942 = vrot.slane %v10941, 2
        %v10943 = vadd.f32 %v10941, %v10942
        %v10944 = vrot.slane %v10943, 1
        %v10945 = vadd.f32 %v10943, %v10944
        %v10946 = vsel %vm6943, %v10842, 0.0
        %v10947 = vrot.slane %v10946, 4
        %v10948 = vadd.f32 %v10946, %v10947
        %v10949 = vrot.slane %v10948, 2
        %v10950 = vadd.f32 %v10948, %v10949
        %v10951 = vrot.slane %v10950, 1
        %v10952 = vadd.f32 %v10950, %v10951
        %v10953 = vsel %vm6943, %v10843, 0.0
        %v10954 = vrot.slane %v10953, 4
        %v10955 = vadd.f32 %v10953, %v10954
        %v10956 = vrot.slane %v10955, 2
        %v10957 = vadd.f32 %v10955, %v10956
        %v10958 = vrot.slane %v10957, 1
        %v10959 = vadd.f32 %v10957, %v10958
        %v10960 = vsel %vm6943, %v10844, 0.0
        %v10961 = vrot.slane %v10960, 4
        %v10962 = vadd.f32 %v10960, %v10961
        %v10963 = vrot.slane %v10962, 2
        %v10964 = vadd.f32 %v10962, %v10963
        %v10965 = vrot.slane %v10964, 1
        %v10966 = vadd.f32 %v10964, %v10965
        %v10967 = vsel %vm6943, %v10845, 0.0
        %v10968 = vrot.slane %v10967, 4
        %v10969 = vadd.f32 %v10967, %v10968
        %v10970 = vrot.slane %v10969, 2
        %v10971 = vadd.f32 %v10969, %v10970
        %v10972 = vrot.slane %v10971, 1
        %v10973 = vadd.f32 %v10971, %v10972
        %v10974 = vsel %vm6943, %v10846, 0.0
        %v10975 = vrot.slane %v10974, 4
        %v10976 = vadd.f32 %v10974, %v10975
        %v10977 = vrot.slane %v10976, 2
        %v10978 = vadd.f32 %v10976, %v10977
        %v10979 = vrot.slane %v10978, 1
        %v10980 = vadd.f32 %v10978, %v10979
        %v10981 = vsel %vm6943, %v10847, 0.0
        %v10982 = vrot.slane %v10981, 4
        %v10983 = vadd.f32 %v10981, %v10982
        %v10984 = vrot.slane %v10983, 2
        %v10985 = vadd.f32 %v10983, %v10984
        %v10986 = vrot.slane %v10985, 1
        %v10987 = vadd.f32 %v10985, %v10986
        %v10988 = vsel %vm6943, %v10848, 0.0
        %v10989 = vrot.slane %v10988, 4
        %v10990 = vadd.f32 %v10988, %v10989
        %v10991 = vrot.slane %v10990, 2
        %v10992 = vadd.f32 %v10990, %v10991
        %v10993 = vrot.slane %v10992, 1
        %v10994 = vadd.f32 %v10992, %v10993
        %v10995 = vsel %vm6943, %v10849, 0.0
        %v10996 = vrot.slane %v10995, 4
        %v10997 = vadd.f32 %v10995, %v10996
        %v10998 = vrot.slane %v10997, 2
        %v10999 = vadd.f32 %v10997, %v10998
        %v11000 = vrot.slane %v10999, 1
        %v11001 = vadd.f32 %v10999, %v11000
        %v11002 = vsel %vm6943, %v10850, 0.0
        %v11003 = vrot.slane %v11002, 4
        %v11004 = vadd.f32 %v11002, %v11003
        %v11005 = vrot.slane %v11004, 2
        %v11006 = vadd.f32 %v11004, %v11005
        %v11007 = vrot.slane %v11006, 1
        %v11008 = vadd.f32 %v11006, %v11007
        %v11009 = vsel %vm6943, %v10851, 0.0
        %v11010 = vrot.slane %v11009, 4
        %v11011 = vadd.f32 %v11009, %v11010
        %v11012 = vrot.slane %v11011, 2
        %v11013 = vadd.f32 %v11011, %v11012
        %v11014 = vrot.slane %v11013, 1
        %v11015 = vadd.f32 %v11013, %v11014
        %v11016 = vsel %vm6943, %v10852, 0.0
        %v11017 = vrot.slane %v11016, 4
        %v11018 = vadd.f32 %v11016, %v11017
        %v11019 = vrot.slane %v11018, 2
        %v11020 = vadd.f32 %v11018, %v11019
        %v11021 = vrot.slane %v11020, 1
        %v11022 = vadd.f32 %v11020, %v11021
        %v11023 = vsel %vm6943, %v10853, 0.0
        %v11024 = vrot.slane %v11023, 4
        %v11025 = vadd.f32 %v11023, %v11024
        %v11026 = vrot.slane %v11025, 2
        %v11027 = vadd.f32 %v11025, %v11026
        %v11028 = vrot.slane %v11027, 1
        %v11029 = vadd.f32 %v11027, %v11028
        %v11030 = vsel %vm6943, %v10854, 0.0
        %v11031 = vrot.slane %v11030, 4
        %v11032 = vadd.f32 %v11030, %v11031
        %v11033 = vrot.slane %v11032, 2
        %v11034 = vadd.f32 %v11032, %v11033
        %v11035 = vrot.slane %v11034, 1
        %v11036 = vadd.f32 %v11034, %v11035
        %v11037 = vsel %vm6943, %v10855, 0.0
        %v11038 = vrot.slane %v11037, 4
        %v11039 = vadd.f32 %v11037, %v11038
        %v11040 = vrot.slane %v11039, 2
        %v11041 = vadd.f32 %v11039, %v11040
        %v11042 = vrot.slane %v11041, 1
        %v11043 = vadd.f32 %v11041, %v11042
        %v11044 = vsel %vm6943, %v10856, 0.0
        %v11045 = vrot.slane %v11044, 4
        %v11046 = vadd.f32 %v11044, %v11045
        %v11047 = vrot.slane %v11046, 2
        %v11048 = vadd.f32 %v11046, %v11047
        %v11049 = vrot.slane %v11048, 1
        %v11050 = vadd.f32 %v11048, %v11049
        %v11051 = vsel %vm6943, %v10857, 0.0
        %v11052 = vrot.slane %v11051, 4
        %v11053 = vadd.f32 %v11051, %v11052
        %v11054 = vrot.slane %v11053, 2
        %v11055 = vadd.f32 %v11053, %v11054
        %v11056 = vrot.slane %v11055, 1
        %v11057 = vadd.f32 %v11055, %v11056
        %v11058 = vsel %vm6943, %v10858, 0.0
        %v11059 = vrot.slane %v11058, 4
        %v11060 = vadd.f32 %v11058, %v11059
        %v11061 = vrot.slane %v11060, 2
        %v11062 = vadd.f32 %v11060, %v11061
        %v11063 = vrot.slane %v11062, 1
        %v11064 = vadd.f32 %v11062, %v11063
        %v11065 = vsel %vm6943, %v10859, 0.0
        %v11066 = vrot.slane %v11065, 4
        %v11067 = vadd.f32 %v11065, %v11066
        %v11068 = vrot.slane %v11067, 2
        %v11069 = vadd.f32 %v11067, %v11068
        %v11070 = vrot.slane %v11069, 1
        %v11071 = vadd.f32 %v11069, %v11070
        %v11072 = vsel %vm6943, %v10860, 0.0
        %v11073 = vrot.slane %v11072, 4
        %v11074 = vadd.f32 %v11072, %v11073
        %v11075 = vrot.slane %v11074, 2
        %v11076 = vadd.f32 %v11074, %v11075
        %v11077 = vrot.slane %v11076, 1
        %v11078 = vadd.f32 %v11076, %v11077
        %v11079 = vsel %vm6943, %v10861, 0.0
        %v11080 = vrot.slane %v11079, 4
        %v11081 = vadd.f32 %v11079, %v11080
        %v11082 = vrot.slane %v11081, 2
        %v11083 = vadd.f32 %v11081, %v11082
        %v11084 = vrot.slane %v11083, 1
        %v11085 = vadd.f32 %v11083, %v11084
        %v11086 = vadd.f32 %v9506, %v10372
        %v11087 = vadd.f32 %v9507, %v10449
        %v11088 = vadd.f32 %v9508, %v10526
        %v11089 = vadd.f32 %v9509, %v10603
        %v11122 = vsel %vm4647, %v10875, %v10868
        %v11123 = vsel %vm4649, %v10882, %v11122
        %v11124 = vsel %vm4651, %v10889, %v11123
        %v11125 = vsel %vm4653, %v10896, %v11124
        %v11126 = vsel %vm4655, %v10903, %v11125
        %v11127 = vsel %vm4657, %v10910, %v11126
        %v11128 = vsel %vm4659, %v10917, %v11127
        %v11129 = vsel %vm4647, %v10931, %v10924
        %v11130 = vsel %vm4649, %v10938, %v11129
        %v11131 = vsel %vm4651, %v10945, %v11130
        %v11132 = vsel %vm4653, %v10952, %v11131
        %v11133 = vsel %vm4655, %v10959, %v11132
        %v11134 = vsel %vm4657, %v10966, %v11133
        %v11135 = vsel %vm4659, %v10973, %v11134
        %v11136 = vsel %vm4647, %v10987, %v10980
        %v11137 = vsel %vm4649, %v10994, %v11136
        %v11138 = vsel %vm4651, %v11001, %v11137
        %v11139 = vsel %vm4653, %v11008, %v11138
        %v11140 = vsel %vm4655, %v11015, %v11139
        %v11141 = vsel %vm4657, %v11022, %v11140
        %v11142 = vsel %vm4659, %v11029, %v11141
        %v11143 = vsel %vm4647, %v11043, %v11036
        %v11144 = vsel %vm4649, %v11050, %v11143
        %v11145 = vsel %vm4651, %v11057, %v11144
        %v11146 = vsel %vm4653, %v11064, %v11145
        %v11147 = vsel %vm4655, %v11071, %v11146
        %v11148 = vsel %vm4657, %v11078, %v11147
        %v11149 = vsel %vm4659, %v11085, %v11148
        %11150 = vrot.lane.b32.xlu0 %v11128, 96
        %v11151 = vpop.permute.xlu0 %11150
        %11152 = vrot.lane.b32.xlu0 %v11135, 96
        %v11153 = vpop.permute.xlu0 %11152
        %11154 = vrot.lane.b32.xlu0 %v11142, 96
        %v11155 = vpop.permute.xlu0 %11154
        %11156 = vrot.lane.b32.xlu0 %v11149, 96
        %v11157 = vpop.permute.xlu0 %11156
        %v11162 = vadd.f32 %v11086, %v11151
        %v11163 = vadd.f32 %v11087, %v11153
        %v11164 = vadd.f32 %v11088, %v11155
        %v11165 = vadd.f32 %v11089, %v11157
        %v11166 = vmul.f32 %v11162, 0.5
        %v11167 = vmul.f32 %v11163, 0.5
        %v11168 = vmul.f32 %v11164, 0.5
        %v11169 = vmul.f32 %v11165, 0.5
        %v11170 = vadd.f32 %v11166, %v7606
        %v11171 = vadd.f32 %v11167, %v7612
        %v11172 = vadd.f32 %v11168, %v7618
        %v11173 = vadd.f32 %v11169, %v7624
        %v11174 = vadd.f32 %v11170, %v7418
        %v11175 = vadd.f32 %v11171, %v7423
        %v11176 = vadd.f32 %v11172, %v7428
        %v11177 = vadd.f32 %v11173, %v7433
        %v11178 = vsel %vm3506, %v11174, 0.0
        %11179 = vadd.xlane.f32.xlu0 %v11178
        %v11180 = vpop.xlane.xlu0 %11179
        %v11181 = vsel %vm3506, %v11175, 0.0
        %11182 = vadd.xlane.f32.xlu0 %v11181
        %v11183 = vpop.xlane.xlu0 %11182
        %v11184 = vsel %vm3506, %v11176, 0.0
        %11185 = vadd.xlane.f32.xlu0 %v11184
        %v11186 = vpop.xlane.xlu0 %11185
        %v11187 = vsel %vm3506, %v11177, 0.0
        %11188 = vadd.xlane.f32.xlu0 %v11187
        %v11189 = vpop.xlane.xlu0 %11188
        %v11190 = vmul.f32 %v11180, %v7272
        %v11191 = vmul.f32 %v11183, %v7272
        %v11192 = vmul.f32 %v11186, %v7272
        %v11193 = vmul.f32 %v11189, %v7272
        %v11194 = vsub.f32 %v11174, %v11190
        %v11195 = vsub.f32 %v11175, %v11191
        %v11196 = vsub.f32 %v11176, %v11192
        %v11197 = vsub.f32 %v11177, %v11193
        %v11198 = vmul.f32 %v11194, %v11194
        %v11199 = vmul.f32 %v11195, %v11195
        %v11200 = vmul.f32 %v11196, %v11196
        %v11201 = vmul.f32 %v11197, %v11197
        %v11202 = vsel %vm3506, %v11198, 0.0
        %11203 = vadd.xlane.f32.xlu0 %v11202
        %v11204 = vpop.xlane.xlu0 %11203
        %v11205 = vsel %vm3506, %v11199, 0.0
        %11206 = vadd.xlane.f32.xlu0 %v11205
        %v11207 = vpop.xlane.xlu0 %11206
        %v11208 = vsel %vm3506, %v11200, 0.0
        %11209 = vadd.xlane.f32.xlu0 %v11208
        %v11210 = vpop.xlane.xlu0 %11209
        %v11211 = vsel %vm3506, %v11201, 0.0
        %11212 = vadd.xlane.f32.xlu0 %v11211
        %v11213 = vpop.xlane.xlu0 %11212
        %v11214 = vmul.f32 %v11204, %v7272
        %v11215 = vmul.f32 %v11207, %v7272
        %v11216 = vmul.f32 %v11210, %v7272
        %v11217 = vmul.f32 %v11213, %v7272
        %v11218 = vadd.f32 %v11214, 1e-06
        %v11219 = vadd.f32 %v11215, 1e-06
        %v11220 = vadd.f32 %v11216, 1e-06
        %v11221 = vadd.f32 %v11217, 1e-06
        %v11222 = vrsqrt.pop %v11218
        %v11223 = vrsqrt.pop %v11219
        %v11224 = vrsqrt.pop %v11220
        %v11225 = vrsqrt.pop %v11221
        %v11226 = vmul.f32 %v11194, %v11222
        %v11227 = vmul.f32 %v11195, %v11223
        %v11228 = vmul.f32 %v11196, %v11224
        %v11229 = vmul.f32 %v11197, %v11225
        %v11231 = vlaneseq
        %v11232 = vshrl.u32 %v11231, 7
        %v11233 = vsub.s32 0, %v11232
        %v11234 = vrot.slane %v3472, %v11233
        %v11236 = vmul.f32 %v11226, %v11234
        %v11237 = vmul.f32 %v11227, %v11234
        %v11238 = vmul.f32 %v11228, %v11234
        %v11239 = vmul.f32 %v11229, %v11234
        %v11241 = vlaneseq
        %v11242 = vshrl.u32 %v11241, 7
        %v11243 = vsub.s32 0, %v11242
        %v11244 = vrot.slane %v3474, %v11243
        %v11246 = vadd.f32 %v11236, %v11244
        %v11247 = vadd.f32 %v11237, %v11244
        %v11248 = vadd.f32 %v11238, %v11244
        %v11249 = vadd.f32 %v11239, %v11244
        %v11251 = vlaneseq
        %v11252 = vshrl.u32 %v11251, 7
        %v11253 = vsub.s32 0, %v11252
        %v11254 = vrot.slane %v3484, %v11253
        %v11257 = vsel %vm3506, %v11246, 0
        %v11260 = vsel %vm3506, %v11247, 0
        %v11263 = vsel %vm3506, %v11248, 0
        %v11266 = vsel %vm3506, %v11249, 0
        %11268 = vmatprep.subr.mxu0 0.0
        %11269 = vmatpush1.msra.mxu0 %v3479
        %11270 = vmatprep.subr.mxu0 0.0
        %11271 = vmatpush1.msra.mxu0 %v3480
        %11272 = vmatprep.subr.mxu0 0.0
        %11273 = vmatpush1.msra.mxu0 %v3481
        %11274 = vmatprep.subr.mxu0 0.0
        %11275 = vmatpush1.msra.mxu0 %v3482
        %11276 = vmatprep.subr.mxu0 0.0
        %11277 = vmatpush1.msra.mxu0 0.0
        %11278 = vmatprep.subr.mxu0 0.0
        %11279 = vmatpush1.msra.mxu0 0.0
        %11280 = vmatprep.subr.mxu0 0.0
        %11281 = vmatpush1.msra.mxu0 0.0
        %11282 = vmatprep.subr.mxu0 0.0
        %11283 = vmatpush1.msra.mxu0 0.0
        %11284 = vmatprep.subr.mxu0 0.0
        %11285 = vmatpush1.msra.mxu0 0.0
        %11286 = vmatprep.subr.mxu0 0.0
        %11287 = vmatpush1.msra.mxu0 0.0
        %11288 = vmatprep.subr.mxu0 0.0
        %11289 = vmatpush1.msra.mxu0 0.0
        %11290 = vmatprep.subr.mxu0 0.0
        %11291 = vmatpush1.msra.mxu0 0.0
        %11292 = vmatprep.subr.mxu0 0.0
        %11293 = vmatpush1.msra.mxu0 0.0
        %11294 = vmatprep.subr.mxu0 0.0
        %11295 = vmatpush1.msra.mxu0 0.0
        %11296 = vmatprep.subr.mxu0 0.0
        %11297 = vmatpush1.msra.mxu0 0.0
        %11298 = vmatprep.subr.mxu0 0.0
        %11299 = vmatpush1.msra.mxu0 0.0
        %11300 = vmatprep.subr.mxu0 0.0
        %11301 = vmatpush1.msra.mxu0 0.0
        %11302 = vmatprep.subr.mxu0 0.0
        %11303 = vmatpush1.msra.mxu0 0.0
        %11304 = vmatprep.subr.mxu0 0.0
        %11305 = vmatpush1.msra.mxu0 0.0
        %11306 = vmatprep.subr.mxu0 0.0
        %11307 = vmatpush1.msra.mxu0 0.0
        %11308 = vmatprep.subr.mxu0 0.0
        %11309 = vmatpush1.msra.mxu0 0.0
        %11310 = vmatprep.subr.mxu0 0.0
        %11311 = vmatpush1.msra.mxu0 0.0
        %11312 = vmatprep.subr.mxu0 0.0
        %11313 = vmatpush1.msra.mxu0 0.0
        %11314 = vmatprep.subr.mxu0 0.0
        %11315 = vmatpush1.msra.mxu0 0.0
        %11316 = vmatprep.subr.mxu0 0.0
        %11317 = vmatpush1.msra.mxu0 0.0
        %11318 = vmatprep.subr.mxu0 0.0
        %11319 = vmatpush1.msra.mxu0 0.0
        %11320 = vmatprep.subr.mxu0 0.0
        %11321 = vmatpush1.msra.mxu0 0.0
        %11322 = vmatprep.subr.mxu0 0.0
        %11323 = vmatpush1.msra.mxu0 0.0
        %11324 = vmatprep.subr.mxu0 0.0
        %11325 = vmatpush1.msra.mxu0 0.0
        %11326 = vmatprep.subr.mxu0 0.0
        %11327 = vmatpush1.msra.mxu0 0.0
        %11328 = vmatprep.subr.mxu0 0.0
        %11329 = vmatpush1.msra.mxu0 0.0
        %11330 = vmatprep.subr.mxu0 0.0
        %11331 = vmatpush1.msra.mxu0 0.0
        %11332 = vmatprep.mubr.f32.mxu0 0.0
        %11333 = vmatmul.mubr.f32.gmra.mrb[0].mxu0 %v11257
        %v11334 = vpop.f32.mrb[0].mxu0
        %v11335 = vadd.f32 %v11254, %v11334
        %v11336 = vpop.f32.mrb[0].mxu0
        %11337 = vmatprep.mubr.f32.mxu0 0.0
        %11338 = vmatmul.mubr.f32.gmra.mrb[0].mxu0 %v11260
        %v11339 = vpop.f32.mrb[0].mxu0
        %v11340 = vadd.f32 %v11254, %v11339
        %v11341 = vpop.f32.mrb[0].mxu0
        %11342 = vmatprep.mubr.f32.mxu0 0.0
        %11343 = vmatmul.mubr.f32.gmra.mrb[0].mxu0 %v11263
        %v11344 = vpop.f32.mrb[0].mxu0
        %v11345 = vadd.f32 %v11254, %v11344
        %v11346 = vpop.f32.mrb[0].mxu0
        %11347 = vmatprep.mubr.f32.mxu0 0.0
        %11348 = vmatmul.mubr.f32.gmra.mrb[0].mxu0 %v11266
        %v11349 = vpop.f32.mrb[0].mxu0
        %v11350 = vadd.f32 %v11254, %v11349
        %v11351 = vpop.f32.mrb[0].mxu0
        %11352 = vdwg.mxu0
        %11353 = vst.msk [vmem:[%s386] sm:$0xff] %vm3506, %v11335
        %11354 = vst.msk [vmem:[%s386 + $0x8] sm:$0xff] %vm3506, %v11340
        %11355 = vst.msk [vmem:[%s386 + $0x10] sm:$0xff] %vm3506, %v11345
        %11356 = vst.msk [vmem:[%s386 + $0x18] sm:$0xff] %vm3506, %v11350
        %s11357 = smul.u32 4, %s22
        %p11358 = scmp.lt.s32.totalorder %s11357, 7
        %s11359 = scalar_select %p11358, %s11357, 7
        %s11360 = smul.addr %s11359, 8
        %s11361 = scalar_lea.vmem %s9, %s11360
        // Predicated region
        $region65: #{tpu_custom_call.1} parent=55 // pred_check
          %p11362 = pneg %p239
        $region66: #{tpu_custom_call.1} parent=55 // pred_check_branch
          %11364 = sbr.rel (%p11362) target = $region68
        $region67: #{tpu_custom_call.1} parent=55 // pred_region
          %s11365 = smul.u32 4, %s22
        $region68: #{tpu_custom_call.1} parent=55 // pred_fallthru
          _
      $region56: #{tpu_custom_call.1} parent=5 // pred_fallthru
        _
      %p11366 = scmp.le.s32.totalorder 2, %s17
      // Predicated region
      $region69: #{tpu_custom_call.1} parent=5 // pred_check
        %p11367 = pneg %p11366
      $region70: #{tpu_custom_call.1} parent=5 // pred_check_branch
        %11369 = sbr.rel (%p11367) target = $region72
      $region71: #{tpu_custom_call.1} parent=5 // pred_region
        %s11370 = ssub.s32 %s17, 2
        // Predicated region
        $region73: #{tpu_custom_call.1} parent=71 // pred_check
          %p11371 = pneg %p245
        $region74: #{tpu_custom_call.1} parent=71 // pred_check_branch
          %11373 = sbr.rel (%p11371) target = $region76
        $region75: #{tpu_custom_call.1} parent=71 // pred_region
          %s11374 = smul.u32 4, %s23
          %p11375 = scmp.lt.s32.totalorder %s11374, 7
          %s11376 = scalar_select %p11375, %s11374, 7
          %s11377 = smul.addr %s11376, 8
          %s11378 = scalar_lea.vmem %s9, %s11377
        $region76: #{tpu_custom_call.1} parent=71 // pred_fallthru
          _
      $region72: #{tpu_custom_call.1} parent=5 // pred_fallthru
        _
    $region6: #{tpu_custom_call.1} parent=1 // loop_footer
      %s21 = sadd.s32 1, %s17
    $region7: #{tpu_custom_call.1} parent=1 // loop_footer_branch
      %16 = sbr.rel target = $region3
    $region8: #{tpu_custom_call.1} parent=1 // loop_exit
      _
    %11379 = vsyncpa [#allocation3], 1
    %s11380 = scalar_lea.sflag [#allocation3], 1
    %11381 = vsyncpa %s11380, 1
    %11382 = vsyncpa [#allocation5], 1

</llo_original>
